<compile_context>
chip_gen: v7x
topology: tpu7x:2x2x1
jax: 0.10.0
libtpu: 0.0.40
codegen_flags: <defaults>
</compile_context>

<pallas_src>
import math

import jax
import jax.numpy as jnp
from jax.experimental import pallas as pl
from jax.experimental.pallas import tpu as pltpu

# ------------------------- small synthetic config -------------------------
BATCH = 2            # N
T_SIZE = 4           # frames (t_size)
IMG = 16             # H = W
PATCH = 8            # patch size
IN_CH = 3
GRID = IMG // PATCH
N_TOKENS = GRID * GRID + 1            # L = 5 (cls + patches)
N_DIM = 128                           # lane-dense hidden width
N_HEAD = 4
HEAD_DIM = N_DIM // N_HEAD            # 32
MLP_DIM = int(N_DIM * 4.0)            # mlp_factor = 4.0
BACKBONE_LAYERS = 4
N_DEC_LAYERS = 2                      # n_layers == return_num (scaled down)
NUM_CLASSES = 16
HEAD_PAD = 128                        # lane-dense classifier slab width
ATTN_SCALE = 1.0 / math.sqrt(HEAD_DIM)
DTYPE = jnp.float32
F32 = jnp.float32
BF16 = jnp.bfloat16


# --------------------------- in-kernel helpers ----------------------------
def _ln(x, g, b, eps=1e-5):
    """LayerNorm over last dim, f32 math (v5e-safe VPU path)."""
    mu = jnp.mean(x, axis=-1, keepdims=True)
    xc = x - mu
    var = jnp.mean(xc * xc, axis=-1, keepdims=True)
    return xc * jax.lax.rsqrt(var + eps) * g + b


def _mm(a, w, bias=None):
    """bf16 MXU matmul with f32 accumulation."""
    out = jnp.dot(a.astype(BF16), w.astype(BF16), preferred_element_type=F32)
    if bias is not None:
        out = out + bias
    return out


def _mha(xq, xkv, wq, bq, wk, bk, wv, bv, wo, bo):
    """Multi-head attention on already-LayerNormed values.

    xq: (Lq, C) f32, xkv: (Lk, C) f32.
    wq/wk/wv: refs (H, C, Dh); bq/bk/bv: refs (H, 1, Dh);
    wo: ref (H, Dh, C); bo: value (1, C).
    """
    acc = jnp.zeros((xq.shape[0], wo.shape[2]), F32)
    for h in range(N_HEAD):
        q = _mm(xq, wq[h], bq[h]) * ATTN_SCALE            # (Lq, Dh), scale pre-folded
        k = _mm(xkv, wk[h], bk[h])                         # (Lk, Dh)
        v = _mm(xkv, wv[h], bv[h])                         # (Lk, Dh)
        s = jax.lax.dot_general(q.astype(BF16), k.astype(BF16),
                                (((1,), (1,)), ((), ())),
                                preferred_element_type=F32)  # (Lq, Lk)
        s = s - jnp.max(s, axis=-1, keepdims=True)
        p = jnp.exp(s)
        p = p * pl.reciprocal(jnp.sum(p, axis=-1, keepdims=True), approx=True)
        ov = _mm(p, v)                                     # (Lq, Dh)
        acc = acc + _mm(ov, wo[h])                         # (Lq, C)
    return acc + bo


def _mlp(x, wfc, bfc, wpr, bpr):
    h = _mm(x, wfc[...], bfc[...])
    h = h * jax.nn.sigmoid(1.702 * h)                      # CLIP QuickGELU
    return _mm(h, wpr[...], bpr[...])


# ------------------------------ Pallas kernels ------------------------------
def _vit_block_kernel(x_ref, ln1g, ln1b, wq, bq, wk, bk, wv, bv, wo, bo,
                      ln2g, ln2b, wfc, bfc, wpr, bpr, o_ref):
    """Fused residual attention block for one frame: (L, C) -> (L, C)."""
    x = x_ref[0].astype(F32)                               # (L, C)
    h = _ln(x, ln1g[...], ln1b[...])
    x1 = x + _mha(h, h, wq, bq, wk, bk, wv, bv, wo, bo[...])
    h2 = _ln(x1, ln2g[...], ln2b[...])
    o_ref[0] = (x1 + _mlp(h2, wfc, bfc, wpr, bpr)).astype(o_ref.dtype)


def _dec_block_kernel(x_ref, y_ref, ln1g, ln1b, ln3g, ln3b,
                      wq, bq, wk, bk, wv, bv, wo, bo,
                      ln2g, ln2b, wfc, bfc, wpr, bpr, o_ref):
    """Fused cross-attention decoder layer for one batch element."""
    x = x_ref[0].astype(F32)                               # (1, C) query token
    y = y_ref[0].astype(F32)                               # (Ty, C) memory
    xn = _ln(x, ln1g[...], ln1b[...])
    yn = _ln(y, ln3g[...], ln3b[...])
    x1 = x + _mha(xn, yn, wq, bq, wk, bk, wv, bv, wo, bo[...])
    h2 = _ln(x1, ln2g[...], ln2b[...])
    o_ref[0] = (x1 + _mlp(h2, wfc, bfc, wpr, bpr)).astype(o_ref.dtype)


def _embed_kernel(p_ref, wconv, cls_ref, pos_ref, lng, lnb, o_ref):
    """Patch conv (im2col matmul) + cls concat + pos-embed + ln_pre, one frame."""
    p = p_ref[0].astype(F32)                               # (gh*gw, Cin*P*P)
    tok = _mm(p, wconv[...])                               # (gh*gw, C)
    xs = jnp.concatenate([cls_ref[...].astype(F32), tok], axis=0)
    xs = xs + pos_ref[...].astype(F32)                     # (L, C)
    o_ref[0] = _ln(xs, lng[...], lnb[...]).astype(o_ref.dtype)


def _tconv_kernel(x_ref, w_ref, b_ref, pe_ref, o_ref):
    """Depthwise temporal Conv1d (k=3, pad=1, groups=C) fused with temporal
    pos-embed add.  x: (T, LN, C).  Neighbor taps via static leading-axis slices
    (no concatenate copies)."""
    x = x_ref[...].astype(F32)                             # (T, LN, C)
    w = w_ref[...].astype(F32)                             # (3, C)
    core = x * w[1] + b_ref[...].astype(F32) + pe_ref[...].astype(F32)
    T = x.shape[0]
    first = core[0:1] + x[1:2] * w[2]
    last = core[T - 1:T] + x[T - 2:T - 1] * w[0]
    o_ref[0:1] = first.astype(o_ref.dtype)
    o_ref[T - 1:T] = last.astype(o_ref.dtype)
    if T > 2:
        mid = core[1:T - 1] + x[0:T - 2] * w[0] + x[2:T] * w[2]
        o_ref[1:T - 1] = mid.astype(o_ref.dtype)


def _head_kernel(x_ref, g_ref, b_ref, w_ref, bias_ref, o_ref):
    """Final LayerNorm + classifier linear; output is a lane-dense 128-wide slab."""
    x = x_ref[...].astype(F32)
    h = _ln(x, g_ref[...], b_ref[...])
    o_ref[...] = _mm(h, w_ref[...], bias_ref[...]).astype(o_ref.dtype)


# ------------------------------ wrappers ------------------------------
def _rep_spec(a):
    """Whole-array block replicated across the grid (stays VMEM-resident)."""
    nd = a.ndim
    return pl.BlockSpec(a.shape, lambda *_, _nd=nd: (0,) * _nd)


def _split_w_heads(w):
    # (C, H*Dh) -> (H, C, Dh)
    C = w.shape[0]
    return w.reshape(C, N_HEAD, HEAD_DIM).transpose(1, 0, 2)


def _split_b_heads(b):
    # (H*Dh,) -> (H, 1, Dh)
    return b.reshape(N_HEAD, 1, HEAD_DIM)


def patch_embed(patches, bp):
    NT, P2, KP = patches.shape
    C = N_DIM
    args = (bp["conv_w"], bp["cls"].reshape(1, C), bp["pos"],
            bp["ln_pre_g"].reshape(1, C), bp["ln_pre_b"].reshape(1, C))
    return pl.pallas_call(
        _embed_kernel,
        grid=(NT,),
        in_specs=[pl.BlockSpec((1, P2, KP), lambda i: (i, 0, 0))]
        + [_rep_spec(a) for a in args],
        out_specs=pl.BlockSpec((1, N_TOKENS, C), lambda i: (i, 0, 0)),
        out_shape=jax.ShapeDtypeStruct((NT, N_TOKENS, C), patches.dtype),
        compiler_params=pltpu.CompilerParams(dimension_semantics=("parallel",)),
    )(patches, *args)


def vit_block(xs, p):
    NT, L, C = xs.shape
    wq = _split_w_heads(p["in_w"][:, :C])
    wk = _split_w_heads(p["in_w"][:, C:2 * C])
    wv = _split_w_heads(p["in_w"][:, 2 * C:])
    bq = _split_b_heads(p["in_b"][:C])
    bk = _split_b_heads(p["in_b"][C:2 * C])
    bv = _split_b_heads(p["in_b"][2 * C:])
    wo = p["out_w"].reshape(N_HEAD, HEAD_DIM, C)
    args = (p["ln1_g"].reshape(1, C), p["ln1_b"].reshape(1, C),
            wq, bq, wk, bk, wv, bv, wo, p["out_b"].reshape(1, C),
            p["ln2_g"].reshape(1, C), p["ln2_b"].reshape(1, C),
            p["fc_w"], p["fc_b"].reshape(1, -1),
            p["proj_w"], p["proj_b"].reshape(1, C))
    return pl.pallas_call(
        _vit_block_kernel,
        grid=(NT,),
        in_specs=[pl.BlockSpec((1, L, C), lambda i: (i, 0, 0))]
        + [_rep_spec(a) for a in args],
        out_specs=pl.BlockSpec((1, L, C), lambda i: (i, 0, 0)),
        out_shape=jax.ShapeDtypeStruct((NT, L, C), xs.dtype),
        compiler_params=pltpu.CompilerParams(dimension_semantics=("parallel",)),
    )(xs, *args)


def decoder_block(x, y, p):
    """x: (N, 1, C) query tokens; y: (N, Ty, C) memory -> (N, 1, C)."""
    N, Lq, C = x.shape
    Ty = y.shape[1]
    wq = _split_w_heads(p["q_w"])
    wk = _split_w_heads(p["k_w"])
    wv = _split_w_heads(p["v_w"])
    bq = _split_b_heads(p["q_b"])
    bk = _split_b_heads(p["k_b"])
    bv = _split_b_heads(p["v_b"])
    wo = p["out_w"].reshape(N_HEAD, HEAD_DIM, C)
    args = (p["ln1_g"].reshape(1, C), p["ln1_b"].reshape(1, C),
            p["ln3_g"].reshape(1, C), p["ln3_b"].reshape(1, C),
            wq, bq, wk, bk, wv, bv, wo, p["out_b"].reshape(1, C),
            p["ln2_g"].reshape(1, C), p["ln2_b"].reshape(1, C),
            p["fc_w"], p["fc_b"].reshape(1, -1),
            p["proj_w"], p["proj_b"].reshape(1, C))
    return pl.pallas_call(
        _dec_block_kernel,
        grid=(N,),
        in_specs=[pl.BlockSpec((1, Lq, C), lambda i: (i, 0, 0)),
                  pl.BlockSpec((1, Ty, C), lambda i: (i, 0, 0))]
        + [_rep_spec(a) for a in args],
        out_specs=pl.BlockSpec((1, Lq, C), lambda i: (i, 0, 0)),
        out_shape=jax.ShapeDtypeStruct((N, Lq, C), x.dtype),
        compiler_params=pltpu.CompilerParams(dimension_semantics=("parallel",)),
    )(x, y, *args)


def temporal_dwconv(x_tlc, w, b, pe):
    """x_tlc: (T, L*N, C); w: (3, C); b: (C,); pe: (T, C)."""
    T, LN, C = x_tlc.shape
    args = (w, b.reshape(1, C), pe.reshape(T, 1, C))
    return pl.pallas_call(
        _tconv_kernel,
        grid=(1,),
        in_specs=[_rep_spec(x_tlc)] + [_rep_spec(a) for a in args],
        out_specs=_rep_spec(x_tlc),
        out_shape=jax.ShapeDtypeStruct((T, LN, C), x_tlc.dtype),
        compiler_params=pltpu.CompilerParams(dimension_semantics=("arbitrary",)),
    )(x_tlc, *args)


def head_proj(cls_tok, ln_g, ln_b, w, b):
    """LayerNorm -> Linear(n_dim, num_classes); kernel emits a lane-dense
    128-wide slab, the narrow class slice is done here in JAX."""
    Nrows, C = cls_tok.shape
    nclasses = w.shape[1]
    w_pad = jnp.zeros((C, HEAD_PAD), w.dtype).at[:, :nclasses].set(w)
    b_pad = jnp.zeros((1, HEAD_PAD), b.dtype).at[0, :nclasses].set(b)
    args = (ln_g.reshape(1, C), ln_b.reshape(1, C), w_pad, b_pad)
    out = pl.pallas_call(
        _head_kernel,
        grid=(1,),
        in_specs=[_rep_spec(cls_tok)] + [_rep_spec(a) for a in args],
        out_specs=pl.BlockSpec((Nrows, HEAD_PAD), lambda i: (0, 0)),
        out_shape=jax.ShapeDtypeStruct((Nrows, HEAD_PAD), cls_tok.dtype),
        compiler_params=pltpu.CompilerParams(dimension_semantics=("arbitrary",)),
    )(cls_tok, *args)
    return out[:, :nclasses]


# ------------------------------ model (glue) ------------------------------
def backbone_forward(x, bp):
    """x: (N, C, T, H, W) -> list of return_num features, each (N*T, L, C)."""
    N, Cin, T, H, W = x.shape
    xt = jnp.transpose(x, (0, 2, 1, 3, 4)).reshape(N * T, Cin, H, W)
    gh, gw = H // PATCH, W // PATCH
    # im2col for non-overlapping patch conv (stride == kernel, no bias)
    patches = xt.reshape(N * T, Cin, gh, PATCH, gw, PATCH)
    patches = patches.transpose(0, 2, 4, 1, 3, 5).reshape(
        N * T, gh * gw, Cin * PATCH * PATCH)
    xs = patch_embed(patches, bp)                       # (NT, L, C)

    feats = []
    for blk in bp["blocks"]:
        xs = vit_block(xs, blk)
        feats.append(xs)
    return feats[-N_DEC_LAYERS:]


def evl_decoder_forward(feats, ep, N, T):
    """feats: list of (N*T, L, C) -> (N, num_classes)."""
    NT, L, C = feats[0].shape
    x = jnp.broadcast_to(ep["cls_token"].reshape(1, 1, C), (N, 1, C))

    mems = []
    for i, f in enumerate(feats):
        # depthwise temporal conv (k=3, pad=1, groups=C) + temporal pos embed
        ft = f.reshape(N, T, L, C).transpose(1, 2, 0, 3).reshape(T, L * N, C)
        ft = temporal_dwconv(ft, ep["tconv"][i]["w"], ep["tconv"][i]["b"],
                             ep["pemb_t"][i])
        mem = ft.reshape(T, L, N, C).transpose(2, 0, 1, 3).reshape(N, T * L, C)
        mems.append(mem)

    for i, dp in enumerate(ep["dec"]):
        x = decoder_block(x, mems[i], dp)

    cls_tok = x[:, 0, :]                                 # (N, C)
    return head_proj(cls_tok, ep["proj_ln_g"], ep["proj_ln_b"],
                     ep["head_w"], ep["head_b"])


def evl_forward(params, x):
    feats = backbone_forward(x, params["backbone"])
    return evl_decoder_forward(feats, params["evl"], x.shape[0], x.shape[2])


# ------------------------------ parameter init ------------------------------
def _dense(key, shape, scale=0.02):
    return scale * jax.random.normal(key, shape, dtype=DTYPE)


def init_params(key):
    keys = iter(jax.random.split(key, 512))
    nk = lambda: next(keys)
    ones = lambda n: jnp.ones((n,), DTYPE)
    zeros = lambda n: jnp.zeros((n,), DTYPE)

    def init_vit_block():
        return dict(
            ln1_g=ones(N_DIM), ln1_b=zeros(N_DIM),
            in_w=_dense(nk(), (N_DIM, 3 * N_DIM)), in_b=zeros(3 * N_DIM),
            out_w=_dense(nk(), (N_DIM, N_DIM)), out_b=zeros(N_DIM),
            ln2_g=ones(N_DIM), ln2_b=zeros(N_DIM),
            fc_w=_dense(nk(), (N_DIM, MLP_DIM)), fc_b=zeros(MLP_DIM),
            proj_w=_dense(nk(), (MLP_DIM, N_DIM)), proj_b=zeros(N_DIM),
        )

    def init_dec_layer():
        return dict(
            ln1_g=ones(N_DIM), ln1_b=zeros(N_DIM),
            ln2_g=ones(N_DIM), ln2_b=zeros(N_DIM),
            ln3_g=ones(N_DIM), ln3_b=zeros(N_DIM),
            q_w=_dense(nk(), (N_DIM, N_DIM)), q_b=zeros(N_DIM),
            k_w=_dense(nk(), (N_DIM, N_DIM)), k_b=zeros(N_DIM),
            v_w=_dense(nk(), (N_DIM, N_DIM)), v_b=zeros(N_DIM),
            out_w=_dense(nk(), (N_DIM, N_DIM)), out_b=zeros(N_DIM),
            fc_w=_dense(nk(), (N_DIM, MLP_DIM)), fc_b=zeros(MLP_DIM),
            proj_w=_dense(nk(), (MLP_DIM, N_DIM)), proj_b=zeros(N_DIM),
        )

    backbone = dict(
        conv_w=_dense(nk(), (IN_CH * PATCH * PATCH, N_DIM)),
        cls=_dense(nk(), (N_DIM,)),
        pos=_dense(nk(), (N_TOKENS, N_DIM)),
        ln_pre_g=ones(N_DIM), ln_pre_b=zeros(N_DIM),
        blocks=[init_vit_block() for _ in range(BACKBONE_LAYERS)],
    )
    evl = dict(
        cls_token=_dense(nk(), (N_DIM,)),
        pemb_t=_dense(nk(), (N_DEC_LAYERS, T_SIZE, N_DIM)),
        tconv=[dict(
            # module init is identity ([0,1,0], bias 0); deterministic perturbation
            w=jnp.array([[0.0], [1.0], [0.0]], DTYPE) + _dense(nk(), (3, N_DIM)),
            b=zeros(N_DIM),
        ) for _ in range(N_DEC_LAYERS)],
        dec=[init_dec_layer() for _ in range(N_DEC_LAYERS)],
        proj_ln_g=ones(N_DIM), proj_ln_b=zeros(N_DIM),
        head_w=_dense(nk(), (N_DIM, NUM_CLASSES)), head_b=zeros(NUM_CLASSES),
    )
    return dict(backbone=backbone, evl=evl)


# ---------------------------------- main ----------------------------------
if __name__ == "__main__":
    root = jax.random.PRNGKey(0)
    pkey, xkey = jax.random.split(root)
    params = init_params(pkey)
    x = jax.random.normal(xkey, (BATCH, IN_CH, T_SIZE, IMG, IMG), dtype=DTYPE)

    out = jax.jit(evl_forward)(params, x)
    out = jax.block_until_ready(out)

    assert out.shape == (BATCH, NUM_CLASSES), out.shape
    assert bool(jnp.all(jnp.isfinite(out)))
    print("KERNEL_OK")
</pallas_src>

<mosaic_0001>
module attributes {stable_mosaic.version = 11 : i64} {
  func.func @_embed_kernel(%arg0: i32, %arg1: memref<1x4x192xf32, #tpu.memory_space<vmem>>, %arg2: memref<192x128xf32, #tpu.memory_space<vmem>>, %arg3: memref<1x128xf32, #tpu.memory_space<vmem>>, %arg4: memref<5x128xf32, #tpu.memory_space<vmem>>, %arg5: memref<1x128xf32, #tpu.memory_space<vmem>>, %arg6: memref<1x128xf32, #tpu.memory_space<vmem>>, %arg7: memref<1x5x128xf32, #tpu.memory_space<vmem>>) attributes {dimension_semantics = [#tpu.dimension_semantics<parallel>], iteration_bounds = array<i64: 8>, scalar_prefetch = 0 : i64, scratch_operands = 0 : i64, tpu.core_type = #tpu.core_type<tc>, window_params = [{transform_indices = @transform_0, window_bounds = array<i64: 1, 4, 192>}, {pipeline_mode = #tpu.pipeline_mode<synchronous>, transform_indices = @transform_1, window_bounds = array<i64: 192, 128>}, {pipeline_mode = #tpu.pipeline_mode<synchronous>, transform_indices = @transform_2, window_bounds = array<i64: 1, 128>}, {pipeline_mode = #tpu.pipeline_mode<synchronous>, transform_indices = @transform_3, window_bounds = array<i64: 5, 128>}, {pipeline_mode = #tpu.pipeline_mode<synchronous>, transform_indices = @transform_4, window_bounds = array<i64: 1, 128>}, {pipeline_mode = #tpu.pipeline_mode<synchronous>, transform_indices = @transform_5, window_bounds = array<i64: 1, 128>}, {transform_indices = @transform_6, window_bounds = array<i64: 1, 5, 128>}]} {
    %c0 = arith.constant 0 : index
    %c0_0 = arith.constant 0 : index
    %c0_1 = arith.constant 0 : index
    %0 = vector.load %arg1[%c0, %c0_0, %c0_1] : memref<1x4x192xf32, #tpu.memory_space<vmem>>, vector<1x4x192xf32>
    %1 = vector.shape_cast %0 : vector<1x4x192xf32> to vector<4x192xf32>
    %c0_2 = arith.constant 0 : index
    %c0_3 = arith.constant 0 : index
    %2 = vector.load %arg2[%c0_2, %c0_3] : memref<192x128xf32, #tpu.memory_space<vmem>>, vector<192x128xf32>
    %3 = arith.truncf %1 : vector<4x192xf32> to vector<4x192xbf16>
    %4 = arith.truncf %2 : vector<192x128xf32> to vector<192x128xbf16>
    %cst = arith.constant dense<0.000000e+00> : vector<4x128xf32>
    %5 = tpu.matmul %3, %4, %cst {dimension_numbers = #tpu.dot_dimension_numbers<[1], [0], [0], [1], [0, 0, 1, 1], [], []>} : vector<4x192xbf16>, vector<192x128xbf16>, vector<4x128xf32> -> vector<4x128xf32>
    %c0_4 = arith.constant 0 : index
    %c0_5 = arith.constant 0 : index
    %6 = vector.load %arg3[%c0_4, %c0_5] : memref<1x128xf32, #tpu.memory_space<vmem>>, vector<1x128xf32>
    %7 = tpu.concatenate %6, %5 in 0 : vector<1x128xf32>, vector<4x128xf32> -> vector<5x128xf32>
    %c0_6 = arith.constant 0 : index
    %c0_7 = arith.constant 0 : index
    %8 = vector.load %arg4[%c0_6, %c0_7] : memref<5x128xf32, #tpu.memory_space<vmem>>, vector<5x128xf32>
    %9 = arith.addf %7, %8 : vector<5x128xf32>
    %c0_8 = arith.constant 0 : index
    %c0_9 = arith.constant 0 : index
    %10 = vector.load %arg5[%c0_8, %c0_9] : memref<1x128xf32, #tpu.memory_space<vmem>>, vector<1x128xf32>
    %c0_10 = arith.constant 0 : index
    %c0_11 = arith.constant 0 : index
    %11 = vector.load %arg6[%c0_10, %c0_11] : memref<1x128xf32, #tpu.memory_space<vmem>>, vector<1x128xf32>
    %cst_12 = arith.constant dense<0.000000e+00> : vector<5xf32>
    %12 = vector.multi_reduction <add>, %9, %cst_12 [1] : vector<5x128xf32> to vector<5xf32>
    %13 = vector.shape_cast %12 : vector<5xf32> to vector<5x1xf32>
    %cst_13 = arith.constant 1.280000e+02 : f32
    %14 = vector.broadcast %cst_13 : f32 to vector<5x1xf32>
    %15 = arith.divf %13, %14 : vector<5x1xf32>
    %16 = vector.broadcast %15 : vector<5x1xf32> to vector<5x128xf32>
    %17 = arith.subf %9, %16 : vector<5x128xf32>
    %18 = arith.mulf %17, %17 : vector<5x128xf32>
    %cst_14 = arith.constant dense<0.000000e+00> : vector<5xf32>
    %19 = vector.multi_reduction <add>, %18, %cst_14 [1] : vector<5x128xf32> to vector<5xf32>
    %20 = vector.shape_cast %19 : vector<5xf32> to vector<5x1xf32>
    %cst_15 = arith.constant 1.280000e+02 : f32
    %21 = vector.broadcast %cst_15 : f32 to vector<5x1xf32>
    %22 = arith.divf %20, %21 : vector<5x1xf32>
    %cst_16 = arith.constant 9.99999974E-6 : f32
    %23 = vector.broadcast %cst_16 : f32 to vector<5x1xf32>
    %24 = arith.addf %22, %23 : vector<5x1xf32>
    %25 = math.rsqrt %24 : vector<5x1xf32>
    %26 = vector.broadcast %25 : vector<5x1xf32> to vector<5x128xf32>
    %27 = arith.mulf %17, %26 : vector<5x128xf32>
    %28 = vector.broadcast %10 : vector<1x128xf32> to vector<5x128xf32>
    %29 = arith.mulf %27, %28 : vector<5x128xf32>
    %30 = vector.broadcast %11 : vector<1x128xf32> to vector<5x128xf32>
    %31 = arith.addf %29, %30 : vector<5x128xf32>
    %c0_17 = arith.constant 0 : index
    %c0_18 = arith.constant 0 : index
    %c0_19 = arith.constant 0 : index
    %32 = vector.load %arg7[%c0_17, %c0_18, %c0_19] : memref<1x5x128xf32, #tpu.memory_space<vmem>>, vector<1x5x128xf32>
    %33 = vector.shape_cast %32 : vector<1x5x128xf32> to vector<5x128xf32>
    %34 = vector.shape_cast %31 : vector<5x128xf32> to vector<1x5x128xf32>
    tpu.vector_store %arg7[%c0_17, %c0_18, %c0_19], %34 {strides = array<i32>} : memref<1x5x128xf32, #tpu.memory_space<vmem>>, vector<1x5x128xf32>,
    return
  }
  func.func @transform_0(%arg0: i32) -> (i32, i32, i32) {
    %c0_i32 = arith.constant 0 : i32
    %c0_i32_0 = arith.constant 0 : i32
    %c0_i32_1 = arith.constant 0 : i32
    return %arg0, %c0_i32, %c0_i32_0 : i32, i32, i32
  }
  func.func @transform_1(%arg0: i32) -> (i32, i32) {
    %c0_i32 = arith.constant 0 : i32
    %c0_i32_0 = arith.constant 0 : i32
    %c0_i32_1 = arith.constant 0 : i32
    return %c0_i32, %c0_i32_0 : i32, i32
  }
  func.func @transform_2(%arg0: i32) -> (i32, i32) {
    %c0_i32 = arith.constant 0 : i32
    %c0_i32_0 = arith.constant 0 : i32
    %c0_i32_1 = arith.constant 0 : i32
    return %c0_i32, %c0_i32_0 : i32, i32
  }
  func.func @transform_3(%arg0: i32) -> (i32, i32) {
    %c0_i32 = arith.constant 0 : i32
    %c0_i32_0 = arith.constant 0 : i32
    %c0_i32_1 = arith.constant 0 : i32
    return %c0_i32, %c0_i32_0 : i32, i32
  }
  func.func @transform_4(%arg0: i32) -> (i32, i32) {
    %c0_i32 = arith.constant 0 : i32
    %c0_i32_0 = arith.constant 0 : i32
    %c0_i32_1 = arith.constant 0 : i32
    return %c0_i32, %c0_i32_0 : i32, i32
  }
  func.func @transform_5(%arg0: i32) -> (i32, i32) {
    %c0_i32 = arith.constant 0 : i32
    %c0_i32_0 = arith.constant 0 : i32
    %c0_i32_1 = arith.constant 0 : i32
    return %c0_i32, %c0_i32_0 : i32, i32
  }
  func.func @transform_6(%arg0: i32) -> (i32, i32, i32) {
    %c0_i32 = arith.constant 0 : i32
    %c0_i32_0 = arith.constant 0 : i32
    %c0_i32_1 = arith.constant 0 : i32
    return %arg0, %c0_i32, %c0_i32_0 : i32, i32, i32
  }
}

module attributes {stable_mosaic.version = 11 : i64} {
  func.func @_vit_block_kernel(%arg0: i32, %arg1: memref<1x5x128xf32, #tpu.memory_space<vmem>>, %arg2: memref<1x128xf32, #tpu.memory_space<vmem>>, %arg3: memref<1x128xf32, #tpu.memory_space<vmem>>, %arg4: memref<4x128x32xf32, #tpu.memory_space<vmem>>, %arg5: memref<4x1x32xf32, #tpu.memory_space<vmem>>, %arg6: memref<4x128x32xf32, #tpu.memory_space<vmem>>, %arg7: memref<4x1x32xf32, #tpu.memory_space<vmem>>, %arg8: memref<4x128x32xf32, #tpu.memory_space<vmem>>, %arg9: memref<4x1x32xf32, #tpu.memory_space<vmem>>, %arg10: memref<4x32x128xf32, #tpu.memory_space<vmem>>, %arg11: memref<1x128xf32, #tpu.memory_space<vmem>>, %arg12: memref<1x128xf32, #tpu.memory_space<vmem>>, %arg13: memref<1x128xf32, #tpu.memory_space<vmem>>, %arg14: memref<128x512xf32, #tpu.memory_space<vmem>>, %arg15: memref<1x512xf32, #tpu.memory_space<vmem>>, %arg16: memref<512x128xf32, #tpu.memory_space<vmem>>, %arg17: memref<1x128xf32, #tpu.memory_space<vmem>>, %arg18: memref<1x5x128xf32, #tpu.memory_space<vmem>>) attributes {dimension_semantics = [#tpu.dimension_semantics<parallel>], iteration_bounds = array<i64: 8>, scalar_prefetch = 0 : i64, scratch_operands = 0 : i64, tpu.core_type = #tpu.core_type<tc>, window_params = [{transform_indices = @transform_0, window_bounds = array<i64: 1, 5, 128>}, {pipeline_mode = #tpu.pipeline_mode<synchronous>, transform_indices = @transform_1, window_bounds = array<i64: 1, 128>}, {pipeline_mode = #tpu.pipeline_mode<synchronous>, transform_indices = @transform_2, window_bounds = array<i64: 1, 128>}, {pipeline_mode = #tpu.pipeline_mode<synchronous>, transform_indices = @transform_3, window_bounds = array<i64: 4, 128, 32>}, {pipeline_mode = #tpu.pipeline_mode<synchronous>, transform_indices = @transform_4, window_bounds = array<i64: 4, 1, 32>}, {pipeline_mode = #tpu.pipeline_mode<synchronous>, transform_indices = @transform_5, window_bounds = array<i64: 4, 128, 32>}, {pipeline_mode = #tpu.pipeline_mode<synchronous>, transform_indices = @transform_6, window_bounds = array<i64: 4, 1, 32>}, {pipeline_mode = #tpu.pipeline_mode<synchronous>, transform_indices = @transform_7, window_bounds = array<i64: 4, 128, 32>}, {pipeline_mode = #tpu.pipeline_mode<synchronous>, transform_indices = @transform_8, window_bounds = array<i64: 4, 1, 32>}, {pipeline_mode = #tpu.pipeline_mode<synchronous>, transform_indices = @transform_9, window_bounds = array<i64: 4, 32, 128>}, {pipeline_mode = #tpu.pipeline_mode<synchronous>, transform_indices = @transform_10, window_bounds = array<i64: 1, 128>}, {pipeline_mode = #tpu.pipeline_mode<synchronous>, transform_indices = @transform_11, window_bounds = array<i64: 1, 128>}, {pipeline_mode = #tpu.pipeline_mode<synchronous>, transform_indices = @transform_12, window_bounds = array<i64: 1, 128>}, {pipeline_mode = #tpu.pipeline_mode<synchronous>, transform_indices = @transform_13, window_bounds = array<i64: 128, 512>}, {pipeline_mode = #tpu.pipeline_mode<synchronous>, transform_indices = @transform_14, window_bounds = array<i64: 1, 512>}, {pipeline_mode = #tpu.pipeline_mode<synchronous>, transform_indices = @transform_15, window_bounds = array<i64: 512, 128>}, {pipeline_mode = #tpu.pipeline_mode<synchronous>, transform_indices = @transform_16, window_bounds = array<i64: 1, 128>}, {transform_indices = @transform_17, window_bounds = array<i64: 1, 5, 128>}]} {
    %c0 = arith.constant 0 : index
    %c0_0 = arith.constant 0 : index
    %c0_1 = arith.constant 0 : index
    %0 = vector.load %arg1[%c0, %c0_0, %c0_1] : memref<1x5x128xf32, #tpu.memory_space<vmem>>, vector<1x5x128xf32>
    %1 = vector.shape_cast %0 : vector<1x5x128xf32> to vector<5x128xf32>
    %c0_2 = arith.constant 0 : index
    %c0_3 = arith.constant 0 : index
    %2 = vector.load %arg2[%c0_2, %c0_3] : memref<1x128xf32, #tpu.memory_space<vmem>>, vector<1x128xf32>
    %c0_4 = arith.constant 0 : index
    %c0_5 = arith.constant 0 : index
    %3 = vector.load %arg3[%c0_4, %c0_5] : memref<1x128xf32, #tpu.memory_space<vmem>>, vector<1x128xf32>
    %cst = arith.constant dense<0.000000e+00> : vector<5xf32>
    %4 = vector.multi_reduction <add>, %1, %cst [1] : vector<5x128xf32> to vector<5xf32>
    %5 = vector.shape_cast %4 : vector<5xf32> to vector<5x1xf32>
    %cst_6 = arith.constant 1.280000e+02 : f32
    %6 = vector.broadcast %cst_6 : f32 to vector<5x1xf32>
    %7 = arith.divf %5, %6 : vector<5x1xf32>
    %8 = vector.broadcast %7 : vector<5x1xf32> to vector<5x128xf32>
    %9 = arith.subf %1, %8 : vector<5x128xf32>
    %10 = arith.mulf %9, %9 : vector<5x128xf32>
    %cst_7 = arith.constant dense<0.000000e+00> : vector<5xf32>
    %11 = vector.multi_reduction <add>, %10, %cst_7 [1] : vector<5x128xf32> to vector<5xf32>
    %12 = vector.shape_cast %11 : vector<5xf32> to vector<5x1xf32>
    %cst_8 = arith.constant 1.280000e+02 : f32
    %13 = vector.broadcast %cst_8 : f32 to vector<5x1xf32>
    %14 = arith.divf %12, %13 : vector<5x1xf32>
    %cst_9 = arith.constant 9.99999974E-6 : f32
    %15 = vector.broadcast %cst_9 : f32 to vector<5x1xf32>
    %16 = arith.addf %14, %15 : vector<5x1xf32>
    %17 = math.rsqrt %16 : vector<5x1xf32>
    %18 = vector.broadcast %17 : vector<5x1xf32> to vector<5x128xf32>
    %19 = arith.mulf %9, %18 : vector<5x128xf32>
    %20 = vector.broadcast %2 : vector<1x128xf32> to vector<5x128xf32>
    %21 = arith.mulf %19, %20 : vector<5x128xf32>
    %22 = vector.broadcast %3 : vector<1x128xf32> to vector<5x128xf32>
    %23 = arith.addf %21, %22 : vector<5x128xf32>
    %c0_10 = arith.constant 0 : index
    %c0_11 = arith.constant 0 : index
    %24 = vector.load %arg11[%c0_10, %c0_11] : memref<1x128xf32, #tpu.memory_space<vmem>>, vector<1x128xf32>
    %cst_12 = arith.constant 0.000000e+00 : f32
    %25 = vector.broadcast %cst_12 : f32 to vector<5x128xf32>
    %c0_13 = arith.constant 0 : index
    %c0_14 = arith.constant 0 : index
    %c0_15 = arith.constant 0 : index
    %26 = vector.load %arg4[%c0_13, %c0_14, %c0_15] : memref<4x128x32xf32, #tpu.memory_space<vmem>>, vector<1x128x32xf32>
    %27 = vector.shape_cast %26 : vector<1x128x32xf32> to vector<128x32xf32>
    %c0_16 = arith.constant 0 : index
    %c0_17 = arith.constant 0 : index
    %c0_18 = arith.constant 0 : index
    %28 = vector.load %arg5[%c0_16, %c0_17, %c0_18] : memref<4x1x32xf32, #tpu.memory_space<vmem>>, vector<1x1x32xf32>
    %29 = vector.shape_cast %28 : vector<1x1x32xf32> to vector<1x32xf32>
    %30 = arith.truncf %23 : vector<5x128xf32> to vector<5x128xbf16>
    %31 = arith.truncf %27 : vector<128x32xf32> to vector<128x32xbf16>
    %cst_19 = arith.constant dense<0.000000e+00> : vector<5x32xf32>
    %32 = tpu.matmul %30, %31, %cst_19 {dimension_numbers = #tpu.dot_dimension_numbers<[1], [0], [0], [1], [0, 0, 1, 1], [], []>} : vector<5x128xbf16>, vector<128x32xbf16>, vector<5x32xf32> -> vector<5x32xf32>
    %33 = vector.broadcast %29 : vector<1x32xf32> to vector<5x32xf32>
    %34 = arith.addf %32, %33 : vector<5x32xf32>
    %cst_20 = arith.constant 0.176776692 : f32
    %35 = vector.broadcast %cst_20 : f32 to vector<5x32xf32>
    %36 = arith.mulf %34, %35 : vector<5x32xf32>
    %c0_21 = arith.constant 0 : index
    %c0_22 = arith.constant 0 : index
    %c0_23 = arith.constant 0 : index
    %37 = vector.load %arg6[%c0_21, %c0_22, %c0_23] : memref<4x128x32xf32, #tpu.memory_space<vmem>>, vector<1x128x32xf32>
    %38 = vector.shape_cast %37 : vector<1x128x32xf32> to vector<128x32xf32>
    %c0_24 = arith.constant 0 : index
    %c0_25 = arith.constant 0 : index
    %c0_26 = arith.constant 0 : index
    %39 = vector.load %arg7[%c0_24, %c0_25, %c0_26] : memref<4x1x32xf32, #tpu.memory_space<vmem>>, vector<1x1x32xf32>
    %40 = vector.shape_cast %39 : vector<1x1x32xf32> to vector<1x32xf32>
    %41 = arith.truncf %23 : vector<5x128xf32> to vector<5x128xbf16>
    %42 = arith.truncf %38 : vector<128x32xf32> to vector<128x32xbf16>
    %cst_27 = arith.constant dense<0.000000e+00> : vector<5x32xf32>
    %43 = tpu.matmul %41, %42, %cst_27 {dimension_numbers = #tpu.dot_dimension_numbers<[1], [0], [0], [1], [0, 0, 1, 1], [], []>} : vector<5x128xbf16>, vector<128x32xbf16>, vector<5x32xf32> -> vector<5x32xf32>
    %44 = vector.broadcast %40 : vector<1x32xf32> to vector<5x32xf32>
    %45 = arith.addf %43, %44 : vector<5x32xf32>
    %c0_28 = arith.constant 0 : index
    %c0_29 = arith.constant 0 : index
    %c0_30 = arith.constant 0 : index
    %46 = vector.load %arg8[%c0_28, %c0_29, %c0_30] : memref<4x128x32xf32, #tpu.memory_space<vmem>>, vector<1x128x32xf32>
    %47 = vector.shape_cast %46 : vector<1x128x32xf32> to vector<128x32xf32>
    %c0_31 = arith.constant 0 : index
    %c0_32 = arith.constant 0 : index
    %c0_33 = arith.constant 0 : index
    %48 = vector.load %arg9[%c0_31, %c0_32, %c0_33] : memref<4x1x32xf32, #tpu.memory_space<vmem>>, vector<1x1x32xf32>
    %49 = vector.shape_cast %48 : vector<1x1x32xf32> to vector<1x32xf32>
    %50 = arith.truncf %23 : vector<5x128xf32> to vector<5x128xbf16>
    %51 = arith.truncf %47 : vector<128x32xf32> to vector<128x32xbf16>
    %cst_34 = arith.constant dense<0.000000e+00> : vector<5x32xf32>
    %52 = tpu.matmul %50, %51, %cst_34 {dimension_numbers = #tpu.dot_dimension_numbers<[1], [0], [0], [1], [0, 0, 1, 1], [], []>} : vector<5x128xbf16>, vector<128x32xbf16>, vector<5x32xf32> -> vector<5x32xf32>
    %53 = vector.broadcast %49 : vector<1x32xf32> to vector<5x32xf32>
    %54 = arith.addf %52, %53 : vector<5x32xf32>
    %55 = arith.truncf %36 : vector<5x32xf32> to vector<5x32xbf16>
    %56 = arith.truncf %45 : vector<5x32xf32> to vector<5x32xbf16>
    %cst_35 = arith.constant dense<0.000000e+00> : vector<5x5xf32>
    %57 = tpu.matmul %55, %56, %cst_35 {dimension_numbers = #tpu.dot_dimension_numbers<[1], [1], [0], [0], [0, 0, 1, 0], [], []>} : vector<5x32xbf16>, vector<5x32xbf16>, vector<5x5xf32> -> vector<5x5xf32>
    %cst_36 = arith.constant dense<0xFF800000> : vector<5xf32>
    %58 = vector.multi_reduction <maximumf>, %57, %cst_36 [1] : vector<5x5xf32> to vector<5xf32>
    %59 = vector.shape_cast %58 : vector<5xf32> to vector<5x1xf32>
    %60 = vector.broadcast %59 : vector<5x1xf32> to vector<5x5xf32>
    %61 = arith.subf %57, %60 : vector<5x5xf32>
    %62 = math.exp %61 : vector<5x5xf32>
    %cst_37 = arith.constant dense<0.000000e+00> : vector<5xf32>
    %63 = vector.multi_reduction <add>, %62, %cst_37 [1] : vector<5x5xf32> to vector<5xf32>
    %64 = vector.shape_cast %63 : vector<5xf32> to vector<5x1xf32>
    %65 = tpu.reciprocal %64 {approx = true} : vector<5x1xf32> -> vector<5x1xf32>
    %66 = vector.broadcast %65 : vector<5x1xf32> to vector<5x5xf32>
    %67 = arith.mulf %62, %66 : vector<5x5xf32>
    %68 = arith.truncf %67 : vector<5x5xf32> to vector<5x5xbf16>
    %69 = arith.truncf %54 : vector<5x32xf32> to vector<5x32xbf16>
    %cst_38 = arith.constant dense<0.000000e+00> : vector<5x32xf32>
    %70 = tpu.matmul %68, %69, %cst_38 {dimension_numbers = #tpu.dot_dimension_numbers<[1], [0], [0], [1], [0, 0, 1, 1], [], []>} : vector<5x5xbf16>, vector<5x32xbf16>, vector<5x32xf32> -> vector<5x32xf32>
    %c0_39 = arith.constant 0 : index
    %c0_40 = arith.constant 0 : index
    %c0_41 = arith.constant 0 : index
    %71 = vector.load %arg10[%c0_39, %c0_40, %c0_41] : memref<4x32x128xf32, #tpu.memory_space<vmem>>, vector<1x32x128xf32>
    %72 = vector.shape_cast %71 : vector<1x32x128xf32> to vector<32x128xf32>
    %73 = arith.truncf %70 : vector<5x32xf32> to vector<5x32xbf16>
    %74 = arith.truncf %72 : vector<32x128xf32> to vector<32x128xbf16>
    %cst_42 = arith.constant dense<0.000000e+00> : vector<5x128xf32>
    %75 = tpu.matmul %73, %74, %cst_42 {dimension_numbers = #tpu.dot_dimension_numbers<[1], [0], [0], [1], [0, 0, 1, 1], [], []>} : vector<5x32xbf16>, vector<32x128xbf16>, vector<5x128xf32> -> vector<5x128xf32>
    %76 = arith.addf %25, %75 : vector<5x128xf32>
    %c1 = arith.constant 1 : index
    %c0_43 = arith.constant 0 : index
    %c0_44 = arith.constant 0 : index
    %77 = vector.load %arg4[%c1, %c0_43, %c0_44] : memref<4x128x32xf32, #tpu.memory_space<vmem>>, vector<1x128x32xf32>
    %78 = vector.shape_cast %77 : vector<1x128x32xf32> to vector<128x32xf32>
    %c1_45 = arith.constant 1 : index
    %c0_46 = arith.constant 0 : index
    %c0_47 = arith.constant 0 : index
    %79 = vector.load %arg5[%c1_45, %c0_46, %c0_47] : memref<4x1x32xf32, #tpu.memory_space<vmem>>, vector<1x1x32xf32>
    %80 = vector.shape_cast %79 : vector<1x1x32xf32> to vector<1x32xf32>
    %81 = arith.truncf %23 : vector<5x128xf32> to vector<5x128xbf16>
    %82 = arith.truncf %78 : vector<128x32xf32> to vector<128x32xbf16>
    %cst_48 = arith.constant dense<0.000000e+00> : vector<5x32xf32>
    %83 = tpu.matmul %81, %82, %cst_48 {dimension_numbers = #tpu.dot_dimension_numbers<[1], [0], [0], [1], [0, 0, 1, 1], [], []>} : vector<5x128xbf16>, vector<128x32xbf16>, vector<5x32xf32> -> vector<5x32xf32>
    %84 = vector.broadcast %80 : vector<1x32xf32> to vector<5x32xf32>
    %85 = arith.addf %83, %84 : vector<5x32xf32>
    %cst_49 = arith.constant 0.176776692 : f32
    %86 = vector.broadcast %cst_49 : f32 to vector<5x32xf32>
    %87 = arith.mulf %85, %86 : vector<5x32xf32>
    %c1_50 = arith.constant 1 : index
    %c0_51 = arith.constant 0 : index
    %c0_52 = arith.constant 0 : index
    %88 = vector.load %arg6[%c1_50, %c0_51, %c0_52] : memref<4x128x32xf32, #tpu.memory_space<vmem>>, vector<1x128x32xf32>
    %89 = vector.shape_cast %88 : vector<1x128x32xf32> to vector<128x32xf32>
    %c1_53 = arith.constant 1 : index
    %c0_54 = arith.constant 0 : index
    %c0_55 = arith.constant 0 : index
    %90 = vector.load %arg7[%c1_53, %c0_54, %c0_55] : memref<4x1x32xf32, #tpu.memory_space<vmem>>, vector<1x1x32xf32>
    %91 = vector.shape_cast %90 : vector<1x1x32xf32> to vector<1x32xf32>
    %92 = arith.truncf %23 : vector<5x128xf32> to vector<5x128xbf16>
    %93 = arith.truncf %89 : vector<128x32xf32> to vector<128x32xbf16>
    %cst_56 = arith.constant dense<0.000000e+00> : vector<5x32xf32>
    %94 = tpu.matmul %92, %93, %cst_56 {dimension_numbers = #tpu.dot_dimension_numbers<[1], [0], [0], [1], [0, 0, 1, 1], [], []>} : vector<5x128xbf16>, vector<128x32xbf16>, vector<5x32xf32> -> vector<5x32xf32>
    %95 = vector.broadcast %91 : vector<1x32xf32> to vector<5x32xf32>
    %96 = arith.addf %94, %95 : vector<5x32xf32>
    %c1_57 = arith.constant 1 : index
    %c0_58 = arith.constant 0 : index
    %c0_59 = arith.constant 0 : index
    %97 = vector.load %arg8[%c1_57, %c0_58, %c0_59] : memref<4x128x32xf32, #tpu.memory_space<vmem>>, vector<1x128x32xf32>
    %98 = vector.shape_cast %97 : vector<1x128x32xf32> to vector<128x32xf32>
    %c1_60 = arith.constant 1 : index
    %c0_61 = arith.constant 0 : index
    %c0_62 = arith.constant 0 : index
    %99 = vector.load %arg9[%c1_60, %c0_61, %c0_62] : memref<4x1x32xf32, #tpu.memory_space<vmem>>, vector<1x1x32xf32>
    %100 = vector.shape_cast %99 : vector<1x1x32xf32> to vector<1x32xf32>
    %101 = arith.truncf %23 : vector<5x128xf32> to vector<5x128xbf16>
    %102 = arith.truncf %98 : vector<128x32xf32> to vector<128x32xbf16>
    %cst_63 = arith.constant dense<0.000000e+00> : vector<5x32xf32>
    %103 = tpu.matmul %101, %102, %cst_63 {dimension_numbers = #tpu.dot_dimension_numbers<[1], [0], [0], [1], [0, 0, 1, 1], [], []>} : vector<5x128xbf16>, vector<128x32xbf16>, vector<5x32xf32> -> vector<5x32xf32>
    %104 = vector.broadcast %100 : vector<1x32xf32> to vector<5x32xf32>
    %105 = arith.addf %103, %104 : vector<5x32xf32>
    %106 = arith.truncf %87 : vector<5x32xf32> to vector<5x32xbf16>
    %107 = arith.truncf %96 : vector<5x32xf32> to vector<5x32xbf16>
    %cst_64 = arith.constant dense<0.000000e+00> : vector<5x5xf32>
    %108 = tpu.matmul %106, %107, %cst_64 {dimension_numbers = #tpu.dot_dimension_numbers<[1], [1], [0], [0], [0, 0, 1, 0], [], []>} : vector<5x32xbf16>, vector<5x32xbf16>, vector<5x5xf32> -> vector<5x5xf32>
    %cst_65 = arith.constant dense<0xFF800000> : vector<5xf32>
    %109 = vector.multi_reduction <maximumf>, %108, %cst_65 [1] : vector<5x5xf32> to vector<5xf32>
    %110 = vector.shape_cast %109 : vector<5xf32> to vector<5x1xf32>
    %111 = vector.broadcast %110 : vector<5x1xf32> to vector<5x5xf32>
    %112 = arith.subf %108, %111 : vector<5x5xf32>
    %113 = math.exp %112 : vector<5x5xf32>
    %cst_66 = arith.constant dense<0.000000e+00> : vector<5xf32>
    %114 = vector.multi_reduction <add>, %113, %cst_66 [1] : vector<5x5xf32> to vector<5xf32>
    %115 = vector.shape_cast %114 : vector<5xf32> to vector<5x1xf32>
    %116 = tpu.reciprocal %115 {approx = true} : vector<5x1xf32> -> vector<5x1xf32>
    %117 = vector.broadcast %116 : vector<5x1xf32> to vector<5x5xf32>
    %118 = arith.mulf %113, %117 : vector<5x5xf32>
    %119 = arith.truncf %118 : vector<5x5xf32> to vector<5x5xbf16>
    %120 = arith.truncf %105 : vector<5x32xf32> to vector<5x32xbf16>
    %cst_67 = arith.constant dense<0.000000e+00> : vector<5x32xf32>
    %121 = tpu.matmul %119, %120, %cst_67 {dimension_numbers = #tpu.dot_dimension_numbers<[1], [0], [0], [1], [0, 0, 1, 1], [], []>} : vector<5x5xbf16>, vector<5x32xbf16>, vector<5x32xf32> -> vector<5x32xf32>
    %c1_68 = arith.constant 1 : index
    %c0_69 = arith.constant 0 : index
    %c0_70 = arith.constant 0 : index
    %122 = vector.load %arg10[%c1_68, %c0_69, %c0_70] : memref<4x32x128xf32, #tpu.memory_space<vmem>>, vector<1x32x128xf32>
    %123 = vector.shape_cast %122 : vector<1x32x128xf32> to vector<32x128xf32>
    %124 = arith.truncf %121 : vector<5x32xf32> to vector<5x32xbf16>
    %125 = arith.truncf %123 : vector<32x128xf32> to vector<32x128xbf16>
    %cst_71 = arith.constant dense<0.000000e+00> : vector<5x128xf32>
    %126 = tpu.matmul %124, %125, %cst_71 {dimension_numbers = #tpu.dot_dimension_numbers<[1], [0], [0], [1], [0, 0, 1, 1], [], []>} : vector<5x32xbf16>, vector<32x128xbf16>, vector<5x128xf32> -> vector<5x128xf32>
    %127 = arith.addf %76, %126 : vector<5x128xf32>
    %c2 = arith.constant 2 : index
    %c0_72 = arith.constant 0 : index
    %c0_73 = arith.constant 0 : index
    %128 = vector.load %arg4[%c2, %c0_72, %c0_73] : memref<4x128x32xf32, #tpu.memory_space<vmem>>, vector<1x128x32xf32>
    %129 = vector.shape_cast %128 : vector<1x128x32xf32> to vector<128x32xf32>
    %c2_74 = arith.constant 2 : index
    %c0_75 = arith.constant 0 : index
    %c0_76 = arith.constant 0 : index
    %130 = vector.load %arg5[%c2_74, %c0_75, %c0_76] : memref<4x1x32xf32, #tpu.memory_space<vmem>>, vector<1x1x32xf32>
    %131 = vector.shape_cast %130 : vector<1x1x32xf32> to vector<1x32xf32>
    %132 = arith.truncf %23 : vector<5x128xf32> to vector<5x128xbf16>
    %133 = arith.truncf %129 : vector<128x32xf32> to vector<128x32xbf16>
    %cst_77 = arith.constant dense<0.000000e+00> : vector<5x32xf32>
    %134 = tpu.matmul %132, %133, %cst_77 {dimension_numbers = #tpu.dot_dimension_numbers<[1], [0], [0], [1], [0, 0, 1, 1], [], []>} : vector<5x128xbf16>, vector<128x32xbf16>, vector<5x32xf32> -> vector<5x32xf32>
    %135 = vector.broadcast %131 : vector<1x32xf32> to vector<5x32xf32>
    %136 = arith.addf %134, %135 : vector<5x32xf32>
    %cst_78 = arith.constant 0.176776692 : f32
    %137 = vector.broadcast %cst_78 : f32 to vector<5x32xf32>
    %138 = arith.mulf %136, %137 : vector<5x32xf32>
    %c2_79 = arith.constant 2 : index
    %c0_80 = arith.constant 0 : index
    %c0_81 = arith.constant 0 : index
    %139 = vector.load %arg6[%c2_79, %c0_80, %c0_81] : memref<4x128x32xf32, #tpu.memory_space<vmem>>, vector<1x128x32xf32>
    %140 = vector.shape_cast %139 : vector<1x128x32xf32> to vector<128x32xf32>
    %c2_82 = arith.constant 2 : index
    %c0_83 = arith.constant 0 : index
    %c0_84 = arith.constant 0 : index
    %141 = vector.load %arg7[%c2_82, %c0_83, %c0_84] : memref<4x1x32xf32, #tpu.memory_space<vmem>>, vector<1x1x32xf32>
    %142 = vector.shape_cast %141 : vector<1x1x32xf32> to vector<1x32xf32>
    %143 = arith.truncf %23 : vector<5x128xf32> to vector<5x128xbf16>
    %144 = arith.truncf %140 : vector<128x32xf32> to vector<128x32xbf16>
    %cst_85 = arith.constant dense<0.000000e+00> : vector<5x32xf32>
    %145 = tpu.matmul %143, %144, %cst_85 {dimension_numbers = #tpu.dot_dimension_numbers<[1], [0], [0], [1], [0, 0, 1, 1], [], []>} : vector<5x128xbf16>, vector<128x32xbf16>, vector<5x32xf32> -> vector<5x32xf32>
    %146 = vector.broadcast %142 : vector<1x32xf32> to vector<5x32xf32>
    %147 = arith.addf %145, %146 : vector<5x32xf32>
    %c2_86 = arith.constant 2 : index
    %c0_87 = arith.constant 0 : index
    %c0_88 = arith.constant 0 : index
    %148 = vector.load %arg8[%c2_86, %c0_87, %c0_88] : memref<4x128x32xf32, #tpu.memory_space<vmem>>, vector<1x128x32xf32>
    %149 = vector.shape_cast %148 : vector<1x128x32xf32> to vector<128x32xf32>
    %c2_89 = arith.constant 2 : index
    %c0_90 = arith.constant 0 : index
    %c0_91 = arith.constant 0 : index
    %150 = vector.load %arg9[%c2_89, %c0_90, %c0_91] : memref<4x1x32xf32, #tpu.memory_space<vmem>>, vector<1x1x32xf32>
    %151 = vector.shape_cast %150 : vector<1x1x32xf32> to vector<1x32xf32>
    %152 = arith.truncf %23 : vector<5x128xf32> to vector<5x128xbf16>
    %153 = arith.truncf %149 : vector<128x32xf32> to vector<128x32xbf16>
    %cst_92 = arith.constant dense<0.000000e+00> : vector<5x32xf32>
    %154 = tpu.matmul %152, %153, %cst_92 {dimension_numbers = #tpu.dot_dimension_numbers<[1], [0], [0], [1], [0, 0, 1, 1], [], []>} : vector<5x128xbf16>, vector<128x32xbf16>, vector<5x32xf32> -> vector<5x32xf32>
    %155 = vector.broadcast %151 : vector<1x32xf32> to vector<5x32xf32>
    %156 = arith.addf %154, %155 : vector<5x32xf32>
    %157 = arith.truncf %138 : vector<5x32xf32> to vector<5x32xbf16>
    %158 = arith.truncf %147 : vector<5x32xf32> to vector<5x32xbf16>
    %cst_93 = arith.constant dense<0.000000e+00> : vector<5x5xf32>
    %159 = tpu.matmul %157, %158, %cst_93 {dimension_numbers = #tpu.dot_dimension_numbers<[1], [1], [0], [0], [0, 0, 1, 0], [], []>} : vector<5x32xbf16>, vector<5x32xbf16>, vector<5x5xf32> -> vector<5x5xf32>
    %cst_94 = arith.constant dense<0xFF800000> : vector<5xf32>
    %160 = vector.multi_reduction <maximumf>, %159, %cst_94 [1] : vector<5x5xf32> to vector<5xf32>
    %161 = vector.shape_cast %160 : vector<5xf32> to vector<5x1xf32>
    %162 = vector.broadcast %161 : vector<5x1xf32> to vector<5x5xf32>
    %163 = arith.subf %159, %162 : vector<5x5xf32>
    %164 = math.exp %163 : vector<5x5xf32>
    %cst_95 = arith.constant dense<0.000000e+00> : vector<5xf32>
    %165 = vector.multi_reduction <add>, %164, %cst_95 [1] : vector<5x5xf32> to vector<5xf32>
    %166 = vector.shape_cast %165 : vector<5xf32> to vector<5x1xf32>
    %167 = tpu.reciprocal %166 {approx = true} : vector<5x1xf32> -> vector<5x1xf32>
    %168 = vector.broadcast %167 : vector<5x1xf32> to vector<5x5xf32>
    %169 = arith.mulf %164, %168 : vector<5x5xf32>
    %170 = arith.truncf %169 : vector<5x5xf32> to vector<5x5xbf16>
    %171 = arith.truncf %156 : vector<5x32xf32> to vector<5x32xbf16>
    %cst_96 = arith.constant dense<0.000000e+00> : vector<5x32xf32>
    %172 = tpu.matmul %170, %171, %cst_96 {dimension_numbers = #tpu.dot_dimension_numbers<[1], [0], [0], [1], [0, 0, 1, 1], [], []>} : vector<5x5xbf16>, vector<5x32xbf16>, vector<5x32xf32> -> vector<5x32xf32>
    %c2_97 = arith.constant 2 : index
    %c0_98 = arith.constant 0 : index
    %c0_99 = arith.constant 0 : index
    %173 = vector.load %arg10[%c2_97, %c0_98, %c0_99] : memref<4x32x128xf32, #tpu.memory_space<vmem>>, vector<1x32x128xf32>
    %174 = vector.shape_cast %173 : vector<1x32x128xf32> to vector<32x128xf32>
    %175 = arith.truncf %172 : vector<5x32xf32> to vector<5x32xbf16>
    %176 = arith.truncf %174 : vector<32x128xf32> to vector<32x128xbf16>
    %cst_100 = arith.constant dense<0.000000e+00> : vector<5x128xf32>
    %177 = tpu.matmul %175, %176, %cst_100 {dimension_numbers = #tpu.dot_dimension_numbers<[1], [0], [0], [1], [0, 0, 1, 1], [], []>} : vector<5x32xbf16>, vector<32x128xbf16>, vector<5x128xf32> -> vector<5x128xf32>
    %178 = arith.addf %127, %177 : vector<5x128xf32>
    %c3 = arith.constant 3 : index
    %c0_101 = arith.constant 0 : index
    %c0_102 = arith.constant 0 : index
    %179 = vector.load %arg4[%c3, %c0_101, %c0_102] : memref<4x128x32xf32, #tpu.memory_space<vmem>>, vector<1x128x32xf32>
    %180 = vector.shape_cast %179 : vector<1x128x32xf32> to vector<128x32xf32>
    %c3_103 = arith.constant 3 : index
    %c0_104 = arith.constant 0 : index
    %c0_105 = arith.constant 0 : index
    %181 = vector.load %arg5[%c3_103, %c0_104, %c0_105] : memref<4x1x32xf32, #tpu.memory_space<vmem>>, vector<1x1x32xf32>
    %182 = vector.shape_cast %181 : vector<1x1x32xf32> to vector<1x32xf32>
    %183 = arith.truncf %23 : vector<5x128xf32> to vector<5x128xbf16>
    %184 = arith.truncf %180 : vector<128x32xf32> to vector<128x32xbf16>
    %cst_106 = arith.constant dense<0.000000e+00> : vector<5x32xf32>
    %185 = tpu.matmul %183, %184, %cst_106 {dimension_numbers = #tpu.dot_dimension_numbers<[1], [0], [0], [1], [0, 0, 1, 1], [], []>} : vector<5x128xbf16>, vector<128x32xbf16>, vector<5x32xf32> -> vector<5x32xf32>
    %186 = vector.broadcast %182 : vector<1x32xf32> to vector<5x32xf32>
    %187 = arith.addf %185, %186 : vector<5x32xf32>
    %cst_107 = arith.constant 0.176776692 : f32
    %188 = vector.broadcast %cst_107 : f32 to vector<5x32xf32>
    %189 = arith.mulf %187, %188 : vector<5x32xf32>
    %c3_108 = arith.constant 3 : index
    %c0_109 = arith.constant 0 : index
    %c0_110 = arith.constant 0 : index
    %190 = vector.load %arg6[%c3_108, %c0_109, %c0_110] : memref<4x128x32xf32, #tpu.memory_space<vmem>>, vector<1x128x32xf32>
    %191 = vector.shape_cast %190 : vector<1x128x32xf32> to vector<128x32xf32>
    %c3_111 = arith.constant 3 : index
    %c0_112 = arith.constant 0 : index
    %c0_113 = arith.constant 0 : index
    %192 = vector.load %arg7[%c3_111, %c0_112, %c0_113] : memref<4x1x32xf32, #tpu.memory_space<vmem>>, vector<1x1x32xf32>
    %193 = vector.shape_cast %192 : vector<1x1x32xf32> to vector<1x32xf32>
    %194 = arith.truncf %23 : vector<5x128xf32> to vector<5x128xbf16>
    %195 = arith.truncf %191 : vector<128x32xf32> to vector<128x32xbf16>
    %cst_114 = arith.constant dense<0.000000e+00> : vector<5x32xf32>
    %196 = tpu.matmul %194, %195, %cst_114 {dimension_numbers = #tpu.dot_dimension_numbers<[1], [0], [0], [1], [0, 0, 1, 1], [], []>} : vector<5x128xbf16>, vector<128x32xbf16>, vector<5x32xf32> -> vector<5x32xf32>
    %197 = vector.broadcast %193 : vector<1x32xf32> to vector<5x32xf32>
    %198 = arith.addf %196, %197 : vector<5x32xf32>
    %c3_115 = arith.constant 3 : index
    %c0_116 = arith.constant 0 : index
    %c0_117 = arith.constant 0 : index
    %199 = vector.load %arg8[%c3_115, %c0_116, %c0_117] : memref<4x128x32xf32, #tpu.memory_space<vmem>>, vector<1x128x32xf32>
    %200 = vector.shape_cast %199 : vector<1x128x32xf32> to vector<128x32xf32>
    %c3_118 = arith.constant 3 : index
    %c0_119 = arith.constant 0 : index
    %c0_120 = arith.constant 0 : index
    %201 = vector.load %arg9[%c3_118, %c0_119, %c0_120] : memref<4x1x32xf32, #tpu.memory_space<vmem>>, vector<1x1x32xf32>
    %202 = vector.shape_cast %201 : vector<1x1x32xf32> to vector<1x32xf32>
    %203 = arith.truncf %23 : vector<5x128xf32> to vector<5x128xbf16>
    %204 = arith.truncf %200 : vector<128x32xf32> to vector<128x32xbf16>
    %cst_121 = arith.constant dense<0.000000e+00> : vector<5x32xf32>
    %205 = tpu.matmul %203, %204, %cst_121 {dimension_numbers = #tpu.dot_dimension_numbers<[1], [0], [0], [1], [0, 0, 1, 1], [], []>} : vector<5x128xbf16>, vector<128x32xbf16>, vector<5x32xf32> -> vector<5x32xf32>
    %206 = vector.broadcast %202 : vector<1x32xf32> to vector<5x32xf32>
    %207 = arith.addf %205, %206 : vector<5x32xf32>
    %208 = arith.truncf %189 : vector<5x32xf32> to vector<5x32xbf16>
    %209 = arith.truncf %198 : vector<5x32xf32> to vector<5x32xbf16>
    %cst_122 = arith.constant dense<0.000000e+00> : vector<5x5xf32>
    %210 = tpu.matmul %208, %209, %cst_122 {dimension_numbers = #tpu.dot_dimension_numbers<[1], [1], [0], [0], [0, 0, 1, 0], [], []>} : vector<5x32xbf16>, vector<5x32xbf16>, vector<5x5xf32> -> vector<5x5xf32>
    %cst_123 = arith.constant dense<0xFF800000> : vector<5xf32>
    %211 = vector.multi_reduction <maximumf>, %210, %cst_123 [1] : vector<5x5xf32> to vector<5xf32>
    %212 = vector.shape_cast %211 : vector<5xf32> to vector<5x1xf32>
    %213 = vector.broadcast %212 : vector<5x1xf32> to vector<5x5xf32>
    %214 = arith.subf %210, %213 : vector<5x5xf32>
    %215 = math.exp %214 : vector<5x5xf32>
    %cst_124 = arith.constant dense<0.000000e+00> : vector<5xf32>
    %216 = vector.multi_reduction <add>, %215, %cst_124 [1] : vector<5x5xf32> to vector<5xf32>
    %217 = vector.shape_cast %216 : vector<5xf32> to vector<5x1xf32>
    %218 = tpu.reciprocal %217 {approx = true} : vector<5x1xf32> -> vector<5x1xf32>
    %219 = vector.broadcast %218 : vector<5x1xf32> to vector<5x5xf32>
    %220 = arith.mulf %215, %219 : vector<5x5xf32>
    %221 = arith.truncf %220 : vector<5x5xf32> to vector<5x5xbf16>
    %222 = arith.truncf %207 : vector<5x32xf32> to vector<5x32xbf16>
    %cst_125 = arith.constant dense<0.000000e+00> : vector<5x32xf32>
    %223 = tpu.matmul %221, %222, %cst_125 {dimension_numbers = #tpu.dot_dimension_numbers<[1], [0], [0], [1], [0, 0, 1, 1], [], []>} : vector<5x5xbf16>, vector<5x32xbf16>, vector<5x32xf32> -> vector<5x32xf32>
    %c3_126 = arith.constant 3 : index
    %c0_127 = arith.constant 0 : index
    %c0_128 = arith.constant 0 : index
    %224 = vector.load %arg10[%c3_126, %c0_127, %c0_128] : memref<4x32x128xf32, #tpu.memory_space<vmem>>, vector<1x32x128xf32>
    %225 = vector.shape_cast %224 : vector<1x32x128xf32> to vector<32x128xf32>
    %226 = arith.truncf %223 : vector<5x32xf32> to vector<5x32xbf16>
    %227 = arith.truncf %225 : vector<32x128xf32> to vector<32x128xbf16>
    %cst_129 = arith.constant dense<0.000000e+00> : vector<5x128xf32>
    %228 = tpu.matmul %226, %227, %cst_129 {dimension_numbers = #tpu.dot_dimension_numbers<[1], [0], [0], [1], [0, 0, 1, 1], [], []>} : vector<5x32xbf16>, vector<32x128xbf16>, vector<5x128xf32> -> vector<5x128xf32>
    %229 = arith.addf %178, %228 : vector<5x128xf32>
    %230 = vector.broadcast %24 : vector<1x128xf32> to vector<5x128xf32>
    %231 = arith.addf %229, %230 : vector<5x128xf32>
    %232 = arith.addf %1, %231 : vector<5x128xf32>
    %c0_130 = arith.constant 0 : index
    %c0_131 = arith.constant 0 : index
    %233 = vector.load %arg12[%c0_130, %c0_131] : memref<1x128xf32, #tpu.memory_space<vmem>>, vector<1x128xf32>
    %c0_132 = arith.constant 0 : index
    %c0_133 = arith.constant 0 : index
    %234 = vector.load %arg13[%c0_132, %c0_133] : memref<1x128xf32, #tpu.memory_space<vmem>>, vector<1x128xf32>
    %cst_134 = arith.constant dense<0.000000e+00> : vector<5xf32>
    %235 = vector.multi_reduction <add>, %232, %cst_134 [1] : vector<5x128xf32> to vector<5xf32>
    %236 = vector.shape_cast %235 : vector<5xf32> to vector<5x1xf32>
    %cst_135 = arith.constant 1.280000e+02 : f32
    %237 = vector.broadcast %cst_135 : f32 to vector<5x1xf32>
    %238 = arith.divf %236, %237 : vector<5x1xf32>
    %239 = vector.broadcast %238 : vector<5x1xf32> to vector<5x128xf32>
    %240 = arith.subf %232, %239 : vector<5x128xf32>
    %241 = arith.mulf %240, %240 : vector<5x128xf32>
    %cst_136 = arith.constant dense<0.000000e+00> : vector<5xf32>
    %242 = vector.multi_reduction <add>, %241, %cst_136 [1] : vector<5x128xf32> to vector<5xf32>
    %243 = vector.shape_cast %242 : vector<5xf32> to vector<5x1xf32>
    %cst_137 = arith.constant 1.280000e+02 : f32
    %244 = vector.broadcast %cst_137 : f32 to vector<5x1xf32>
    %245 = arith.divf %243, %244 : vector<5x1xf32>
    %cst_138 = arith.constant 9.99999974E-6 : f32
    %246 = vector.broadcast %cst_138 : f32 to vector<5x1xf32>
    %247 = arith.addf %245, %246 : vector<5x1xf32>
    %248 = math.rsqrt %247 : vector<5x1xf32>
    %249 = vector.broadcast %248 : vector<5x1xf32> to vector<5x128xf32>
    %250 = arith.mulf %240, %249 : vector<5x128xf32>
    %251 = vector.broadcast %233 : vector<1x128xf32> to vector<5x128xf32>
    %252 = arith.mulf %250, %251 : vector<5x128xf32>
    %253 = vector.broadcast %234 : vector<1x128xf32> to vector<5x128xf32>
    %254 = arith.addf %252, %253 : vector<5x128xf32>
    %c0_139 = arith.constant 0 : index
    %c0_140 = arith.constant 0 : index
    %255 = vector.load %arg14[%c0_139, %c0_140] : memref<128x512xf32, #tpu.memory_space<vmem>>, vector<128x512xf32>
    %c0_141 = arith.constant 0 : index
    %c0_142 = arith.constant 0 : index
    %256 = vector.load %arg15[%c0_141, %c0_142] : memref<1x512xf32, #tpu.memory_space<vmem>>, vector<1x512xf32>
    %257 = arith.truncf %254 : vector<5x128xf32> to vector<5x128xbf16>
    %258 = arith.truncf %255 : vector<128x512xf32> to vector<128x512xbf16>
    %cst_143 = arith.constant dense<0.000000e+00> : vector<5x512xf32>
    %259 = tpu.matmul %257, %258, %cst_143 {dimension_numbers = #tpu.dot_dimension_numbers<[1], [0], [0], [1], [0, 0, 1, 1], [], []>} : vector<5x128xbf16>, vector<128x512xbf16>, vector<5x512xf32> -> vector<5x512xf32>
    %260 = vector.broadcast %256 : vector<1x512xf32> to vector<5x512xf32>
    %261 = arith.addf %259, %260 : vector<5x512xf32>
    %cst_144 = arith.constant 1.702000e+00 : f32
    %262 = vector.broadcast %cst_144 : f32 to vector<5x512xf32>
    %263 = arith.mulf %262, %261 : vector<5x512xf32>
    %264 = arith.negf %263 : vector<5x512xf32>
    %265 = math.exp %264 : vector<5x512xf32>
    %cst_145 = arith.constant 1.000000e+00 : f32
    %266 = vector.broadcast %cst_145 : f32 to vector<5x512xf32>
    %267 = arith.addf %266, %265 : vector<5x512xf32>
    %268 = arith.divf %266, %267 : vector<5x512xf32>
    %269 = arith.mulf %261, %268 : vector<5x512xf32>
    %c0_146 = arith.constant 0 : index
    %c0_147 = arith.constant 0 : index
    %270 = vector.load %arg16[%c0_146, %c0_147] : memref<512x128xf32, #tpu.memory_space<vmem>>, vector<512x128xf32>
    %c0_148 = arith.constant 0 : index
    %c0_149 = arith.constant 0 : index
    %271 = vector.load %arg17[%c0_148, %c0_149] : memref<1x128xf32, #tpu.memory_space<vmem>>, vector<1x128xf32>
    %272 = arith.truncf %269 : vector<5x512xf32> to vector<5x512xbf16>
    %273 = arith.truncf %270 : vector<512x128xf32> to vector<512x128xbf16>
    %cst_150 = arith.constant dense<0.000000e+00> : vector<5x128xf32>
    %274 = tpu.matmul %272, %273, %cst_150 {dimension_numbers = #tpu.dot_dimension_numbers<[1], [0], [0], [1], [0, 0, 1, 1], [], []>} : vector<5x512xbf16>, vector<512x128xbf16>, vector<5x128xf32> -> vector<5x128xf32>
    %275 = vector.broadcast %271 : vector<1x128xf32> to vector<5x128xf32>
    %276 = arith.addf %274, %275 : vector<5x128xf32>
    %277 = arith.addf %232, %276 : vector<5x128xf32>
    %c0_151 = arith.constant 0 : index
    %c0_152 = arith.constant 0 : index
    %c0_153 = arith.constant 0 : index
    %278 = vector.load %arg18[%c0_151, %c0_152, %c0_153] : memref<1x5x128xf32, #tpu.memory_space<vmem>>, vector<1x5x128xf32>
    %279 = vector.shape_cast %278 : vector<1x5x128xf32> to vector<5x128xf32>
    %280 = vector.shape_cast %277 : vector<5x128xf32> to vector<1x5x128xf32>
    tpu.vector_store %arg18[%c0_151, %c0_152, %c0_153], %280 {strides = array<i32>} : memref<1x5x128xf32, #tpu.memory_space<vmem>>, vector<1x5x128xf32>,
    return
  }
  func.func @transform_0(%arg0: i32) -> (i32, i32, i32) {
    %c0_i32 = arith.constant 0 : i32
    %c0_i32_0 = arith.constant 0 : i32
    %c0_i32_1 = arith.constant 0 : i32
    return %arg0, %c0_i32, %c0_i32_0 : i32, i32, i32
  }
  func.func @transform_1(%arg0: i32) -> (i32, i32) {
    %c0_i32 = arith.constant 0 : i32
    %c0_i32_0 = arith.constant 0 : i32
    %c0_i32_1 = arith.constant 0 : i32
    return %c0_i32, %c0_i32_0 : i32, i32
  }
  func.func @transform_2(%arg0: i32) -> (i32, i32) {
    %c0_i32 = arith.constant 0 : i32
    %c0_i32_0 = arith.constant 0 : i32
    %c0_i32_1 = arith.constant 0 : i32
    return %c0_i32, %c0_i32_0 : i32, i32
  }
  func.func @transform_3(%arg0: i32) -> (i32, i32, i32) {
    %c0_i32 = arith.constant 0 : i32
    %c0_i32_0 = arith.constant 0 : i32
    %c0_i32_1 = arith.constant 0 : i32
    %c0_i32_2 = arith.constant 0 : i32
    return %c0_i32, %c0_i32_0, %c0_i32_1 : i32, i32, i32
  }
  func.func @transform_4(%arg0: i32) -> (i32, i32, i32) {
    %c0_i32 = arith.constant 0 : i32
    %c0_i32_0 = arith.constant 0 : i32
    %c0_i32_1 = arith.constant 0 : i32
    %c0_i32_2 = arith.constant 0 : i32
    return %c0_i32, %c0_i32_0, %c0_i32_1 : i32, i32, i32
  }
  func.func @transform_5(%arg0: i32) -> (i32, i32, i32) {
    %c0_i32 = arith.constant 0 : i32
    %c0_i32_0 = arith.constant 0 : i32
    %c0_i32_1 = arith.constant 0 : i32
    %c0_i32_2 = arith.constant 0 : i32
    return %c0_i32, %c0_i32_0, %c0_i32_1 : i32, i32, i32
  }
  func.func @transform_6(%arg0: i32) -> (i32, i32, i32) {
    %c0_i32 = arith.constant 0 : i32
    %c0_i32_0 = arith.constant 0 : i32
    %c0_i32_1 = arith.constant 0 : i32
    %c0_i32_2 = arith.constant 0 : i32
    return %c0_i32, %c0_i32_0, %c0_i32_1 : i32, i32, i32
  }
  func.func @transform_7(%arg0: i32) -> (i32, i32, i32) {
    %c0_i32 = arith.constant 0 : i32
    %c0_i32_0 = arith.constant 0 : i32
    %c0_i32_1 = arith.constant 0 : i32
    %c0_i32_2 = arith.constant 0 : i32
    return %c0_i32, %c0_i32_0, %c0_i32_1 : i32, i32, i32
  }
  func.func @transform_8(%arg0: i32) -> (i32, i32, i32) {
    %c0_i32 = arith.constant 0 : i32
    %c0_i32_0 = arith.constant 0 : i32
    %c0_i32_1 = arith.constant 0 : i32
    %c0_i32_2 = arith.constant 0 : i32
    return %c0_i32, %c0_i32_0, %c0_i32_1 : i32, i32, i32
  }
  func.func @transform_9(%arg0: i32) -> (i32, i32, i32) {
    %c0_i32 = arith.constant 0 : i32
    %c0_i32_0 = arith.constant 0 : i32
    %c0_i32_1 = arith.constant 0 : i32
    %c0_i32_2 = arith.constant 0 : i32
    return %c0_i32, %c0_i32_0, %c0_i32_1 : i32, i32, i32
  }
  func.func @transform_10(%arg0: i32) -> (i32, i32) {
    %c0_i32 = arith.constant 0 : i32
    %c0_i32_0 = arith.constant 0 : i32
    %c0_i32_1 = arith.constant 0 : i32
    return %c0_i32, %c0_i32_0 : i32, i32
  }
  func.func @transform_11(%arg0: i32) -> (i32, i32) {
    %c0_i32 = arith.constant 0 : i32
    %c0_i32_0 = arith.constant 0 : i32
    %c0_i32_1 = arith.constant 0 : i32
    return %c0_i32, %c0_i32_0 : i32, i32
  }
  func.func @transform_12(%arg0: i32) -> (i32, i32) {
    %c0_i32 = arith.constant 0 : i32
    %c0_i32_0 = arith.constant 0 : i32
    %c0_i32_1 = arith.constant 0 : i32
    return %c0_i32, %c0_i32_0 : i32, i32
  }
  func.func @transform_13(%arg0: i32) -> (i32, i32) {
    %c0_i32 = arith.constant 0 : i32
    %c0_i32_0 = arith.constant 0 : i32
    %c0_i32_1 = arith.constant 0 : i32
    return %c0_i32, %c0_i32_0 : i32, i32
  }
  func.func @transform_14(%arg0: i32) -> (i32, i32) {
    %c0_i32 = arith.constant 0 : i32
    %c0_i32_0 = arith.constant 0 : i32
    %c0_i32_1 = arith.constant 0 : i32
    return %c0_i32, %c0_i32_0 : i32, i32
  }
  func.func @transform_15(%arg0: i32) -> (i32, i32) {
    %c0_i32 = arith.constant 0 : i32
    %c0_i32_0 = arith.constant 0 : i32
    %c0_i32_1 = arith.constant 0 : i32
    return %c0_i32, %c0_i32_0 : i32, i32
  }
  func.func @transform_16(%arg0: i32) -> (i32, i32) {
    %c0_i32 = arith.constant 0 : i32
    %c0_i32_0 = arith.constant 0 : i32
    %c0_i32_1 = arith.constant 0 : i32
    return %c0_i32, %c0_i32_0 : i32, i32
  }
  func.func @transform_17(%arg0: i32) -> (i32, i32, i32) {
    %c0_i32 = arith.constant 0 : i32
    %c0_i32_0 = arith.constant 0 : i32
    %c0_i32_1 = arith.constant 0 : i32
    return %arg0, %c0_i32, %c0_i32_0 : i32, i32, i32
  }
}

module attributes {stable_mosaic.version = 11 : i64} {
  func.func @_tconv_kernel(%arg0: i32, %arg1: memref<4x10x128xf32, #tpu.memory_space<vmem>>, %arg2: memref<3x128xf32, #tpu.memory_space<vmem>>, %arg3: memref<1x128xf32, #tpu.memory_space<vmem>>, %arg4: memref<4x1x128xf32, #tpu.memory_space<vmem>>, %arg5: memref<4x10x128xf32, #tpu.memory_space<vmem>>) attributes {dimension_semantics = [#tpu.dimension_semantics<arbitrary>], iteration_bounds = array<i64: 1>, scalar_prefetch = 0 : i64, scratch_operands = 0 : i64, tpu.core_type = #tpu.core_type<tc>, window_params = [{pipeline_mode = #tpu.pipeline_mode<synchronous>, transform_indices = @transform_0, window_bounds = array<i64: 4, 10, 128>}, {pipeline_mode = #tpu.pipeline_mode<synchronous>, transform_indices = @transform_1, window_bounds = array<i64: 3, 128>}, {pipeline_mode = #tpu.pipeline_mode<synchronous>, transform_indices = @transform_2, window_bounds = array<i64: 1, 128>}, {pipeline_mode = #tpu.pipeline_mode<synchronous>, transform_indices = @transform_3, window_bounds = array<i64: 4, 1, 128>}, {pipeline_mode = #tpu.pipeline_mode<synchronous>, transform_indices = @transform_4, window_bounds = array<i64: 4, 10, 128>}]} {
    %c0 = arith.constant 0 : index
    %c0_0 = arith.constant 0 : index
    %c0_1 = arith.constant 0 : index
    %0 = vector.load %arg1[%c0, %c0_0, %c0_1] : memref<4x10x128xf32, #tpu.memory_space<vmem>>, vector<4x10x128xf32>
    %c0_2 = arith.constant 0 : index
    %c0_3 = arith.constant 0 : index
    %1 = vector.load %arg2[%c0_2, %c0_3] : memref<3x128xf32, #tpu.memory_space<vmem>>, vector<3x128xf32>
    %2 = vector.extract_strided_slice %1 {offsets = [1, 0], sizes = [1, 128], strides = [1, 1]} : vector<3x128xf32> to vector<1x128xf32>
    %3 = vector.shape_cast %2 : vector<1x128xf32> to vector<128xf32>
    %4 = vector.shape_cast %3 : vector<128xf32> to vector<1x1x128xf32>
    %5 = vector.broadcast %4 : vector<1x1x128xf32> to vector<4x10x128xf32>
    %6 = arith.mulf %0, %5 : vector<4x10x128xf32>
    %c0_4 = arith.constant 0 : index
    %c0_5 = arith.constant 0 : index
    %7 = vector.load %arg3[%c0_4, %c0_5] : memref<1x128xf32, #tpu.memory_space<vmem>>, vector<1x128xf32>
    %8 = vector.shape_cast %7 : vector<1x128xf32> to vector<1x1x128xf32>
    %9 = vector.broadcast %8 : vector<1x1x128xf32> to vector<4x10x128xf32>
    %10 = arith.addf %6, %9 : vector<4x10x128xf32>
    %c0_6 = arith.constant 0 : index
    %c0_7 = arith.constant 0 : index
    %c0_8 = arith.constant 0 : index
    %11 = vector.load %arg4[%c0_6, %c0_7, %c0_8] : memref<4x1x128xf32, #tpu.memory_space<vmem>>, vector<4x1x128xf32>
    %12 = vector.broadcast %11 : vector<4x1x128xf32> to vector<4x10x128xf32>
    %13 = arith.addf %10, %12 : vector<4x10x128xf32>
    %14 = vector.extract_strided_slice %13 {offsets = [0, 0, 0], sizes = [1, 10, 128], strides = [1, 1, 1]} : vector<4x10x128xf32> to vector<1x10x128xf32>
    %15 = vector.extract_strided_slice %0 {offsets = [1, 0, 0], sizes = [1, 10, 128], strides = [1, 1, 1]} : vector<4x10x128xf32> to vector<1x10x128xf32>
    %16 = vector.extract_strided_slice %1 {offsets = [2, 0], sizes = [1, 128], strides = [1, 1]} : vector<3x128xf32> to vector<1x128xf32>
    %17 = vector.shape_cast %16 : vector<1x128xf32> to vector<128xf32>
    %18 = vector.shape_cast %17 : vector<128xf32> to vector<1x1x128xf32>
    %19 = vector.broadcast %18 : vector<1x1x128xf32> to vector<1x10x128xf32>
    %20 = arith.mulf %15, %19 : vector<1x10x128xf32>
    %21 = arith.addf %14, %20 : vector<1x10x128xf32>
    %22 = vector.extract_strided_slice %13 {offsets = [3, 0, 0], sizes = [1, 10, 128], strides = [1, 1, 1]} : vector<4x10x128xf32> to vector<1x10x128xf32>
    %23 = vector.extract_strided_slice %0 {offsets = [2, 0, 0], sizes = [1, 10, 128], strides = [1, 1, 1]} : vector<4x10x128xf32> to vector<1x10x128xf32>
    %24 = vector.extract_strided_slice %1 {offsets = [0, 0], sizes = [1, 128], strides = [1, 1]} : vector<3x128xf32> to vector<1x128xf32>
    %25 = vector.shape_cast %24 : vector<1x128xf32> to vector<128xf32>
    %26 = vector.shape_cast %25 : vector<128xf32> to vector<1x1x128xf32>
    %27 = vector.broadcast %26 : vector<1x1x128xf32> to vector<1x10x128xf32>
    %28 = arith.mulf %23, %27 : vector<1x10x128xf32>
    %29 = arith.addf %22, %28 : vector<1x10x128xf32>
    %c0_9 = arith.constant 0 : index
    %c0_10 = arith.constant 0 : index
    %c0_11 = arith.constant 0 : index
    %30 = vector.load %arg5[%c0_9, %c0_10, %c0_11] : memref<4x10x128xf32, #tpu.memory_space<vmem>>, vector<1x10x128xf32>
    tpu.vector_store %arg5[%c0_9, %c0_10, %c0_11], %21 {strides = array<i32>} : memref<4x10x128xf32, #tpu.memory_space<vmem>>, vector<1x10x128xf32>,
    %c3 = arith.constant 3 : index
    %c0_12 = arith.constant 0 : index
    %c0_13 = arith.constant 0 : index
    %31 = vector.load %arg5[%c3, %c0_12, %c0_13] : memref<4x10x128xf32, #tpu.memory_space<vmem>>, vector<1x10x128xf32>
    tpu.vector_store %arg5[%c3, %c0_12, %c0_13], %29 {strides = array<i32>} : memref<4x10x128xf32, #tpu.memory_space<vmem>>, vector<1x10x128xf32>,
    %32 = vector.extract_strided_slice %13 {offsets = [1, 0, 0], sizes = [2, 10, 128], strides = [1, 1, 1]} : vector<4x10x128xf32> to vector<2x10x128xf32>
    %33 = vector.extract_strided_slice %0 {offsets = [0, 0, 0], sizes = [2, 10, 128], strides = [1, 1, 1]} : vector<4x10x128xf32> to vector<2x10x128xf32>
    %34 = vector.extract_strided_slice %1 {offsets = [0, 0], sizes = [1, 128], strides = [1, 1]} : vector<3x128xf32> to vector<1x128xf32>
    %35 = vector.shape_cast %34 : vector<1x128xf32> to vector<128xf32>
    %36 = vector.shape_cast %35 : vector<128xf32> to vector<1x1x128xf32>
    %37 = vector.broadcast %36 : vector<1x1x128xf32> to vector<2x10x128xf32>
    %38 = arith.mulf %33, %37 : vector<2x10x128xf32>
    %39 = arith.addf %32, %38 : vector<2x10x128xf32>
    %40 = vector.extract_strided_slice %0 {offsets = [2, 0, 0], sizes = [2, 10, 128], strides = [1, 1, 1]} : vector<4x10x128xf32> to vector<2x10x128xf32>
    %41 = vector.extract_strided_slice %1 {offsets = [2, 0], sizes = [1, 128], strides = [1, 1]} : vector<3x128xf32> to vector<1x128xf32>
    %42 = vector.shape_cast %41 : vector<1x128xf32> to vector<128xf32>
    %43 = vector.shape_cast %42 : vector<128xf32> to vector<1x1x128xf32>
    %44 = vector.broadcast %43 : vector<1x1x128xf32> to vector<2x10x128xf32>
    %45 = arith.mulf %40, %44 : vector<2x10x128xf32>
    %46 = arith.addf %39, %45 : vector<2x10x128xf32>
    %c1 = arith.constant 1 : index
    %c0_14 = arith.constant 0 : index
    %c0_15 = arith.constant 0 : index
    %47 = vector.load %arg5[%c1, %c0_14, %c0_15] : memref<4x10x128xf32, #tpu.memory_space<vmem>>, vector<2x10x128xf32>
    tpu.vector_store %arg5[%c1, %c0_14, %c0_15], %46 {strides = array<i32>} : memref<4x10x128xf32, #tpu.memory_space<vmem>>, vector<2x10x128xf32>,
    return
  }
  func.func @transform_0(%arg0: i32) -> (i32, i32, i32) {
    %c0_i32 = arith.constant 0 : i32
    %c0_i32_0 = arith.constant 0 : i32
    %c0_i32_1 = arith.constant 0 : i32
    %c0_i32_2 = arith.constant 0 : i32
    return %c0_i32, %c0_i32_0, %c0_i32_1 : i32, i32, i32
  }
  func.func @transform_1(%arg0: i32) -> (i32, i32) {
    %c0_i32 = arith.constant 0 : i32
    %c0_i32_0 = arith.constant 0 : i32
    %c0_i32_1 = arith.constant 0 : i32
    return %c0_i32, %c0_i32_0 : i32, i32
  }
  func.func @transform_2(%arg0: i32) -> (i32, i32) {
    %c0_i32 = arith.constant 0 : i32
    %c0_i32_0 = arith.constant 0 : i32
    %c0_i32_1 = arith.constant 0 : i32
    return %c0_i32, %c0_i32_0 : i32, i32
  }
  func.func @transform_3(%arg0: i32) -> (i32, i32, i32) {
    %c0_i32 = arith.constant 0 : i32
    %c0_i32_0 = arith.constant 0 : i32
    %c0_i32_1 = arith.constant 0 : i32
    %c0_i32_2 = arith.constant 0 : i32
    return %c0_i32, %c0_i32_0, %c0_i32_1 : i32, i32, i32
  }
  func.func @transform_4(%arg0: i32) -> (i32, i32, i32) {
    %c0_i32 = arith.constant 0 : i32
    %c0_i32_0 = arith.constant 0 : i32
    %c0_i32_1 = arith.constant 0 : i32
    %c0_i32_2 = arith.constant 0 : i32
    return %c0_i32, %c0_i32_0, %c0_i32_1 : i32, i32, i32
  }
}

module attributes {stable_mosaic.version = 11 : i64} {
  func.func @_dec_block_kernel(%arg0: i32, %arg1: memref<1x1x128xf32, #tpu.memory_space<vmem>>, %arg2: memref<1x20x128xf32, #tpu.memory_space<vmem>>, %arg3: memref<1x128xf32, #tpu.memory_space<vmem>>, %arg4: memref<1x128xf32, #tpu.memory_space<vmem>>, %arg5: memref<1x128xf32, #tpu.memory_space<vmem>>, %arg6: memref<1x128xf32, #tpu.memory_space<vmem>>, %arg7: memref<4x128x32xf32, #tpu.memory_space<vmem>>, %arg8: memref<4x1x32xf32, #tpu.memory_space<vmem>>, %arg9: memref<4x128x32xf32, #tpu.memory_space<vmem>>, %arg10: memref<4x1x32xf32, #tpu.memory_space<vmem>>, %arg11: memref<4x128x32xf32, #tpu.memory_space<vmem>>, %arg12: memref<4x1x32xf32, #tpu.memory_space<vmem>>, %arg13: memref<4x32x128xf32, #tpu.memory_space<vmem>>, %arg14: memref<1x128xf32, #tpu.memory_space<vmem>>, %arg15: memref<1x128xf32, #tpu.memory_space<vmem>>, %arg16: memref<1x128xf32, #tpu.memory_space<vmem>>, %arg17: memref<128x512xf32, #tpu.memory_space<vmem>>, %arg18: memref<1x512xf32, #tpu.memory_space<vmem>>, %arg19: memref<512x128xf32, #tpu.memory_space<vmem>>, %arg20: memref<1x128xf32, #tpu.memory_space<vmem>>, %arg21: memref<1x1x128xf32, #tpu.memory_space<vmem>>) attributes {dimension_semantics = [#tpu.dimension_semantics<parallel>], iteration_bounds = array<i64: 2>, scalar_prefetch = 0 : i64, scratch_operands = 0 : i64, tpu.core_type = #tpu.core_type<tc>, window_params = [{transform_indices = @transform_0, window_bounds = array<i64: 1, 1, 128>}, {transform_indices = @transform_1, window_bounds = array<i64: 1, 20, 128>}, {pipeline_mode = #tpu.pipeline_mode<synchronous>, transform_indices = @transform_2, window_bounds = array<i64: 1, 128>}, {pipeline_mode = #tpu.pipeline_mode<synchronous>, transform_indices = @transform_3, window_bounds = array<i64: 1, 128>}, {pipeline_mode = #tpu.pipeline_mode<synchronous>, transform_indices = @transform_4, window_bounds = array<i64: 1, 128>}, {pipeline_mode = #tpu.pipeline_mode<synchronous>, transform_indices = @transform_5, window_bounds = array<i64: 1, 128>}, {pipeline_mode = #tpu.pipeline_mode<synchronous>, transform_indices = @transform_6, window_bounds = array<i64: 4, 128, 32>}, {pipeline_mode = #tpu.pipeline_mode<synchronous>, transform_indices = @transform_7, window_bounds = array<i64: 4, 1, 32>}, {pipeline_mode = #tpu.pipeline_mode<synchronous>, transform_indices = @transform_8, window_bounds = array<i64: 4, 128, 32>}, {pipeline_mode = #tpu.pipeline_mode<synchronous>, transform_indices = @transform_9, window_bounds = array<i64: 4, 1, 32>}, {pipeline_mode = #tpu.pipeline_mode<synchronous>, transform_indices = @transform_10, window_bounds = array<i64: 4, 128, 32>}, {pipeline_mode = #tpu.pipeline_mode<synchronous>, transform_indices = @transform_11, window_bounds = array<i64: 4, 1, 32>}, {pipeline_mode = #tpu.pipeline_mode<synchronous>, transform_indices = @transform_12, window_bounds = array<i64: 4, 32, 128>}, {pipeline_mode = #tpu.pipeline_mode<synchronous>, transform_indices = @transform_13, window_bounds = array<i64: 1, 128>}, {pipeline_mode = #tpu.pipeline_mode<synchronous>, transform_indices = @transform_14, window_bounds = array<i64: 1, 128>}, {pipeline_mode = #tpu.pipeline_mode<synchronous>, transform_indices = @transform_15, window_bounds = array<i64: 1, 128>}, {pipeline_mode = #tpu.pipeline_mode<synchronous>, transform_indices = @transform_16, window_bounds = array<i64: 128, 512>}, {pipeline_mode = #tpu.pipeline_mode<synchronous>, transform_indices = @transform_17, window_bounds = array<i64: 1, 512>}, {pipeline_mode = #tpu.pipeline_mode<synchronous>, transform_indices = @transform_18, window_bounds = array<i64: 512, 128>}, {pipeline_mode = #tpu.pipeline_mode<synchronous>, transform_indices = @transform_19, window_bounds = array<i64: 1, 128>}, {transform_indices = @transform_20, window_bounds = array<i64: 1, 1, 128>}]} {
    %c0 = arith.constant 0 : index
    %c0_0 = arith.constant 0 : index
    %c0_1 = arith.constant 0 : index
    %0 = vector.load %arg1[%c0, %c0_0, %c0_1] : memref<1x1x128xf32, #tpu.memory_space<vmem>>, vector<1x1x128xf32>
    %1 = vector.shape_cast %0 : vector<1x1x128xf32> to vector<1x128xf32>
    %c0_2 = arith.constant 0 : index
    %c0_3 = arith.constant 0 : index
    %c0_4 = arith.constant 0 : index
    %2 = vector.load %arg2[%c0_2, %c0_3, %c0_4] : memref<1x20x128xf32, #tpu.memory_space<vmem>>, vector<1x20x128xf32>
    %3 = vector.shape_cast %2 : vector<1x20x128xf32> to vector<20x128xf32>
    %c0_5 = arith.constant 0 : index
    %c0_6 = arith.constant 0 : index
    %4 = vector.load %arg3[%c0_5, %c0_6] : memref<1x128xf32, #tpu.memory_space<vmem>>, vector<1x128xf32>
    %c0_7 = arith.constant 0 : index
    %c0_8 = arith.constant 0 : index
    %5 = vector.load %arg4[%c0_7, %c0_8] : memref<1x128xf32, #tpu.memory_space<vmem>>, vector<1x128xf32>
    %cst = arith.constant dense<0.000000e+00> : vector<1xf32>
    %6 = vector.multi_reduction <add>, %1, %cst [1] : vector<1x128xf32> to vector<1xf32>
    %7 = vector.shape_cast %6 : vector<1xf32> to vector<1x1xf32>
    %cst_9 = arith.constant 1.280000e+02 : f32
    %8 = vector.broadcast %cst_9 : f32 to vector<1x1xf32>
    %9 = arith.divf %7, %8 : vector<1x1xf32>
    %10 = vector.broadcast %9 : vector<1x1xf32> to vector<1x128xf32>
    %11 = arith.subf %1, %10 : vector<1x128xf32>
    %12 = arith.mulf %11, %11 : vector<1x128xf32>
    %cst_10 = arith.constant dense<0.000000e+00> : vector<1xf32>
    %13 = vector.multi_reduction <add>, %12, %cst_10 [1] : vector<1x128xf32> to vector<1xf32>
    %14 = vector.shape_cast %13 : vector<1xf32> to vector<1x1xf32>
    %cst_11 = arith.constant 1.280000e+02 : f32
    %15 = vector.broadcast %cst_11 : f32 to vector<1x1xf32>
    %16 = arith.divf %14, %15 : vector<1x1xf32>
    %cst_12 = arith.constant 9.99999974E-6 : f32
    %17 = vector.broadcast %cst_12 : f32 to vector<1x1xf32>
    %18 = arith.addf %16, %17 : vector<1x1xf32>
    %19 = math.rsqrt %18 : vector<1x1xf32>
    %20 = vector.broadcast %19 : vector<1x1xf32> to vector<1x128xf32>
    %21 = arith.mulf %11, %20 : vector<1x128xf32>
    %22 = arith.mulf %21, %4 : vector<1x128xf32>
    %23 = arith.addf %22, %5 : vector<1x128xf32>
    %c0_13 = arith.constant 0 : index
    %c0_14 = arith.constant 0 : index
    %24 = vector.load %arg5[%c0_13, %c0_14] : memref<1x128xf32, #tpu.memory_space<vmem>>, vector<1x128xf32>
    %c0_15 = arith.constant 0 : index
    %c0_16 = arith.constant 0 : index
    %25 = vector.load %arg6[%c0_15, %c0_16] : memref<1x128xf32, #tpu.memory_space<vmem>>, vector<1x128xf32>
    %cst_17 = arith.constant dense<0.000000e+00> : vector<20xf32>
    %26 = vector.multi_reduction <add>, %3, %cst_17 [1] : vector<20x128xf32> to vector<20xf32>
    %27 = vector.shape_cast %26 : vector<20xf32> to vector<20x1xf32>
    %cst_18 = arith.constant 1.280000e+02 : f32
    %28 = vector.broadcast %cst_18 : f32 to vector<20x1xf32>
    %29 = arith.divf %27, %28 : vector<20x1xf32>
    %30 = vector.broadcast %29 : vector<20x1xf32> to vector<20x128xf32>
    %31 = arith.subf %3, %30 : vector<20x128xf32>
    %32 = arith.mulf %31, %31 : vector<20x128xf32>
    %cst_19 = arith.constant dense<0.000000e+00> : vector<20xf32>
    %33 = vector.multi_reduction <add>, %32, %cst_19 [1] : vector<20x128xf32> to vector<20xf32>
    %34 = vector.shape_cast %33 : vector<20xf32> to vector<20x1xf32>
    %cst_20 = arith.constant 1.280000e+02 : f32
    %35 = vector.broadcast %cst_20 : f32 to vector<20x1xf32>
    %36 = arith.divf %34, %35 : vector<20x1xf32>
    %cst_21 = arith.constant 9.99999974E-6 : f32
    %37 = vector.broadcast %cst_21 : f32 to vector<20x1xf32>
    %38 = arith.addf %36, %37 : vector<20x1xf32>
    %39 = math.rsqrt %38 : vector<20x1xf32>
    %40 = vector.broadcast %39 : vector<20x1xf32> to vector<20x128xf32>
    %41 = arith.mulf %31, %40 : vector<20x128xf32>
    %42 = vector.broadcast %24 : vector<1x128xf32> to vector<20x128xf32>
    %43 = arith.mulf %41, %42 : vector<20x128xf32>
    %44 = vector.broadcast %25 : vector<1x128xf32> to vector<20x128xf32>
    %45 = arith.addf %43, %44 : vector<20x128xf32>
    %c0_22 = arith.constant 0 : index
    %c0_23 = arith.constant 0 : index
    %46 = vector.load %arg14[%c0_22, %c0_23] : memref<1x128xf32, #tpu.memory_space<vmem>>, vector<1x128xf32>
    %cst_24 = arith.constant 0.000000e+00 : f32
    %47 = vector.broadcast %cst_24 : f32 to vector<1x128xf32>
    %c0_25 = arith.constant 0 : index
    %c0_26 = arith.constant 0 : index
    %c0_27 = arith.constant 0 : index
    %48 = vector.load %arg7[%c0_25, %c0_26, %c0_27] : memref<4x128x32xf32, #tpu.memory_space<vmem>>, vector<1x128x32xf32>
    %49 = vector.shape_cast %48 : vector<1x128x32xf32> to vector<128x32xf32>
    %c0_28 = arith.constant 0 : index
    %c0_29 = arith.constant 0 : index
    %c0_30 = arith.constant 0 : index
    %50 = vector.load %arg8[%c0_28, %c0_29, %c0_30] : memref<4x1x32xf32, #tpu.memory_space<vmem>>, vector<1x1x32xf32>
    %51 = vector.shape_cast %50 : vector<1x1x32xf32> to vector<1x32xf32>
    %52 = arith.truncf %23 : vector<1x128xf32> to vector<1x128xbf16>
    %53 = arith.truncf %49 : vector<128x32xf32> to vector<128x32xbf16>
    %cst_31 = arith.constant dense<0.000000e+00> : vector<1x32xf32>
    %54 = tpu.matmul %52, %53, %cst_31 {dimension_numbers = #tpu.dot_dimension_numbers<[1], [0], [0], [1], [0, 0, 1, 1], [], []>} : vector<1x128xbf16>, vector<128x32xbf16>, vector<1x32xf32> -> vector<1x32xf32>
    %55 = arith.addf %54, %51 : vector<1x32xf32>
    %cst_32 = arith.constant 0.176776692 : f32
    %56 = vector.broadcast %cst_32 : f32 to vector<1x32xf32>
    %57 = arith.mulf %55, %56 : vector<1x32xf32>
    %c0_33 = arith.constant 0 : index
    %c0_34 = arith.constant 0 : index
    %c0_35 = arith.constant 0 : index
    %58 = vector.load %arg9[%c0_33, %c0_34, %c0_35] : memref<4x128x32xf32, #tpu.memory_space<vmem>>, vector<1x128x32xf32>
    %59 = vector.shape_cast %58 : vector<1x128x32xf32> to vector<128x32xf32>
    %c0_36 = arith.constant 0 : index
    %c0_37 = arith.constant 0 : index
    %c0_38 = arith.constant 0 : index
    %60 = vector.load %arg10[%c0_36, %c0_37, %c0_38] : memref<4x1x32xf32, #tpu.memory_space<vmem>>, vector<1x1x32xf32>
    %61 = vector.shape_cast %60 : vector<1x1x32xf32> to vector<1x32xf32>
    %62 = arith.truncf %45 : vector<20x128xf32> to vector<20x128xbf16>
    %63 = arith.truncf %59 : vector<128x32xf32> to vector<128x32xbf16>
    %cst_39 = arith.constant dense<0.000000e+00> : vector<20x32xf32>
    %64 = tpu.matmul %62, %63, %cst_39 {dimension_numbers = #tpu.dot_dimension_numbers<[1], [0], [0], [1], [0, 0, 1, 1], [], []>} : vector<20x128xbf16>, vector<128x32xbf16>, vector<20x32xf32> -> vector<20x32xf32>
    %65 = vector.broadcast %61 : vector<1x32xf32> to vector<20x32xf32>
    %66 = arith.addf %64, %65 : vector<20x32xf32>
    %c0_40 = arith.constant 0 : index
    %c0_41 = arith.constant 0 : index
    %c0_42 = arith.constant 0 : index
    %67 = vector.load %arg11[%c0_40, %c0_41, %c0_42] : memref<4x128x32xf32, #tpu.memory_space<vmem>>, vector<1x128x32xf32>
    %68 = vector.shape_cast %67 : vector<1x128x32xf32> to vector<128x32xf32>
    %c0_43 = arith.constant 0 : index
    %c0_44 = arith.constant 0 : index
    %c0_45 = arith.constant 0 : index
    %69 = vector.load %arg12[%c0_43, %c0_44, %c0_45] : memref<4x1x32xf32, #tpu.memory_space<vmem>>, vector<1x1x32xf32>
    %70 = vector.shape_cast %69 : vector<1x1x32xf32> to vector<1x32xf32>
    %71 = arith.truncf %45 : vector<20x128xf32> to vector<20x128xbf16>
    %72 = arith.truncf %68 : vector<128x32xf32> to vector<128x32xbf16>
    %cst_46 = arith.constant dense<0.000000e+00> : vector<20x32xf32>
    %73 = tpu.matmul %71, %72, %cst_46 {dimension_numbers = #tpu.dot_dimension_numbers<[1], [0], [0], [1], [0, 0, 1, 1], [], []>} : vector<20x128xbf16>, vector<128x32xbf16>, vector<20x32xf32> -> vector<20x32xf32>
    %74 = vector.broadcast %70 : vector<1x32xf32> to vector<20x32xf32>
    %75 = arith.addf %73, %74 : vector<20x32xf32>
    %76 = arith.truncf %57 : vector<1x32xf32> to vector<1x32xbf16>
    %77 = arith.truncf %66 : vector<20x32xf32> to vector<20x32xbf16>
    %cst_47 = arith.constant dense<0.000000e+00> : vector<1x20xf32>
    %78 = tpu.matmul %76, %77, %cst_47 {dimension_numbers = #tpu.dot_dimension_numbers<[1], [1], [0], [0], [0, 0, 1, 0], [], []>} : vector<1x32xbf16>, vector<20x32xbf16>, vector<1x20xf32> -> vector<1x20xf32>
    %cst_48 = arith.constant dense<0xFF800000> : vector<1xf32>
    %79 = vector.multi_reduction <maximumf>, %78, %cst_48 [1] : vector<1x20xf32> to vector<1xf32>
    %80 = vector.shape_cast %79 : vector<1xf32> to vector<1x1xf32>
    %81 = vector.broadcast %80 : vector<1x1xf32> to vector<1x20xf32>
    %82 = arith.subf %78, %81 : vector<1x20xf32>
    %83 = math.exp %82 : vector<1x20xf32>
    %cst_49 = arith.constant dense<0.000000e+00> : vector<1xf32>
    %84 = vector.multi_reduction <add>, %83, %cst_49 [1] : vector<1x20xf32> to vector<1xf32>
    %85 = vector.shape_cast %84 : vector<1xf32> to vector<1x1xf32>
    %86 = tpu.reciprocal %85 {approx = true} : vector<1x1xf32> -> vector<1x1xf32>
    %87 = vector.broadcast %86 : vector<1x1xf32> to vector<1x20xf32>
    %88 = arith.mulf %83, %87 : vector<1x20xf32>
    %89 = arith.truncf %88 : vector<1x20xf32> to vector<1x20xbf16>
    %90 = arith.truncf %75 : vector<20x32xf32> to vector<20x32xbf16>
    %cst_50 = arith.constant dense<0.000000e+00> : vector<1x32xf32>
    %91 = tpu.matmul %89, %90, %cst_50 {dimension_numbers = #tpu.dot_dimension_numbers<[1], [0], [0], [1], [0, 0, 1, 1], [], []>} : vector<1x20xbf16>, vector<20x32xbf16>, vector<1x32xf32> -> vector<1x32xf32>
    %c0_51 = arith.constant 0 : index
    %c0_52 = arith.constant 0 : index
    %c0_53 = arith.constant 0 : index
    %92 = vector.load %arg13[%c0_51, %c0_52, %c0_53] : memref<4x32x128xf32, #tpu.memory_space<vmem>>, vector<1x32x128xf32>
    %93 = vector.shape_cast %92 : vector<1x32x128xf32> to vector<32x128xf32>
    %94 = arith.truncf %91 : vector<1x32xf32> to vector<1x32xbf16>
    %95 = arith.truncf %93 : vector<32x128xf32> to vector<32x128xbf16>
    %cst_54 = arith.constant dense<0.000000e+00> : vector<1x128xf32>
    %96 = tpu.matmul %94, %95, %cst_54 {dimension_numbers = #tpu.dot_dimension_numbers<[1], [0], [0], [1], [0, 0, 1, 1], [], []>} : vector<1x32xbf16>, vector<32x128xbf16>, vector<1x128xf32> -> vector<1x128xf32>
    %97 = arith.addf %47, %96 : vector<1x128xf32>
    %c1 = arith.constant 1 : index
    %c0_55 = arith.constant 0 : index
    %c0_56 = arith.constant 0 : index
    %98 = vector.load %arg7[%c1, %c0_55, %c0_56] : memref<4x128x32xf32, #tpu.memory_space<vmem>>, vector<1x128x32xf32>
    %99 = vector.shape_cast %98 : vector<1x128x32xf32> to vector<128x32xf32>
    %c1_57 = arith.constant 1 : index
    %c0_58 = arith.constant 0 : index
    %c0_59 = arith.constant 0 : index
    %100 = vector.load %arg8[%c1_57, %c0_58, %c0_59] : memref<4x1x32xf32, #tpu.memory_space<vmem>>, vector<1x1x32xf32>
    %101 = vector.shape_cast %100 : vector<1x1x32xf32> to vector<1x32xf32>
    %102 = arith.truncf %23 : vector<1x128xf32> to vector<1x128xbf16>
    %103 = arith.truncf %99 : vector<128x32xf32> to vector<128x32xbf16>
    %cst_60 = arith.constant dense<0.000000e+00> : vector<1x32xf32>
    %104 = tpu.matmul %102, %103, %cst_60 {dimension_numbers = #tpu.dot_dimension_numbers<[1], [0], [0], [1], [0, 0, 1, 1], [], []>} : vector<1x128xbf16>, vector<128x32xbf16>, vector<1x32xf32> -> vector<1x32xf32>
    %105 = arith.addf %104, %101 : vector<1x32xf32>
    %cst_61 = arith.constant 0.176776692 : f32
    %106 = vector.broadcast %cst_61 : f32 to vector<1x32xf32>
    %107 = arith.mulf %105, %106 : vector<1x32xf32>
    %c1_62 = arith.constant 1 : index
    %c0_63 = arith.constant 0 : index
    %c0_64 = arith.constant 0 : index
    %108 = vector.load %arg9[%c1_62, %c0_63, %c0_64] : memref<4x128x32xf32, #tpu.memory_space<vmem>>, vector<1x128x32xf32>
    %109 = vector.shape_cast %108 : vector<1x128x32xf32> to vector<128x32xf32>
    %c1_65 = arith.constant 1 : index
    %c0_66 = arith.constant 0 : index
    %c0_67 = arith.constant 0 : index
    %110 = vector.load %arg10[%c1_65, %c0_66, %c0_67] : memref<4x1x32xf32, #tpu.memory_space<vmem>>, vector<1x1x32xf32>
    %111 = vector.shape_cast %110 : vector<1x1x32xf32> to vector<1x32xf32>
    %112 = arith.truncf %45 : vector<20x128xf32> to vector<20x128xbf16>
    %113 = arith.truncf %109 : vector<128x32xf32> to vector<128x32xbf16>
    %cst_68 = arith.constant dense<0.000000e+00> : vector<20x32xf32>
    %114 = tpu.matmul %112, %113, %cst_68 {dimension_numbers = #tpu.dot_dimension_numbers<[1], [0], [0], [1], [0, 0, 1, 1], [], []>} : vector<20x128xbf16>, vector<128x32xbf16>, vector<20x32xf32> -> vector<20x32xf32>
    %115 = vector.broadcast %111 : vector<1x32xf32> to vector<20x32xf32>
    %116 = arith.addf %114, %115 : vector<20x32xf32>
    %c1_69 = arith.constant 1 : index
    %c0_70 = arith.constant 0 : index
    %c0_71 = arith.constant 0 : index
    %117 = vector.load %arg11[%c1_69, %c0_70, %c0_71] : memref<4x128x32xf32, #tpu.memory_space<vmem>>, vector<1x128x32xf32>
    %118 = vector.shape_cast %117 : vector<1x128x32xf32> to vector<128x32xf32>
    %c1_72 = arith.constant 1 : index
    %c0_73 = arith.constant 0 : index
    %c0_74 = arith.constant 0 : index
    %119 = vector.load %arg12[%c1_72, %c0_73, %c0_74] : memref<4x1x32xf32, #tpu.memory_space<vmem>>, vector<1x1x32xf32>
    %120 = vector.shape_cast %119 : vector<1x1x32xf32> to vector<1x32xf32>
    %121 = arith.truncf %45 : vector<20x128xf32> to vector<20x128xbf16>
    %122 = arith.truncf %118 : vector<128x32xf32> to vector<128x32xbf16>
    %cst_75 = arith.constant dense<0.000000e+00> : vector<20x32xf32>
    %123 = tpu.matmul %121, %122, %cst_75 {dimension_numbers = #tpu.dot_dimension_numbers<[1], [0], [0], [1], [0, 0, 1, 1], [], []>} : vector<20x128xbf16>, vector<128x32xbf16>, vector<20x32xf32> -> vector<20x32xf32>
    %124 = vector.broadcast %120 : vector<1x32xf32> to vector<20x32xf32>
    %125 = arith.addf %123, %124 : vector<20x32xf32>
    %126 = arith.truncf %107 : vector<1x32xf32> to vector<1x32xbf16>
    %127 = arith.truncf %116 : vector<20x32xf32> to vector<20x32xbf16>
    %cst_76 = arith.constant dense<0.000000e+00> : vector<1x20xf32>
    %128 = tpu.matmul %126, %127, %cst_76 {dimension_numbers = #tpu.dot_dimension_numbers<[1], [1], [0], [0], [0, 0, 1, 0], [], []>} : vector<1x32xbf16>, vector<20x32xbf16>, vector<1x20xf32> -> vector<1x20xf32>
    %cst_77 = arith.constant dense<0xFF800000> : vector<1xf32>
    %129 = vector.multi_reduction <maximumf>, %128, %cst_77 [1] : vector<1x20xf32> to vector<1xf32>
    %130 = vector.shape_cast %129 : vector<1xf32> to vector<1x1xf32>
    %131 = vector.broadcast %130 : vector<1x1xf32> to vector<1x20xf32>
    %132 = arith.subf %128, %131 : vector<1x20xf32>
    %133 = math.exp %132 : vector<1x20xf32>
    %cst_78 = arith.constant dense<0.000000e+00> : vector<1xf32>
    %134 = vector.multi_reduction <add>, %133, %cst_78 [1] : vector<1x20xf32> to vector<1xf32>
    %135 = vector.shape_cast %134 : vector<1xf32> to vector<1x1xf32>
    %136 = tpu.reciprocal %135 {approx = true} : vector<1x1xf32> -> vector<1x1xf32>
    %137 = vector.broadcast %136 : vector<1x1xf32> to vector<1x20xf32>
    %138 = arith.mulf %133, %137 : vector<1x20xf32>
    %139 = arith.truncf %138 : vector<1x20xf32> to vector<1x20xbf16>
    %140 = arith.truncf %125 : vector<20x32xf32> to vector<20x32xbf16>
    %cst_79 = arith.constant dense<0.000000e+00> : vector<1x32xf32>
    %141 = tpu.matmul %139, %140, %cst_79 {dimension_numbers = #tpu.dot_dimension_numbers<[1], [0], [0], [1], [0, 0, 1, 1], [], []>} : vector<1x20xbf16>, vector<20x32xbf16>, vector<1x32xf32> -> vector<1x32xf32>
    %c1_80 = arith.constant 1 : index
    %c0_81 = arith.constant 0 : index
    %c0_82 = arith.constant 0 : index
    %142 = vector.load %arg13[%c1_80, %c0_81, %c0_82] : memref<4x32x128xf32, #tpu.memory_space<vmem>>, vector<1x32x128xf32>
    %143 = vector.shape_cast %142 : vector<1x32x128xf32> to vector<32x128xf32>
    %144 = arith.truncf %141 : vector<1x32xf32> to vector<1x32xbf16>
    %145 = arith.truncf %143 : vector<32x128xf32> to vector<32x128xbf16>
    %cst_83 = arith.constant dense<0.000000e+00> : vector<1x128xf32>
    %146 = tpu.matmul %144, %145, %cst_83 {dimension_numbers = #tpu.dot_dimension_numbers<[1], [0], [0], [1], [0, 0, 1, 1], [], []>} : vector<1x32xbf16>, vector<32x128xbf16>, vector<1x128xf32> -> vector<1x128xf32>
    %147 = arith.addf %97, %146 : vector<1x128xf32>
    %c2 = arith.constant 2 : index
    %c0_84 = arith.constant 0 : index
    %c0_85 = arith.constant 0 : index
    %148 = vector.load %arg7[%c2, %c0_84, %c0_85] : memref<4x128x32xf32, #tpu.memory_space<vmem>>, vector<1x128x32xf32>
    %149 = vector.shape_cast %148 : vector<1x128x32xf32> to vector<128x32xf32>
    %c2_86 = arith.constant 2 : index
    %c0_87 = arith.constant 0 : index
    %c0_88 = arith.constant 0 : index
    %150 = vector.load %arg8[%c2_86, %c0_87, %c0_88] : memref<4x1x32xf32, #tpu.memory_space<vmem>>, vector<1x1x32xf32>
    %151 = vector.shape_cast %150 : vector<1x1x32xf32> to vector<1x32xf32>
    %152 = arith.truncf %23 : vector<1x128xf32> to vector<1x128xbf16>
    %153 = arith.truncf %149 : vector<128x32xf32> to vector<128x32xbf16>
    %cst_89 = arith.constant dense<0.000000e+00> : vector<1x32xf32>
    %154 = tpu.matmul %152, %153, %cst_89 {dimension_numbers = #tpu.dot_dimension_numbers<[1], [0], [0], [1], [0, 0, 1, 1], [], []>} : vector<1x128xbf16>, vector<128x32xbf16>, vector<1x32xf32> -> vector<1x32xf32>
    %155 = arith.addf %154, %151 : vector<1x32xf32>
    %cst_90 = arith.constant 0.176776692 : f32
    %156 = vector.broadcast %cst_90 : f32 to vector<1x32xf32>
    %157 = arith.mulf %155, %156 : vector<1x32xf32>
    %c2_91 = arith.constant 2 : index
    %c0_92 = arith.constant 0 : index
    %c0_93 = arith.constant 0 : index
    %158 = vector.load %arg9[%c2_91, %c0_92, %c0_93] : memref<4x128x32xf32, #tpu.memory_space<vmem>>, vector<1x128x32xf32>
    %159 = vector.shape_cast %158 : vector<1x128x32xf32> to vector<128x32xf32>
    %c2_94 = arith.constant 2 : index
    %c0_95 = arith.constant 0 : index
    %c0_96 = arith.constant 0 : index
    %160 = vector.load %arg10[%c2_94, %c0_95, %c0_96] : memref<4x1x32xf32, #tpu.memory_space<vmem>>, vector<1x1x32xf32>
    %161 = vector.shape_cast %160 : vector<1x1x32xf32> to vector<1x32xf32>
    %162 = arith.truncf %45 : vector<20x128xf32> to vector<20x128xbf16>
    %163 = arith.truncf %159 : vector<128x32xf32> to vector<128x32xbf16>
    %cst_97 = arith.constant dense<0.000000e+00> : vector<20x32xf32>
    %164 = tpu.matmul %162, %163, %cst_97 {dimension_numbers = #tpu.dot_dimension_numbers<[1], [0], [0], [1], [0, 0, 1, 1], [], []>} : vector<20x128xbf16>, vector<128x32xbf16>, vector<20x32xf32> -> vector<20x32xf32>
    %165 = vector.broadcast %161 : vector<1x32xf32> to vector<20x32xf32>
    %166 = arith.addf %164, %165 : vector<20x32xf32>
    %c2_98 = arith.constant 2 : index
    %c0_99 = arith.constant 0 : index
    %c0_100 = arith.constant 0 : index
    %167 = vector.load %arg11[%c2_98, %c0_99, %c0_100] : memref<4x128x32xf32, #tpu.memory_space<vmem>>, vector<1x128x32xf32>
    %168 = vector.shape_cast %167 : vector<1x128x32xf32> to vector<128x32xf32>
    %c2_101 = arith.constant 2 : index
    %c0_102 = arith.constant 0 : index
    %c0_103 = arith.constant 0 : index
    %169 = vector.load %arg12[%c2_101, %c0_102, %c0_103] : memref<4x1x32xf32, #tpu.memory_space<vmem>>, vector<1x1x32xf32>
    %170 = vector.shape_cast %169 : vector<1x1x32xf32> to vector<1x32xf32>
    %171 = arith.truncf %45 : vector<20x128xf32> to vector<20x128xbf16>
    %172 = arith.truncf %168 : vector<128x32xf32> to vector<128x32xbf16>
    %cst_104 = arith.constant dense<0.000000e+00> : vector<20x32xf32>
    %173 = tpu.matmul %171, %172, %cst_104 {dimension_numbers = #tpu.dot_dimension_numbers<[1], [0], [0], [1], [0, 0, 1, 1], [], []>} : vector<20x128xbf16>, vector<128x32xbf16>, vector<20x32xf32> -> vector<20x32xf32>
    %174 = vector.broadcast %170 : vector<1x32xf32> to vector<20x32xf32>
    %175 = arith.addf %173, %174 : vector<20x32xf32>
    %176 = arith.truncf %157 : vector<1x32xf32> to vector<1x32xbf16>
    %177 = arith.truncf %166 : vector<20x32xf32> to vector<20x32xbf16>
    %cst_105 = arith.constant dense<0.000000e+00> : vector<1x20xf32>
    %178 = tpu.matmul %176, %177, %cst_105 {dimension_numbers = #tpu.dot_dimension_numbers<[1], [1], [0], [0], [0, 0, 1, 0], [], []>} : vector<1x32xbf16>, vector<20x32xbf16>, vector<1x20xf32> -> vector<1x20xf32>
    %cst_106 = arith.constant dense<0xFF800000> : vector<1xf32>
    %179 = vector.multi_reduction <maximumf>, %178, %cst_106 [1] : vector<1x20xf32> to vector<1xf32>
    %180 = vector.shape_cast %179 : vector<1xf32> to vector<1x1xf32>
    %181 = vector.broadcast %180 : vector<1x1xf32> to vector<1x20xf32>
    %182 = arith.subf %178, %181 : vector<1x20xf32>
    %183 = math.exp %182 : vector<1x20xf32>
    %cst_107 = arith.constant dense<0.000000e+00> : vector<1xf32>
    %184 = vector.multi_reduction <add>, %183, %cst_107 [1] : vector<1x20xf32> to vector<1xf32>
    %185 = vector.shape_cast %184 : vector<1xf32> to vector<1x1xf32>
    %186 = tpu.reciprocal %185 {approx = true} : vector<1x1xf32> -> vector<1x1xf32>
    %187 = vector.broadcast %186 : vector<1x1xf32> to vector<1x20xf32>
    %188 = arith.mulf %183, %187 : vector<1x20xf32>
    %189 = arith.truncf %188 : vector<1x20xf32> to vector<1x20xbf16>
    %190 = arith.truncf %175 : vector<20x32xf32> to vector<20x32xbf16>
    %cst_108 = arith.constant dense<0.000000e+00> : vector<1x32xf32>
    %191 = tpu.matmul %189, %190, %cst_108 {dimension_numbers = #tpu.dot_dimension_numbers<[1], [0], [0], [1], [0, 0, 1, 1], [], []>} : vector<1x20xbf16>, vector<20x32xbf16>, vector<1x32xf32> -> vector<1x32xf32>
    %c2_109 = arith.constant 2 : index
    %c0_110 = arith.constant 0 : index
    %c0_111 = arith.constant 0 : index
    %192 = vector.load %arg13[%c2_109, %c0_110, %c0_111] : memref<4x32x128xf32, #tpu.memory_space<vmem>>, vector<1x32x128xf32>
    %193 = vector.shape_cast %192 : vector<1x32x128xf32> to vector<32x128xf32>
    %194 = arith.truncf %191 : vector<1x32xf32> to vector<1x32xbf16>
    %195 = arith.truncf %193 : vector<32x128xf32> to vector<32x128xbf16>
    %cst_112 = arith.constant dense<0.000000e+00> : vector<1x128xf32>
    %196 = tpu.matmul %194, %195, %cst_112 {dimension_numbers = #tpu.dot_dimension_numbers<[1], [0], [0], [1], [0, 0, 1, 1], [], []>} : vector<1x32xbf16>, vector<32x128xbf16>, vector<1x128xf32> -> vector<1x128xf32>
    %197 = arith.addf %147, %196 : vector<1x128xf32>
    %c3 = arith.constant 3 : index
    %c0_113 = arith.constant 0 : index
    %c0_114 = arith.constant 0 : index
    %198 = vector.load %arg7[%c3, %c0_113, %c0_114] : memref<4x128x32xf32, #tpu.memory_space<vmem>>, vector<1x128x32xf32>
    %199 = vector.shape_cast %198 : vector<1x128x32xf32> to vector<128x32xf32>
    %c3_115 = arith.constant 3 : index
    %c0_116 = arith.constant 0 : index
    %c0_117 = arith.constant 0 : index
    %200 = vector.load %arg8[%c3_115, %c0_116, %c0_117] : memref<4x1x32xf32, #tpu.memory_space<vmem>>, vector<1x1x32xf32>
    %201 = vector.shape_cast %200 : vector<1x1x32xf32> to vector<1x32xf32>
    %202 = arith.truncf %23 : vector<1x128xf32> to vector<1x128xbf16>
    %203 = arith.truncf %199 : vector<128x32xf32> to vector<128x32xbf16>
    %cst_118 = arith.constant dense<0.000000e+00> : vector<1x32xf32>
    %204 = tpu.matmul %202, %203, %cst_118 {dimension_numbers = #tpu.dot_dimension_numbers<[1], [0], [0], [1], [0, 0, 1, 1], [], []>} : vector<1x128xbf16>, vector<128x32xbf16>, vector<1x32xf32> -> vector<1x32xf32>
    %205 = arith.addf %204, %201 : vector<1x32xf32>
    %cst_119 = arith.constant 0.176776692 : f32
    %206 = vector.broadcast %cst_119 : f32 to vector<1x32xf32>
    %207 = arith.mulf %205, %206 : vector<1x32xf32>
    %c3_120 = arith.constant 3 : index
    %c0_121 = arith.constant 0 : index
    %c0_122 = arith.constant 0 : index
    %208 = vector.load %arg9[%c3_120, %c0_121, %c0_122] : memref<4x128x32xf32, #tpu.memory_space<vmem>>, vector<1x128x32xf32>
    %209 = vector.shape_cast %208 : vector<1x128x32xf32> to vector<128x32xf32>
    %c3_123 = arith.constant 3 : index
    %c0_124 = arith.constant 0 : index
    %c0_125 = arith.constant 0 : index
    %210 = vector.load %arg10[%c3_123, %c0_124, %c0_125] : memref<4x1x32xf32, #tpu.memory_space<vmem>>, vector<1x1x32xf32>
    %211 = vector.shape_cast %210 : vector<1x1x32xf32> to vector<1x32xf32>
    %212 = arith.truncf %45 : vector<20x128xf32> to vector<20x128xbf16>
    %213 = arith.truncf %209 : vector<128x32xf32> to vector<128x32xbf16>
    %cst_126 = arith.constant dense<0.000000e+00> : vector<20x32xf32>
    %214 = tpu.matmul %212, %213, %cst_126 {dimension_numbers = #tpu.dot_dimension_numbers<[1], [0], [0], [1], [0, 0, 1, 1], [], []>} : vector<20x128xbf16>, vector<128x32xbf16>, vector<20x32xf32> -> vector<20x32xf32>
    %215 = vector.broadcast %211 : vector<1x32xf32> to vector<20x32xf32>
    %216 = arith.addf %214, %215 : vector<20x32xf32>
    %c3_127 = arith.constant 3 : index
    %c0_128 = arith.constant 0 : index
    %c0_129 = arith.constant 0 : index
    %217 = vector.load %arg11[%c3_127, %c0_128, %c0_129] : memref<4x128x32xf32, #tpu.memory_space<vmem>>, vector<1x128x32xf32>
    %218 = vector.shape_cast %217 : vector<1x128x32xf32> to vector<128x32xf32>
    %c3_130 = arith.constant 3 : index
    %c0_131 = arith.constant 0 : index
    %c0_132 = arith.constant 0 : index
    %219 = vector.load %arg12[%c3_130, %c0_131, %c0_132] : memref<4x1x32xf32, #tpu.memory_space<vmem>>, vector<1x1x32xf32>
    %220 = vector.shape_cast %219 : vector<1x1x32xf32> to vector<1x32xf32>
    %221 = arith.truncf %45 : vector<20x128xf32> to vector<20x128xbf16>
    %222 = arith.truncf %218 : vector<128x32xf32> to vector<128x32xbf16>
    %cst_133 = arith.constant dense<0.000000e+00> : vector<20x32xf32>
    %223 = tpu.matmul %221, %222, %cst_133 {dimension_numbers = #tpu.dot_dimension_numbers<[1], [0], [0], [1], [0, 0, 1, 1], [], []>} : vector<20x128xbf16>, vector<128x32xbf16>, vector<20x32xf32> -> vector<20x32xf32>
    %224 = vector.broadcast %220 : vector<1x32xf32> to vector<20x32xf32>
    %225 = arith.addf %223, %224 : vector<20x32xf32>
    %226 = arith.truncf %207 : vector<1x32xf32> to vector<1x32xbf16>
    %227 = arith.truncf %216 : vector<20x32xf32> to vector<20x32xbf16>
    %cst_134 = arith.constant dense<0.000000e+00> : vector<1x20xf32>
    %228 = tpu.matmul %226, %227, %cst_134 {dimension_numbers = #tpu.dot_dimension_numbers<[1], [1], [0], [0], [0, 0, 1, 0], [], []>} : vector<1x32xbf16>, vector<20x32xbf16>, vector<1x20xf32> -> vector<1x20xf32>
    %cst_135 = arith.constant dense<0xFF800000> : vector<1xf32>
    %229 = vector.multi_reduction <maximumf>, %228, %cst_135 [1] : vector<1x20xf32> to vector<1xf32>
    %230 = vector.shape_cast %229 : vector<1xf32> to vector<1x1xf32>
    %231 = vector.broadcast %230 : vector<1x1xf32> to vector<1x20xf32>
    %232 = arith.subf %228, %231 : vector<1x20xf32>
    %233 = math.exp %232 : vector<1x20xf32>
    %cst_136 = arith.constant dense<0.000000e+00> : vector<1xf32>
    %234 = vector.multi_reduction <add>, %233, %cst_136 [1] : vector<1x20xf32> to vector<1xf32>
    %235 = vector.shape_cast %234 : vector<1xf32> to vector<1x1xf32>
    %236 = tpu.reciprocal %235 {approx = true} : vector<1x1xf32> -> vector<1x1xf32>
    %237 = vector.broadcast %236 : vector<1x1xf32> to vector<1x20xf32>
    %238 = arith.mulf %233, %237 : vector<1x20xf32>
    %239 = arith.truncf %238 : vector<1x20xf32> to vector<1x20xbf16>
    %240 = arith.truncf %225 : vector<20x32xf32> to vector<20x32xbf16>
    %cst_137 = arith.constant dense<0.000000e+00> : vector<1x32xf32>
    %241 = tpu.matmul %239, %240, %cst_137 {dimension_numbers = #tpu.dot_dimension_numbers<[1], [0], [0], [1], [0, 0, 1, 1], [], []>} : vector<1x20xbf16>, vector<20x32xbf16>, vector<1x32xf32> -> vector<1x32xf32>
    %c3_138 = arith.constant 3 : index
    %c0_139 = arith.constant 0 : index
    %c0_140 = arith.constant 0 : index
    %242 = vector.load %arg13[%c3_138, %c0_139, %c0_140] : memref<4x32x128xf32, #tpu.memory_space<vmem>>, vector<1x32x128xf32>
    %243 = vector.shape_cast %242 : vector<1x32x128xf32> to vector<32x128xf32>
    %244 = arith.truncf %241 : vector<1x32xf32> to vector<1x32xbf16>
    %245 = arith.truncf %243 : vector<32x128xf32> to vector<32x128xbf16>
    %cst_141 = arith.constant dense<0.000000e+00> : vector<1x128xf32>
    %246 = tpu.matmul %244, %245, %cst_141 {dimension_numbers = #tpu.dot_dimension_numbers<[1], [0], [0], [1], [0, 0, 1, 1], [], []>} : vector<1x32xbf16>, vector<32x128xbf16>, vector<1x128xf32> -> vector<1x128xf32>
    %247 = arith.addf %197, %246 : vector<1x128xf32>
    %248 = arith.addf %247, %46 : vector<1x128xf32>
    %249 = arith.addf %1, %248 : vector<1x128xf32>
    %c0_142 = arith.constant 0 : index
    %c0_143 = arith.constant 0 : index
    %250 = vector.load %arg15[%c0_142, %c0_143] : memref<1x128xf32, #tpu.memory_space<vmem>>, vector<1x128xf32>
    %c0_144 = arith.constant 0 : index
    %c0_145 = arith.constant 0 : index
    %251 = vector.load %arg16[%c0_144, %c0_145] : memref<1x128xf32, #tpu.memory_space<vmem>>, vector<1x128xf32>
    %cst_146 = arith.constant dense<0.000000e+00> : vector<1xf32>
    %252 = vector.multi_reduction <add>, %249, %cst_146 [1] : vector<1x128xf32> to vector<1xf32>
    %253 = vector.shape_cast %252 : vector<1xf32> to vector<1x1xf32>
    %cst_147 = arith.constant 1.280000e+02 : f32
    %254 = vector.broadcast %cst_147 : f32 to vector<1x1xf32>
    %255 = arith.divf %253, %254 : vector<1x1xf32>
    %256 = vector.broadcast %255 : vector<1x1xf32> to vector<1x128xf32>
    %257 = arith.subf %249, %256 : vector<1x128xf32>
    %258 = arith.mulf %257, %257 : vector<1x128xf32>
    %cst_148 = arith.constant dense<0.000000e+00> : vector<1xf32>
    %259 = vector.multi_reduction <add>, %258, %cst_148 [1] : vector<1x128xf32> to vector<1xf32>
    %260 = vector.shape_cast %259 : vector<1xf32> to vector<1x1xf32>
    %cst_149 = arith.constant 1.280000e+02 : f32
    %261 = vector.broadcast %cst_149 : f32 to vector<1x1xf32>
    %262 = arith.divf %260, %261 : vector<1x1xf32>
    %cst_150 = arith.constant 9.99999974E-6 : f32
    %263 = vector.broadcast %cst_150 : f32 to vector<1x1xf32>
    %264 = arith.addf %262, %263 : vector<1x1xf32>
    %265 = math.rsqrt %264 : vector<1x1xf32>
    %266 = vector.broadcast %265 : vector<1x1xf32> to vector<1x128xf32>
    %267 = arith.mulf %257, %266 : vector<1x128xf32>
    %268 = arith.mulf %267, %250 : vector<1x128xf32>
    %269 = arith.addf %268, %251 : vector<1x128xf32>
    %c0_151 = arith.constant 0 : index
    %c0_152 = arith.constant 0 : index
    %270 = vector.load %arg17[%c0_151, %c0_152] : memref<128x512xf32, #tpu.memory_space<vmem>>, vector<128x512xf32>
    %c0_153 = arith.constant 0 : index
    %c0_154 = arith.constant 0 : index
    %271 = vector.load %arg18[%c0_153, %c0_154] : memref<1x512xf32, #tpu.memory_space<vmem>>, vector<1x512xf32>
    %272 = arith.truncf %269 : vector<1x128xf32> to vector<1x128xbf16>
    %273 = arith.truncf %270 : vector<128x512xf32> to vector<128x512xbf16>
    %cst_155 = arith.constant dense<0.000000e+00> : vector<1x512xf32>
    %274 = tpu.matmul %272, %273, %cst_155 {dimension_numbers = #tpu.dot_dimension_numbers<[1], [0], [0], [1], [0, 0, 1, 1], [], []>} : vector<1x128xbf16>, vector<128x512xbf16>, vector<1x512xf32> -> vector<1x512xf32>
    %275 = arith.addf %274, %271 : vector<1x512xf32>
    %cst_156 = arith.constant 1.702000e+00 : f32
    %276 = vector.broadcast %cst_156 : f32 to vector<1x512xf32>
    %277 = arith.mulf %276, %275 : vector<1x512xf32>
    %278 = arith.negf %277 : vector<1x512xf32>
    %279 = math.exp %278 : vector<1x512xf32>
    %cst_157 = arith.constant 1.000000e+00 : f32
    %280 = vector.broadcast %cst_157 : f32 to vector<1x512xf32>
    %281 = arith.addf %280, %279 : vector<1x512xf32>
    %282 = arith.divf %280, %281 : vector<1x512xf32>
    %283 = arith.mulf %275, %282 : vector<1x512xf32>
    %c0_158 = arith.constant 0 : index
    %c0_159 = arith.constant 0 : index
    %284 = vector.load %arg19[%c0_158, %c0_159] : memref<512x128xf32, #tpu.memory_space<vmem>>, vector<512x128xf32>
    %c0_160 = arith.constant 0 : index
    %c0_161 = arith.constant 0 : index
    %285 = vector.load %arg20[%c0_160, %c0_161] : memref<1x128xf32, #tpu.memory_space<vmem>>, vector<1x128xf32>
    %286 = arith.truncf %283 : vector<1x512xf32> to vector<1x512xbf16>
    %287 = arith.truncf %284 : vector<512x128xf32> to vector<512x128xbf16>
    %cst_162 = arith.constant dense<0.000000e+00> : vector<1x128xf32>
    %288 = tpu.matmul %286, %287, %cst_162 {dimension_numbers = #tpu.dot_dimension_numbers<[1], [0], [0], [1], [0, 0, 1, 1], [], []>} : vector<1x512xbf16>, vector<512x128xbf16>, vector<1x128xf32> -> vector<1x128xf32>
    %289 = arith.addf %288, %285 : vector<1x128xf32>
    %290 = arith.addf %249, %289 : vector<1x128xf32>
    %c0_163 = arith.constant 0 : index
    %c0_164 = arith.constant 0 : index
    %c0_165 = arith.constant 0 : index
    %291 = vector.load %arg21[%c0_163, %c0_164, %c0_165] : memref<1x1x128xf32, #tpu.memory_space<vmem>>, vector<1x1x128xf32>
    %292 = vector.shape_cast %291 : vector<1x1x128xf32> to vector<1x128xf32>
    %293 = vector.shape_cast %290 : vector<1x128xf32> to vector<1x1x128xf32>
    tpu.vector_store %arg21[%c0_163, %c0_164, %c0_165], %293 {strides = array<i32>} : memref<1x1x128xf32, #tpu.memory_space<vmem>>, vector<1x1x128xf32>,
    return
  }
  func.func @transform_0(%arg0: i32) -> (i32, i32, i32) {
    %c0_i32 = arith.constant 0 : i32
    %c0_i32_0 = arith.constant 0 : i32
    %c0_i32_1 = arith.constant 0 : i32
    return %arg0, %c0_i32, %c0_i32_0 : i32, i32, i32
  }
  func.func @transform_1(%arg0: i32) -> (i32, i32, i32) {
    %c0_i32 = arith.constant 0 : i32
    %c0_i32_0 = arith.constant 0 : i32
    %c0_i32_1 = arith.constant 0 : i32
    return %arg0, %c0_i32, %c0_i32_0 : i32, i32, i32
  }
  func.func @transform_2(%arg0: i32) -> (i32, i32) {
    %c0_i32 = arith.constant 0 : i32
    %c0_i32_0 = arith.constant 0 : i32
    %c0_i32_1 = arith.constant 0 : i32
    return %c0_i32, %c0_i32_0 : i32, i32
  }
  func.func @transform_3(%arg0: i32) -> (i32, i32) {
    %c0_i32 = arith.constant 0 : i32
    %c0_i32_0 = arith.constant 0 : i32
    %c0_i32_1 = arith.constant 0 : i32
    return %c0_i32, %c0_i32_0 : i32, i32
  }
  func.func @transform_4(%arg0: i32) -> (i32, i32) {
    %c0_i32 = arith.constant 0 : i32
    %c0_i32_0 = arith.constant 0 : i32
    %c0_i32_1 = arith.constant 0 : i32
    return %c0_i32, %c0_i32_0 : i32, i32
  }
  func.func @transform_5(%arg0: i32) -> (i32, i32) {
    %c0_i32 = arith.constant 0 : i32
    %c0_i32_0 = arith.constant 0 : i32
    %c0_i32_1 = arith.constant 0 : i32
    return %c0_i32, %c0_i32_0 : i32, i32
  }
  func.func @transform_6(%arg0: i32) -> (i32, i32, i32) {
    %c0_i32 = arith.constant 0 : i32
    %c0_i32_0 = arith.constant 0 : i32
    %c0_i32_1 = arith.constant 0 : i32
    %c0_i32_2 = arith.constant 0 : i32
    return %c0_i32, %c0_i32_0, %c0_i32_1 : i32, i32, i32
  }
  func.func @transform_7(%arg0: i32) -> (i32, i32, i32) {
    %c0_i32 = arith.constant 0 : i32
    %c0_i32_0 = arith.constant 0 : i32
    %c0_i32_1 = arith.constant 0 : i32
    %c0_i32_2 = arith.constant 0 : i32
    return %c0_i32, %c0_i32_0, %c0_i32_1 : i32, i32, i32
  }
  func.func @transform_8(%arg0: i32) -> (i32, i32, i32) {
    %c0_i32 = arith.constant 0 : i32
    %c0_i32_0 = arith.constant 0 : i32
    %c0_i32_1 = arith.constant 0 : i32
    %c0_i32_2 = arith.constant 0 : i32
    return %c0_i32, %c0_i32_0, %c0_i32_1 : i32, i32, i32
  }
  func.func @transform_9(%arg0: i32) -> (i32, i32, i32) {
    %c0_i32 = arith.constant 0 : i32
    %c0_i32_0 = arith.constant 0 : i32
    %c0_i32_1 = arith.constant 0 : i32
    %c0_i32_2 = arith.constant 0 : i32
    return %c0_i32, %c0_i32_0, %c0_i32_1 : i32, i32, i32
  }
  func.func @transform_10(%arg0: i32) -> (i32, i32, i32) {
    %c0_i32 = arith.constant 0 : i32
    %c0_i32_0 = arith.constant 0 : i32
    %c0_i32_1 = arith.constant 0 : i32
    %c0_i32_2 = arith.constant 0 : i32
    return %c0_i32, %c0_i32_0, %c0_i32_1 : i32, i32, i32
  }
  func.func @transform_11(%arg0: i32) -> (i32, i32, i32) {
    %c0_i32 = arith.constant 0 : i32
    %c0_i32_0 = arith.constant 0 : i32
    %c0_i32_1 = arith.constant 0 : i32
    %c0_i32_2 = arith.constant 0 : i32
    return %c0_i32, %c0_i32_0, %c0_i32_1 : i32, i32, i32
  }
  func.func @transform_12(%arg0: i32) -> (i32, i32, i32) {
    %c0_i32 = arith.constant 0 : i32
    %c0_i32_0 = arith.constant 0 : i32
    %c0_i32_1 = arith.constant 0 : i32
    %c0_i32_2 = arith.constant 0 : i32
    return %c0_i32, %c0_i32_0, %c0_i32_1 : i32, i32, i32
  }
  func.func @transform_13(%arg0: i32) -> (i32, i32) {
    %c0_i32 = arith.constant 0 : i32
    %c0_i32_0 = arith.constant 0 : i32
    %c0_i32_1 = arith.constant 0 : i32
    return %c0_i32, %c0_i32_0 : i32, i32
  }
  func.func @transform_14(%arg0: i32) -> (i32, i32) {
    %c0_i32 = arith.constant 0 : i32
    %c0_i32_0 = arith.constant 0 : i32
    %c0_i32_1 = arith.constant 0 : i32
    return %c0_i32, %c0_i32_0 : i32, i32
  }
  func.func @transform_15(%arg0: i32) -> (i32, i32) {
    %c0_i32 = arith.constant 0 : i32
    %c0_i32_0 = arith.constant 0 : i32
    %c0_i32_1 = arith.constant 0 : i32
    return %c0_i32, %c0_i32_0 : i32, i32
  }
  func.func @transform_16(%arg0: i32) -> (i32, i32) {
    %c0_i32 = arith.constant 0 : i32
    %c0_i32_0 = arith.constant 0 : i32
    %c0_i32_1 = arith.constant 0 : i32
    return %c0_i32, %c0_i32_0 : i32, i32
  }
  func.func @transform_17(%arg0: i32) -> (i32, i32) {
    %c0_i32 = arith.constant 0 : i32
    %c0_i32_0 = arith.constant 0 : i32
    %c0_i32_1 = arith.constant 0 : i32
    return %c0_i32, %c0_i32_0 : i32, i32
  }
  func.func @transform_18(%arg0: i32) -> (i32, i32) {
    %c0_i32 = arith.constant 0 : i32
    %c0_i32_0 = arith.constant 0 : i32
    %c0_i32_1 = arith.constant 0 : i32
    return %c0_i32, %c0_i32_0 : i32, i32
  }
  func.func @transform_19(%arg0: i32) -> (i32, i32) {
    %c0_i32 = arith.constant 0 : i32
    %c0_i32_0 = arith.constant 0 : i32
    %c0_i32_1 = arith.constant 0 : i32
    return %c0_i32, %c0_i32_0 : i32, i32
  }
  func.func @transform_20(%arg0: i32) -> (i32, i32, i32) {
    %c0_i32 = arith.constant 0 : i32
    %c0_i32_0 = arith.constant 0 : i32
    %c0_i32_1 = arith.constant 0 : i32
    return %arg0, %c0_i32, %c0_i32_0 : i32, i32, i32
  }
}

module attributes {stable_mosaic.version = 11 : i64} {
  func.func @_head_kernel(%arg0: i32, %arg1: memref<2x128xf32, #tpu.memory_space<vmem>>, %arg2: memref<1x128xf32, #tpu.memory_space<vmem>>, %arg3: memref<1x128xf32, #tpu.memory_space<vmem>>, %arg4: memref<128x128xf32, #tpu.memory_space<vmem>>, %arg5: memref<1x128xf32, #tpu.memory_space<vmem>>, %arg6: memref<2x128xf32, #tpu.memory_space<vmem>>) attributes {dimension_semantics = [#tpu.dimension_semantics<arbitrary>], iteration_bounds = array<i64: 1>, scalar_prefetch = 0 : i64, scratch_operands = 0 : i64, tpu.core_type = #tpu.core_type<tc>, window_params = [{pipeline_mode = #tpu.pipeline_mode<synchronous>, transform_indices = @transform_0, window_bounds = array<i64: 2, 128>}, {pipeline_mode = #tpu.pipeline_mode<synchronous>, transform_indices = @transform_1, window_bounds = array<i64: 1, 128>}, {pipeline_mode = #tpu.pipeline_mode<synchronous>, transform_indices = @transform_2, window_bounds = array<i64: 1, 128>}, {pipeline_mode = #tpu.pipeline_mode<synchronous>, transform_indices = @transform_3, window_bounds = array<i64: 128, 128>}, {pipeline_mode = #tpu.pipeline_mode<synchronous>, transform_indices = @transform_4, window_bounds = array<i64: 1, 128>}, {pipeline_mode = #tpu.pipeline_mode<synchronous>, transform_indices = @transform_5, window_bounds = array<i64: 2, 128>}]} {
    %c0 = arith.constant 0 : index
    %c0_0 = arith.constant 0 : index
    %0 = vector.load %arg1[%c0, %c0_0] : memref<2x128xf32, #tpu.memory_space<vmem>>, vector<2x128xf32>
    %c0_1 = arith.constant 0 : index
    %c0_2 = arith.constant 0 : index
    %1 = vector.load %arg2[%c0_1, %c0_2] : memref<1x128xf32, #tpu.memory_space<vmem>>, vector<1x128xf32>
    %c0_3 = arith.constant 0 : index
    %c0_4 = arith.constant 0 : index
    %2 = vector.load %arg3[%c0_3, %c0_4] : memref<1x128xf32, #tpu.memory_space<vmem>>, vector<1x128xf32>
    %cst = arith.constant dense<0.000000e+00> : vector<2xf32>
    %3 = vector.multi_reduction <add>, %0, %cst [1] : vector<2x128xf32> to vector<2xf32>
    %4 = vector.shape_cast %3 : vector<2xf32> to vector<2x1xf32>
    %cst_5 = arith.constant 1.280000e+02 : f32
    %5 = vector.broadcast %cst_5 : f32 to vector<2x1xf32>
    %6 = arith.divf %4, %5 : vector<2x1xf32>
    %7 = vector.broadcast %6 : vector<2x1xf32> to vector<2x128xf32>
    %8 = arith.subf %0, %7 : vector<2x128xf32>
    %9 = arith.mulf %8, %8 : vector<2x128xf32>
    %cst_6 = arith.constant dense<0.000000e+00> : vector<2xf32>
    %10 = vector.multi_reduction <add>, %9, %cst_6 [1] : vector<2x128xf32> to vector<2xf32>
    %11 = vector.shape_cast %10 : vector<2xf32> to vector<2x1xf32>
    %cst_7 = arith.constant 1.280000e+02 : f32
    %12 = vector.broadcast %cst_7 : f32 to vector<2x1xf32>
    %13 = arith.divf %11, %12 : vector<2x1xf32>
    %cst_8 = arith.constant 9.99999974E-6 : f32
    %14 = vector.broadcast %cst_8 : f32 to vector<2x1xf32>
    %15 = arith.addf %13, %14 : vector<2x1xf32>
    %16 = math.rsqrt %15 : vector<2x1xf32>
    %17 = vector.broadcast %16 : vector<2x1xf32> to vector<2x128xf32>
    %18 = arith.mulf %8, %17 : vector<2x128xf32>
    %19 = vector.broadcast %1 : vector<1x128xf32> to vector<2x128xf32>
    %20 = arith.mulf %18, %19 : vector<2x128xf32>
    %21 = vector.broadcast %2 : vector<1x128xf32> to vector<2x128xf32>
    %22 = arith.addf %20, %21 : vector<2x128xf32>
    %c0_9 = arith.constant 0 : index
    %c0_10 = arith.constant 0 : index
    %23 = vector.load %arg4[%c0_9, %c0_10] : memref<128x128xf32, #tpu.memory_space<vmem>>, vector<128x128xf32>
    %c0_11 = arith.constant 0 : index
    %c0_12 = arith.constant 0 : index
    %24 = vector.load %arg5[%c0_11, %c0_12] : memref<1x128xf32, #tpu.memory_space<vmem>>, vector<1x128xf32>
    %25 = arith.truncf %22 : vector<2x128xf32> to vector<2x128xbf16>
    %26 = arith.truncf %23 : vector<128x128xf32> to vector<128x128xbf16>
    %cst_13 = arith.constant dense<0.000000e+00> : vector<2x128xf32>
    %27 = tpu.matmul %25, %26, %cst_13 {dimension_numbers = #tpu.dot_dimension_numbers<[1], [0], [0], [1], [0, 0, 1, 1], [], []>} : vector<2x128xbf16>, vector<128x128xbf16>, vector<2x128xf32> -> vector<2x128xf32>
    %28 = vector.broadcast %24 : vector<1x128xf32> to vector<2x128xf32>
    %29 = arith.addf %27, %28 : vector<2x128xf32>
    %c0_14 = arith.constant 0 : index
    %c0_15 = arith.constant 0 : index
    %30 = vector.load %arg6[%c0_14, %c0_15] : memref<2x128xf32, #tpu.memory_space<vmem>>, vector<2x128xf32>
    tpu.vector_store %arg6[%c0_14, %c0_15], %29 {strides = array<i32>} : memref<2x128xf32, #tpu.memory_space<vmem>>, vector<2x128xf32>,
    return
  }
  func.func @transform_0(%arg0: i32) -> (i32, i32) {
    %c0_i32 = arith.constant 0 : i32
    %c0_i32_0 = arith.constant 0 : i32
    %c0_i32_1 = arith.constant 0 : i32
    return %c0_i32, %c0_i32_0 : i32, i32
  }
  func.func @transform_1(%arg0: i32) -> (i32, i32) {
    %c0_i32 = arith.constant 0 : i32
    %c0_i32_0 = arith.constant 0 : i32
    %c0_i32_1 = arith.constant 0 : i32
    return %c0_i32, %c0_i32_0 : i32, i32
  }
  func.func @transform_2(%arg0: i32) -> (i32, i32) {
    %c0_i32 = arith.constant 0 : i32
    %c0_i32_0 = arith.constant 0 : i32
    %c0_i32_1 = arith.constant 0 : i32
    return %c0_i32, %c0_i32_0 : i32, i32
  }
  func.func @transform_3(%arg0: i32) -> (i32, i32) {
    %c0_i32 = arith.constant 0 : i32
    %c0_i32_0 = arith.constant 0 : i32
    %c0_i32_1 = arith.constant 0 : i32
    return %c0_i32, %c0_i32_0 : i32, i32
  }
  func.func @transform_4(%arg0: i32) -> (i32, i32) {
    %c0_i32 = arith.constant 0 : i32
    %c0_i32_0 = arith.constant 0 : i32
    %c0_i32_1 = arith.constant 0 : i32
    return %c0_i32, %c0_i32_0 : i32, i32
  }
  func.func @transform_5(%arg0: i32) -> (i32, i32) {
    %c0_i32 = arith.constant 0 : i32
    %c0_i32_0 = arith.constant 0 : i32
    %c0_i32_1 = arith.constant 0 : i32
    return %c0_i32, %c0_i32_0 : i32, i32
  }
}

</mosaic_0001>

<llo_original>
// kernel: evl_forward.10
$region0: #{evl_forward.10}
  #allocation0 [shape = 'u32[]', space=smem, size = 0x4, offset = 0x4, fixed_abs, tag = 'smem constant byte address 0x4 - core index']
  #allocation1 [shape = 'u32[144,128]{1,0:T(1,128)}', space=vmem, size = 0x12000, scoped, tag = 'internal scratch']
  %s0 = inlined_call_operand.vmem [shape: f32[8,4,192], index: 0, kind: input, shape index: {}]
  %s1 = inlined_call_operand.vmem [shape: f32[192,128], index: 1, kind: input, shape index: {}]
  %s2 = inlined_call_operand.vmem [shape: f32[1,128], index: 2, kind: input, shape index: {}]
  %s3 = inlined_call_operand.vmem [shape: f32[5,128], index: 3, kind: input, shape index: {}]
  %s4 = inlined_call_operand.vmem [shape: f32[1,128], index: 4, kind: input, shape index: {}]
  %s5 = inlined_call_operand.vmem [shape: f32[1,128], index: 5, kind: input, shape index: {}]
  %s6 = inlined_call_operand.vmem [shape: f32[8,5,128], index: 6, kind: output, shape index: {}]
  %s7 = sld [smem:[#allocation0]]
  $region57: #{evl_forward.10} parent=0
    _
  %s9 = ssub.s32 1, %s7
  %s10 = scalar_select 0, %s9, %s7
  loop: start=0, step=1, limit=10
  $region2: #{evl_forward.10} parent=0 // loop_pre_header
    _
  $region3: #{evl_forward.10} parent=0 // loop_header
    %s12 = sphi 0, %s16
    %p13 = scmp.ge.s32.totalorder %s12, 10
    %s22 = sphi 0, %s24
    %s25 = sphi 0, %s22
    %s26 = sphi 0, %s25
    %s42 = sphi 0, %s26
    %s46 = sphi 0, %s46
    %s48 = sphi 0, %s46
    %s49 = sphi 0, %s48
    %s63 = sphi 0, %s49
    %s67 = sphi 0, %s67
    %s69 = sphi 0, %s67
    %s70 = sphi 0, %s69
    %s84 = sphi 0, %s70
    %s88 = sphi 0, %s88
    %s90 = sphi 0, %s88
    %s91 = sphi 0, %s90
    %s105 = sphi 0, %s91
    %s109 = sphi 0, %s109
    %s111 = sphi 0, %s109
    %s112 = sphi 0, %s111
    %s126 = sphi 0, %s112
    %s130 = sphi 0, %s130
    %s132 = sphi 0, %s130
    %s133 = sphi 0, %s132
    %s147 = sphi 0, %s133
    %s153 = sphi 0, %s155
    %s156 = sphi 0, %s153
    %s157 = sphi 0, %s156
    %s173 = sphi 0, %s157
  $region4: #{evl_forward.10} parent=0 // loop_header_branch
    %15 = sbr.rel (%p13) target = $region8
  $region5: #{evl_forward.10} parent=0 // loop_body
    %s17 = ssub.s32 %s12, 1
    %s18 = ssub.s32 %s12, 2
    %s19 = sadd.s32 %s12, 1
    %s20 = ssub.s32 %s12, %s19
    %p21 = scmp.eq.s32.totalorder %s20, 0
    %s23 = sadd.s32 %s22, 1
    %s24 = scalar_select %p21, %s22, %s23
    %p27 = pneg %p21
    %p28 = scmp.eq.s32.totalorder %s12, 7
    %p29 = por %p27, %p28
    %p30 = scmp.ne.s32.totalorder %s22, %s25
    %p31 = scmp.eq.s32.totalorder %s12, 0
    %p32 = por %p30, %p31
    %p33 = scmp.ne.s32.totalorder %s22, %s25
    %p34 = scmp.eq.s32.totalorder %s17, 7
    %p35 = por %p33, %p34
    %p36 = scmp.ne.s32.totalorder %s25, %s26
    %p37 = scmp.eq.s32.totalorder %s17, 0
    %p38 = por %p36, %p37
    %p39 = scmp.ne.s32.totalorder %s25, %s26
    %p40 = scmp.eq.s32.totalorder %s18, 7
    %p41 = por %p39, %p40
    %p43 = scmp.ne.s32.totalorder %s26, %s42
    %p44 = scmp.eq.s32.totalorder %s18, 0
    %p45 = por %p43, %p44
    %s47 = sadd.s32 %s46, 1
    %p50 = scmp.eq.s32.totalorder %s12, 7
    %p51 = scmp.ne.s32.totalorder %s46, %s48
    %p52 = scmp.eq.s32.totalorder %s12, 0
    %p53 = por %p51, %p52
    %p54 = scmp.ne.s32.totalorder %s46, %s48
    %p55 = scmp.eq.s32.totalorder %s17, 7
    %p56 = por %p54, %p55
    %p57 = scmp.ne.s32.totalorder %s48, %s49
    %p58 = scmp.eq.s32.totalorder %s17, 0
    %p59 = por %p57, %p58
    %p60 = scmp.ne.s32.totalorder %s48, %s49
    %p61 = scmp.eq.s32.totalorder %s18, 7
    %p62 = por %p60, %p61
    %p64 = scmp.ne.s32.totalorder %s49, %s63
    %p65 = scmp.eq.s32.totalorder %s18, 0
    %p66 = por %p64, %p65
    %s68 = sadd.s32 %s67, 1
    %p71 = scmp.eq.s32.totalorder %s12, 7
    %p72 = scmp.ne.s32.totalorder %s67, %s69
    %p73 = scmp.eq.s32.totalorder %s12, 0
    %p74 = por %p72, %p73
    %p75 = scmp.ne.s32.totalorder %s67, %s69
    %p76 = scmp.eq.s32.totalorder %s17, 7
    %p77 = por %p75, %p76
    %p78 = scmp.ne.s32.totalorder %s69, %s70
    %p79 = scmp.eq.s32.totalorder %s17, 0
    %p80 = por %p78, %p79
    %p81 = scmp.ne.s32.totalorder %s69, %s70
    %p82 = scmp.eq.s32.totalorder %s18, 7
    %p83 = por %p81, %p82
    %p85 = scmp.ne.s32.totalorder %s70, %s84
    %p86 = scmp.eq.s32.totalorder %s18, 0
    %p87 = por %p85, %p86
    %s89 = sadd.s32 %s88, 1
    %p92 = scmp.eq.s32.totalorder %s12, 7
    %p93 = scmp.ne.s32.totalorder %s88, %s90
    %p94 = scmp.eq.s32.totalorder %s12, 0
    %p95 = por %p93, %p94
    %p96 = scmp.ne.s32.totalorder %s88, %s90
    %p97 = scmp.eq.s32.totalorder %s17, 7
    %p98 = por %p96, %p97
    %p99 = scmp.ne.s32.totalorder %s90, %s91
    %p100 = scmp.eq.s32.totalorder %s17, 0
    %p101 = por %p99, %p100
    %p102 = scmp.ne.s32.totalorder %s90, %s91
    %p103 = scmp.eq.s32.totalorder %s18, 7
    %p104 = por %p102, %p103
    %p106 = scmp.ne.s32.totalorder %s91, %s105
    %p107 = scmp.eq.s32.totalorder %s18, 0
    %p108 = por %p106, %p107
    %s110 = sadd.s32 %s109, 1
    %p113 = scmp.eq.s32.totalorder %s12, 7
    %p114 = scmp.ne.s32.totalorder %s109, %s111
    %p115 = scmp.eq.s32.totalorder %s12, 0
    %p116 = por %p114, %p115
    %p117 = scmp.ne.s32.totalorder %s109, %s111
    %p118 = scmp.eq.s32.totalorder %s17, 7
    %p119 = por %p117, %p118
    %p120 = scmp.ne.s32.totalorder %s111, %s112
    %p121 = scmp.eq.s32.totalorder %s17, 0
    %p122 = por %p120, %p121
    %p123 = scmp.ne.s32.totalorder %s111, %s112
    %p124 = scmp.eq.s32.totalorder %s18, 7
    %p125 = por %p123, %p124
    %p127 = scmp.ne.s32.totalorder %s112, %s126
    %p128 = scmp.eq.s32.totalorder %s18, 0
    %p129 = por %p127, %p128
    %s131 = sadd.s32 %s130, 1
    %p134 = scmp.eq.s32.totalorder %s12, 7
    %p135 = scmp.ne.s32.totalorder %s130, %s132
    %p136 = scmp.eq.s32.totalorder %s12, 0
    %p137 = por %p135, %p136
    %p138 = scmp.ne.s32.totalorder %s130, %s132
    %p139 = scmp.eq.s32.totalorder %s17, 7
    %p140 = por %p138, %p139
    %p141 = scmp.ne.s32.totalorder %s132, %s133
    %p142 = scmp.eq.s32.totalorder %s17, 0
    %p143 = por %p141, %p142
    %p144 = scmp.ne.s32.totalorder %s132, %s133
    %p145 = scmp.eq.s32.totalorder %s18, 7
    %p146 = por %p144, %p145
    %p148 = scmp.ne.s32.totalorder %s133, %s147
    %p149 = scmp.eq.s32.totalorder %s18, 0
    %p150 = por %p148, %p149
    %s151 = ssub.s32 %s12, %s19
    %p152 = scmp.eq.s32.totalorder %s151, 0
    %s154 = sadd.s32 %s153, 1
    %s155 = scalar_select %p152, %s153, %s154
    %p158 = pneg %p152
    %p159 = scmp.eq.s32.totalorder %s12, 7
    %p160 = por %p158, %p159
    %p161 = scmp.ne.s32.totalorder %s153, %s156
    %p162 = scmp.eq.s32.totalorder %s12, 0
    %p163 = por %p161, %p162
    %p164 = scmp.ne.s32.totalorder %s153, %s156
    %p165 = scmp.eq.s32.totalorder %s17, 7
    %p166 = por %p164, %p165
    %p167 = scmp.ne.s32.totalorder %s156, %s157
    %p168 = scmp.eq.s32.totalorder %s17, 0
    %p169 = por %p167, %p168
    %p170 = scmp.ne.s32.totalorder %s156, %s157
    %p171 = scmp.eq.s32.totalorder %s18, 7
    %p172 = por %p170, %p171
    %p174 = scmp.ne.s32.totalorder %s157, %s173
    %p175 = scmp.eq.s32.totalorder %s18, 0
    %p176 = por %p174, %p175
    %p177 = scmp.le.s32.totalorder 1, %s12
    %p178 = scmp.lt.s32.totalorder %s12, 9
    %p179 = pnand %p177, %p178
    %p180 = pneg %p179
    // Predicated region
    $region9: #{evl_forward.10} parent=5 // pred_check
      _
    $region10: #{evl_forward.10} parent=5 // pred_check_branch
      %182 = sbr.rel (%p179) target = $region12
    $region11: #{evl_forward.10} parent=5 // pred_region
      %s183 = ssub.s32 %s12, 1
      // Predicated region
      $region13: #{evl_forward.10} parent=11 // pred_check
        %p184 = pneg %p59
      $region14: #{evl_forward.10} parent=11 // pred_check_branch
        %186 = sbr.rel (%p184) target = $region16
      $region15: #{evl_forward.10} parent=11 // pred_region
        _
      $region16: #{evl_forward.10} parent=11 // pred_fallthru
        _
      // Predicated region
      $region17: #{evl_forward.10} parent=11 // pred_check
        %p187 = pneg %p80
      $region18: #{evl_forward.10} parent=11 // pred_check_branch
        %189 = sbr.rel (%p187) target = $region20
      $region19: #{evl_forward.10} parent=11 // pred_region
        _
      $region20: #{evl_forward.10} parent=11 // pred_fallthru
        _
      // Predicated region
      $region21: #{evl_forward.10} parent=11 // pred_check
        %p190 = pneg %p101
      $region22: #{evl_forward.10} parent=11 // pred_check_branch
        %192 = sbr.rel (%p190) target = $region24
      $region23: #{evl_forward.10} parent=11 // pred_region
        _
      $region24: #{evl_forward.10} parent=11 // pred_fallthru
        _
      // Predicated region
      $region25: #{evl_forward.10} parent=11 // pred_check
        %p193 = pneg %p122
      $region26: #{evl_forward.10} parent=11 // pred_check_branch
        %195 = sbr.rel (%p193) target = $region28
      $region27: #{evl_forward.10} parent=11 // pred_region
        _
      $region28: #{evl_forward.10} parent=11 // pred_fallthru
        _
      // Predicated region
      $region29: #{evl_forward.10} parent=11 // pred_check
        %p196 = pneg %p143
      $region30: #{evl_forward.10} parent=11 // pred_check_branch
        %198 = sbr.rel (%p196) target = $region32
      $region31: #{evl_forward.10} parent=11 // pred_region
        _
      $region32: #{evl_forward.10} parent=11 // pred_fallthru
        _
    $region12: #{evl_forward.10} parent=5 // pred_fallthru
      _
    %p199 = scmp.lt.s32.totalorder %s12, 8
    // Predicated region
    $region33: #{evl_forward.10} parent=5 // pred_check
      %p200 = pneg %p199
    $region34: #{evl_forward.10} parent=5 // pred_check_branch
      %202 = sbr.rel (%p200) target = $region36
    $region35: #{evl_forward.10} parent=5 // pred_region
      // Predicated region
      $region37: #{evl_forward.10} parent=35 // pred_check
        %p203 = pneg %p32
      $region38: #{evl_forward.10} parent=35 // pred_check_branch
        %205 = sbr.rel (%p203) target = $region40
      $region39: #{evl_forward.10} parent=35 // pred_region
        %p206 = scmp.lt.s32.totalorder %s12, 7
        %s207 = scalar_select %p206, %s12, 7
        %s208 = smul.addr %s207, 2
        %s209 = smul.addr %s208, 4
        %s210 = scalar_lea.vmem %s0, %s209
      $region40: #{evl_forward.10} parent=35 // pred_fallthru
        _
    $region36: #{evl_forward.10} parent=5 // pred_fallthru
      _
    %p211 = scmp.le.s32.totalorder 1, %s12
    %p212 = scmp.lt.s32.totalorder %s12, 9
    %p213 = pnand %p211, %p212
    %p214 = pneg %p213
    // Predicated region
    $region41: #{evl_forward.10} parent=5 // pred_check
      _
    $region42: #{evl_forward.10} parent=5 // pred_check_branch
      %216 = sbr.rel (%p213) target = $region44
    $region43: #{evl_forward.10} parent=5 // pred_region
      %s217 = ssub.s32 %s12, 1
      %p218 = scmp.lt.s32.totalorder %s17, 7
      %s219 = scalar_select %p218, %s17, 7
      %s220 = smul.addr %s219, 2
      %s221 = smul.addr %s220, 4
      %s222 = scalar_lea.vmem %s0, %s221
      %p223 = pneg %p38
      %p224 = pneg %p35
      %p225 = pneg %p59
      %p226 = pneg %p56
      %p227 = pneg %p80
      %p228 = pneg %p77
      %p229 = pneg %p101
      %p230 = pneg %p98
      %p231 = pneg %p122
      %p232 = pneg %p119
      %p233 = pneg %p143
      %p234 = pneg %p140
      %p235 = pneg %p169
      %p236 = pneg %p166
      %p237 = scmp.lt.s32.totalorder %s17, 7
      %s238 = scalar_select %p237, %s17, 7
      %s239 = smul.addr %s238, 8
      %s240 = scalar_lea.vmem %s6, %s239
      %p241 = scmp.lt.s32.totalorder %s17, 7
      %s242 = scalar_select %p241, %s17, 7
      %s243 = smul.addr %s242, 2
      %s244 = smul.addr %s243, 4
      %s245 = scalar_lea.vmem %s0, %s244
      %p246 = scmp.lt.s32.totalorder %s17, 7
      %s247 = scalar_select %p246, %s17, 7
      %s248 = smul.addr %s247, 8
      %s249 = scalar_lea.vmem %s6, %s248
      %v251 = vld [vmem:[%s245] sm:$0xff]
      %v252 = vld [vmem:[%s1] sm:$0xff]
      %v253 = vld [vmem:[%s1 + $0x8] sm:$0xff]
      %v254 = vld [vmem:[%s1 + $0x10] sm:$0xff]
      %v255 = vld [vmem:[%s1 + $0x18] sm:$0xff]
      %v256 = vld [vmem:[%s1 + $0x20] sm:$0xff]
      %v257 = vld [vmem:[%s1 + $0x28] sm:$0xff]
      %v258 = vld [vmem:[%s1 + $0x30] sm:$0xff]
      %v259 = vld [vmem:[%s1 + $0x38] sm:$0xff]
      %v260 = vld [vmem:[%s1 + $0x40] sm:$0xff]
      %v261 = vld [vmem:[%s1 + $0x48] sm:$0xff]
      %v262 = vld [vmem:[%s1 + $0x50] sm:$0xff]
      %v263 = vld [vmem:[%s1 + $0x58] sm:$0xff]
      %v264 = vld [vmem:[%s1 + $0x60] sm:$0xff]
      %v265 = vld [vmem:[%s1 + $0x68] sm:$0xff]
      %v266 = vld [vmem:[%s1 + $0x70] sm:$0xff]
      %v267 = vld [vmem:[%s1 + $0x78] sm:$0xff]
      %v268 = vld [vmem:[%s1 + $0x80] sm:$0xff]
      %v269 = vld [vmem:[%s1 + $0x88] sm:$0xff]
      %v270 = vld [vmem:[%s1 + $0x90] sm:$0xff]
      %v271 = vld [vmem:[%s1 + $0x98] sm:$0xff]
      %v272 = vld [vmem:[%s1 + $0xa0] sm:$0xff]
      %v273 = vld [vmem:[%s1 + $0xa8] sm:$0xff]
      %v274 = vld [vmem:[%s1 + $0xb0] sm:$0xff]
      %v275 = vld [vmem:[%s1 + $0xb8] sm:$0xff]
      %v277 = vcombine.high %v251, %v251
      %v279 = vpack.c.bf16 %v251, %v251
      %v280 = vpack.c.bf16 %v277, %v277
      %v281 = vpack.c.bf16 %v253, %v252
      %v282 = vpack.c.bf16 %v255, %v254
      %v283 = vpack.c.bf16 %v257, %v256
      %v284 = vpack.c.bf16 %v259, %v258
      %v285 = vpack.c.bf16 %v261, %v260
      %v286 = vpack.c.bf16 %v263, %v262
      %v287 = vpack.c.bf16 %v265, %v264
      %v288 = vpack.c.bf16 %v267, %v266
      %v289 = vpack.c.bf16 %v269, %v268
      %v290 = vpack.c.bf16 %v271, %v270
      %v291 = vpack.c.bf16 %v273, %v272
      %v292 = vpack.c.bf16 %v275, %v274
      %vm293 = vcmask 523264
      %v295 = vsel %vm293, %v280, 0
      %297 = vmatprep.subr.bf16.mxu0 0
      %298 = vmatpush1.bf16.msra.mxu0 %v281
      %299 = vmatprep.subr.bf16.mxu0 0
      %300 = vmatpush1.bf16.msra.mxu0 %v282
      %301 = vmatprep.subr.bf16.mxu0 0
      %302 = vmatpush1.bf16.msra.mxu0 %v283
      %303 = vmatprep.subr.bf16.mxu0 0
      %304 = vmatpush1.bf16.msra.mxu0 %v284
      %305 = vmatprep.subr.bf16.mxu0 0
      %306 = vmatpush1.bf16.msra.mxu0 %v285
      %307 = vmatprep.subr.bf16.mxu0 0
      %308 = vmatpush1.bf16.msra.mxu0 %v286
      %309 = vmatprep.subr.bf16.mxu0 0
      %310 = vmatpush1.bf16.msra.mxu0 %v287
      %311 = vmatprep.subr.bf16.mxu0 0
      %312 = vmatpush1.bf16.msra.mxu0 %v288
      %313 = vmatprep.subr.bf16.mxu0 0
      %314 = vmatpush1.bf16.msra.mxu0 %v289
      %315 = vmatprep.subr.bf16.mxu0 0
      %316 = vmatpush1.bf16.msra.mxu0 %v290
      %317 = vmatprep.subr.bf16.mxu0 0
      %318 = vmatpush1.bf16.msra.mxu0 %v291
      %319 = vmatprep.subr.bf16.mxu0 0
      %320 = vmatpush1.bf16.msra.mxu0 %v292
      %321 = vmatprep.subr.bf16.mxu0 0
      %322 = vmatpush1.bf16.msra.mxu0 0
      %323 = vmatprep.subr.bf16.mxu0 0
      %324 = vmatpush1.bf16.msra.mxu0 0
      %325 = vmatprep.subr.bf16.mxu0 0
      %326 = vmatpush1.bf16.msra.mxu0 0
      %327 = vmatprep.subr.bf16.mxu0 0
      %328 = vmatpush1.bf16.msra.mxu0 0
      %329 = vmatprep.mubr.bf16.mxu0 %v295
      %330 = vmatmul.mubr.bf16.gmra.mrb[0].mxu0 %v279
      %v331 = vpop.f32.mrb[0].mxu0
      %v332 = vadd.f32 0.0, %v331
      %v333 = vpop.f32.mrb[0].mxu0
      %v334 = vpop.f32.mrb[0].mxu0
      %v335 = vpop.f32.mrb[0].mxu0
      %336 = vdwg.mxu0
      %v337 = vld [vmem:[%s2] sm:$0x1]
      %v339 = vrot.slane %v332, 7
      %vm341 = vcmask 1040384
      %v342 = vsel %vm341, %v337, %v339
      %v343 = vld [vmem:[%s3] sm:$0x1f]
      %v344 = vadd.f32 %v342, %v343
      %v345 = vld [vmem:[%s4] sm:$0x1]
      %v346 = vld [vmem:[%s5] sm:$0x1]
      %vm347 = vcmask 1044480
      %v348 = vsel %vm347, %v344, 0.0
      %349 = vadd.xlane.f32.xlu0 %v348
      %v350 = vpop.xlane.xlu0 %349
      %v351 = vrcp.pop 128.0
      %v352 = vmul.f32 %v350, %v351
      %v353 = vsub.f32 %v344, %v352
      %v354 = vmul.f32 %v353, %v353
      %v355 = vsel %vm347, %v354, 0.0
      %356 = vadd.xlane.f32.xlu0 %v355
      %v357 = vpop.xlane.xlu0 %356
      %v358 = vmul.f32 %v357, %v351
      %v359 = vadd.f32 %v358, 1e-05
      %v360 = vrsqrt.pop %v359
      %v361 = vmul.f32 %v353, %v360
      %v363 = vlaneseq
      %v364 = vshrl.u32 %v363, 7
      %v365 = vsub.s32 0, %v364
      %v366 = vrot.slane %v345, %v365
      %v368 = vmul.f32 %v361, %v366
      %v370 = vlaneseq
      %v371 = vshrl.u32 %v370, 7
      %v372 = vsub.s32 0, %v371
      %v373 = vrot.slane %v346, %v372
      %v375 = vadd.f32 %v368, %v373
      %376 = vst [vmem:[%s249] sm:$0x1f] %v375
      %p377 = scmp.lt.s32.totalorder %s17, 7
      %s378 = scalar_select %p377, %s17, 7
      %s379 = smul.addr %s378, 8
      %s380 = scalar_lea.vmem %s6, %s379
      // Predicated region
      $region45: #{evl_forward.10} parent=43 // pred_check
        %p381 = pneg %p166
      $region46: #{evl_forward.10} parent=43 // pred_check_branch
        %383 = sbr.rel (%p381) target = $region48
      $region47: #{evl_forward.10} parent=43 // pred_region
        _
      $region48: #{evl_forward.10} parent=43 // pred_fallthru
        _
    $region44: #{evl_forward.10} parent=5 // pred_fallthru
      _
    %p384 = scmp.le.s32.totalorder 2, %s12
    // Predicated region
    $region49: #{evl_forward.10} parent=5 // pred_check
      %p385 = pneg %p384
    $region50: #{evl_forward.10} parent=5 // pred_check_branch
      %387 = sbr.rel (%p385) target = $region52
    $region51: #{evl_forward.10} parent=5 // pred_region
      %s388 = ssub.s32 %s12, 2
      // Predicated region
      $region53: #{evl_forward.10} parent=51 // pred_check
        %p389 = pneg %p172
      $region54: #{evl_forward.10} parent=51 // pred_check_branch
        %391 = sbr.rel (%p389) target = $region56
      $region55: #{evl_forward.10} parent=51 // pred_region
        %p392 = scmp.lt.s32.totalorder %s18, 7
        %s393 = scalar_select %p392, %s18, 7
        %s394 = smul.addr %s393, 8
        %s395 = scalar_lea.vmem %s6, %s394
      $region56: #{evl_forward.10} parent=51 // pred_fallthru
        _
    $region52: #{evl_forward.10} parent=5 // pred_fallthru
      _
  $region6: #{evl_forward.10} parent=0 // loop_footer
    %s16 = sadd.s32 1, %s12
  $region7: #{evl_forward.10} parent=0 // loop_footer_branch
    %11 = sbr.rel target = $region3
  $region8: #{evl_forward.10} parent=0 // loop_exit
    _

// kernel: evl_forward.15
$region0: #{evl_forward.15}
  #allocation0 [shape = 'u32[]', space=smem, size = 0x4, offset = 0x4, fixed_abs, tag = 'smem constant byte address 0x4 - core index']
  #allocation1 [shape = 'u32[144,128]{1,0:T(1,128)}', space=vmem, size = 0x12000, scoped, tag = 'internal scratch']
  %s0 = inlined_call_operand.vmem [shape: f32[4,10,128], index: 0, kind: input, shape index: {}]
  %s1 = inlined_call_operand.vmem [shape: f32[3,128], index: 1, kind: input, shape index: {}]
  %s2 = inlined_call_operand.vmem [shape: f32[1,128], index: 2, kind: input, shape index: {}]
  %s3 = inlined_call_operand.vmem [shape: f32[4,1,128], index: 3, kind: input, shape index: {}]
  %s4 = inlined_call_operand.vmem [shape: f32[4,10,128], index: 4, kind: output, shape index: {}]
  %s5 = sld [smem:[#allocation0]]
  $region26: #{evl_forward.15} parent=0
    _
  %s7 = ssub.s32 1, %s5
  %s8 = scalar_select 0, %s7, %s5
  // Predicated region
  $region2: #{evl_forward.15} parent=0 // pred_check
    _
  $region3: #{evl_forward.15} parent=0 // pred_check_branch
    %10 = sbr.rel (0) target = $region5
  $region4: #{evl_forward.15} parent=0 // pred_region
    _
  $region5: #{evl_forward.15} parent=0 // pred_fallthru
    _
  // Predicated region
  $region6: #{evl_forward.15} parent=0 // pred_check
    _
  $region7: #{evl_forward.15} parent=0 // pred_check_branch
    %12 = sbr.rel (0) target = $region9
  $region8: #{evl_forward.15} parent=0 // pred_region
    _
  $region9: #{evl_forward.15} parent=0 // pred_fallthru
    _
  // Predicated region
  $region10: #{evl_forward.15} parent=0 // pred_check
    _
  $region11: #{evl_forward.15} parent=0 // pred_check_branch
    %14 = sbr.rel (0) target = $region13
  $region12: #{evl_forward.15} parent=0 // pred_region
    _
  $region13: #{evl_forward.15} parent=0 // pred_fallthru
    _
  // Predicated region
  $region14: #{evl_forward.15} parent=0 // pred_check
    _
  $region15: #{evl_forward.15} parent=0 // pred_check_branch
    %16 = sbr.rel (0) target = $region17
  $region16: #{evl_forward.15} parent=0 // pred_region
    _
  $region17: #{evl_forward.15} parent=0 // pred_fallthru
    _
  %v17 = vld [vmem:[%s0] sm:$0xff]
  %v18 = vld [vmem:[%s0 + $0x8] sm:$0x3]
  %v19 = vld [vmem:[%s0 + $0x10] sm:$0xff]
  %v20 = vld [vmem:[%s0 + $0x18] sm:$0x3]
  %v21 = vld [vmem:[%s0 + $0x20] sm:$0xff]
  %v22 = vld [vmem:[%s0 + $0x28] sm:$0x3]
  %v23 = vld [vmem:[%s0 + $0x30] sm:$0xff]
  %v24 = vld [vmem:[%s0 + $0x38] sm:$0x3]
  %v25 = vld [vmem:[%s1] sm:$0x7]
  %v26 = vlaneseq
  %v27 = vshrl.u32 %v26, 7
  %v28 = vsub.s32 1, %v27
  %v29 = vrot.slane %v25, %v28
  %v30 = vmul.f32 %v17, %v29
  %v31 = vmul.f32 %v18, %v29
  %v32 = vmul.f32 %v19, %v29
  %v33 = vmul.f32 %v20, %v29
  %v34 = vmul.f32 %v21, %v29
  %v35 = vmul.f32 %v22, %v29
  %v36 = vmul.f32 %v23, %v29
  %v37 = vmul.f32 %v24, %v29
  %v38 = vld [vmem:[%s2] sm:$0x1]
  %v40 = vlaneseq
  %v41 = vshrl.u32 %v40, 7
  %v42 = vsub.s32 0, %v41
  %v43 = vrot.slane %v38, %v42
  %v45 = vadd.f32 %v30, %v43
  %v46 = vadd.f32 %v31, %v43
  %v47 = vadd.f32 %v32, %v43
  %v48 = vadd.f32 %v33, %v43
  %v49 = vadd.f32 %v34, %v43
  %v50 = vadd.f32 %v35, %v43
  %v51 = vadd.f32 %v36, %v43
  %v52 = vadd.f32 %v37, %v43
  %v53 = vld [vmem:[%s3] sm:$0x1]
  %v54 = vld [vmem:[%s3 + $0x1] sm:$0x1]
  %v55 = vld [vmem:[%s3 + $0x2] sm:$0x1]
  %v56 = vld [vmem:[%s3 + $0x3] sm:$0x1]
  %v61 = vlaneseq
  %v62 = vshrl.u32 %v61, 7
  %v63 = vsub.s32 0, %v62
  %v64 = vrot.slane %v53, %v63
  %v65 = vlaneseq
  %v66 = vshrl.u32 %v65, 7
  %v67 = vsub.s32 0, %v66
  %v68 = vrot.slane %v54, %v67
  %v69 = vlaneseq
  %v70 = vshrl.u32 %v69, 7
  %v71 = vsub.s32 0, %v70
  %v72 = vrot.slane %v55, %v71
  %v73 = vlaneseq
  %v74 = vshrl.u32 %v73, 7
  %v75 = vsub.s32 0, %v74
  %v76 = vrot.slane %v56, %v75
  %v81 = vadd.f32 %v45, %v64
  %v82 = vadd.f32 %v46, %v64
  %v83 = vadd.f32 %v47, %v68
  %v84 = vadd.f32 %v48, %v68
  %v85 = vadd.f32 %v49, %v72
  %v86 = vadd.f32 %v50, %v72
  %v87 = vadd.f32 %v51, %v76
  %v88 = vadd.f32 %v52, %v76
  %v89 = vlaneseq
  %v90 = vshrl.u32 %v89, 7
  %v91 = vsub.s32 2, %v90
  %v92 = vrot.slane %v25, %v91
  %v93 = vmul.f32 %v19, %v92
  %v94 = vmul.f32 %v20, %v92
  %v95 = vadd.f32 %v81, %v93
  %v96 = vadd.f32 %v82, %v94
  %v97 = vlaneseq
  %v98 = vshrl.u32 %v97, 7
  %v99 = vsub.s32 0, %v98
  %v100 = vrot.slane %v25, %v99
  %v101 = vmul.f32 %v21, %v100
  %v102 = vmul.f32 %v22, %v100
  %v103 = vadd.f32 %v87, %v101
  %v104 = vadd.f32 %v88, %v102
  %105 = vst [vmem:[%s4] sm:$0xff] %v95
  %106 = vst [vmem:[%s4 + $0x8] sm:$0x3] %v96
  %s107 = scalar_lea.vmem %s4, 48
  %108 = vst [vmem:[%s107] sm:$0xff] %v103
  %109 = vst [vmem:[%s107 + $0x8] sm:$0x3] %v104
  %v110 = vmul.f32 %v17, %v100
  %v111 = vmul.f32 %v18, %v100
  %v112 = vmul.f32 %v19, %v100
  %v113 = vmul.f32 %v20, %v100
  %v114 = vadd.f32 %v83, %v110
  %v115 = vadd.f32 %v84, %v111
  %v116 = vadd.f32 %v85, %v112
  %v117 = vadd.f32 %v86, %v113
  %v118 = vmul.f32 %v21, %v92
  %v119 = vmul.f32 %v22, %v92
  %v120 = vmul.f32 %v23, %v92
  %v121 = vmul.f32 %v24, %v92
  %v122 = vadd.f32 %v114, %v118
  %v123 = vadd.f32 %v115, %v119
  %v124 = vadd.f32 %v116, %v120
  %v125 = vadd.f32 %v117, %v121
  %s126 = scalar_lea.vmem %s4, 16
  %127 = vst [vmem:[%s126] sm:$0xff] %v122
  %128 = vst [vmem:[%s126 + $0x8] sm:$0x3] %v123
  %129 = vst [vmem:[%s126 + $0x10] sm:$0xff] %v124
  %130 = vst [vmem:[%s126 + $0x18] sm:$0x3] %v125
  // Predicated region
  $region18: #{evl_forward.15} parent=0 // pred_check
    _
  $region19: #{evl_forward.15} parent=0 // pred_check_branch
    %132 = sbr.rel (0) target = $region21
  $region20: #{evl_forward.15} parent=0 // pred_region
    _
  $region21: #{evl_forward.15} parent=0 // pred_fallthru
    _
  // Predicated region
  $region22: #{evl_forward.15} parent=0 // pred_check
    _
  $region23: #{evl_forward.15} parent=0 // pred_check_branch
    %134 = sbr.rel (0) target = $region25
  $region24: #{evl_forward.15} parent=0 // pred_region
    _
  $region25: #{evl_forward.15} parent=0 // pred_fallthru
    _

// kernel: evl_forward.19
$region0: #{evl_forward.19}
  #allocation0 [shape = 'u32[]', space=smem, size = 0x4, offset = 0x4, fixed_abs, tag = 'smem constant byte address 0x4 - core index']
  #allocation1 [shape = 'u32[144,128]{1,0:T(1,128)}', space=vmem, size = 0x12000, scoped, tag = 'internal scratch']
  %s0 = inlined_call_operand.vmem [shape: f32[2,128], index: 0, kind: input, shape index: {}]
  %s1 = inlined_call_operand.vmem [shape: f32[1,128], index: 1, kind: input, shape index: {}]
  %s2 = inlined_call_operand.vmem [shape: f32[1,128], index: 2, kind: input, shape index: {}]
  %s3 = inlined_call_operand.vmem [shape: f32[128,128], index: 3, kind: input, shape index: {}]
  %s4 = inlined_call_operand.vmem [shape: f32[1,128], index: 4, kind: input, shape index: {}]
  %s5 = inlined_call_operand.hbm [shape: f32[2,128], index: 5, kind: output, shape index: {}]
  %s6 = sld [smem:[#allocation0]]
  $region30: #{evl_forward.19} parent=0
    _
  %s8 = ssub.s32 1, %s6
  %s9 = scalar_select 0, %s8, %s6
  $region1: #{evl_forward.19} parent=0
    #allocation2 [shape = 'u8[1024]{0}', space=vmem, size = 0x400, scoped, tag = 'output window, operand 0, single buffered']
    #allocation3 [shape = 's32[1]{0}', space=sflag, size = 0x4, scoped, tag = 'scoped memory for evl_forward.19']
    %10 = vsyncpa [#allocation3], 0
    // Predicated region
    $region2: #{evl_forward.19} parent=1 // pred_check
      _
    $region3: #{evl_forward.19} parent=1 // pred_check_branch
      %12 = sbr.rel (0) target = $region5
    $region4: #{evl_forward.19} parent=1 // pred_region
      _
    $region5: #{evl_forward.19} parent=1 // pred_fallthru
      _
    // Predicated region
    $region6: #{evl_forward.19} parent=1 // pred_check
      _
    $region7: #{evl_forward.19} parent=1 // pred_check_branch
      %14 = sbr.rel (0) target = $region9
    $region8: #{evl_forward.19} parent=1 // pred_region
      _
    $region9: #{evl_forward.19} parent=1 // pred_fallthru
      _
    // Predicated region
    $region10: #{evl_forward.19} parent=1 // pred_check
      _
    $region11: #{evl_forward.19} parent=1 // pred_check_branch
      %16 = sbr.rel (0) target = $region13
    $region12: #{evl_forward.19} parent=1 // pred_region
      _
    $region13: #{evl_forward.19} parent=1 // pred_fallthru
      _
    // Predicated region
    $region14: #{evl_forward.19} parent=1 // pred_check
      _
    $region15: #{evl_forward.19} parent=1 // pred_check_branch
      %18 = sbr.rel (0) target = $region17
    $region16: #{evl_forward.19} parent=1 // pred_region
      _
    $region17: #{evl_forward.19} parent=1 // pred_fallthru
      _
    // Predicated region
    $region18: #{evl_forward.19} parent=1 // pred_check
      _
    $region19: #{evl_forward.19} parent=1 // pred_check_branch
      %20 = sbr.rel (0) target = $region21
    $region20: #{evl_forward.19} parent=1 // pred_region
      _
    $region21: #{evl_forward.19} parent=1 // pred_fallthru
      _
    %v22 = vld [vmem:[%s0] sm:$0x3]
    %v23 = vld [vmem:[%s1] sm:$0x1]
    %v24 = vld [vmem:[%s2] sm:$0x1]
    %vm25 = vcmask 1041408
    %v26 = vsel %vm25, %v22, 0.0
    %27 = vadd.xlane.f32.xlu0 %v26
    %v28 = vpop.xlane.xlu0 %27
    %v29 = vrcp.pop 128.0
    %v30 = vmul.f32 %v28, %v29
    %v31 = vsub.f32 %v22, %v30
    %v32 = vmul.f32 %v31, %v31
    %v33 = vsel %vm25, %v32, 0.0
    %34 = vadd.xlane.f32.xlu0 %v33
    %v35 = vpop.xlane.xlu0 %34
    %v36 = vmul.f32 %v35, %v29
    %v37 = vadd.f32 %v36, 1e-05
    %v38 = vrsqrt.pop %v37
    %v39 = vmul.f32 %v31, %v38
    %v41 = vlaneseq
    %v42 = vshrl.u32 %v41, 7
    %v43 = vsub.s32 0, %v42
    %v44 = vrot.slane %v23, %v43
    %v46 = vmul.f32 %v39, %v44
    %v48 = vlaneseq
    %v49 = vshrl.u32 %v48, 7
    %v50 = vsub.s32 0, %v49
    %v51 = vrot.slane %v24, %v50
    %v53 = vadd.f32 %v46, %v51
    %v54 = vld [vmem:[%s3] sm:$0xff]
    %v55 = vld [vmem:[%s3 + $0x8] sm:$0xff]
    %v56 = vld [vmem:[%s3 + $0x10] sm:$0xff]
    %v57 = vld [vmem:[%s3 + $0x18] sm:$0xff]
    %v58 = vld [vmem:[%s3 + $0x20] sm:$0xff]
    %v59 = vld [vmem:[%s3 + $0x28] sm:$0xff]
    %v60 = vld [vmem:[%s3 + $0x30] sm:$0xff]
    %v61 = vld [vmem:[%s3 + $0x38] sm:$0xff]
    %v62 = vld [vmem:[%s3 + $0x40] sm:$0xff]
    %v63 = vld [vmem:[%s3 + $0x48] sm:$0xff]
    %v64 = vld [vmem:[%s3 + $0x50] sm:$0xff]
    %v65 = vld [vmem:[%s3 + $0x58] sm:$0xff]
    %v66 = vld [vmem:[%s3 + $0x60] sm:$0xff]
    %v67 = vld [vmem:[%s3 + $0x68] sm:$0xff]
    %v68 = vld [vmem:[%s3 + $0x70] sm:$0xff]
    %v69 = vld [vmem:[%s3 + $0x78] sm:$0xff]
    %v70 = vld [vmem:[%s4] sm:$0x1]
    %v71 = vpack.c.bf16 %v53, %v53
    %v72 = vpack.c.bf16 %v55, %v54
    %v73 = vpack.c.bf16 %v57, %v56
    %v74 = vpack.c.bf16 %v59, %v58
    %v75 = vpack.c.bf16 %v61, %v60
    %v76 = vpack.c.bf16 %v63, %v62
    %v77 = vpack.c.bf16 %v65, %v64
    %v78 = vpack.c.bf16 %v67, %v66
    %v79 = vpack.c.bf16 %v69, %v68
    %v81 = vlaneseq
    %v82 = vshrl.u32 %v81, 7
    %v83 = vsub.s32 0, %v82
    %v84 = vrot.slane %v70, %v83
    %86 = vmatprep.subr.bf16.mxu0 0
    %87 = vmatpush1.bf16.msra.mxu0 %v72
    %88 = vmatprep.subr.bf16.mxu0 0
    %89 = vmatpush1.bf16.msra.mxu0 %v73
    %90 = vmatprep.subr.bf16.mxu0 0
    %91 = vmatpush1.bf16.msra.mxu0 %v74
    %92 = vmatprep.subr.bf16.mxu0 0
    %93 = vmatpush1.bf16.msra.mxu0 %v75
    %94 = vmatprep.subr.bf16.mxu0 0
    %95 = vmatpush1.bf16.msra.mxu0 %v76
    %96 = vmatprep.subr.bf16.mxu0 0
    %97 = vmatpush1.bf16.msra.mxu0 %v77
    %98 = vmatprep.subr.bf16.mxu0 0
    %99 = vmatpush1.bf16.msra.mxu0 %v78
    %100 = vmatprep.subr.bf16.mxu0 0
    %101 = vmatpush1.bf16.msra.mxu0 %v79
    %102 = vmatprep.subr.bf16.mxu0 0
    %103 = vmatpush1.bf16.msra.mxu0 0
    %104 = vmatprep.subr.bf16.mxu0 0
    %105 = vmatpush1.bf16.msra.mxu0 0
    %106 = vmatprep.subr.bf16.mxu0 0
    %107 = vmatpush1.bf16.msra.mxu0 0
    %108 = vmatprep.subr.bf16.mxu0 0
    %109 = vmatpush1.bf16.msra.mxu0 0
    %110 = vmatprep.subr.bf16.mxu0 0
    %111 = vmatpush1.bf16.msra.mxu0 0
    %112 = vmatprep.subr.bf16.mxu0 0
    %113 = vmatpush1.bf16.msra.mxu0 0
    %114 = vmatprep.subr.bf16.mxu0 0
    %115 = vmatpush1.bf16.msra.mxu0 0
    %116 = vmatprep.subr.bf16.mxu0 0
    %117 = vmatpush1.bf16.msra.mxu0 0
    %118 = vmatprep.mubr.bf16.mxu0 0
    %119 = vmatmul.mubr.bf16.gmra.mrb[0].mxu0 %v71
    %v120 = vpop.f32.mrb[0].mxu0
    %v121 = vadd.f32 %v84, %v120
    %v122 = vpop.f32.mrb[0].mxu0
    %v123 = vpop.f32.mrb[0].mxu0
    %v124 = vpop.f32.mrb[0].mxu0
    %125 = vdwg.mxu0
    %126 = vst [vmem:[#allocation2] sm:$0x3] %v121
    // Predicated region
    $region22: #{evl_forward.19} parent=1 // pred_check
      _
    $region23: #{evl_forward.19} parent=1 // pred_check_branch
      %128 = sbr.rel (0) target = $region25
    $region24: #{evl_forward.19} parent=1 // pred_region
      %s130 = ssub.s32 32, 32
      %131 = vsyncadd [#allocation3], %s130
      %s133 = sshll.u32 [#allocation2], 4
      %s134 = int_to_ptr.vmem [resolvable:$true] %s133
      %136 = dma.vmem_to_hbm [thread:$0]  %s134, 32, %s5, [#allocation3]
    $region25: #{evl_forward.19} parent=1 // pred_fallthru
      _
    // Predicated region
    $region26: #{evl_forward.19} parent=1 // pred_check
      _
    $region27: #{evl_forward.19} parent=1 // pred_check_branch
      %138 = sbr.rel (0) target = $region29
    $region28: #{evl_forward.19} parent=1 // pred_region
      %139 = dma.done [#allocation3], 32
    $region29: #{evl_forward.19} parent=1 // pred_fallthru
      _
    %140 = vsyncpa [#allocation3], 1

// kernel: evl_forward.11
$region0: #{evl_forward.11}
  #allocation0 [shape = 'u32[]', space=smem, size = 0x4, offset = 0x4, fixed_abs, tag = 'smem constant byte address 0x4 - core index']
  #allocation1 [shape = 'u32[144,128]{1,0:T(1,128)}', space=vmem, size = 0x12000, scoped, tag = 'internal scratch']
  %s0 = inlined_call_operand.vmem [shape: f32[8,5,128], index: 0, kind: input, shape index: {}]
  %s1 = inlined_call_operand.vmem [shape: f32[1,128], index: 1, kind: input, shape index: {}]
  %s2 = inlined_call_operand.vmem [shape: f32[1,128], index: 2, kind: input, shape index: {}]
  %s3 = inlined_call_operand.vmem [shape: f32[4,128,32], index: 3, kind: input, shape index: {}]
  %s4 = inlined_call_operand.vmem [shape: f32[4,1,32], index: 4, kind: input, shape index: {}]
  %s5 = inlined_call_operand.vmem [shape: f32[4,128,32], index: 5, kind: input, shape index: {}]
  %s6 = inlined_call_operand.vmem [shape: f32[4,1,32], index: 6, kind: input, shape index: {}]
  %s7 = inlined_call_operand.vmem [shape: f32[4,128,32], index: 7, kind: input, shape index: {}]
  %s8 = inlined_call_operand.vmem [shape: f32[4,1,32], index: 8, kind: input, shape index: {}]
  %s9 = inlined_call_operand.vmem [shape: f32[4,32,128], index: 9, kind: input, shape index: {}]
  %s10 = inlined_call_operand.vmem [shape: f32[1,128], index: 10, kind: input, shape index: {}]
  %s11 = inlined_call_operand.vmem [shape: f32[1,128], index: 11, kind: input, shape index: {}]
  %s12 = inlined_call_operand.vmem [shape: f32[1,128], index: 12, kind: input, shape index: {}]
  %s13 = inlined_call_operand.vmem [shape: f32[128,512], index: 13, kind: input, shape index: {}]
  %s14 = inlined_call_operand.vmem [shape: f32[1,512], index: 14, kind: input, shape index: {}]
  %s15 = inlined_call_operand.vmem [shape: f32[512,128], index: 15, kind: input, shape index: {}]
  %s16 = inlined_call_operand.vmem [shape: f32[1,128], index: 16, kind: input, shape index: {}]
  %s17 = inlined_call_operand.vmem [shape: f32[8,5,128], index: 17, kind: output, shape index: {}]
  %s18 = sld [smem:[#allocation0]]
  $region101: #{evl_forward.11} parent=0
    _
  %s20 = ssub.s32 1, %s18
  %s21 = scalar_select 0, %s20, %s18
  loop: start=0, step=1, limit=10
  $region2: #{evl_forward.11} parent=0 // loop_pre_header
    _
  $region3: #{evl_forward.11} parent=0 // loop_header
    %s23 = sphi 0, %s27
    %p24 = scmp.ge.s32.totalorder %s23, 10
    %s33 = sphi 0, %s35
    %s36 = sphi 0, %s33
    %s37 = sphi 0, %s36
    %s53 = sphi 0, %s37
    %s57 = sphi 0, %s57
    %s59 = sphi 0, %s57
    %s60 = sphi 0, %s59
    %s74 = sphi 0, %s60
    %s78 = sphi 0, %s78
    %s80 = sphi 0, %s78
    %s81 = sphi 0, %s80
    %s95 = sphi 0, %s81
    %s99 = sphi 0, %s99
    %s101 = sphi 0, %s99
    %s102 = sphi 0, %s101
    %s116 = sphi 0, %s102
    %s120 = sphi 0, %s120
    %s122 = sphi 0, %s120
    %s123 = sphi 0, %s122
    %s137 = sphi 0, %s123
    %s141 = sphi 0, %s141
    %s143 = sphi 0, %s141
    %s144 = sphi 0, %s143
    %s158 = sphi 0, %s144
    %s162 = sphi 0, %s162
    %s164 = sphi 0, %s162
    %s165 = sphi 0, %s164
    %s179 = sphi 0, %s165
    %s183 = sphi 0, %s183
    %s185 = sphi 0, %s183
    %s186 = sphi 0, %s185
    %s200 = sphi 0, %s186
    %s204 = sphi 0, %s204
    %s206 = sphi 0, %s204
    %s207 = sphi 0, %s206
    %s221 = sphi 0, %s207
    %s225 = sphi 0, %s225
    %s227 = sphi 0, %s225
    %s228 = sphi 0, %s227
    %s242 = sphi 0, %s228
    %s246 = sphi 0, %s246
    %s248 = sphi 0, %s246
    %s249 = sphi 0, %s248
    %s263 = sphi 0, %s249
    %s267 = sphi 0, %s267
    %s269 = sphi 0, %s267
    %s270 = sphi 0, %s269
    %s284 = sphi 0, %s270
    %s288 = sphi 0, %s288
    %s290 = sphi 0, %s288
    %s291 = sphi 0, %s290
    %s305 = sphi 0, %s291
    %s309 = sphi 0, %s309
    %s311 = sphi 0, %s309
    %s312 = sphi 0, %s311
    %s326 = sphi 0, %s312
    %s330 = sphi 0, %s330
    %s332 = sphi 0, %s330
    %s333 = sphi 0, %s332
    %s347 = sphi 0, %s333
    %s351 = sphi 0, %s351
    %s353 = sphi 0, %s351
    %s354 = sphi 0, %s353
    %s368 = sphi 0, %s354
    %s372 = sphi 0, %s372
    %s374 = sphi 0, %s372
    %s375 = sphi 0, %s374
    %s389 = sphi 0, %s375
    %s395 = sphi 0, %s397
    %s398 = sphi 0, %s395
    %s399 = sphi 0, %s398
    %s415 = sphi 0, %s399
  $region4: #{evl_forward.11} parent=0 // loop_header_branch
    %26 = sbr.rel (%p24) target = $region8
  $region5: #{evl_forward.11} parent=0 // loop_body
    %s28 = ssub.s32 %s23, 1
    %s29 = ssub.s32 %s23, 2
    %s30 = sadd.s32 %s23, 1
    %s31 = ssub.s32 %s23, %s30
    %p32 = scmp.eq.s32.totalorder %s31, 0
    %s34 = sadd.s32 %s33, 1
    %s35 = scalar_select %p32, %s33, %s34
    %p38 = pneg %p32
    %p39 = scmp.eq.s32.totalorder %s23, 7
    %p40 = por %p38, %p39
    %p41 = scmp.ne.s32.totalorder %s33, %s36
    %p42 = scmp.eq.s32.totalorder %s23, 0
    %p43 = por %p41, %p42
    %p44 = scmp.ne.s32.totalorder %s33, %s36
    %p45 = scmp.eq.s32.totalorder %s28, 7
    %p46 = por %p44, %p45
    %p47 = scmp.ne.s32.totalorder %s36, %s37
    %p48 = scmp.eq.s32.totalorder %s28, 0
    %p49 = por %p47, %p48
    %p50 = scmp.ne.s32.totalorder %s36, %s37
    %p51 = scmp.eq.s32.totalorder %s29, 7
    %p52 = por %p50, %p51
    %p54 = scmp.ne.s32.totalorder %s37, %s53
    %p55 = scmp.eq.s32.totalorder %s29, 0
    %p56 = por %p54, %p55
    %s58 = sadd.s32 %s57, 1
    %p61 = scmp.eq.s32.totalorder %s23, 7
    %p62 = scmp.ne.s32.totalorder %s57, %s59
    %p63 = scmp.eq.s32.totalorder %s23, 0
    %p64 = por %p62, %p63
    %p65 = scmp.ne.s32.totalorder %s57, %s59
    %p66 = scmp.eq.s32.totalorder %s28, 7
    %p67 = por %p65, %p66
    %p68 = scmp.ne.s32.totalorder %s59, %s60
    %p69 = scmp.eq.s32.totalorder %s28, 0
    %p70 = por %p68, %p69
    %p71 = scmp.ne.s32.totalorder %s59, %s60
    %p72 = scmp.eq.s32.totalorder %s29, 7
    %p73 = por %p71, %p72
    %p75 = scmp.ne.s32.totalorder %s60, %s74
    %p76 = scmp.eq.s32.totalorder %s29, 0
    %p77 = por %p75, %p76
    %s79 = sadd.s32 %s78, 1
    %p82 = scmp.eq.s32.totalorder %s23, 7
    %p83 = scmp.ne.s32.totalorder %s78, %s80
    %p84 = scmp.eq.s32.totalorder %s23, 0
    %p85 = por %p83, %p84
    %p86 = scmp.ne.s32.totalorder %s78, %s80
    %p87 = scmp.eq.s32.totalorder %s28, 7
    %p88 = por %p86, %p87
    %p89 = scmp.ne.s32.totalorder %s80, %s81
    %p90 = scmp.eq.s32.totalorder %s28, 0
    %p91 = por %p89, %p90
    %p92 = scmp.ne.s32.totalorder %s80, %s81
    %p93 = scmp.eq.s32.totalorder %s29, 7
    %p94 = por %p92, %p93
    %p96 = scmp.ne.s32.totalorder %s81, %s95
    %p97 = scmp.eq.s32.totalorder %s29, 0
    %p98 = por %p96, %p97
    %s100 = sadd.s32 %s99, 1
    %p103 = scmp.eq.s32.totalorder %s23, 7
    %p104 = scmp.ne.s32.totalorder %s99, %s101
    %p105 = scmp.eq.s32.totalorder %s23, 0
    %p106 = por %p104, %p105
    %p107 = scmp.ne.s32.totalorder %s99, %s101
    %p108 = scmp.eq.s32.totalorder %s28, 7
    %p109 = por %p107, %p108
    %p110 = scmp.ne.s32.totalorder %s101, %s102
    %p111 = scmp.eq.s32.totalorder %s28, 0
    %p112 = por %p110, %p111
    %p113 = scmp.ne.s32.totalorder %s101, %s102
    %p114 = scmp.eq.s32.totalorder %s29, 7
    %p115 = por %p113, %p114
    %p117 = scmp.ne.s32.totalorder %s102, %s116
    %p118 = scmp.eq.s32.totalorder %s29, 0
    %p119 = por %p117, %p118
    %s121 = sadd.s32 %s120, 1
    %p124 = scmp.eq.s32.totalorder %s23, 7
    %p125 = scmp.ne.s32.totalorder %s120, %s122
    %p126 = scmp.eq.s32.totalorder %s23, 0
    %p127 = por %p125, %p126
    %p128 = scmp.ne.s32.totalorder %s120, %s122
    %p129 = scmp.eq.s32.totalorder %s28, 7
    %p130 = por %p128, %p129
    %p131 = scmp.ne.s32.totalorder %s122, %s123
    %p132 = scmp.eq.s32.totalorder %s28, 0
    %p133 = por %p131, %p132
    %p134 = scmp.ne.s32.totalorder %s122, %s123
    %p135 = scmp.eq.s32.totalorder %s29, 7
    %p136 = por %p134, %p135
    %p138 = scmp.ne.s32.totalorder %s123, %s137
    %p139 = scmp.eq.s32.totalorder %s29, 0
    %p140 = por %p138, %p139
    %s142 = sadd.s32 %s141, 1
    %p145 = scmp.eq.s32.totalorder %s23, 7
    %p146 = scmp.ne.s32.totalorder %s141, %s143
    %p147 = scmp.eq.s32.totalorder %s23, 0
    %p148 = por %p146, %p147
    %p149 = scmp.ne.s32.totalorder %s141, %s143
    %p150 = scmp.eq.s32.totalorder %s28, 7
    %p151 = por %p149, %p150
    %p152 = scmp.ne.s32.totalorder %s143, %s144
    %p153 = scmp.eq.s32.totalorder %s28, 0
    %p154 = por %p152, %p153
    %p155 = scmp.ne.s32.totalorder %s143, %s144
    %p156 = scmp.eq.s32.totalorder %s29, 7
    %p157 = por %p155, %p156
    %p159 = scmp.ne.s32.totalorder %s144, %s158
    %p160 = scmp.eq.s32.totalorder %s29, 0
    %p161 = por %p159, %p160
    %s163 = sadd.s32 %s162, 1
    %p166 = scmp.eq.s32.totalorder %s23, 7
    %p167 = scmp.ne.s32.totalorder %s162, %s164
    %p168 = scmp.eq.s32.totalorder %s23, 0
    %p169 = por %p167, %p168
    %p170 = scmp.ne.s32.totalorder %s162, %s164
    %p171 = scmp.eq.s32.totalorder %s28, 7
    %p172 = por %p170, %p171
    %p173 = scmp.ne.s32.totalorder %s164, %s165
    %p174 = scmp.eq.s32.totalorder %s28, 0
    %p175 = por %p173, %p174
    %p176 = scmp.ne.s32.totalorder %s164, %s165
    %p177 = scmp.eq.s32.totalorder %s29, 7
    %p178 = por %p176, %p177
    %p180 = scmp.ne.s32.totalorder %s165, %s179
    %p181 = scmp.eq.s32.totalorder %s29, 0
    %p182 = por %p180, %p181
    %s184 = sadd.s32 %s183, 1
    %p187 = scmp.eq.s32.totalorder %s23, 7
    %p188 = scmp.ne.s32.totalorder %s183, %s185
    %p189 = scmp.eq.s32.totalorder %s23, 0
    %p190 = por %p188, %p189
    %p191 = scmp.ne.s32.totalorder %s183, %s185
    %p192 = scmp.eq.s32.totalorder %s28, 7
    %p193 = por %p191, %p192
    %p194 = scmp.ne.s32.totalorder %s185, %s186
    %p195 = scmp.eq.s32.totalorder %s28, 0
    %p196 = por %p194, %p195
    %p197 = scmp.ne.s32.totalorder %s185, %s186
    %p198 = scmp.eq.s32.totalorder %s29, 7
    %p199 = por %p197, %p198
    %p201 = scmp.ne.s32.totalorder %s186, %s200
    %p202 = scmp.eq.s32.totalorder %s29, 0
    %p203 = por %p201, %p202
    %s205 = sadd.s32 %s204, 1
    %p208 = scmp.eq.s32.totalorder %s23, 7
    %p209 = scmp.ne.s32.totalorder %s204, %s206
    %p210 = scmp.eq.s32.totalorder %s23, 0
    %p211 = por %p209, %p210
    %p212 = scmp.ne.s32.totalorder %s204, %s206
    %p213 = scmp.eq.s32.totalorder %s28, 7
    %p214 = por %p212, %p213
    %p215 = scmp.ne.s32.totalorder %s206, %s207
    %p216 = scmp.eq.s32.totalorder %s28, 0
    %p217 = por %p215, %p216
    %p218 = scmp.ne.s32.totalorder %s206, %s207
    %p219 = scmp.eq.s32.totalorder %s29, 7
    %p220 = por %p218, %p219
    %p222 = scmp.ne.s32.totalorder %s207, %s221
    %p223 = scmp.eq.s32.totalorder %s29, 0
    %p224 = por %p222, %p223
    %s226 = sadd.s32 %s225, 1
    %p229 = scmp.eq.s32.totalorder %s23, 7
    %p230 = scmp.ne.s32.totalorder %s225, %s227
    %p231 = scmp.eq.s32.totalorder %s23, 0
    %p232 = por %p230, %p231
    %p233 = scmp.ne.s32.totalorder %s225, %s227
    %p234 = scmp.eq.s32.totalorder %s28, 7
    %p235 = por %p233, %p234
    %p236 = scmp.ne.s32.totalorder %s227, %s228
    %p237 = scmp.eq.s32.totalorder %s28, 0
    %p238 = por %p236, %p237
    %p239 = scmp.ne.s32.totalorder %s227, %s228
    %p240 = scmp.eq.s32.totalorder %s29, 7
    %p241 = por %p239, %p240
    %p243 = scmp.ne.s32.totalorder %s228, %s242
    %p244 = scmp.eq.s32.totalorder %s29, 0
    %p245 = por %p243, %p244
    %s247 = sadd.s32 %s246, 1
    %p250 = scmp.eq.s32.totalorder %s23, 7
    %p251 = scmp.ne.s32.totalorder %s246, %s248
    %p252 = scmp.eq.s32.totalorder %s23, 0
    %p253 = por %p251, %p252
    %p254 = scmp.ne.s32.totalorder %s246, %s248
    %p255 = scmp.eq.s32.totalorder %s28, 7
    %p256 = por %p254, %p255
    %p257 = scmp.ne.s32.totalorder %s248, %s249
    %p258 = scmp.eq.s32.totalorder %s28, 0
    %p259 = por %p257, %p258
    %p260 = scmp.ne.s32.totalorder %s248, %s249
    %p261 = scmp.eq.s32.totalorder %s29, 7
    %p262 = por %p260, %p261
    %p264 = scmp.ne.s32.totalorder %s249, %s263
    %p265 = scmp.eq.s32.totalorder %s29, 0
    %p266 = por %p264, %p265
    %s268 = sadd.s32 %s267, 1
    %p271 = scmp.eq.s32.totalorder %s23, 7
    %p272 = scmp.ne.s32.totalorder %s267, %s269
    %p273 = scmp.eq.s32.totalorder %s23, 0
    %p274 = por %p272, %p273
    %p275 = scmp.ne.s32.totalorder %s267, %s269
    %p276 = scmp.eq.s32.totalorder %s28, 7
    %p277 = por %p275, %p276
    %p278 = scmp.ne.s32.totalorder %s269, %s270
    %p279 = scmp.eq.s32.totalorder %s28, 0
    %p280 = por %p278, %p279
    %p281 = scmp.ne.s32.totalorder %s269, %s270
    %p282 = scmp.eq.s32.totalorder %s29, 7
    %p283 = por %p281, %p282
    %p285 = scmp.ne.s32.totalorder %s270, %s284
    %p286 = scmp.eq.s32.totalorder %s29, 0
    %p287 = por %p285, %p286
    %s289 = sadd.s32 %s288, 1
    %p292 = scmp.eq.s32.totalorder %s23, 7
    %p293 = scmp.ne.s32.totalorder %s288, %s290
    %p294 = scmp.eq.s32.totalorder %s23, 0
    %p295 = por %p293, %p294
    %p296 = scmp.ne.s32.totalorder %s288, %s290
    %p297 = scmp.eq.s32.totalorder %s28, 7
    %p298 = por %p296, %p297
    %p299 = scmp.ne.s32.totalorder %s290, %s291
    %p300 = scmp.eq.s32.totalorder %s28, 0
    %p301 = por %p299, %p300
    %p302 = scmp.ne.s32.totalorder %s290, %s291
    %p303 = scmp.eq.s32.totalorder %s29, 7
    %p304 = por %p302, %p303
    %p306 = scmp.ne.s32.totalorder %s291, %s305
    %p307 = scmp.eq.s32.totalorder %s29, 0
    %p308 = por %p306, %p307
    %s310 = sadd.s32 %s309, 1
    %p313 = scmp.eq.s32.totalorder %s23, 7
    %p314 = scmp.ne.s32.totalorder %s309, %s311
    %p315 = scmp.eq.s32.totalorder %s23, 0
    %p316 = por %p314, %p315
    %p317 = scmp.ne.s32.totalorder %s309, %s311
    %p318 = scmp.eq.s32.totalorder %s28, 7
    %p319 = por %p317, %p318
    %p320 = scmp.ne.s32.totalorder %s311, %s312
    %p321 = scmp.eq.s32.totalorder %s28, 0
    %p322 = por %p320, %p321
    %p323 = scmp.ne.s32.totalorder %s311, %s312
    %p324 = scmp.eq.s32.totalorder %s29, 7
    %p325 = por %p323, %p324
    %p327 = scmp.ne.s32.totalorder %s312, %s326
    %p328 = scmp.eq.s32.totalorder %s29, 0
    %p329 = por %p327, %p328
    %s331 = sadd.s32 %s330, 1
    %p334 = scmp.eq.s32.totalorder %s23, 7
    %p335 = scmp.ne.s32.totalorder %s330, %s332
    %p336 = scmp.eq.s32.totalorder %s23, 0
    %p337 = por %p335, %p336
    %p338 = scmp.ne.s32.totalorder %s330, %s332
    %p339 = scmp.eq.s32.totalorder %s28, 7
    %p340 = por %p338, %p339
    %p341 = scmp.ne.s32.totalorder %s332, %s333
    %p342 = scmp.eq.s32.totalorder %s28, 0
    %p343 = por %p341, %p342
    %p344 = scmp.ne.s32.totalorder %s332, %s333
    %p345 = scmp.eq.s32.totalorder %s29, 7
    %p346 = por %p344, %p345
    %p348 = scmp.ne.s32.totalorder %s333, %s347
    %p349 = scmp.eq.s32.totalorder %s29, 0
    %p350 = por %p348, %p349
    %s352 = sadd.s32 %s351, 1
    %p355 = scmp.eq.s32.totalorder %s23, 7
    %p356 = scmp.ne.s32.totalorder %s351, %s353
    %p357 = scmp.eq.s32.totalorder %s23, 0
    %p358 = por %p356, %p357
    %p359 = scmp.ne.s32.totalorder %s351, %s353
    %p360 = scmp.eq.s32.totalorder %s28, 7
    %p361 = por %p359, %p360
    %p362 = scmp.ne.s32.totalorder %s353, %s354
    %p363 = scmp.eq.s32.totalorder %s28, 0
    %p364 = por %p362, %p363
    %p365 = scmp.ne.s32.totalorder %s353, %s354
    %p366 = scmp.eq.s32.totalorder %s29, 7
    %p367 = por %p365, %p366
    %p369 = scmp.ne.s32.totalorder %s354, %s368
    %p370 = scmp.eq.s32.totalorder %s29, 0
    %p371 = por %p369, %p370
    %s373 = sadd.s32 %s372, 1
    %p376 = scmp.eq.s32.totalorder %s23, 7
    %p377 = scmp.ne.s32.totalorder %s372, %s374
    %p378 = scmp.eq.s32.totalorder %s23, 0
    %p379 = por %p377, %p378
    %p380 = scmp.ne.s32.totalorder %s372, %s374
    %p381 = scmp.eq.s32.totalorder %s28, 7
    %p382 = por %p380, %p381
    %p383 = scmp.ne.s32.totalorder %s374, %s375
    %p384 = scmp.eq.s32.totalorder %s28, 0
    %p385 = por %p383, %p384
    %p386 = scmp.ne.s32.totalorder %s374, %s375
    %p387 = scmp.eq.s32.totalorder %s29, 7
    %p388 = por %p386, %p387
    %p390 = scmp.ne.s32.totalorder %s375, %s389
    %p391 = scmp.eq.s32.totalorder %s29, 0
    %p392 = por %p390, %p391
    %s393 = ssub.s32 %s23, %s30
    %p394 = scmp.eq.s32.totalorder %s393, 0
    %s396 = sadd.s32 %s395, 1
    %s397 = scalar_select %p394, %s395, %s396
    %p400 = pneg %p394
    %p401 = scmp.eq.s32.totalorder %s23, 7
    %p402 = por %p400, %p401
    %p403 = scmp.ne.s32.totalorder %s395, %s398
    %p404 = scmp.eq.s32.totalorder %s23, 0
    %p405 = por %p403, %p404
    %p406 = scmp.ne.s32.totalorder %s395, %s398
    %p407 = scmp.eq.s32.totalorder %s28, 7
    %p408 = por %p406, %p407
    %p409 = scmp.ne.s32.totalorder %s398, %s399
    %p410 = scmp.eq.s32.totalorder %s28, 0
    %p411 = por %p409, %p410
    %p412 = scmp.ne.s32.totalorder %s398, %s399
    %p413 = scmp.eq.s32.totalorder %s29, 7
    %p414 = por %p412, %p413
    %p416 = scmp.ne.s32.totalorder %s399, %s415
    %p417 = scmp.eq.s32.totalorder %s29, 0
    %p418 = por %p416, %p417
    %p419 = scmp.le.s32.totalorder 1, %s23
    %p420 = scmp.lt.s32.totalorder %s23, 9
    %p421 = pnand %p419, %p420
    %p422 = pneg %p421
    // Predicated region
    $region9: #{evl_forward.11} parent=5 // pred_check
      _
    $region10: #{evl_forward.11} parent=5 // pred_check_branch
      %424 = sbr.rel (%p421) target = $region12
    $region11: #{evl_forward.11} parent=5 // pred_region
      %s425 = ssub.s32 %s23, 1
      // Predicated region
      $region13: #{evl_forward.11} parent=11 // pred_check
        %p426 = pneg %p70
      $region14: #{evl_forward.11} parent=11 // pred_check_branch
        %428 = sbr.rel (%p426) target = $region16
      $region15: #{evl_forward.11} parent=11 // pred_region
        _
      $region16: #{evl_forward.11} parent=11 // pred_fallthru
        _
      // Predicated region
      $region17: #{evl_forward.11} parent=11 // pred_check
        %p429 = pneg %p91
      $region18: #{evl_forward.11} parent=11 // pred_check_branch
        %431 = sbr.rel (%p429) target = $region20
      $region19: #{evl_forward.11} parent=11 // pred_region
        _
      $region20: #{evl_forward.11} parent=11 // pred_fallthru
        _
      // Predicated region
      $region21: #{evl_forward.11} parent=11 // pred_check
        %p432 = pneg %p112
      $region22: #{evl_forward.11} parent=11 // pred_check_branch
        %434 = sbr.rel (%p432) target = $region24
      $region23: #{evl_forward.11} parent=11 // pred_region
        _
      $region24: #{evl_forward.11} parent=11 // pred_fallthru
        _
      // Predicated region
      $region25: #{evl_forward.11} parent=11 // pred_check
        %p435 = pneg %p133
      $region26: #{evl_forward.11} parent=11 // pred_check_branch
        %437 = sbr.rel (%p435) target = $region28
      $region27: #{evl_forward.11} parent=11 // pred_region
        _
      $region28: #{evl_forward.11} parent=11 // pred_fallthru
        _
      // Predicated region
      $region29: #{evl_forward.11} parent=11 // pred_check
        %p438 = pneg %p154
      $region30: #{evl_forward.11} parent=11 // pred_check_branch
        %440 = sbr.rel (%p438) target = $region32
      $region31: #{evl_forward.11} parent=11 // pred_region
        _
      $region32: #{evl_forward.11} parent=11 // pred_fallthru
        _
      // Predicated region
      $region33: #{evl_forward.11} parent=11 // pred_check
        %p441 = pneg %p175
      $region34: #{evl_forward.11} parent=11 // pred_check_branch
        %443 = sbr.rel (%p441) target = $region36
      $region35: #{evl_forward.11} parent=11 // pred_region
        _
      $region36: #{evl_forward.11} parent=11 // pred_fallthru
        _
      // Predicated region
      $region37: #{evl_forward.11} parent=11 // pred_check
        %p444 = pneg %p196
      $region38: #{evl_forward.11} parent=11 // pred_check_branch
        %446 = sbr.rel (%p444) target = $region40
      $region39: #{evl_forward.11} parent=11 // pred_region
        _
      $region40: #{evl_forward.11} parent=11 // pred_fallthru
        _
      // Predicated region
      $region41: #{evl_forward.11} parent=11 // pred_check
        %p447 = pneg %p217
      $region42: #{evl_forward.11} parent=11 // pred_check_branch
        %449 = sbr.rel (%p447) target = $region44
      $region43: #{evl_forward.11} parent=11 // pred_region
        _
      $region44: #{evl_forward.11} parent=11 // pred_fallthru
        _
      // Predicated region
      $region45: #{evl_forward.11} parent=11 // pred_check
        %p450 = pneg %p238
      $region46: #{evl_forward.11} parent=11 // pred_check_branch
        %452 = sbr.rel (%p450) target = $region48
      $region47: #{evl_forward.11} parent=11 // pred_region
        _
      $region48: #{evl_forward.11} parent=11 // pred_fallthru
        _
      // Predicated region
      $region49: #{evl_forward.11} parent=11 // pred_check
        %p453 = pneg %p259
      $region50: #{evl_forward.11} parent=11 // pred_check_branch
        %455 = sbr.rel (%p453) target = $region52
      $region51: #{evl_forward.11} parent=11 // pred_region
        _
      $region52: #{evl_forward.11} parent=11 // pred_fallthru
        _
      // Predicated region
      $region53: #{evl_forward.11} parent=11 // pred_check
        %p456 = pneg %p280
      $region54: #{evl_forward.11} parent=11 // pred_check_branch
        %458 = sbr.rel (%p456) target = $region56
      $region55: #{evl_forward.11} parent=11 // pred_region
        _
      $region56: #{evl_forward.11} parent=11 // pred_fallthru
        _
      // Predicated region
      $region57: #{evl_forward.11} parent=11 // pred_check
        %p459 = pneg %p301
      $region58: #{evl_forward.11} parent=11 // pred_check_branch
        %461 = sbr.rel (%p459) target = $region60
      $region59: #{evl_forward.11} parent=11 // pred_region
        _
      $region60: #{evl_forward.11} parent=11 // pred_fallthru
        _
      // Predicated region
      $region61: #{evl_forward.11} parent=11 // pred_check
        %p462 = pneg %p322
      $region62: #{evl_forward.11} parent=11 // pred_check_branch
        %464 = sbr.rel (%p462) target = $region64
      $region63: #{evl_forward.11} parent=11 // pred_region
        _
      $region64: #{evl_forward.11} parent=11 // pred_fallthru
        _
      // Predicated region
      $region65: #{evl_forward.11} parent=11 // pred_check
        %p465 = pneg %p343
      $region66: #{evl_forward.11} parent=11 // pred_check_branch
        %467 = sbr.rel (%p465) target = $region68
      $region67: #{evl_forward.11} parent=11 // pred_region
        _
      $region68: #{evl_forward.11} parent=11 // pred_fallthru
        _
      // Predicated region
      $region69: #{evl_forward.11} parent=11 // pred_check
        %p468 = pneg %p364
      $region70: #{evl_forward.11} parent=11 // pred_check_branch
        %470 = sbr.rel (%p468) target = $region72
      $region71: #{evl_forward.11} parent=11 // pred_region
        _
      $region72: #{evl_forward.11} parent=11 // pred_fallthru
        _
      // Predicated region
      $region73: #{evl_forward.11} parent=11 // pred_check
        %p471 = pneg %p385
      $region74: #{evl_forward.11} parent=11 // pred_check_branch
        %473 = sbr.rel (%p471) target = $region76
      $region75: #{evl_forward.11} parent=11 // pred_region
        _
      $region76: #{evl_forward.11} parent=11 // pred_fallthru
        _
    $region12: #{evl_forward.11} parent=5 // pred_fallthru
      _
    %p474 = scmp.lt.s32.totalorder %s23, 8
    // Predicated region
    $region77: #{evl_forward.11} parent=5 // pred_check
      %p475 = pneg %p474
    $region78: #{evl_forward.11} parent=5 // pred_check_branch
      %477 = sbr.rel (%p475) target = $region80
    $region79: #{evl_forward.11} parent=5 // pred_region
      // Predicated region
      $region81: #{evl_forward.11} parent=79 // pred_check
        %p478 = pneg %p43
      $region82: #{evl_forward.11} parent=79 // pred_check_branch
        %480 = sbr.rel (%p478) target = $region84
      $region83: #{evl_forward.11} parent=79 // pred_region
        %p481 = scmp.lt.s32.totalorder %s23, 7
        %s482 = scalar_select %p481, %s23, 7
        %s483 = smul.addr %s482, 8
        %s484 = scalar_lea.vmem %s0, %s483
      $region84: #{evl_forward.11} parent=79 // pred_fallthru
        _
    $region80: #{evl_forward.11} parent=5 // pred_fallthru
      _
    %p485 = scmp.le.s32.totalorder 1, %s23
    %p486 = scmp.lt.s32.totalorder %s23, 9
    %p487 = pnand %p485, %p486
    %p488 = pneg %p487
    // Predicated region
    $region85: #{evl_forward.11} parent=5 // pred_check
      _
    $region86: #{evl_forward.11} parent=5 // pred_check_branch
      %490 = sbr.rel (%p487) target = $region88
    $region87: #{evl_forward.11} parent=5 // pred_region
      %s491 = ssub.s32 %s23, 1
      %p492 = scmp.lt.s32.totalorder %s28, 7
      %s493 = scalar_select %p492, %s28, 7
      %s494 = smul.addr %s493, 8
      %s495 = scalar_lea.vmem %s0, %s494
      %p496 = pneg %p49
      %p497 = pneg %p46
      %p498 = pneg %p70
      %p499 = pneg %p67
      %p500 = pneg %p91
      %p501 = pneg %p88
      %p502 = pneg %p112
      %p503 = pneg %p109
      %p504 = pneg %p133
      %p505 = pneg %p130
      %p506 = pneg %p154
      %p507 = pneg %p151
      %p508 = pneg %p175
      %p509 = pneg %p172
      %p510 = pneg %p196
      %p511 = pneg %p193
      %p512 = pneg %p217
      %p513 = pneg %p214
      %p514 = pneg %p238
      %p515 = pneg %p235
      %p516 = pneg %p259
      %p517 = pneg %p256
      %p518 = pneg %p280
      %p519 = pneg %p277
      %p520 = pneg %p301
      %p521 = pneg %p298
      %p522 = pneg %p322
      %p523 = pneg %p319
      %p524 = pneg %p343
      %p525 = pneg %p340
      %p526 = pneg %p364
      %p527 = pneg %p361
      %p528 = pneg %p385
      %p529 = pneg %p382
      %p530 = pneg %p411
      %p531 = pneg %p408
      %p532 = scmp.lt.s32.totalorder %s28, 7
      %s533 = scalar_select %p532, %s28, 7
      %s534 = smul.addr %s533, 8
      %s535 = scalar_lea.vmem %s17, %s534
      %p536 = scmp.lt.s32.totalorder %s28, 7
      %s537 = scalar_select %p536, %s28, 7
      %s538 = smul.addr %s537, 8
      %s539 = scalar_lea.vmem %s0, %s538
      %p540 = scmp.lt.s32.totalorder %s28, 7
      %s541 = scalar_select %p540, %s28, 7
      %s542 = smul.addr %s541, 8
      %s543 = scalar_lea.vmem %s17, %s542
      %v545 = vld [vmem:[%s539] sm:$0x1f]
      %v546 = vld [vmem:[%s1] sm:$0x1]
      %v547 = vld [vmem:[%s2] sm:$0x1]
      %vm548 = vcmask 1044480
      %v549 = vsel %vm548, %v545, 0.0
      %550 = vadd.xlane.f32.xlu0 %v549
      %v551 = vpop.xlane.xlu0 %550
      %v552 = vrcp.pop 128.0
      %v553 = vmul.f32 %v551, %v552
      %v554 = vsub.f32 %v545, %v553
      %v555 = vmul.f32 %v554, %v554
      %v556 = vsel %vm548, %v555, 0.0
      %557 = vadd.xlane.f32.xlu0 %v556
      %v558 = vpop.xlane.xlu0 %557
      %v559 = vmul.f32 %v558, %v552
      %v560 = vadd.f32 %v559, 1e-05
      %v561 = vrsqrt.pop %v560
      %v562 = vmul.f32 %v554, %v561
      %v564 = vlaneseq
      %v565 = vshrl.u32 %v564, 7
      %v566 = vsub.s32 0, %v565
      %v567 = vrot.slane %v546, %v566
      %v569 = vmul.f32 %v562, %v567
      %v571 = vlaneseq
      %v572 = vshrl.u32 %v571, 7
      %v573 = vsub.s32 0, %v572
      %v574 = vrot.slane %v547, %v573
      %v576 = vadd.f32 %v569, %v574
      %v577 = vld [vmem:[%s10] sm:$0x1]
      %v578 = vld [vmem:[%s3] sm:$0xff]
      %v579 = vld [vmem:[%s3 + $0x8] sm:$0xff]
      %v580 = vld [vmem:[%s3 + $0x10] sm:$0xff]
      %v581 = vld [vmem:[%s3 + $0x18] sm:$0xff]
      %v582 = vld [vmem:[%s3 + $0x20] sm:$0xff]
      %v583 = vld [vmem:[%s3 + $0x28] sm:$0xff]
      %v584 = vld [vmem:[%s3 + $0x30] sm:$0xff]
      %v585 = vld [vmem:[%s3 + $0x38] sm:$0xff]
      %v586 = vld [vmem:[%s3 + $0x40] sm:$0xff]
      %v587 = vld [vmem:[%s3 + $0x48] sm:$0xff]
      %v588 = vld [vmem:[%s3 + $0x50] sm:$0xff]
      %v589 = vld [vmem:[%s3 + $0x58] sm:$0xff]
      %v590 = vld [vmem:[%s3 + $0x60] sm:$0xff]
      %v591 = vld [vmem:[%s3 + $0x68] sm:$0xff]
      %v592 = vld [vmem:[%s3 + $0x70] sm:$0xff]
      %v593 = vld [vmem:[%s3 + $0x78] sm:$0xff]
      %v594 = vld [vmem:[%s4] sm:$0x1]
      %v595 = vpack.c.bf16 %v576, %v576
      %v596 = vpack.c.bf16 %v579, %v578
      %v597 = vpack.c.bf16 %v581, %v580
      %v598 = vpack.c.bf16 %v583, %v582
      %v599 = vpack.c.bf16 %v585, %v584
      %v600 = vpack.c.bf16 %v587, %v586
      %v601 = vpack.c.bf16 %v589, %v588
      %v602 = vpack.c.bf16 %v591, %v590
      %v603 = vpack.c.bf16 %v593, %v592
      %v605 = vlaneseq
      %v606 = vshrl.u32 %v605, 7
      %v607 = vsub.s32 0, %v606
      %v608 = vrot.slane %v594, %v607
      %610 = vmatprep.subr.bf16.mxu0 0
      %611 = vmatpush1.bf16.msra.mxu0 %v596
      %612 = vmatprep.subr.bf16.mxu0 0
      %613 = vmatpush1.bf16.msra.mxu0 %v597
      %614 = vmatprep.subr.bf16.mxu0 0
      %615 = vmatpush1.bf16.msra.mxu0 %v598
      %616 = vmatprep.subr.bf16.mxu0 0
      %617 = vmatpush1.bf16.msra.mxu0 %v599
      %618 = vmatprep.subr.bf16.mxu0 0
      %619 = vmatpush1.bf16.msra.mxu0 %v600
      %620 = vmatprep.subr.bf16.mxu0 0
      %621 = vmatpush1.bf16.msra.mxu0 %v601
      %622 = vmatprep.subr.bf16.mxu0 0
      %623 = vmatpush1.bf16.msra.mxu0 %v602
      %624 = vmatprep.subr.bf16.mxu0 0
      %625 = vmatpush1.bf16.msra.mxu0 %v603
      %626 = vmatprep.subr.bf16.mxu0 0
      %627 = vmatpush1.bf16.msra.mxu0 0
      %628 = vmatprep.subr.bf16.mxu0 0
      %629 = vmatpush1.bf16.msra.mxu0 0
      %630 = vmatprep.subr.bf16.mxu0 0
      %631 = vmatpush1.bf16.msra.mxu0 0
      %632 = vmatprep.subr.bf16.mxu0 0
      %633 = vmatpush1.bf16.msra.mxu0 0
      %634 = vmatprep.subr.bf16.mxu0 0
      %635 = vmatpush1.bf16.msra.mxu0 0
      %636 = vmatprep.subr.bf16.mxu0 0
      %637 = vmatpush1.bf16.msra.mxu0 0
      %638 = vmatprep.subr.bf16.mxu0 0
      %639 = vmatpush1.bf16.msra.mxu0 0
      %640 = vmatprep.subr.bf16.mxu0 0
      %641 = vmatpush1.bf16.msra.mxu0 0
      %642 = vmatprep.mubr.bf16.mxu0 0
      %643 = vmatmul.mubr.bf16.gmra.mrb[0].mxu0 %v595
      %v644 = vpop.f32.mrb[0].mxu0
      %v645 = vadd.f32 %v608, %v644
      %v646 = vpop.f32.mrb[0].mxu0
      %v647 = vpop.f32.mrb[0].mxu0
      %v648 = vpop.f32.mrb[0].mxu0
      %649 = vdwg.mxu0
      %v650 = vmul.f32 %v645, 0.17677669
      %v651 = vld [vmem:[%s5] sm:$0xff]
      %v652 = vld [vmem:[%s5 + $0x8] sm:$0xff]
      %v653 = vld [vmem:[%s5 + $0x10] sm:$0xff]
      %v654 = vld [vmem:[%s5 + $0x18] sm:$0xff]
      %v655 = vld [vmem:[%s5 + $0x20] sm:$0xff]
      %v656 = vld [vmem:[%s5 + $0x28] sm:$0xff]
      %v657 = vld [vmem:[%s5 + $0x30] sm:$0xff]
      %v658 = vld [vmem:[%s5 + $0x38] sm:$0xff]
      %v659 = vld [vmem:[%s5 + $0x40] sm:$0xff]
      %v660 = vld [vmem:[%s5 + $0x48] sm:$0xff]
      %v661 = vld [vmem:[%s5 + $0x50] sm:$0xff]
      %v662 = vld [vmem:[%s5 + $0x58] sm:$0xff]
      %v663 = vld [vmem:[%s5 + $0x60] sm:$0xff]
      %v664 = vld [vmem:[%s5 + $0x68] sm:$0xff]
      %v665 = vld [vmem:[%s5 + $0x70] sm:$0xff]
      %v666 = vld [vmem:[%s5 + $0x78] sm:$0xff]
      %v667 = vld [vmem:[%s6] sm:$0x1]
      %v668 = vpack.c.bf16 %v652, %v651
      %v669 = vpack.c.bf16 %v654, %v653
      %v670 = vpack.c.bf16 %v656, %v655
      %v671 = vpack.c.bf16 %v658, %v657
      %v672 = vpack.c.bf16 %v660, %v659
      %v673 = vpack.c.bf16 %v662, %v661
      %v674 = vpack.c.bf16 %v664, %v663
      %v675 = vpack.c.bf16 %v666, %v665
      %v677 = vlaneseq
      %v678 = vshrl.u32 %v677, 7
      %v679 = vsub.s32 0, %v678
      %v680 = vrot.slane %v667, %v679
      %682 = vmatprep.subr.bf16.mxu0 0
      %683 = vmatpush1.bf16.msra.mxu0 %v668
      %684 = vmatprep.subr.bf16.mxu0 0
      %685 = vmatpush1.bf16.msra.mxu0 %v669
      %686 = vmatprep.subr.bf16.mxu0 0
      %687 = vmatpush1.bf16.msra.mxu0 %v670
      %688 = vmatprep.subr.bf16.mxu0 0
      %689 = vmatpush1.bf16.msra.mxu0 %v671
      %690 = vmatprep.subr.bf16.mxu0 0
      %691 = vmatpush1.bf16.msra.mxu0 %v672
      %692 = vmatprep.subr.bf16.mxu0 0
      %693 = vmatpush1.bf16.msra.mxu0 %v673
      %694 = vmatprep.subr.bf16.mxu0 0
      %695 = vmatpush1.bf16.msra.mxu0 %v674
      %696 = vmatprep.subr.bf16.mxu0 0
      %697 = vmatpush1.bf16.msra.mxu0 %v675
      %698 = vmatprep.subr.bf16.mxu0 0
      %699 = vmatpush1.bf16.msra.mxu0 0
      %700 = vmatprep.subr.bf16.mxu0 0
      %701 = vmatpush1.bf16.msra.mxu0 0
      %702 = vmatprep.subr.bf16.mxu0 0
      %703 = vmatpush1.bf16.msra.mxu0 0
      %704 = vmatprep.subr.bf16.mxu0 0
      %705 = vmatpush1.bf16.msra.mxu0 0
      %706 = vmatprep.subr.bf16.mxu0 0
      %707 = vmatpush1.bf16.msra.mxu0 0
      %708 = vmatprep.subr.bf16.mxu0 0
      %709 = vmatpush1.bf16.msra.mxu0 0
      %710 = vmatprep.subr.bf16.mxu0 0
      %711 = vmatpush1.bf16.msra.mxu0 0
      %712 = vmatprep.subr.bf16.mxu0 0
      %713 = vmatpush1.bf16.msra.mxu0 0
      %714 = vmatprep.mubr.bf16.mxu0 0
      %715 = vmatmul.mubr.bf16.gmra.mrb[0].mxu0 %v595
      %v716 = vpop.f32.mrb[0].mxu0
      %v717 = vadd.f32 %v680, %v716
      %v718 = vpop.f32.mrb[0].mxu0
      %v719 = vpop.f32.mrb[0].mxu0
      %v720 = vpop.f32.mrb[0].mxu0
      %721 = vdwg.mxu0
      %v722 = vld [vmem:[%s7] sm:$0xff]
      %v723 = vld [vmem:[%s7 + $0x8] sm:$0xff]
      %v724 = vld [vmem:[%s7 + $0x10] sm:$0xff]
      %v725 = vld [vmem:[%s7 + $0x18] sm:$0xff]
      %v726 = vld [vmem:[%s7 + $0x20] sm:$0xff]
      %v727 = vld [vmem:[%s7 + $0x28] sm:$0xff]
      %v728 = vld [vmem:[%s7 + $0x30] sm:$0xff]
      %v729 = vld [vmem:[%s7 + $0x38] sm:$0xff]
      %v730 = vld [vmem:[%s7 + $0x40] sm:$0xff]
      %v731 = vld [vmem:[%s7 + $0x48] sm:$0xff]
      %v732 = vld [vmem:[%s7 + $0x50] sm:$0xff]
      %v733 = vld [vmem:[%s7 + $0x58] sm:$0xff]
      %v734 = vld [vmem:[%s7 + $0x60] sm:$0xff]
      %v735 = vld [vmem:[%s7 + $0x68] sm:$0xff]
      %v736 = vld [vmem:[%s7 + $0x70] sm:$0xff]
      %v737 = vld [vmem:[%s7 + $0x78] sm:$0xff]
      %v738 = vld [vmem:[%s8] sm:$0x1]
      %v739 = vpack.c.bf16 %v723, %v722
      %v740 = vpack.c.bf16 %v725, %v724
      %v741 = vpack.c.bf16 %v727, %v726
      %v742 = vpack.c.bf16 %v729, %v728
      %v743 = vpack.c.bf16 %v731, %v730
      %v744 = vpack.c.bf16 %v733, %v732
      %v745 = vpack.c.bf16 %v735, %v734
      %v746 = vpack.c.bf16 %v737, %v736
      %v748 = vlaneseq
      %v749 = vshrl.u32 %v748, 7
      %v750 = vsub.s32 0, %v749
      %v751 = vrot.slane %v738, %v750
      %753 = vmatprep.subr.bf16.mxu0 0
      %754 = vmatpush1.bf16.msra.mxu0 %v739
      %755 = vmatprep.subr.bf16.mxu0 0
      %756 = vmatpush1.bf16.msra.mxu0 %v740
      %757 = vmatprep.subr.bf16.mxu0 0
      %758 = vmatpush1.bf16.msra.mxu0 %v741
      %759 = vmatprep.subr.bf16.mxu0 0
      %760 = vmatpush1.bf16.msra.mxu0 %v742
      %761 = vmatprep.subr.bf16.mxu0 0
      %762 = vmatpush1.bf16.msra.mxu0 %v743
      %763 = vmatprep.subr.bf16.mxu0 0
      %764 = vmatpush1.bf16.msra.mxu0 %v744
      %765 = vmatprep.subr.bf16.mxu0 0
      %766 = vmatpush1.bf16.msra.mxu0 %v745
      %767 = vmatprep.subr.bf16.mxu0 0
      %768 = vmatpush1.bf16.msra.mxu0 %v746
      %769 = vmatprep.subr.bf16.mxu0 0
      %770 = vmatpush1.bf16.msra.mxu0 0
      %771 = vmatprep.subr.bf16.mxu0 0
      %772 = vmatpush1.bf16.msra.mxu0 0
      %773 = vmatprep.subr.bf16.mxu0 0
      %774 = vmatpush1.bf16.msra.mxu0 0
      %775 = vmatprep.subr.bf16.mxu0 0
      %776 = vmatpush1.bf16.msra.mxu0 0
      %777 = vmatprep.subr.bf16.mxu0 0
      %778 = vmatpush1.bf16.msra.mxu0 0
      %779 = vmatprep.subr.bf16.mxu0 0
      %780 = vmatpush1.bf16.msra.mxu0 0
      %781 = vmatprep.subr.bf16.mxu0 0
      %782 = vmatpush1.bf16.msra.mxu0 0
      %783 = vmatprep.subr.bf16.mxu0 0
      %784 = vmatpush1.bf16.msra.mxu0 0
      %785 = vmatprep.mubr.bf16.mxu0 0
      %786 = vmatmul.mubr.bf16.gmra.mrb[0].mxu0 %v595
      %v787 = vpop.f32.mrb[0].mxu0
      %v788 = vadd.f32 %v751, %v787
      %v789 = vpop.f32.mrb[0].mxu0
      %v790 = vpop.f32.mrb[0].mxu0
      %v791 = vpop.f32.mrb[0].mxu0
      %792 = vdwg.mxu0
      %v793 = vpack.c.bf16 %v650, %v650
      %v794 = vpack.c.bf16 %v717, %v717
      %vm795 = vcmask 261120
      %v797 = vsel %vm795, %v793, 0
      %v800 = vsel %vm795, %v794, 0
      %802 = vmatprep.subr.bf16.mxu0 0
      %803 = vmatpush1.bf16.xpose.msra.mxu0 %v800
      %804 = vmatprep.subr.bf16.mxu0 0
      %805 = vmatpush1.bf16.xpose.msra.mxu0 0
      %806 = vmatprep.subr.bf16.mxu0 0
      %807 = vmatpush1.bf16.xpose.msra.mxu0 0
      %808 = vmatprep.subr.bf16.mxu0 0
      %809 = vmatpush1.bf16.xpose.msra.mxu0 0
      %810 = vmatprep.subr.bf16.mxu0 0
      %811 = vmatpush1.bf16.xpose.msra.mxu0 0
      %812 = vmatprep.subr.bf16.mxu0 0
      %813 = vmatpush1.bf16.xpose.msra.mxu0 0
      %814 = vmatprep.subr.bf16.mxu0 0
      %815 = vmatpush1.bf16.xpose.msra.mxu0 0
      %816 = vmatprep.subr.bf16.mxu0 0
      %817 = vmatpush1.bf16.xpose.msra.mxu0 0
      %818 = vmatprep.subr.bf16.mxu0 0
      %819 = vmatpush1.bf16.xpose.msra.mxu0 0
      %820 = vmatprep.subr.bf16.mxu0 0
      %821 = vmatpush1.bf16.xpose.msra.mxu0 0
      %822 = vmatprep.subr.bf16.mxu0 0
      %823 = vmatpush1.bf16.xpose.msra.mxu0 0
      %824 = vmatprep.subr.bf16.mxu0 0
      %825 = vmatpush1.bf16.xpose.msra.mxu0 0
      %826 = vmatprep.subr.bf16.mxu0 0
      %827 = vmatpush1.bf16.xpose.msra.mxu0 0
      %828 = vmatprep.subr.bf16.mxu0 0
      %829 = vmatpush1.bf16.xpose.msra.mxu0 0
      %830 = vmatprep.subr.bf16.mxu0 0
      %831 = vmatpush1.bf16.xpose.msra.mxu0 0
      %832 = vmatprep.subr.bf16.mxu0 0
      %833 = vmatpush1.bf16.xpose.msra.mxu0 0
      %834 = vmatprep.mubr.bf16.mxu0 0
      %835 = vmatmul.mubr.bf16.gmra.mrb[0].mxu0 %v797
      %v836 = vpop.f32.mrb[0].mxu0
      %v837 = vadd.f32 0.0, %v836
      %v838 = vpop.f32.mrb[0].mxu0
      %v839 = vpop.f32.mrb[0].mxu0
      %v840 = vpop.f32.mrb[0].mxu0
      %841 = vdwg.mxu0
      %vm842 = vcmask 36864
      %v843 = vsel %vm842, %v837, -inf
      %844 = vmax.xlane.f32.xlu0 %v843
      %v845 = vpop.xlane.xlu0 %844
      %v846 = vsub.f32 %v837, %v845
      %v847 = vmul.f32 %v846, 1.442695
      %v848 = vpow.pop %v847
      %v849 = vsel %vm842, %v848, 0.0
      %850 = vadd.xlane.f32.xlu0 %v849
      %v851 = vpop.xlane.xlu0 %850
      %v852 = vrcp.pop %v851
      %v853 = vmul.f32 %v848, %v852
      %v854 = vpack.c.bf16 %v853, %v853
      %v855 = vpack.c.bf16 %v788, %v788
      %vm856 = vcmask 39936
      %v858 = vsel %vm856, %v854, 0
      %vm860 = vcmask 1041408
      %vm861 = vcmask 1042432
      %v862 = vsel %vm860, 4294967295, 65535
      %v863 = vsel %vm861, %v862, 0
      %v865 = vand.u32 %v855, %v863
      %867 = vmatprep.subr.bf16.mxu0 0
      %868 = vmatpush1.bf16.msra.mxu0 %v865
      %869 = vmatprep.subr.bf16.mxu0 0
      %870 = vmatpush1.bf16.msra.mxu0 0
      %871 = vmatprep.subr.bf16.mxu0 0
      %872 = vmatpush1.bf16.msra.mxu0 0
      %873 = vmatprep.subr.bf16.mxu0 0
      %874 = vmatpush1.bf16.msra.mxu0 0
      %875 = vmatprep.subr.bf16.mxu0 0
      %876 = vmatpush1.bf16.msra.mxu0 0
      %877 = vmatprep.subr.bf16.mxu0 0
      %878 = vmatpush1.bf16.msra.mxu0 0
      %879 = vmatprep.subr.bf16.mxu0 0
      %880 = vmatpush1.bf16.msra.mxu0 0
      %881 = vmatprep.subr.bf16.mxu0 0
      %882 = vmatpush1.bf16.msra.mxu0 0
      %883 = vmatprep.subr.bf16.mxu0 0
      %884 = vmatpush1.bf16.msra.mxu0 0
      %885 = vmatprep.subr.bf16.mxu0 0
      %886 = vmatpush1.bf16.msra.mxu0 0
      %887 = vmatprep.subr.bf16.mxu0 0
      %888 = vmatpush1.bf16.msra.mxu0 0
      %889 = vmatprep.subr.bf16.mxu0 0
      %890 = vmatpush1.bf16.msra.mxu0 0
      %891 = vmatprep.subr.bf16.mxu0 0
      %892 = vmatpush1.bf16.msra.mxu0 0
      %893 = vmatprep.subr.bf16.mxu0 0
      %894 = vmatpush1.bf16.msra.mxu0 0
      %895 = vmatprep.subr.bf16.mxu0 0
      %896 = vmatpush1.bf16.msra.mxu0 0
      %897 = vmatprep.subr.bf16.mxu0 0
      %898 = vmatpush1.bf16.msra.mxu0 0
      %899 = vmatprep.mubr.bf16.mxu0 0
      %900 = vmatmul.mubr.bf16.gmra.mrb[0].mxu0 %v858
      %v901 = vpop.f32.mrb[0].mxu0
      %v902 = vadd.f32 0.0, %v901
      %v903 = vpop.f32.mrb[0].mxu0
      %v904 = vpop.f32.mrb[0].mxu0
      %v905 = vpop.f32.mrb[0].mxu0
      %906 = vdwg.mxu0
      %v907 = vld [vmem:[%s9] sm:$0xff]
      %v908 = vld [vmem:[%s9 + $0x8] sm:$0xff]
      %v909 = vld [vmem:[%s9 + $0x10] sm:$0xff]
      %v910 = vld [vmem:[%s9 + $0x18] sm:$0xff]
      %v911 = vpack.c.bf16 %v902, %v902
      %v912 = vpack.c.bf16 %v908, %v907
      %v913 = vpack.c.bf16 %v910, %v909
      %s914 = scalar_lea.vmem %s3, 128
      %v915 = vld [vmem:[%s914] sm:$0xff]
      %v916 = vld [vmem:[%s914 + $0x8] sm:$0xff]
      %v917 = vld [vmem:[%s914 + $0x10] sm:$0xff]
      %v918 = vld [vmem:[%s914 + $0x18] sm:$0xff]
      %v919 = vld [vmem:[%s914 + $0x20] sm:$0xff]
      %v920 = vld [vmem:[%s914 + $0x28] sm:$0xff]
      %v921 = vld [vmem:[%s914 + $0x30] sm:$0xff]
      %v922 = vld [vmem:[%s914 + $0x38] sm:$0xff]
      %v923 = vld [vmem:[%s914 + $0x40] sm:$0xff]
      %v924 = vld [vmem:[%s914 + $0x48] sm:$0xff]
      %v925 = vld [vmem:[%s914 + $0x50] sm:$0xff]
      %v926 = vld [vmem:[%s914 + $0x58] sm:$0xff]
      %v927 = vld [vmem:[%s914 + $0x60] sm:$0xff]
      %v928 = vld [vmem:[%s914 + $0x68] sm:$0xff]
      %v929 = vld [vmem:[%s914 + $0x70] sm:$0xff]
      %v930 = vld [vmem:[%s914 + $0x78] sm:$0xff]
      %s931 = scalar_lea.vmem %s4, 1
      %v932 = vld [vmem:[%s931] sm:$0x1]
      %v933 = vpack.c.bf16 %v916, %v915
      %v934 = vpack.c.bf16 %v918, %v917
      %v935 = vpack.c.bf16 %v920, %v919
      %v936 = vpack.c.bf16 %v922, %v921
      %v937 = vpack.c.bf16 %v924, %v923
      %v938 = vpack.c.bf16 %v926, %v925
      %v939 = vpack.c.bf16 %v928, %v927
      %v940 = vpack.c.bf16 %v930, %v929
      %v942 = vlaneseq
      %v943 = vshrl.u32 %v942, 7
      %v944 = vsub.s32 0, %v943
      %v945 = vrot.slane %v932, %v944
      %947 = vmatprep.subr.bf16.mxu0 0
      %948 = vmatpush1.bf16.msra.mxu0 %v933
      %949 = vmatprep.subr.bf16.mxu0 0
      %950 = vmatpush1.bf16.msra.mxu0 %v934
      %951 = vmatprep.subr.bf16.mxu0 0
      %952 = vmatpush1.bf16.msra.mxu0 %v935
      %953 = vmatprep.subr.bf16.mxu0 0
      %954 = vmatpush1.bf16.msra.mxu0 %v936
      %955 = vmatprep.subr.bf16.mxu0 0
      %956 = vmatpush1.bf16.msra.mxu0 %v937
      %957 = vmatprep.subr.bf16.mxu0 0
      %958 = vmatpush1.bf16.msra.mxu0 %v938
      %959 = vmatprep.subr.bf16.mxu0 0
      %960 = vmatpush1.bf16.msra.mxu0 %v939
      %961 = vmatprep.subr.bf16.mxu0 0
      %962 = vmatpush1.bf16.msra.mxu0 %v940
      %963 = vmatprep.subr.bf16.mxu0 0
      %964 = vmatpush1.bf16.msra.mxu0 0
      %965 = vmatprep.subr.bf16.mxu0 0
      %966 = vmatpush1.bf16.msra.mxu0 0
      %967 = vmatprep.subr.bf16.mxu0 0
      %968 = vmatpush1.bf16.msra.mxu0 0
      %969 = vmatprep.subr.bf16.mxu0 0
      %970 = vmatpush1.bf16.msra.mxu0 0
      %971 = vmatprep.subr.bf16.mxu0 0
      %972 = vmatpush1.bf16.msra.mxu0 0
      %973 = vmatprep.subr.bf16.mxu0 0
      %974 = vmatpush1.bf16.msra.mxu0 0
      %975 = vmatprep.subr.bf16.mxu0 0
      %976 = vmatpush1.bf16.msra.mxu0 0
      %977 = vmatprep.subr.bf16.mxu0 0
      %978 = vmatpush1.bf16.msra.mxu0 0
      %979 = vmatprep.mubr.bf16.mxu0 0
      %980 = vmatmul.mubr.bf16.gmra.mrb[0].mxu0 %v595
      %v981 = vpop.f32.mrb[0].mxu0
      %v982 = vadd.f32 %v945, %v981
      %v983 = vpop.f32.mrb[0].mxu0
      %v984 = vpop.f32.mrb[0].mxu0
      %v985 = vpop.f32.mrb[0].mxu0
      %986 = vdwg.mxu0
      %v987 = vmul.f32 %v982, 0.17677669
      %s988 = scalar_lea.vmem %s5, 128
      %v989 = vld [vmem:[%s988] sm:$0xff]
      %v990 = vld [vmem:[%s988 + $0x8] sm:$0xff]
      %v991 = vld [vmem:[%s988 + $0x10] sm:$0xff]
      %v992 = vld [vmem:[%s988 + $0x18] sm:$0xff]
      %v993 = vld [vmem:[%s988 + $0x20] sm:$0xff]
      %v994 = vld [vmem:[%s988 + $0x28] sm:$0xff]
      %v995 = vld [vmem:[%s988 + $0x30] sm:$0xff]
      %v996 = vld [vmem:[%s988 + $0x38] sm:$0xff]
      %v997 = vld [vmem:[%s988 + $0x40] sm:$0xff]
      %v998 = vld [vmem:[%s988 + $0x48] sm:$0xff]
      %v999 = vld [vmem:[%s988 + $0x50] sm:$0xff]
      %v1000 = vld [vmem:[%s988 + $0x58] sm:$0xff]
      %v1001 = vld [vmem:[%s988 + $0x60] sm:$0xff]
      %v1002 = vld [vmem:[%s988 + $0x68] sm:$0xff]
      %v1003 = vld [vmem:[%s988 + $0x70] sm:$0xff]
      %v1004 = vld [vmem:[%s988 + $0x78] sm:$0xff]
      %s1005 = scalar_lea.vmem %s6, 1
      %v1006 = vld [vmem:[%s1005] sm:$0x1]
      %v1007 = vpack.c.bf16 %v990, %v989
      %v1008 = vpack.c.bf16 %v992, %v991
      %v1009 = vpack.c.bf16 %v994, %v993
      %v1010 = vpack.c.bf16 %v996, %v995
      %v1011 = vpack.c.bf16 %v998, %v997
      %v1012 = vpack.c.bf16 %v1000, %v999
      %v1013 = vpack.c.bf16 %v1002, %v1001
      %v1014 = vpack.c.bf16 %v1004, %v1003
      %v1016 = vlaneseq
      %v1017 = vshrl.u32 %v1016, 7
      %v1018 = vsub.s32 0, %v1017
      %v1019 = vrot.slane %v1006, %v1018
      %1021 = vmatprep.subr.bf16.mxu0 0
      %1022 = vmatpush1.bf16.msra.mxu0 %v1007
      %1023 = vmatprep.subr.bf16.mxu0 0
      %1024 = vmatpush1.bf16.msra.mxu0 %v1008
      %1025 = vmatprep.subr.bf16.mxu0 0
      %1026 = vmatpush1.bf16.msra.mxu0 %v1009
      %1027 = vmatprep.subr.bf16.mxu0 0
      %1028 = vmatpush1.bf16.msra.mxu0 %v1010
      %1029 = vmatprep.subr.bf16.mxu0 0
      %1030 = vmatpush1.bf16.msra.mxu0 %v1011
      %1031 = vmatprep.subr.bf16.mxu0 0
      %1032 = vmatpush1.bf16.msra.mxu0 %v1012
      %1033 = vmatprep.subr.bf16.mxu0 0
      %1034 = vmatpush1.bf16.msra.mxu0 %v1013
      %1035 = vmatprep.subr.bf16.mxu0 0
      %1036 = vmatpush1.bf16.msra.mxu0 %v1014
      %1037 = vmatprep.subr.bf16.mxu0 0
      %1038 = vmatpush1.bf16.msra.mxu0 0
      %1039 = vmatprep.subr.bf16.mxu0 0
      %1040 = vmatpush1.bf16.msra.mxu0 0
      %1041 = vmatprep.subr.bf16.mxu0 0
      %1042 = vmatpush1.bf16.msra.mxu0 0
      %1043 = vmatprep.subr.bf16.mxu0 0
      %1044 = vmatpush1.bf16.msra.mxu0 0
      %1045 = vmatprep.subr.bf16.mxu0 0
      %1046 = vmatpush1.bf16.msra.mxu0 0
      %1047 = vmatprep.subr.bf16.mxu0 0
      %1048 = vmatpush1.bf16.msra.mxu0 0
      %1049 = vmatprep.subr.bf16.mxu0 0
      %1050 = vmatpush1.bf16.msra.mxu0 0
      %1051 = vmatprep.subr.bf16.mxu0 0
      %1052 = vmatpush1.bf16.msra.mxu0 0
      %1053 = vmatprep.mubr.bf16.mxu0 0
      %1054 = vmatmul.mubr.bf16.gmra.mrb[0].mxu0 %v595
      %v1055 = vpop.f32.mrb[0].mxu0
      %v1056 = vadd.f32 %v1019, %v1055
      %v1057 = vpop.f32.mrb[0].mxu0
      %v1058 = vpop.f32.mrb[0].mxu0
      %v1059 = vpop.f32.mrb[0].mxu0
      %1060 = vdwg.mxu0
      %s1061 = scalar_lea.vmem %s7, 128
      %v1062 = vld [vmem:[%s1061] sm:$0xff]
      %v1063 = vld [vmem:[%s1061 + $0x8] sm:$0xff]
      %v1064 = vld [vmem:[%s1061 + $0x10] sm:$0xff]
      %v1065 = vld [vmem:[%s1061 + $0x18] sm:$0xff]
      %v1066 = vld [vmem:[%s1061 + $0x20] sm:$0xff]
      %v1067 = vld [vmem:[%s1061 + $0x28] sm:$0xff]
      %v1068 = vld [vmem:[%s1061 + $0x30] sm:$0xff]
      %v1069 = vld [vmem:[%s1061 + $0x38] sm:$0xff]
      %v1070 = vld [vmem:[%s1061 + $0x40] sm:$0xff]
      %v1071 = vld [vmem:[%s1061 + $0x48] sm:$0xff]
      %v1072 = vld [vmem:[%s1061 + $0x50] sm:$0xff]
      %v1073 = vld [vmem:[%s1061 + $0x58] sm:$0xff]
      %v1074 = vld [vmem:[%s1061 + $0x60] sm:$0xff]
      %v1075 = vld [vmem:[%s1061 + $0x68] sm:$0xff]
      %v1076 = vld [vmem:[%s1061 + $0x70] sm:$0xff]
      %v1077 = vld [vmem:[%s1061 + $0x78] sm:$0xff]
      %s1078 = scalar_lea.vmem %s8, 1
      %v1079 = vld [vmem:[%s1078] sm:$0x1]
      %v1080 = vpack.c.bf16 %v1063, %v1062
      %v1081 = vpack.c.bf16 %v1065, %v1064
      %v1082 = vpack.c.bf16 %v1067, %v1066
      %v1083 = vpack.c.bf16 %v1069, %v1068
      %v1084 = vpack.c.bf16 %v1071, %v1070
      %v1085 = vpack.c.bf16 %v1073, %v1072
      %v1086 = vpack.c.bf16 %v1075, %v1074
      %v1087 = vpack.c.bf16 %v1077, %v1076
      %v1089 = vlaneseq
      %v1090 = vshrl.u32 %v1089, 7
      %v1091 = vsub.s32 0, %v1090
      %v1092 = vrot.slane %v1079, %v1091
      %1094 = vmatprep.subr.bf16.mxu0 0
      %1095 = vmatpush1.bf16.msra.mxu0 %v1080
      %1096 = vmatprep.subr.bf16.mxu0 0
      %1097 = vmatpush1.bf16.msra.mxu0 %v1081
      %1098 = vmatprep.subr.bf16.mxu0 0
      %1099 = vmatpush1.bf16.msra.mxu0 %v1082
      %1100 = vmatprep.subr.bf16.mxu0 0
      %1101 = vmatpush1.bf16.msra.mxu0 %v1083
      %1102 = vmatprep.subr.bf16.mxu0 0
      %1103 = vmatpush1.bf16.msra.mxu0 %v1084
      %1104 = vmatprep.subr.bf16.mxu0 0
      %1105 = vmatpush1.bf16.msra.mxu0 %v1085
      %1106 = vmatprep.subr.bf16.mxu0 0
      %1107 = vmatpush1.bf16.msra.mxu0 %v1086
      %1108 = vmatprep.subr.bf16.mxu0 0
      %1109 = vmatpush1.bf16.msra.mxu0 %v1087
      %1110 = vmatprep.subr.bf16.mxu0 0
      %1111 = vmatpush1.bf16.msra.mxu0 0
      %1112 = vmatprep.subr.bf16.mxu0 0
      %1113 = vmatpush1.bf16.msra.mxu0 0
      %1114 = vmatprep.subr.bf16.mxu0 0
      %1115 = vmatpush1.bf16.msra.mxu0 0
      %1116 = vmatprep.subr.bf16.mxu0 0
      %1117 = vmatpush1.bf16.msra.mxu0 0
      %1118 = vmatprep.subr.bf16.mxu0 0
      %1119 = vmatpush1.bf16.msra.mxu0 0
      %1120 = vmatprep.subr.bf16.mxu0 0
      %1121 = vmatpush1.bf16.msra.mxu0 0
      %1122 = vmatprep.subr.bf16.mxu0 0
      %1123 = vmatpush1.bf16.msra.mxu0 0
      %1124 = vmatprep.subr.bf16.mxu0 0
      %1125 = vmatpush1.bf16.msra.mxu0 0
      %1126 = vmatprep.mubr.bf16.mxu0 0
      %1127 = vmatmul.mubr.bf16.gmra.mrb[0].mxu0 %v595
      %v1128 = vpop.f32.mrb[0].mxu0
      %v1129 = vadd.f32 %v1092, %v1128
      %v1130 = vpop.f32.mrb[0].mxu0
      %v1131 = vpop.f32.mrb[0].mxu0
      %v1132 = vpop.f32.mrb[0].mxu0
      %1133 = vdwg.mxu0
      %v1134 = vpack.c.bf16 %v987, %v987
      %v1135 = vpack.c.bf16 %v1056, %v1056
      %v1137 = vsel %vm795, %v1134, 0
      %v1140 = vsel %vm795, %v1135, 0
      %1142 = vmatprep.subr.bf16.mxu0 0
      %1143 = vmatpush1.bf16.xpose.msra.mxu0 %v1140
      %1144 = vmatprep.subr.bf16.mxu0 0
      %1145 = vmatpush1.bf16.xpose.msra.mxu0 0
      %1146 = vmatprep.subr.bf16.mxu0 0
      %1147 = vmatpush1.bf16.xpose.msra.mxu0 0
      %1148 = vmatprep.subr.bf16.mxu0 0
      %1149 = vmatpush1.bf16.xpose.msra.mxu0 0
      %1150 = vmatprep.subr.bf16.mxu0 0
      %1151 = vmatpush1.bf16.xpose.msra.mxu0 0
      %1152 = vmatprep.subr.bf16.mxu0 0
      %1153 = vmatpush1.bf16.xpose.msra.mxu0 0
      %1154 = vmatprep.subr.bf16.mxu0 0
      %1155 = vmatpush1.bf16.xpose.msra.mxu0 0
      %1156 = vmatprep.subr.bf16.mxu0 0
      %1157 = vmatpush1.bf16.xpose.msra.mxu0 0
      %1158 = vmatprep.subr.bf16.mxu0 0
      %1159 = vmatpush1.bf16.xpose.msra.mxu0 0
      %1160 = vmatprep.subr.bf16.mxu0 0
      %1161 = vmatpush1.bf16.xpose.msra.mxu0 0
      %1162 = vmatprep.subr.bf16.mxu0 0
      %1163 = vmatpush1.bf16.xpose.msra.mxu0 0
      %1164 = vmatprep.subr.bf16.mxu0 0
      %1165 = vmatpush1.bf16.xpose.msra.mxu0 0
      %1166 = vmatprep.subr.bf16.mxu0 0
      %1167 = vmatpush1.bf16.xpose.msra.mxu0 0
      %1168 = vmatprep.subr.bf16.mxu0 0
      %1169 = vmatpush1.bf16.xpose.msra.mxu0 0
      %1170 = vmatprep.subr.bf16.mxu0 0
      %1171 = vmatpush1.bf16.xpose.msra.mxu0 0
      %1172 = vmatprep.subr.bf16.mxu0 0
      %1173 = vmatpush1.bf16.xpose.msra.mxu0 0
      %1174 = vmatprep.mubr.bf16.mxu0 0
      %1175 = vmatmul.mubr.bf16.gmra.mrb[0].mxu0 %v1137
      %v1176 = vpop.f32.mrb[0].mxu0
      %v1177 = vadd.f32 0.0, %v1176
      %v1178 = vpop.f32.mrb[0].mxu0
      %v1179 = vpop.f32.mrb[0].mxu0
      %v1180 = vpop.f32.mrb[0].mxu0
      %1181 = vdwg.mxu0
      %v1182 = vsel %vm842, %v1177, -inf
      %1183 = vmax.xlane.f32.xlu0 %v1182
      %v1184 = vpop.xlane.xlu0 %1183
      %v1185 = vsub.f32 %v1177, %v1184
      %v1186 = vmul.f32 %v1185, 1.442695
      %v1187 = vpow.pop %v1186
      %v1188 = vsel %vm842, %v1187, 0.0
      %1189 = vadd.xlane.f32.xlu0 %v1188
      %v1190 = vpop.xlane.xlu0 %1189
      %v1191 = vrcp.pop %v1190
      %v1192 = vmul.f32 %v1187, %v1191
      %v1193 = vpack.c.bf16 %v1192, %v1192
      %v1194 = vpack.c.bf16 %v1129, %v1129
      %v1196 = vsel %vm856, %v1193, 0
      %v1199 = vand.u32 %v1194, %v863
      %1201 = vmatprep.subr.bf16.mxu0 0
      %1202 = vmatpush1.bf16.msra.mxu0 %v1199
      %1203 = vmatprep.subr.bf16.mxu0 0
      %1204 = vmatpush1.bf16.msra.mxu0 0
      %1205 = vmatprep.subr.bf16.mxu0 0
      %1206 = vmatpush1.bf16.msra.mxu0 0
      %1207 = vmatprep.subr.bf16.mxu0 0
      %1208 = vmatpush1.bf16.msra.mxu0 0
      %1209 = vmatprep.subr.bf16.mxu0 0
      %1210 = vmatpush1.bf16.msra.mxu0 0
      %1211 = vmatprep.subr.bf16.mxu0 0
      %1212 = vmatpush1.bf16.msra.mxu0 0
      %1213 = vmatprep.subr.bf16.mxu0 0
      %1214 = vmatpush1.bf16.msra.mxu0 0
      %1215 = vmatprep.subr.bf16.mxu0 0
      %1216 = vmatpush1.bf16.msra.mxu0 0
      %1217 = vmatprep.subr.bf16.mxu0 0
      %1218 = vmatpush1.bf16.msra.mxu0 0
      %1219 = vmatprep.subr.bf16.mxu0 0
      %1220 = vmatpush1.bf16.msra.mxu0 0
      %1221 = vmatprep.subr.bf16.mxu0 0
      %1222 = vmatpush1.bf16.msra.mxu0 0
      %1223 = vmatprep.subr.bf16.mxu0 0
      %1224 = vmatpush1.bf16.msra.mxu0 0
      %1225 = vmatprep.subr.bf16.mxu0 0
      %1226 = vmatpush1.bf16.msra.mxu0 0
      %1227 = vmatprep.subr.bf16.mxu0 0
      %1228 = vmatpush1.bf16.msra.mxu0 0
      %1229 = vmatprep.subr.bf16.mxu0 0
      %1230 = vmatpush1.bf16.msra.mxu0 0
      %1231 = vmatprep.subr.bf16.mxu0 0
      %1232 = vmatpush1.bf16.msra.mxu0 0
      %1233 = vmatprep.mubr.bf16.mxu0 0
      %1234 = vmatmul.mubr.bf16.gmra.mrb[0].mxu0 %v1196
      %v1235 = vpop.f32.mrb[0].mxu0
      %v1236 = vadd.f32 0.0, %v1235
      %v1237 = vpop.f32.mrb[0].mxu0
      %v1238 = vpop.f32.mrb[0].mxu0
      %v1239 = vpop.f32.mrb[0].mxu0
      %1240 = vdwg.mxu0
      %s1241 = scalar_lea.vmem %s9, 32
      %v1242 = vld [vmem:[%s1241] sm:$0xff]
      %v1243 = vld [vmem:[%s1241 + $0x8] sm:$0xff]
      %v1244 = vld [vmem:[%s1241 + $0x10] sm:$0xff]
      %v1245 = vld [vmem:[%s1241 + $0x18] sm:$0xff]
      %v1246 = vpack.c.bf16 %v1236, %v1236
      %v1247 = vpack.c.bf16 %v1243, %v1242
      %v1248 = vpack.c.bf16 %v1245, %v1244
      %v1250 = vsel %vm795, %v1246, 0
      %1252 = vmatprep.subr.bf16.mxu0 0
      %1253 = vmatpush1.bf16.msra.mxu0 %v1247
      %1254 = vmatprep.subr.bf16.mxu0 0
      %1255 = vmatpush1.bf16.msra.mxu0 %v1248
      %1256 = vmatprep.subr.bf16.mxu0 0
      %1257 = vmatpush1.bf16.msra.mxu0 0
      %1258 = vmatprep.subr.bf16.mxu0 0
      %1259 = vmatpush1.bf16.msra.mxu0 0
      %1260 = vmatprep.subr.bf16.mxu0 0
      %1261 = vmatpush1.bf16.msra.mxu0 0
      %1262 = vmatprep.subr.bf16.mxu0 0
      %1263 = vmatpush1.bf16.msra.mxu0 0
      %1264 = vmatprep.subr.bf16.mxu0 0
      %1265 = vmatpush1.bf16.msra.mxu0 0
      %1266 = vmatprep.subr.bf16.mxu0 0
      %1267 = vmatpush1.bf16.msra.mxu0 0
      %1268 = vmatprep.subr.bf16.mxu0 0
      %1269 = vmatpush1.bf16.msra.mxu0 0
      %1270 = vmatprep.subr.bf16.mxu0 0
      %1271 = vmatpush1.bf16.msra.mxu0 0
      %1272 = vmatprep.subr.bf16.mxu0 0
      %1273 = vmatpush1.bf16.msra.mxu0 0
      %1274 = vmatprep.subr.bf16.mxu0 0
      %1275 = vmatpush1.bf16.msra.mxu0 0
      %1276 = vmatprep.subr.bf16.mxu0 0
      %1277 = vmatpush1.bf16.msra.mxu0 0
      %1278 = vmatprep.subr.bf16.mxu0 0
      %1279 = vmatpush1.bf16.msra.mxu0 0
      %1280 = vmatprep.subr.bf16.mxu0 0
      %1281 = vmatpush1.bf16.msra.mxu0 0
      %1282 = vmatprep.subr.bf16.mxu0 0
      %1283 = vmatpush1.bf16.msra.mxu0 0
      %1284 = vmatprep.mubr.bf16.mxu0 0
      %1285 = vmatmul.mubr.bf16.gmra.mrb[0].mxu0 %v1250
      %v1286 = vpop.f32.mrb[0].mxu0
      %v1287 = vadd.f32 0.0, %v1286
      %v1288 = vpop.f32.mrb[0].mxu0
      %v1289 = vpop.f32.mrb[0].mxu0
      %v1290 = vpop.f32.mrb[0].mxu0
      %1291 = vdwg.mxu0
      %v1293 = vsel %vm795, %v911, 0
      %1295 = vmatprep.subr.bf16.mxu0 0
      %1296 = vmatpush1.bf16.msra.mxu0 %v912
      %1297 = vmatprep.subr.bf16.mxu0 0
      %1298 = vmatpush1.bf16.msra.mxu0 %v913
      %1299 = vmatprep.subr.bf16.mxu0 0
      %1300 = vmatpush1.bf16.msra.mxu0 0
      %1301 = vmatprep.subr.bf16.mxu0 0
      %1302 = vmatpush1.bf16.msra.mxu0 0
      %1303 = vmatprep.subr.bf16.mxu0 0
      %1304 = vmatpush1.bf16.msra.mxu0 0
      %1305 = vmatprep.subr.bf16.mxu0 0
      %1306 = vmatpush1.bf16.msra.mxu0 0
      %1307 = vmatprep.subr.bf16.mxu0 0
      %1308 = vmatpush1.bf16.msra.mxu0 0
      %1309 = vmatprep.subr.bf16.mxu0 0
      %1310 = vmatpush1.bf16.msra.mxu0 0
      %1311 = vmatprep.subr.bf16.mxu0 0
      %1312 = vmatpush1.bf16.msra.mxu0 0
      %1313 = vmatprep.subr.bf16.mxu0 0
      %1314 = vmatpush1.bf16.msra.mxu0 0
      %1315 = vmatprep.subr.bf16.mxu0 0
      %1316 = vmatpush1.bf16.msra.mxu0 0
      %1317 = vmatprep.subr.bf16.mxu0 0
      %1318 = vmatpush1.bf16.msra.mxu0 0
      %1319 = vmatprep.subr.bf16.mxu0 0
      %1320 = vmatpush1.bf16.msra.mxu0 0
      %1321 = vmatprep.subr.bf16.mxu0 0
      %1322 = vmatpush1.bf16.msra.mxu0 0
      %1323 = vmatprep.subr.bf16.mxu0 0
      %1324 = vmatpush1.bf16.msra.mxu0 0
      %1325 = vmatprep.subr.bf16.mxu0 0
      %1326 = vmatpush1.bf16.msra.mxu0 0
      %1327 = vmatprep.mubr.bf16.mxu0 0
      %1328 = vmatmul.mubr.bf16.gmra.mrb[0].mxu0 %v1293
      %v1329 = vpop.f32.mrb[0].mxu0
      %v1330 = vadd.f32 %v1287, %v1329
      %v1331 = vpop.f32.mrb[0].mxu0
      %v1332 = vpop.f32.mrb[0].mxu0
      %v1333 = vpop.f32.mrb[0].mxu0
      %1334 = vdwg.mxu0
      %s1335 = scalar_lea.vmem %s3, 256
      %v1336 = vld [vmem:[%s1335] sm:$0xff]
      %v1337 = vld [vmem:[%s1335 + $0x8] sm:$0xff]
      %v1338 = vld [vmem:[%s1335 + $0x10] sm:$0xff]
      %v1339 = vld [vmem:[%s1335 + $0x18] sm:$0xff]
      %v1340 = vld [vmem:[%s1335 + $0x20] sm:$0xff]
      %v1341 = vld [vmem:[%s1335 + $0x28] sm:$0xff]
      %v1342 = vld [vmem:[%s1335 + $0x30] sm:$0xff]
      %v1343 = vld [vmem:[%s1335 + $0x38] sm:$0xff]
      %v1344 = vld [vmem:[%s1335 + $0x40] sm:$0xff]
      %v1345 = vld [vmem:[%s1335 + $0x48] sm:$0xff]
      %v1346 = vld [vmem:[%s1335 + $0x50] sm:$0xff]
      %v1347 = vld [vmem:[%s1335 + $0x58] sm:$0xff]
      %v1348 = vld [vmem:[%s1335 + $0x60] sm:$0xff]
      %v1349 = vld [vmem:[%s1335 + $0x68] sm:$0xff]
      %v1350 = vld [vmem:[%s1335 + $0x70] sm:$0xff]
      %v1351 = vld [vmem:[%s1335 + $0x78] sm:$0xff]
      %s1352 = scalar_lea.vmem %s4, 2
      %v1353 = vld [vmem:[%s1352] sm:$0x1]
      %v1354 = vpack.c.bf16 %v1337, %v1336
      %v1355 = vpack.c.bf16 %v1339, %v1338
      %v1356 = vpack.c.bf16 %v1341, %v1340
      %v1357 = vpack.c.bf16 %v1343, %v1342
      %v1358 = vpack.c.bf16 %v1345, %v1344
      %v1359 = vpack.c.bf16 %v1347, %v1346
      %v1360 = vpack.c.bf16 %v1349, %v1348
      %v1361 = vpack.c.bf16 %v1351, %v1350
      %v1363 = vlaneseq
      %v1364 = vshrl.u32 %v1363, 7
      %v1365 = vsub.s32 0, %v1364
      %v1366 = vrot.slane %v1353, %v1365
      %1368 = vmatprep.subr.bf16.mxu0 0
      %1369 = vmatpush1.bf16.msra.mxu0 %v1354
      %1370 = vmatprep.subr.bf16.mxu0 0
      %1371 = vmatpush1.bf16.msra.mxu0 %v1355
      %1372 = vmatprep.subr.bf16.mxu0 0
      %1373 = vmatpush1.bf16.msra.mxu0 %v1356
      %1374 = vmatprep.subr.bf16.mxu0 0
      %1375 = vmatpush1.bf16.msra.mxu0 %v1357
      %1376 = vmatprep.subr.bf16.mxu0 0
      %1377 = vmatpush1.bf16.msra.mxu0 %v1358
      %1378 = vmatprep.subr.bf16.mxu0 0
      %1379 = vmatpush1.bf16.msra.mxu0 %v1359
      %1380 = vmatprep.subr.bf16.mxu0 0
      %1381 = vmatpush1.bf16.msra.mxu0 %v1360
      %1382 = vmatprep.subr.bf16.mxu0 0
      %1383 = vmatpush1.bf16.msra.mxu0 %v1361
      %1384 = vmatprep.subr.bf16.mxu0 0
      %1385 = vmatpush1.bf16.msra.mxu0 0
      %1386 = vmatprep.subr.bf16.mxu0 0
      %1387 = vmatpush1.bf16.msra.mxu0 0
      %1388 = vmatprep.subr.bf16.mxu0 0
      %1389 = vmatpush1.bf16.msra.mxu0 0
      %1390 = vmatprep.subr.bf16.mxu0 0
      %1391 = vmatpush1.bf16.msra.mxu0 0
      %1392 = vmatprep.subr.bf16.mxu0 0
      %1393 = vmatpush1.bf16.msra.mxu0 0
      %1394 = vmatprep.subr.bf16.mxu0 0
      %1395 = vmatpush1.bf16.msra.mxu0 0
      %1396 = vmatprep.subr.bf16.mxu0 0
      %1397 = vmatpush1.bf16.msra.mxu0 0
      %1398 = vmatprep.subr.bf16.mxu0 0
      %1399 = vmatpush1.bf16.msra.mxu0 0
      %1400 = vmatprep.mubr.bf16.mxu0 0
      %1401 = vmatmul.mubr.bf16.gmra.mrb[0].mxu0 %v595
      %v1402 = vpop.f32.mrb[0].mxu0
      %v1403 = vadd.f32 %v1366, %v1402
      %v1404 = vpop.f32.mrb[0].mxu0
      %v1405 = vpop.f32.mrb[0].mxu0
      %v1406 = vpop.f32.mrb[0].mxu0
      %1407 = vdwg.mxu0
      %v1408 = vmul.f32 %v1403, 0.17677669
      %s1409 = scalar_lea.vmem %s5, 256
      %v1410 = vld [vmem:[%s1409] sm:$0xff]
      %v1411 = vld [vmem:[%s1409 + $0x8] sm:$0xff]
      %v1412 = vld [vmem:[%s1409 + $0x10] sm:$0xff]
      %v1413 = vld [vmem:[%s1409 + $0x18] sm:$0xff]
      %v1414 = vld [vmem:[%s1409 + $0x20] sm:$0xff]
      %v1415 = vld [vmem:[%s1409 + $0x28] sm:$0xff]
      %v1416 = vld [vmem:[%s1409 + $0x30] sm:$0xff]
      %v1417 = vld [vmem:[%s1409 + $0x38] sm:$0xff]
      %v1418 = vld [vmem:[%s1409 + $0x40] sm:$0xff]
      %v1419 = vld [vmem:[%s1409 + $0x48] sm:$0xff]
      %v1420 = vld [vmem:[%s1409 + $0x50] sm:$0xff]
      %v1421 = vld [vmem:[%s1409 + $0x58] sm:$0xff]
      %v1422 = vld [vmem:[%s1409 + $0x60] sm:$0xff]
      %v1423 = vld [vmem:[%s1409 + $0x68] sm:$0xff]
      %v1424 = vld [vmem:[%s1409 + $0x70] sm:$0xff]
      %v1425 = vld [vmem:[%s1409 + $0x78] sm:$0xff]
      %s1426 = scalar_lea.vmem %s6, 2
      %v1427 = vld [vmem:[%s1426] sm:$0x1]
      %v1428 = vpack.c.bf16 %v1411, %v1410
      %v1429 = vpack.c.bf16 %v1413, %v1412
      %v1430 = vpack.c.bf16 %v1415, %v1414
      %v1431 = vpack.c.bf16 %v1417, %v1416
      %v1432 = vpack.c.bf16 %v1419, %v1418
      %v1433 = vpack.c.bf16 %v1421, %v1420
      %v1434 = vpack.c.bf16 %v1423, %v1422
      %v1435 = vpack.c.bf16 %v1425, %v1424
      %v1437 = vlaneseq
      %v1438 = vshrl.u32 %v1437, 7
      %v1439 = vsub.s32 0, %v1438
      %v1440 = vrot.slane %v1427, %v1439
      %1442 = vmatprep.subr.bf16.mxu0 0
      %1443 = vmatpush1.bf16.msra.mxu0 %v1428
      %1444 = vmatprep.subr.bf16.mxu0 0
      %1445 = vmatpush1.bf16.msra.mxu0 %v1429
      %1446 = vmatprep.subr.bf16.mxu0 0
      %1447 = vmatpush1.bf16.msra.mxu0 %v1430
      %1448 = vmatprep.subr.bf16.mxu0 0
      %1449 = vmatpush1.bf16.msra.mxu0 %v1431
      %1450 = vmatprep.subr.bf16.mxu0 0
      %1451 = vmatpush1.bf16.msra.mxu0 %v1432
      %1452 = vmatprep.subr.bf16.mxu0 0
      %1453 = vmatpush1.bf16.msra.mxu0 %v1433
      %1454 = vmatprep.subr.bf16.mxu0 0
      %1455 = vmatpush1.bf16.msra.mxu0 %v1434
      %1456 = vmatprep.subr.bf16.mxu0 0
      %1457 = vmatpush1.bf16.msra.mxu0 %v1435
      %1458 = vmatprep.subr.bf16.mxu0 0
      %1459 = vmatpush1.bf16.msra.mxu0 0
      %1460 = vmatprep.subr.bf16.mxu0 0
      %1461 = vmatpush1.bf16.msra.mxu0 0
      %1462 = vmatprep.subr.bf16.mxu0 0
      %1463 = vmatpush1.bf16.msra.mxu0 0
      %1464 = vmatprep.subr.bf16.mxu0 0
      %1465 = vmatpush1.bf16.msra.mxu0 0
      %1466 = vmatprep.subr.bf16.mxu0 0
      %1467 = vmatpush1.bf16.msra.mxu0 0
      %1468 = vmatprep.subr.bf16.mxu0 0
      %1469 = vmatpush1.bf16.msra.mxu0 0
      %1470 = vmatprep.subr.bf16.mxu0 0
      %1471 = vmatpush1.bf16.msra.mxu0 0
      %1472 = vmatprep.subr.bf16.mxu0 0
      %1473 = vmatpush1.bf16.msra.mxu0 0
      %1474 = vmatprep.mubr.bf16.mxu0 0
      %1475 = vmatmul.mubr.bf16.gmra.mrb[0].mxu0 %v595
      %v1476 = vpop.f32.mrb[0].mxu0
      %v1477 = vadd.f32 %v1440, %v1476
      %v1478 = vpop.f32.mrb[0].mxu0
      %v1479 = vpop.f32.mrb[0].mxu0
      %v1480 = vpop.f32.mrb[0].mxu0
      %1481 = vdwg.mxu0
      %s1482 = scalar_lea.vmem %s7, 256
      %v1483 = vld [vmem:[%s1482] sm:$0xff]
      %v1484 = vld [vmem:[%s1482 + $0x8] sm:$0xff]
      %v1485 = vld [vmem:[%s1482 + $0x10] sm:$0xff]
      %v1486 = vld [vmem:[%s1482 + $0x18] sm:$0xff]
      %v1487 = vld [vmem:[%s1482 + $0x20] sm:$0xff]
      %v1488 = vld [vmem:[%s1482 + $0x28] sm:$0xff]
      %v1489 = vld [vmem:[%s1482 + $0x30] sm:$0xff]
      %v1490 = vld [vmem:[%s1482 + $0x38] sm:$0xff]
      %v1491 = vld [vmem:[%s1482 + $0x40] sm:$0xff]
      %v1492 = vld [vmem:[%s1482 + $0x48] sm:$0xff]
      %v1493 = vld [vmem:[%s1482 + $0x50] sm:$0xff]
      %v1494 = vld [vmem:[%s1482 + $0x58] sm:$0xff]
      %v1495 = vld [vmem:[%s1482 + $0x60] sm:$0xff]
      %v1496 = vld [vmem:[%s1482 + $0x68] sm:$0xff]
      %v1497 = vld [vmem:[%s1482 + $0x70] sm:$0xff]
      %v1498 = vld [vmem:[%s1482 + $0x78] sm:$0xff]
      %s1499 = scalar_lea.vmem %s8, 2
      %v1500 = vld [vmem:[%s1499] sm:$0x1]
      %v1501 = vpack.c.bf16 %v1484, %v1483
      %v1502 = vpack.c.bf16 %v1486, %v1485
      %v1503 = vpack.c.bf16 %v1488, %v1487
      %v1504 = vpack.c.bf16 %v1490, %v1489
      %v1505 = vpack.c.bf16 %v1492, %v1491
      %v1506 = vpack.c.bf16 %v1494, %v1493
      %v1507 = vpack.c.bf16 %v1496, %v1495
      %v1508 = vpack.c.bf16 %v1498, %v1497
      %v1510 = vlaneseq
      %v1511 = vshrl.u32 %v1510, 7
      %v1512 = vsub.s32 0, %v1511
      %v1513 = vrot.slane %v1500, %v1512
      %1515 = vmatprep.subr.bf16.mxu0 0
      %1516 = vmatpush1.bf16.msra.mxu0 %v1501
      %1517 = vmatprep.subr.bf16.mxu0 0
      %1518 = vmatpush1.bf16.msra.mxu0 %v1502
      %1519 = vmatprep.subr.bf16.mxu0 0
      %1520 = vmatpush1.bf16.msra.mxu0 %v1503
      %1521 = vmatprep.subr.bf16.mxu0 0
      %1522 = vmatpush1.bf16.msra.mxu0 %v1504
      %1523 = vmatprep.subr.bf16.mxu0 0
      %1524 = vmatpush1.bf16.msra.mxu0 %v1505
      %1525 = vmatprep.subr.bf16.mxu0 0
      %1526 = vmatpush1.bf16.msra.mxu0 %v1506
      %1527 = vmatprep.subr.bf16.mxu0 0
      %1528 = vmatpush1.bf16.msra.mxu0 %v1507
      %1529 = vmatprep.subr.bf16.mxu0 0
      %1530 = vmatpush1.bf16.msra.mxu0 %v1508
      %1531 = vmatprep.subr.bf16.mxu0 0
      %1532 = vmatpush1.bf16.msra.mxu0 0
      %1533 = vmatprep.subr.bf16.mxu0 0
      %1534 = vmatpush1.bf16.msra.mxu0 0
      %1535 = vmatprep.subr.bf16.mxu0 0
      %1536 = vmatpush1.bf16.msra.mxu0 0
      %1537 = vmatprep.subr.bf16.mxu0 0
      %1538 = vmatpush1.bf16.msra.mxu0 0
      %1539 = vmatprep.subr.bf16.mxu0 0
      %1540 = vmatpush1.bf16.msra.mxu0 0
      %1541 = vmatprep.subr.bf16.mxu0 0
      %1542 = vmatpush1.bf16.msra.mxu0 0
      %1543 = vmatprep.subr.bf16.mxu0 0
      %1544 = vmatpush1.bf16.msra.mxu0 0
      %1545 = vmatprep.subr.bf16.mxu0 0
      %1546 = vmatpush1.bf16.msra.mxu0 0
      %1547 = vmatprep.mubr.bf16.mxu0 0
      %1548 = vmatmul.mubr.bf16.gmra.mrb[0].mxu0 %v595
      %v1549 = vpop.f32.mrb[0].mxu0
      %v1550 = vadd.f32 %v1513, %v1549
      %v1551 = vpop.f32.mrb[0].mxu0
      %v1552 = vpop.f32.mrb[0].mxu0
      %v1553 = vpop.f32.mrb[0].mxu0
      %1554 = vdwg.mxu0
      %v1555 = vpack.c.bf16 %v1408, %v1408
      %v1556 = vpack.c.bf16 %v1477, %v1477
      %v1558 = vsel %vm795, %v1555, 0
      %v1561 = vsel %vm795, %v1556, 0
      %1563 = vmatprep.subr.bf16.mxu0 0
      %1564 = vmatpush1.bf16.xpose.msra.mxu0 %v1561
      %1565 = vmatprep.subr.bf16.mxu0 0
      %1566 = vmatpush1.bf16.xpose.msra.mxu0 0
      %1567 = vmatprep.subr.bf16.mxu0 0
      %1568 = vmatpush1.bf16.xpose.msra.mxu0 0
      %1569 = vmatprep.subr.bf16.mxu0 0
      %1570 = vmatpush1.bf16.xpose.msra.mxu0 0
      %1571 = vmatprep.subr.bf16.mxu0 0
      %1572 = vmatpush1.bf16.xpose.msra.mxu0 0
      %1573 = vmatprep.subr.bf16.mxu0 0
      %1574 = vmatpush1.bf16.xpose.msra.mxu0 0
      %1575 = vmatprep.subr.bf16.mxu0 0
      %1576 = vmatpush1.bf16.xpose.msra.mxu0 0
      %1577 = vmatprep.subr.bf16.mxu0 0
      %1578 = vmatpush1.bf16.xpose.msra.mxu0 0
      %1579 = vmatprep.subr.bf16.mxu0 0
      %1580 = vmatpush1.bf16.xpose.msra.mxu0 0
      %1581 = vmatprep.subr.bf16.mxu0 0
      %1582 = vmatpush1.bf16.xpose.msra.mxu0 0
      %1583 = vmatprep.subr.bf16.mxu0 0
      %1584 = vmatpush1.bf16.xpose.msra.mxu0 0
      %1585 = vmatprep.subr.bf16.mxu0 0
      %1586 = vmatpush1.bf16.xpose.msra.mxu0 0
      %1587 = vmatprep.subr.bf16.mxu0 0
      %1588 = vmatpush1.bf16.xpose.msra.mxu0 0
      %1589 = vmatprep.subr.bf16.mxu0 0
      %1590 = vmatpush1.bf16.xpose.msra.mxu0 0
      %1591 = vmatprep.subr.bf16.mxu0 0
      %1592 = vmatpush1.bf16.xpose.msra.mxu0 0
      %1593 = vmatprep.subr.bf16.mxu0 0
      %1594 = vmatpush1.bf16.xpose.msra.mxu0 0
      %1595 = vmatprep.mubr.bf16.mxu0 0
      %1596 = vmatmul.mubr.bf16.gmra.mrb[0].mxu0 %v1558
      %v1597 = vpop.f32.mrb[0].mxu0
      %v1598 = vadd.f32 0.0, %v1597
      %v1599 = vpop.f32.mrb[0].mxu0
      %v1600 = vpop.f32.mrb[0].mxu0
      %v1601 = vpop.f32.mrb[0].mxu0
      %1602 = vdwg.mxu0
      %v1603 = vsel %vm842, %v1598, -inf
      %1604 = vmax.xlane.f32.xlu0 %v1603
      %v1605 = vpop.xlane.xlu0 %1604
      %v1606 = vsub.f32 %v1598, %v1605
      %v1607 = vmul.f32 %v1606, 1.442695
      %v1608 = vpow.pop %v1607
      %v1609 = vsel %vm842, %v1608, 0.0
      %1610 = vadd.xlane.f32.xlu0 %v1609
      %v1611 = vpop.xlane.xlu0 %1610
      %v1612 = vrcp.pop %v1611
      %v1613 = vmul.f32 %v1608, %v1612
      %v1614 = vpack.c.bf16 %v1613, %v1613
      %v1615 = vpack.c.bf16 %v1550, %v1550
      %v1617 = vsel %vm856, %v1614, 0
      %v1620 = vand.u32 %v1615, %v863
      %1622 = vmatprep.subr.bf16.mxu0 0
      %1623 = vmatpush1.bf16.msra.mxu0 %v1620
      %1624 = vmatprep.subr.bf16.mxu0 0
      %1625 = vmatpush1.bf16.msra.mxu0 0
      %1626 = vmatprep.subr.bf16.mxu0 0
      %1627 = vmatpush1.bf16.msra.mxu0 0
      %1628 = vmatprep.subr.bf16.mxu0 0
      %1629 = vmatpush1.bf16.msra.mxu0 0
      %1630 = vmatprep.subr.bf16.mxu0 0
      %1631 = vmatpush1.bf16.msra.mxu0 0
      %1632 = vmatprep.subr.bf16.mxu0 0
      %1633 = vmatpush1.bf16.msra.mxu0 0
      %1634 = vmatprep.subr.bf16.mxu0 0
      %1635 = vmatpush1.bf16.msra.mxu0 0
      %1636 = vmatprep.subr.bf16.mxu0 0
      %1637 = vmatpush1.bf16.msra.mxu0 0
      %1638 = vmatprep.subr.bf16.mxu0 0
      %1639 = vmatpush1.bf16.msra.mxu0 0
      %1640 = vmatprep.subr.bf16.mxu0 0
      %1641 = vmatpush1.bf16.msra.mxu0 0
      %1642 = vmatprep.subr.bf16.mxu0 0
      %1643 = vmatpush1.bf16.msra.mxu0 0
      %1644 = vmatprep.subr.bf16.mxu0 0
      %1645 = vmatpush1.bf16.msra.mxu0 0
      %1646 = vmatprep.subr.bf16.mxu0 0
      %1647 = vmatpush1.bf16.msra.mxu0 0
      %1648 = vmatprep.subr.bf16.mxu0 0
      %1649 = vmatpush1.bf16.msra.mxu0 0
      %1650 = vmatprep.subr.bf16.mxu0 0
      %1651 = vmatpush1.bf16.msra.mxu0 0
      %1652 = vmatprep.subr.bf16.mxu0 0
      %1653 = vmatpush1.bf16.msra.mxu0 0
      %1654 = vmatprep.mubr.bf16.mxu0 0
      %1655 = vmatmul.mubr.bf16.gmra.mrb[0].mxu0 %v1617
      %v1656 = vpop.f32.mrb[0].mxu0
      %v1657 = vadd.f32 0.0, %v1656
      %v1658 = vpop.f32.mrb[0].mxu0
      %v1659 = vpop.f32.mrb[0].mxu0
      %v1660 = vpop.f32.mrb[0].mxu0
      %1661 = vdwg.mxu0
      %s1662 = scalar_lea.vmem %s9, 64
      %v1663 = vld [vmem:[%s1662] sm:$0xff]
      %v1664 = vld [vmem:[%s1662 + $0x8] sm:$0xff]
      %v1665 = vld [vmem:[%s1662 + $0x10] sm:$0xff]
      %v1666 = vld [vmem:[%s1662 + $0x18] sm:$0xff]
      %v1667 = vpack.c.bf16 %v1657, %v1657
      %v1668 = vpack.c.bf16 %v1664, %v1663
      %v1669 = vpack.c.bf16 %v1666, %v1665
      %v1671 = vsel %vm795, %v1667, 0
      %1673 = vmatprep.subr.bf16.mxu0 0
      %1674 = vmatpush1.bf16.msra.mxu0 %v1668
      %1675 = vmatprep.subr.bf16.mxu0 0
      %1676 = vmatpush1.bf16.msra.mxu0 %v1669
      %1677 = vmatprep.subr.bf16.mxu0 0
      %1678 = vmatpush1.bf16.msra.mxu0 0
      %1679 = vmatprep.subr.bf16.mxu0 0
      %1680 = vmatpush1.bf16.msra.mxu0 0
      %1681 = vmatprep.subr.bf16.mxu0 0
      %1682 = vmatpush1.bf16.msra.mxu0 0
      %1683 = vmatprep.subr.bf16.mxu0 0
      %1684 = vmatpush1.bf16.msra.mxu0 0
      %1685 = vmatprep.subr.bf16.mxu0 0
      %1686 = vmatpush1.bf16.msra.mxu0 0
      %1687 = vmatprep.subr.bf16.mxu0 0
      %1688 = vmatpush1.bf16.msra.mxu0 0
      %1689 = vmatprep.subr.bf16.mxu0 0
      %1690 = vmatpush1.bf16.msra.mxu0 0
      %1691 = vmatprep.subr.bf16.mxu0 0
      %1692 = vmatpush1.bf16.msra.mxu0 0
      %1693 = vmatprep.subr.bf16.mxu0 0
      %1694 = vmatpush1.bf16.msra.mxu0 0
      %1695 = vmatprep.subr.bf16.mxu0 0
      %1696 = vmatpush1.bf16.msra.mxu0 0
      %1697 = vmatprep.subr.bf16.mxu0 0
      %1698 = vmatpush1.bf16.msra.mxu0 0
      %1699 = vmatprep.subr.bf16.mxu0 0
      %1700 = vmatpush1.bf16.msra.mxu0 0
      %1701 = vmatprep.subr.bf16.mxu0 0
      %1702 = vmatpush1.bf16.msra.mxu0 0
      %1703 = vmatprep.subr.bf16.mxu0 0
      %1704 = vmatpush1.bf16.msra.mxu0 0
      %1705 = vmatprep.mubr.bf16.mxu0 0
      %1706 = vmatmul.mubr.bf16.gmra.mrb[0].mxu0 %v1671
      %v1707 = vpop.f32.mrb[0].mxu0
      %v1708 = vadd.f32 0.0, %v1707
      %v1709 = vpop.f32.mrb[0].mxu0
      %v1710 = vpop.f32.mrb[0].mxu0
      %v1711 = vpop.f32.mrb[0].mxu0
      %1712 = vdwg.mxu0
      %v1713 = vadd.f32 %v1330, %v1708
      %s1714 = scalar_lea.vmem %s3, 384
      %v1715 = vld [vmem:[%s1714] sm:$0xff]
      %v1716 = vld [vmem:[%s1714 + $0x8] sm:$0xff]
      %v1717 = vld [vmem:[%s1714 + $0x10] sm:$0xff]
      %v1718 = vld [vmem:[%s1714 + $0x18] sm:$0xff]
      %v1719 = vld [vmem:[%s1714 + $0x20] sm:$0xff]
      %v1720 = vld [vmem:[%s1714 + $0x28] sm:$0xff]
      %v1721 = vld [vmem:[%s1714 + $0x30] sm:$0xff]
      %v1722 = vld [vmem:[%s1714 + $0x38] sm:$0xff]
      %v1723 = vld [vmem:[%s1714 + $0x40] sm:$0xff]
      %v1724 = vld [vmem:[%s1714 + $0x48] sm:$0xff]
      %v1725 = vld [vmem:[%s1714 + $0x50] sm:$0xff]
      %v1726 = vld [vmem:[%s1714 + $0x58] sm:$0xff]
      %v1727 = vld [vmem:[%s1714 + $0x60] sm:$0xff]
      %v1728 = vld [vmem:[%s1714 + $0x68] sm:$0xff]
      %v1729 = vld [vmem:[%s1714 + $0x70] sm:$0xff]
      %v1730 = vld [vmem:[%s1714 + $0x78] sm:$0xff]
      %s1731 = scalar_lea.vmem %s4, 3
      %v1732 = vld [vmem:[%s1731] sm:$0x1]
      %v1733 = vpack.c.bf16 %v1716, %v1715
      %v1734 = vpack.c.bf16 %v1718, %v1717
      %v1735 = vpack.c.bf16 %v1720, %v1719
      %v1736 = vpack.c.bf16 %v1722, %v1721
      %v1737 = vpack.c.bf16 %v1724, %v1723
      %v1738 = vpack.c.bf16 %v1726, %v1725
      %v1739 = vpack.c.bf16 %v1728, %v1727
      %v1740 = vpack.c.bf16 %v1730, %v1729
      %v1742 = vlaneseq
      %v1743 = vshrl.u32 %v1742, 7
      %v1744 = vsub.s32 0, %v1743
      %v1745 = vrot.slane %v1732, %v1744
      %1747 = vmatprep.subr.bf16.mxu0 0
      %1748 = vmatpush1.bf16.msra.mxu0 %v1733
      %1749 = vmatprep.subr.bf16.mxu0 0
      %1750 = vmatpush1.bf16.msra.mxu0 %v1734
      %1751 = vmatprep.subr.bf16.mxu0 0
      %1752 = vmatpush1.bf16.msra.mxu0 %v1735
      %1753 = vmatprep.subr.bf16.mxu0 0
      %1754 = vmatpush1.bf16.msra.mxu0 %v1736
      %1755 = vmatprep.subr.bf16.mxu0 0
      %1756 = vmatpush1.bf16.msra.mxu0 %v1737
      %1757 = vmatprep.subr.bf16.mxu0 0
      %1758 = vmatpush1.bf16.msra.mxu0 %v1738
      %1759 = vmatprep.subr.bf16.mxu0 0
      %1760 = vmatpush1.bf16.msra.mxu0 %v1739
      %1761 = vmatprep.subr.bf16.mxu0 0
      %1762 = vmatpush1.bf16.msra.mxu0 %v1740
      %1763 = vmatprep.subr.bf16.mxu0 0
      %1764 = vmatpush1.bf16.msra.mxu0 0
      %1765 = vmatprep.subr.bf16.mxu0 0
      %1766 = vmatpush1.bf16.msra.mxu0 0
      %1767 = vmatprep.subr.bf16.mxu0 0
      %1768 = vmatpush1.bf16.msra.mxu0 0
      %1769 = vmatprep.subr.bf16.mxu0 0
      %1770 = vmatpush1.bf16.msra.mxu0 0
      %1771 = vmatprep.subr.bf16.mxu0 0
      %1772 = vmatpush1.bf16.msra.mxu0 0
      %1773 = vmatprep.subr.bf16.mxu0 0
      %1774 = vmatpush1.bf16.msra.mxu0 0
      %1775 = vmatprep.subr.bf16.mxu0 0
      %1776 = vmatpush1.bf16.msra.mxu0 0
      %1777 = vmatprep.subr.bf16.mxu0 0
      %1778 = vmatpush1.bf16.msra.mxu0 0
      %1779 = vmatprep.mubr.bf16.mxu0 0
      %1780 = vmatmul.mubr.bf16.gmra.mrb[0].mxu0 %v595
      %v1781 = vpop.f32.mrb[0].mxu0
      %v1782 = vadd.f32 %v1745, %v1781
      %v1783 = vpop.f32.mrb[0].mxu0
      %v1784 = vpop.f32.mrb[0].mxu0
      %v1785 = vpop.f32.mrb[0].mxu0
      %1786 = vdwg.mxu0
      %v1787 = vmul.f32 %v1782, 0.17677669
      %s1788 = scalar_lea.vmem %s5, 384
      %v1789 = vld [vmem:[%s1788] sm:$0xff]
      %v1790 = vld [vmem:[%s1788 + $0x8] sm:$0xff]
      %v1791 = vld [vmem:[%s1788 + $0x10] sm:$0xff]
      %v1792 = vld [vmem:[%s1788 + $0x18] sm:$0xff]
      %v1793 = vld [vmem:[%s1788 + $0x20] sm:$0xff]
      %v1794 = vld [vmem:[%s1788 + $0x28] sm:$0xff]
      %v1795 = vld [vmem:[%s1788 + $0x30] sm:$0xff]
      %v1796 = vld [vmem:[%s1788 + $0x38] sm:$0xff]
      %v1797 = vld [vmem:[%s1788 + $0x40] sm:$0xff]
      %v1798 = vld [vmem:[%s1788 + $0x48] sm:$0xff]
      %v1799 = vld [vmem:[%s1788 + $0x50] sm:$0xff]
      %v1800 = vld [vmem:[%s1788 + $0x58] sm:$0xff]
      %v1801 = vld [vmem:[%s1788 + $0x60] sm:$0xff]
      %v1802 = vld [vmem:[%s1788 + $0x68] sm:$0xff]
      %v1803 = vld [vmem:[%s1788 + $0x70] sm:$0xff]
      %v1804 = vld [vmem:[%s1788 + $0x78] sm:$0xff]
      %s1805 = scalar_lea.vmem %s6, 3
      %v1806 = vld [vmem:[%s1805] sm:$0x1]
      %v1807 = vpack.c.bf16 %v1790, %v1789
      %v1808 = vpack.c.bf16 %v1792, %v1791
      %v1809 = vpack.c.bf16 %v1794, %v1793
      %v1810 = vpack.c.bf16 %v1796, %v1795
      %v1811 = vpack.c.bf16 %v1798, %v1797
      %v1812 = vpack.c.bf16 %v1800, %v1799
      %v1813 = vpack.c.bf16 %v1802, %v1801
      %v1814 = vpack.c.bf16 %v1804, %v1803
      %v1816 = vlaneseq
      %v1817 = vshrl.u32 %v1816, 7
      %v1818 = vsub.s32 0, %v1817
      %v1819 = vrot.slane %v1806, %v1818
      %1821 = vmatprep.subr.bf16.mxu0 0
      %1822 = vmatpush1.bf16.msra.mxu0 %v1807
      %1823 = vmatprep.subr.bf16.mxu0 0
      %1824 = vmatpush1.bf16.msra.mxu0 %v1808
      %1825 = vmatprep.subr.bf16.mxu0 0
      %1826 = vmatpush1.bf16.msra.mxu0 %v1809
      %1827 = vmatprep.subr.bf16.mxu0 0
      %1828 = vmatpush1.bf16.msra.mxu0 %v1810
      %1829 = vmatprep.subr.bf16.mxu0 0
      %1830 = vmatpush1.bf16.msra.mxu0 %v1811
      %1831 = vmatprep.subr.bf16.mxu0 0
      %1832 = vmatpush1.bf16.msra.mxu0 %v1812
      %1833 = vmatprep.subr.bf16.mxu0 0
      %1834 = vmatpush1.bf16.msra.mxu0 %v1813
      %1835 = vmatprep.subr.bf16.mxu0 0
      %1836 = vmatpush1.bf16.msra.mxu0 %v1814
      %1837 = vmatprep.subr.bf16.mxu0 0
      %1838 = vmatpush1.bf16.msra.mxu0 0
      %1839 = vmatprep.subr.bf16.mxu0 0
      %1840 = vmatpush1.bf16.msra.mxu0 0
      %1841 = vmatprep.subr.bf16.mxu0 0
      %1842 = vmatpush1.bf16.msra.mxu0 0
      %1843 = vmatprep.subr.bf16.mxu0 0
      %1844 = vmatpush1.bf16.msra.mxu0 0
      %1845 = vmatprep.subr.bf16.mxu0 0
      %1846 = vmatpush1.bf16.msra.mxu0 0
      %1847 = vmatprep.subr.bf16.mxu0 0
      %1848 = vmatpush1.bf16.msra.mxu0 0
      %1849 = vmatprep.subr.bf16.mxu0 0
      %1850 = vmatpush1.bf16.msra.mxu0 0
      %1851 = vmatprep.subr.bf16.mxu0 0
      %1852 = vmatpush1.bf16.msra.mxu0 0
      %1853 = vmatprep.mubr.bf16.mxu0 0
      %1854 = vmatmul.mubr.bf16.gmra.mrb[0].mxu0 %v595
      %v1855 = vpop.f32.mrb[0].mxu0
      %v1856 = vadd.f32 %v1819, %v1855
      %v1857 = vpop.f32.mrb[0].mxu0
      %v1858 = vpop.f32.mrb[0].mxu0
      %v1859 = vpop.f32.mrb[0].mxu0
      %1860 = vdwg.mxu0
      %s1861 = scalar_lea.vmem %s7, 384
      %v1862 = vld [vmem:[%s1861] sm:$0xff]
      %v1863 = vld [vmem:[%s1861 + $0x8] sm:$0xff]
      %v1864 = vld [vmem:[%s1861 + $0x10] sm:$0xff]
      %v1865 = vld [vmem:[%s1861 + $0x18] sm:$0xff]
      %v1866 = vld [vmem:[%s1861 + $0x20] sm:$0xff]
      %v1867 = vld [vmem:[%s1861 + $0x28] sm:$0xff]
      %v1868 = vld [vmem:[%s1861 + $0x30] sm:$0xff]
      %v1869 = vld [vmem:[%s1861 + $0x38] sm:$0xff]
      %v1870 = vld [vmem:[%s1861 + $0x40] sm:$0xff]
      %v1871 = vld [vmem:[%s1861 + $0x48] sm:$0xff]
      %v1872 = vld [vmem:[%s1861 + $0x50] sm:$0xff]
      %v1873 = vld [vmem:[%s1861 + $0x58] sm:$0xff]
      %v1874 = vld [vmem:[%s1861 + $0x60] sm:$0xff]
      %v1875 = vld [vmem:[%s1861 + $0x68] sm:$0xff]
      %v1876 = vld [vmem:[%s1861 + $0x70] sm:$0xff]
      %v1877 = vld [vmem:[%s1861 + $0x78] sm:$0xff]
      %s1878 = scalar_lea.vmem %s8, 3
      %v1879 = vld [vmem:[%s1878] sm:$0x1]
      %v1880 = vpack.c.bf16 %v1863, %v1862
      %v1881 = vpack.c.bf16 %v1865, %v1864
      %v1882 = vpack.c.bf16 %v1867, %v1866
      %v1883 = vpack.c.bf16 %v1869, %v1868
      %v1884 = vpack.c.bf16 %v1871, %v1870
      %v1885 = vpack.c.bf16 %v1873, %v1872
      %v1886 = vpack.c.bf16 %v1875, %v1874
      %v1887 = vpack.c.bf16 %v1877, %v1876
      %v1889 = vlaneseq
      %v1890 = vshrl.u32 %v1889, 7
      %v1891 = vsub.s32 0, %v1890
      %v1892 = vrot.slane %v1879, %v1891
      %1894 = vmatprep.subr.bf16.mxu0 0
      %1895 = vmatpush1.bf16.msra.mxu0 %v1880
      %1896 = vmatprep.subr.bf16.mxu0 0
      %1897 = vmatpush1.bf16.msra.mxu0 %v1881
      %1898 = vmatprep.subr.bf16.mxu0 0
      %1899 = vmatpush1.bf16.msra.mxu0 %v1882
      %1900 = vmatprep.subr.bf16.mxu0 0
      %1901 = vmatpush1.bf16.msra.mxu0 %v1883
      %1902 = vmatprep.subr.bf16.mxu0 0
      %1903 = vmatpush1.bf16.msra.mxu0 %v1884
      %1904 = vmatprep.subr.bf16.mxu0 0
      %1905 = vmatpush1.bf16.msra.mxu0 %v1885
      %1906 = vmatprep.subr.bf16.mxu0 0
      %1907 = vmatpush1.bf16.msra.mxu0 %v1886
      %1908 = vmatprep.subr.bf16.mxu0 0
      %1909 = vmatpush1.bf16.msra.mxu0 %v1887
      %1910 = vmatprep.subr.bf16.mxu0 0
      %1911 = vmatpush1.bf16.msra.mxu0 0
      %1912 = vmatprep.subr.bf16.mxu0 0
      %1913 = vmatpush1.bf16.msra.mxu0 0
      %1914 = vmatprep.subr.bf16.mxu0 0
      %1915 = vmatpush1.bf16.msra.mxu0 0
      %1916 = vmatprep.subr.bf16.mxu0 0
      %1917 = vmatpush1.bf16.msra.mxu0 0
      %1918 = vmatprep.subr.bf16.mxu0 0
      %1919 = vmatpush1.bf16.msra.mxu0 0
      %1920 = vmatprep.subr.bf16.mxu0 0
      %1921 = vmatpush1.bf16.msra.mxu0 0
      %1922 = vmatprep.subr.bf16.mxu0 0
      %1923 = vmatpush1.bf16.msra.mxu0 0
      %1924 = vmatprep.subr.bf16.mxu0 0
      %1925 = vmatpush1.bf16.msra.mxu0 0
      %1926 = vmatprep.mubr.bf16.mxu0 0
      %1927 = vmatmul.mubr.bf16.gmra.mrb[0].mxu0 %v595
      %v1928 = vpop.f32.mrb[0].mxu0
      %v1929 = vadd.f32 %v1892, %v1928
      %v1930 = vpop.f32.mrb[0].mxu0
      %v1931 = vpop.f32.mrb[0].mxu0
      %v1932 = vpop.f32.mrb[0].mxu0
      %1933 = vdwg.mxu0
      %v1934 = vpack.c.bf16 %v1787, %v1787
      %v1935 = vpack.c.bf16 %v1856, %v1856
      %v1937 = vsel %vm795, %v1934, 0
      %v1940 = vsel %vm795, %v1935, 0
      %1942 = vmatprep.subr.bf16.mxu0 0
      %1943 = vmatpush1.bf16.xpose.msra.mxu0 %v1940
      %1944 = vmatprep.subr.bf16.mxu0 0
      %1945 = vmatpush1.bf16.xpose.msra.mxu0 0
      %1946 = vmatprep.subr.bf16.mxu0 0
      %1947 = vmatpush1.bf16.xpose.msra.mxu0 0
      %1948 = vmatprep.subr.bf16.mxu0 0
      %1949 = vmatpush1.bf16.xpose.msra.mxu0 0
      %1950 = vmatprep.subr.bf16.mxu0 0
      %1951 = vmatpush1.bf16.xpose.msra.mxu0 0
      %1952 = vmatprep.subr.bf16.mxu0 0
      %1953 = vmatpush1.bf16.xpose.msra.mxu0 0
      %1954 = vmatprep.subr.bf16.mxu0 0
      %1955 = vmatpush1.bf16.xpose.msra.mxu0 0
      %1956 = vmatprep.subr.bf16.mxu0 0
      %1957 = vmatpush1.bf16.xpose.msra.mxu0 0
      %1958 = vmatprep.subr.bf16.mxu0 0
      %1959 = vmatpush1.bf16.xpose.msra.mxu0 0
      %1960 = vmatprep.subr.bf16.mxu0 0
      %1961 = vmatpush1.bf16.xpose.msra.mxu0 0
      %1962 = vmatprep.subr.bf16.mxu0 0
      %1963 = vmatpush1.bf16.xpose.msra.mxu0 0
      %1964 = vmatprep.subr.bf16.mxu0 0
      %1965 = vmatpush1.bf16.xpose.msra.mxu0 0
      %1966 = vmatprep.subr.bf16.mxu0 0
      %1967 = vmatpush1.bf16.xpose.msra.mxu0 0
      %1968 = vmatprep.subr.bf16.mxu0 0
      %1969 = vmatpush1.bf16.xpose.msra.mxu0 0
      %1970 = vmatprep.subr.bf16.mxu0 0
      %1971 = vmatpush1.bf16.xpose.msra.mxu0 0
      %1972 = vmatprep.subr.bf16.mxu0 0
      %1973 = vmatpush1.bf16.xpose.msra.mxu0 0
      %1974 = vmatprep.mubr.bf16.mxu0 0
      %1975 = vmatmul.mubr.bf16.gmra.mrb[0].mxu0 %v1937
      %v1976 = vpop.f32.mrb[0].mxu0
      %v1977 = vadd.f32 0.0, %v1976
      %v1978 = vpop.f32.mrb[0].mxu0
      %v1979 = vpop.f32.mrb[0].mxu0
      %v1980 = vpop.f32.mrb[0].mxu0
      %1981 = vdwg.mxu0
      %v1982 = vsel %vm842, %v1977, -inf
      %1983 = vmax.xlane.f32.xlu0 %v1982
      %v1984 = vpop.xlane.xlu0 %1983
      %v1985 = vsub.f32 %v1977, %v1984
      %v1986 = vmul.f32 %v1985, 1.442695
      %v1987 = vpow.pop %v1986
      %v1988 = vsel %vm842, %v1987, 0.0
      %1989 = vadd.xlane.f32.xlu0 %v1988
      %v1990 = vpop.xlane.xlu0 %1989
      %v1991 = vrcp.pop %v1990
      %v1992 = vmul.f32 %v1987, %v1991
      %v1993 = vpack.c.bf16 %v1992, %v1992
      %v1994 = vpack.c.bf16 %v1929, %v1929
      %v1996 = vsel %vm856, %v1993, 0
      %v1999 = vand.u32 %v1994, %v863
      %2001 = vmatprep.subr.bf16.mxu0 0
      %2002 = vmatpush1.bf16.msra.mxu0 %v1999
      %2003 = vmatprep.subr.bf16.mxu0 0
      %2004 = vmatpush1.bf16.msra.mxu0 0
      %2005 = vmatprep.subr.bf16.mxu0 0
      %2006 = vmatpush1.bf16.msra.mxu0 0
      %2007 = vmatprep.subr.bf16.mxu0 0
      %2008 = vmatpush1.bf16.msra.mxu0 0
      %2009 = vmatprep.subr.bf16.mxu0 0
      %2010 = vmatpush1.bf16.msra.mxu0 0
      %2011 = vmatprep.subr.bf16.mxu0 0
      %2012 = vmatpush1.bf16.msra.mxu0 0
      %2013 = vmatprep.subr.bf16.mxu0 0
      %2014 = vmatpush1.bf16.msra.mxu0 0
      %2015 = vmatprep.subr.bf16.mxu0 0
      %2016 = vmatpush1.bf16.msra.mxu0 0
      %2017 = vmatprep.subr.bf16.mxu0 0
      %2018 = vmatpush1.bf16.msra.mxu0 0
      %2019 = vmatprep.subr.bf16.mxu0 0
      %2020 = vmatpush1.bf16.msra.mxu0 0
      %2021 = vmatprep.subr.bf16.mxu0 0
      %2022 = vmatpush1.bf16.msra.mxu0 0
      %2023 = vmatprep.subr.bf16.mxu0 0
      %2024 = vmatpush1.bf16.msra.mxu0 0
      %2025 = vmatprep.subr.bf16.mxu0 0
      %2026 = vmatpush1.bf16.msra.mxu0 0
      %2027 = vmatprep.subr.bf16.mxu0 0
      %2028 = vmatpush1.bf16.msra.mxu0 0
      %2029 = vmatprep.subr.bf16.mxu0 0
      %2030 = vmatpush1.bf16.msra.mxu0 0
      %2031 = vmatprep.subr.bf16.mxu0 0
      %2032 = vmatpush1.bf16.msra.mxu0 0
      %2033 = vmatprep.mubr.bf16.mxu0 0
      %2034 = vmatmul.mubr.bf16.gmra.mrb[0].mxu0 %v1996
      %v2035 = vpop.f32.mrb[0].mxu0
      %v2036 = vadd.f32 0.0, %v2035
      %v2037 = vpop.f32.mrb[0].mxu0
      %v2038 = vpop.f32.mrb[0].mxu0
      %v2039 = vpop.f32.mrb[0].mxu0
      %2040 = vdwg.mxu0
      %s2041 = scalar_lea.vmem %s9, 96
      %v2042 = vld [vmem:[%s2041] sm:$0xff]
      %v2043 = vld [vmem:[%s2041 + $0x8] sm:$0xff]
      %v2044 = vld [vmem:[%s2041 + $0x10] sm:$0xff]
      %v2045 = vld [vmem:[%s2041 + $0x18] sm:$0xff]
      %v2046 = vpack.c.bf16 %v2036, %v2036
      %v2047 = vpack.c.bf16 %v2043, %v2042
      %v2048 = vpack.c.bf16 %v2045, %v2044
      %v2050 = vsel %vm795, %v2046, 0
      %2052 = vmatprep.subr.bf16.mxu0 0
      %2053 = vmatpush1.bf16.msra.mxu0 %v2047
      %2054 = vmatprep.subr.bf16.mxu0 0
      %2055 = vmatpush1.bf16.msra.mxu0 %v2048
      %2056 = vmatprep.subr.bf16.mxu0 0
      %2057 = vmatpush1.bf16.msra.mxu0 0
      %2058 = vmatprep.subr.bf16.mxu0 0
      %2059 = vmatpush1.bf16.msra.mxu0 0
      %2060 = vmatprep.subr.bf16.mxu0 0
      %2061 = vmatpush1.bf16.msra.mxu0 0
      %2062 = vmatprep.subr.bf16.mxu0 0
      %2063 = vmatpush1.bf16.msra.mxu0 0
      %2064 = vmatprep.subr.bf16.mxu0 0
      %2065 = vmatpush1.bf16.msra.mxu0 0
      %2066 = vmatprep.subr.bf16.mxu0 0
      %2067 = vmatpush1.bf16.msra.mxu0 0
      %2068 = vmatprep.subr.bf16.mxu0 0
      %2069 = vmatpush1.bf16.msra.mxu0 0
      %2070 = vmatprep.subr.bf16.mxu0 0
      %2071 = vmatpush1.bf16.msra.mxu0 0
      %2072 = vmatprep.subr.bf16.mxu0 0
      %2073 = vmatpush1.bf16.msra.mxu0 0
      %2074 = vmatprep.subr.bf16.mxu0 0
      %2075 = vmatpush1.bf16.msra.mxu0 0
      %2076 = vmatprep.subr.bf16.mxu0 0
      %2077 = vmatpush1.bf16.msra.mxu0 0
      %2078 = vmatprep.subr.bf16.mxu0 0
      %2079 = vmatpush1.bf16.msra.mxu0 0
      %2080 = vmatprep.subr.bf16.mxu0 0
      %2081 = vmatpush1.bf16.msra.mxu0 0
      %2082 = vmatprep.subr.bf16.mxu0 0
      %2083 = vmatpush1.bf16.msra.mxu0 0
      %2084 = vmatprep.mubr.bf16.mxu0 0
      %2085 = vmatmul.mubr.bf16.gmra.mrb[0].mxu0 %v2050
      %v2086 = vpop.f32.mrb[0].mxu0
      %v2087 = vadd.f32 0.0, %v2086
      %v2088 = vpop.f32.mrb[0].mxu0
      %v2089 = vpop.f32.mrb[0].mxu0
      %v2090 = vpop.f32.mrb[0].mxu0
      %2091 = vdwg.mxu0
      %v2092 = vadd.f32 %v1713, %v2087
      %v2094 = vlaneseq
      %v2095 = vshrl.u32 %v2094, 7
      %v2096 = vsub.s32 0, %v2095
      %v2097 = vrot.slane %v577, %v2096
      %v2099 = vadd.f32 %v2092, %v2097
      %v2100 = vadd.f32 %v545, %v2099
      %v2101 = vld [vmem:[%s11] sm:$0x1]
      %v2102 = vld [vmem:[%s12] sm:$0x1]
      %v2103 = vsel %vm548, %v2100, 0.0
      %2104 = vadd.xlane.f32.xlu0 %v2103
      %v2105 = vpop.xlane.xlu0 %2104
      %v2106 = vmul.f32 %v2105, %v552
      %v2107 = vsub.f32 %v2100, %v2106
      %v2108 = vmul.f32 %v2107, %v2107
      %v2109 = vsel %vm548, %v2108, 0.0
      %2110 = vadd.xlane.f32.xlu0 %v2109
      %v2111 = vpop.xlane.xlu0 %2110
      %v2112 = vmul.f32 %v2111, %v552
      %v2113 = vadd.f32 %v2112, 1e-05
      %v2114 = vrsqrt.pop %v2113
      %v2115 = vmul.f32 %v2107, %v2114
      %v2117 = vlaneseq
      %v2118 = vshrl.u32 %v2117, 7
      %v2119 = vsub.s32 0, %v2118
      %v2120 = vrot.slane %v2101, %v2119
      %v2122 = vmul.f32 %v2115, %v2120
      %v2124 = vlaneseq
      %v2125 = vshrl.u32 %v2124, 7
      %v2126 = vsub.s32 0, %v2125
      %v2127 = vrot.slane %v2102, %v2126
      %v2129 = vadd.f32 %v2122, %v2127
      %v2130 = vld [vmem:[%s13] sm:$0xff]
      %v2131 = vld [vmem:[%s13 + $0x8] sm:$0xff]
      %v2132 = vld [vmem:[%s13 + $0x10] sm:$0xff]
      %v2133 = vld [vmem:[%s13 + $0x18] sm:$0xff]
      %v2134 = vld [vmem:[%s13 + $0x20] sm:$0xff]
      %v2135 = vld [vmem:[%s13 + $0x28] sm:$0xff]
      %v2136 = vld [vmem:[%s13 + $0x30] sm:$0xff]
      %v2137 = vld [vmem:[%s13 + $0x38] sm:$0xff]
      %v2138 = vld [vmem:[%s13 + $0x40] sm:$0xff]
      %v2139 = vld [vmem:[%s13 + $0x48] sm:$0xff]
      %v2140 = vld [vmem:[%s13 + $0x50] sm:$0xff]
      %v2141 = vld [vmem:[%s13 + $0x58] sm:$0xff]
      %v2142 = vld [vmem:[%s13 + $0x60] sm:$0xff]
      %v2143 = vld [vmem:[%s13 + $0x68] sm:$0xff]
      %v2144 = vld [vmem:[%s13 + $0x70] sm:$0xff]
      %v2145 = vld [vmem:[%s13 + $0x78] sm:$0xff]
      %v2146 = vld [vmem:[%s13 + $0x80] sm:$0xff]
      %v2147 = vld [vmem:[%s13 + $0x88] sm:$0xff]
      %v2148 = vld [vmem:[%s13 + $0x90] sm:$0xff]
      %v2149 = vld [vmem:[%s13 + $0x98] sm:$0xff]
      %v2150 = vld [vmem:[%s13 + $0xa0] sm:$0xff]
      %v2151 = vld [vmem:[%s13 + $0xa8] sm:$0xff]
      %v2152 = vld [vmem:[%s13 + $0xb0] sm:$0xff]
      %v2153 = vld [vmem:[%s13 + $0xb8] sm:$0xff]
      %v2154 = vld [vmem:[%s13 + $0xc0] sm:$0xff]
      %v2155 = vld [vmem:[%s13 + $0xc8] sm:$0xff]
      %v2156 = vld [vmem:[%s13 + $0xd0] sm:$0xff]
      %v2157 = vld [vmem:[%s13 + $0xd8] sm:$0xff]
      %v2158 = vld [vmem:[%s13 + $0xe0] sm:$0xff]
      %v2159 = vld [vmem:[%s13 + $0xe8] sm:$0xff]
      %v2160 = vld [vmem:[%s13 + $0xf0] sm:$0xff]
      %v2161 = vld [vmem:[%s13 + $0xf8] sm:$0xff]
      %v2162 = vld [vmem:[%s13 + $0x100] sm:$0xff]
      %v2163 = vld [vmem:[%s13 + $0x108] sm:$0xff]
      %v2164 = vld [vmem:[%s13 + $0x110] sm:$0xff]
      %v2165 = vld [vmem:[%s13 + $0x118] sm:$0xff]
      %v2166 = vld [vmem:[%s13 + $0x120] sm:$0xff]
      %v2167 = vld [vmem:[%s13 + $0x128] sm:$0xff]
      %v2168 = vld [vmem:[%s13 + $0x130] sm:$0xff]
      %v2169 = vld [vmem:[%s13 + $0x138] sm:$0xff]
      %v2170 = vld [vmem:[%s13 + $0x140] sm:$0xff]
      %v2171 = vld [vmem:[%s13 + $0x148] sm:$0xff]
      %v2172 = vld [vmem:[%s13 + $0x150] sm:$0xff]
      %v2173 = vld [vmem:[%s13 + $0x158] sm:$0xff]
      %v2174 = vld [vmem:[%s13 + $0x160] sm:$0xff]
      %v2175 = vld [vmem:[%s13 + $0x168] sm:$0xff]
      %v2176 = vld [vmem:[%s13 + $0x170] sm:$0xff]
      %v2177 = vld [vmem:[%s13 + $0x178] sm:$0xff]
      %v2178 = vld [vmem:[%s13 + $0x180] sm:$0xff]
      %v2179 = vld [vmem:[%s13 + $0x188] sm:$0xff]
      %v2180 = vld [vmem:[%s13 + $0x190] sm:$0xff]
      %v2181 = vld [vmem:[%s13 + $0x198] sm:$0xff]
      %v2182 = vld [vmem:[%s13 + $0x1a0] sm:$0xff]
      %v2183 = vld [vmem:[%s13 + $0x1a8] sm:$0xff]
      %v2184 = vld [vmem:[%s13 + $0x1b0] sm:$0xff]
      %v2185 = vld [vmem:[%s13 + $0x1b8] sm:$0xff]
      %v2186 = vld [vmem:[%s13 + $0x1c0] sm:$0xff]
      %v2187 = vld [vmem:[%s13 + $0x1c8] sm:$0xff]
      %v2188 = vld [vmem:[%s13 + $0x1d0] sm:$0xff]
      %v2189 = vld [vmem:[%s13 + $0x1d8] sm:$0xff]
      %v2190 = vld [vmem:[%s13 + $0x1e0] sm:$0xff]
      %v2191 = vld [vmem:[%s13 + $0x1e8] sm:$0xff]
      %v2192 = vld [vmem:[%s13 + $0x1f0] sm:$0xff]
      %v2193 = vld [vmem:[%s13 + $0x1f8] sm:$0xff]
      %v2194 = vld [vmem:[%s14] sm:$0xf]
      %v2195 = vpack.c.bf16 %v2129, %v2129
      %v2196 = vpack.c.bf16 %v2134, %v2130
      %v2197 = vpack.c.bf16 %v2135, %v2131
      %v2198 = vpack.c.bf16 %v2136, %v2132
      %v2199 = vpack.c.bf16 %v2137, %v2133
      %v2200 = vpack.c.bf16 %v2142, %v2138
      %v2201 = vpack.c.bf16 %v2143, %v2139
      %v2202 = vpack.c.bf16 %v2144, %v2140
      %v2203 = vpack.c.bf16 %v2145, %v2141
      %v2204 = vpack.c.bf16 %v2150, %v2146
      %v2205 = vpack.c.bf16 %v2151, %v2147
      %v2206 = vpack.c.bf16 %v2152, %v2148
      %v2207 = vpack.c.bf16 %v2153, %v2149
      %v2208 = vpack.c.bf16 %v2158, %v2154
      %v2209 = vpack.c.bf16 %v2159, %v2155
      %v2210 = vpack.c.bf16 %v2160, %v2156
      %v2211 = vpack.c.bf16 %v2161, %v2157
      %v2212 = vpack.c.bf16 %v2166, %v2162
      %v2213 = vpack.c.bf16 %v2167, %v2163
      %v2214 = vpack.c.bf16 %v2168, %v2164
      %v2215 = vpack.c.bf16 %v2169, %v2165
      %v2216 = vpack.c.bf16 %v2174, %v2170
      %v2217 = vpack.c.bf16 %v2175, %v2171
      %v2218 = vpack.c.bf16 %v2176, %v2172
      %v2219 = vpack.c.bf16 %v2177, %v2173
      %v2220 = vpack.c.bf16 %v2182, %v2178
      %v2221 = vpack.c.bf16 %v2183, %v2179
      %v2222 = vpack.c.bf16 %v2184, %v2180
      %v2223 = vpack.c.bf16 %v2185, %v2181
      %v2224 = vpack.c.bf16 %v2190, %v2186
      %v2225 = vpack.c.bf16 %v2191, %v2187
      %v2226 = vpack.c.bf16 %v2192, %v2188
      %v2227 = vpack.c.bf16 %v2193, %v2189
      %v2229 = vlaneseq
      %v2230 = vshrl.u32 %v2229, 7
      %v2231 = vsub.s32 0, %v2230
      %v2232 = vrot.slane %v2194, %v2231
      %v2233 = vlaneseq
      %v2234 = vshrl.u32 %v2233, 7
      %v2235 = vsub.s32 1, %v2234
      %v2236 = vrot.slane %v2194, %v2235
      %v2237 = vlaneseq
      %v2238 = vshrl.u32 %v2237, 7
      %v2239 = vsub.s32 2, %v2238
      %v2240 = vrot.slane %v2194, %v2239
      %v2241 = vlaneseq
      %v2242 = vshrl.u32 %v2241, 7
      %v2243 = vsub.s32 3, %v2242
      %v2244 = vrot.slane %v2194, %v2243
      %2249 = vmatprep.subr.bf16.mxu0 %v2197
      %2250 = vmatpush1.bf16.msra.mxu0 %v2196
      %2251 = vmatprep.subr.bf16.mxu0 %v2201
      %2252 = vmatpush1.bf16.msra.mxu0 %v2200
      %2253 = vmatprep.subr.bf16.mxu0 %v2205
      %2254 = vmatpush1.bf16.msra.mxu0 %v2204
      %2255 = vmatprep.subr.bf16.mxu0 %v2209
      %2256 = vmatpush1.bf16.msra.mxu0 %v2208
      %2257 = vmatprep.subr.bf16.mxu0 %v2213
      %2258 = vmatpush1.bf16.msra.mxu0 %v2212
      %2259 = vmatprep.subr.bf16.mxu0 %v2217
      %2260 = vmatpush1.bf16.msra.mxu0 %v2216
      %2261 = vmatprep.subr.bf16.mxu0 %v2221
      %2262 = vmatpush1.bf16.msra.mxu0 %v2220
      %2263 = vmatprep.subr.bf16.mxu0 %v2225
      %2264 = vmatpush1.bf16.msra.mxu0 %v2224
      %2265 = vmatprep.subr.bf16.mxu0 0
      %2266 = vmatpush1.bf16.msra.mxu0 0
      %2267 = vmatprep.subr.bf16.mxu0 0
      %2268 = vmatpush1.bf16.msra.mxu0 0
      %2269 = vmatprep.subr.bf16.mxu0 0
      %2270 = vmatpush1.bf16.msra.mxu0 0
      %2271 = vmatprep.subr.bf16.mxu0 0
      %2272 = vmatpush1.bf16.msra.mxu0 0
      %2273 = vmatprep.subr.bf16.mxu0 0
      %2274 = vmatpush1.bf16.msra.mxu0 0
      %2275 = vmatprep.subr.bf16.mxu0 0
      %2276 = vmatpush1.bf16.msra.mxu0 0
      %2277 = vmatprep.subr.bf16.mxu0 0
      %2278 = vmatpush1.bf16.msra.mxu0 0
      %2279 = vmatprep.subr.bf16.mxu0 0
      %2280 = vmatpush1.bf16.msra.mxu0 0
      %2281 = vmatprep.mubr.bf16.mxu0 0
      %2282 = vmatmul.mubr.bf16.gmra.mrb[0].mxu0 %v2195
      %v2283 = vpop.f32.mrb[0].mxu0
      %v2284 = vadd.f32 %v2232, %v2283
      %v2285 = vpop.f32.mrb[0].mxu0
      %v2286 = vadd.f32 %v2236, %v2285
      %v2287 = vpop.f32.mrb[0].mxu0
      %v2288 = vpop.f32.mrb[0].mxu0
      %2289 = vdwg.mxu0
      %2290 = vmatprep.subr.bf16.mxu0 %v2199
      %2291 = vmatpush1.bf16.msra.mxu0 %v2198
      %2292 = vmatprep.subr.bf16.mxu0 %v2203
      %2293 = vmatpush1.bf16.msra.mxu0 %v2202
      %2294 = vmatprep.subr.bf16.mxu0 %v2207
      %2295 = vmatpush1.bf16.msra.mxu0 %v2206
      %2296 = vmatprep.subr.bf16.mxu0 %v2211
      %2297 = vmatpush1.bf16.msra.mxu0 %v2210
      %2298 = vmatprep.subr.bf16.mxu0 %v2215
      %2299 = vmatpush1.bf16.msra.mxu0 %v2214
      %2300 = vmatprep.subr.bf16.mxu0 %v2219
      %2301 = vmatpush1.bf16.msra.mxu0 %v2218
      %2302 = vmatprep.subr.bf16.mxu0 %v2223
      %2303 = vmatpush1.bf16.msra.mxu0 %v2222
      %2304 = vmatprep.subr.bf16.mxu0 %v2227
      %2305 = vmatpush1.bf16.msra.mxu0 %v2226
      %2306 = vmatprep.subr.bf16.mxu0 0
      %2307 = vmatpush1.bf16.msra.mxu0 0
      %2308 = vmatprep.subr.bf16.mxu0 0
      %2309 = vmatpush1.bf16.msra.mxu0 0
      %2310 = vmatprep.subr.bf16.mxu0 0
      %2311 = vmatpush1.bf16.msra.mxu0 0
      %2312 = vmatprep.subr.bf16.mxu0 0
      %2313 = vmatpush1.bf16.msra.mxu0 0
      %2314 = vmatprep.subr.bf16.mxu0 0
      %2315 = vmatpush1.bf16.msra.mxu0 0
      %2316 = vmatprep.subr.bf16.mxu0 0
      %2317 = vmatpush1.bf16.msra.mxu0 0
      %2318 = vmatprep.subr.bf16.mxu0 0
      %2319 = vmatpush1.bf16.msra.mxu0 0
      %2320 = vmatprep.subr.bf16.mxu0 0
      %2321 = vmatpush1.bf16.msra.mxu0 0
      %2322 = vmatprep.mubr.bf16.mxu0 0
      %2323 = vmatmul.mubr.bf16.gmra.mrb[0].mxu0 %v2195
      %v2324 = vpop.f32.mrb[0].mxu0
      %v2325 = vadd.f32 %v2240, %v2324
      %v2326 = vpop.f32.mrb[0].mxu0
      %v2327 = vadd.f32 %v2244, %v2326
      %v2328 = vpop.f32.mrb[0].mxu0
      %v2329 = vpop.f32.mrb[0].mxu0
      %2330 = vdwg.mxu0
      %v2331 = vmul.f32 %v2284, 1.702
      %v2332 = vmul.f32 %v2286, 1.702
      %v2333 = vmul.f32 %v2325, 1.702
      %v2334 = vmul.f32 %v2327, 1.702
      %v2335 = vxor.u32 %v2331, 2147483648
      %v2336 = vxor.u32 %v2332, 2147483648
      %v2337 = vxor.u32 %v2333, 2147483648
      %v2338 = vxor.u32 %v2334, 2147483648
      %v2339 = vmul.f32 %v2335, 1.442695
      %v2340 = vpow.pop %v2339
      %v2341 = vmul.f32 %v2336, 1.442695
      %v2342 = vpow.pop %v2341
      %v2343 = vmul.f32 %v2337, 1.442695
      %v2344 = vpow.pop %v2343
      %v2345 = vmul.f32 %v2338, 1.442695
      %v2346 = vpow.pop %v2345
      %v2347 = vadd.f32 %v2340, 1.0
      %v2348 = vadd.f32 %v2342, 1.0
      %v2349 = vadd.f32 %v2344, 1.0
      %v2350 = vadd.f32 %v2346, 1.0
      %v2351 = vrcp.pop %v2347
      %v2352 = vmul.f32 1.0, %v2351
      %v2353 = vrcp.pop %v2348
      %v2354 = vmul.f32 1.0, %v2353
      %v2355 = vrcp.pop %v2349
      %v2356 = vmul.f32 1.0, %v2355
      %v2357 = vrcp.pop %v2350
      %v2358 = vmul.f32 1.0, %v2357
      %v2359 = vmul.f32 %v2284, %v2352
      %v2360 = vmul.f32 %v2286, %v2354
      %v2361 = vmul.f32 %v2325, %v2356
      %v2362 = vmul.f32 %v2327, %v2358
      %v2363 = vld [vmem:[%s15] sm:$0xff]
      %v2364 = vld [vmem:[%s15 + $0x8] sm:$0xff]
      %v2365 = vld [vmem:[%s15 + $0x10] sm:$0xff]
      %v2366 = vld [vmem:[%s15 + $0x18] sm:$0xff]
      %v2367 = vld [vmem:[%s15 + $0x20] sm:$0xff]
      %v2368 = vld [vmem:[%s15 + $0x28] sm:$0xff]
      %v2369 = vld [vmem:[%s15 + $0x30] sm:$0xff]
      %v2370 = vld [vmem:[%s15 + $0x38] sm:$0xff]
      %v2371 = vld [vmem:[%s15 + $0x40] sm:$0xff]
      %v2372 = vld [vmem:[%s15 + $0x48] sm:$0xff]
      %v2373 = vld [vmem:[%s15 + $0x50] sm:$0xff]
      %v2374 = vld [vmem:[%s15 + $0x58] sm:$0xff]
      %v2375 = vld [vmem:[%s15 + $0x60] sm:$0xff]
      %v2376 = vld [vmem:[%s15 + $0x68] sm:$0xff]
      %v2377 = vld [vmem:[%s15 + $0x70] sm:$0xff]
      %v2378 = vld [vmem:[%s15 + $0x78] sm:$0xff]
      %v2379 = vld [vmem:[%s15 + $0x80] sm:$0xff]
      %v2380 = vld [vmem:[%s15 + $0x88] sm:$0xff]
      %v2381 = vld [vmem:[%s15 + $0x90] sm:$0xff]
      %v2382 = vld [vmem:[%s15 + $0x98] sm:$0xff]
      %v2383 = vld [vmem:[%s15 + $0xa0] sm:$0xff]
      %v2384 = vld [vmem:[%s15 + $0xa8] sm:$0xff]
      %v2385 = vld [vmem:[%s15 + $0xb0] sm:$0xff]
      %v2386 = vld [vmem:[%s15 + $0xb8] sm:$0xff]
      %v2387 = vld [vmem:[%s15 + $0xc0] sm:$0xff]
      %v2388 = vld [vmem:[%s15 + $0xc8] sm:$0xff]
      %v2389 = vld [vmem:[%s15 + $0xd0] sm:$0xff]
      %v2390 = vld [vmem:[%s15 + $0xd8] sm:$0xff]
      %v2391 = vld [vmem:[%s15 + $0xe0] sm:$0xff]
      %v2392 = vld [vmem:[%s15 + $0xe8] sm:$0xff]
      %v2393 = vld [vmem:[%s15 + $0xf0] sm:$0xff]
      %v2394 = vld [vmem:[%s15 + $0xf8] sm:$0xff]
      %v2395 = vld [vmem:[%s15 + $0x100] sm:$0xff]
      %v2396 = vld [vmem:[%s15 + $0x108] sm:$0xff]
      %v2397 = vld [vmem:[%s15 + $0x110] sm:$0xff]
      %v2398 = vld [vmem:[%s15 + $0x118] sm:$0xff]
      %v2399 = vld [vmem:[%s15 + $0x120] sm:$0xff]
      %v2400 = vld [vmem:[%s15 + $0x128] sm:$0xff]
      %v2401 = vld [vmem:[%s15 + $0x130] sm:$0xff]
      %v2402 = vld [vmem:[%s15 + $0x138] sm:$0xff]
      %v2403 = vld [vmem:[%s15 + $0x140] sm:$0xff]
      %v2404 = vld [vmem:[%s15 + $0x148] sm:$0xff]
      %v2405 = vld [vmem:[%s15 + $0x150] sm:$0xff]
      %v2406 = vld [vmem:[%s15 + $0x158] sm:$0xff]
      %v2407 = vld [vmem:[%s15 + $0x160] sm:$0xff]
      %v2408 = vld [vmem:[%s15 + $0x168] sm:$0xff]
      %v2409 = vld [vmem:[%s15 + $0x170] sm:$0xff]
      %v2410 = vld [vmem:[%s15 + $0x178] sm:$0xff]
      %v2411 = vld [vmem:[%s15 + $0x180] sm:$0xff]
      %v2412 = vld [vmem:[%s15 + $0x188] sm:$0xff]
      %v2413 = vld [vmem:[%s15 + $0x190] sm:$0xff]
      %v2414 = vld [vmem:[%s15 + $0x198] sm:$0xff]
      %v2415 = vld [vmem:[%s15 + $0x1a0] sm:$0xff]
      %v2416 = vld [vmem:[%s15 + $0x1a8] sm:$0xff]
      %v2417 = vld [vmem:[%s15 + $0x1b0] sm:$0xff]
      %v2418 = vld [vmem:[%s15 + $0x1b8] sm:$0xff]
      %v2419 = vld [vmem:[%s15 + $0x1c0] sm:$0xff]
      %v2420 = vld [vmem:[%s15 + $0x1c8] sm:$0xff]
      %v2421 = vld [vmem:[%s15 + $0x1d0] sm:$0xff]
      %v2422 = vld [vmem:[%s15 + $0x1d8] sm:$0xff]
      %v2423 = vld [vmem:[%s15 + $0x1e0] sm:$0xff]
      %v2424 = vld [vmem:[%s15 + $0x1e8] sm:$0xff]
      %v2425 = vld [vmem:[%s15 + $0x1f0] sm:$0xff]
      %v2426 = vld [vmem:[%s15 + $0x1f8] sm:$0xff]
      %v2427 = vld [vmem:[%s16] sm:$0x1]
      %v2428 = vpack.c.bf16 %v2359, %v2359
      %v2429 = vpack.c.bf16 %v2360, %v2360
      %v2430 = vpack.c.bf16 %v2361, %v2361
      %v2431 = vpack.c.bf16 %v2362, %v2362
      %v2432 = vpack.c.bf16 %v2364, %v2363
      %v2433 = vpack.c.bf16 %v2366, %v2365
      %v2434 = vpack.c.bf16 %v2368, %v2367
      %v2435 = vpack.c.bf16 %v2370, %v2369
      %v2436 = vpack.c.bf16 %v2372, %v2371
      %v2437 = vpack.c.bf16 %v2374, %v2373
      %v2438 = vpack.c.bf16 %v2376, %v2375
      %v2439 = vpack.c.bf16 %v2378, %v2377
      %v2440 = vpack.c.bf16 %v2380, %v2379
      %v2441 = vpack.c.bf16 %v2382, %v2381
      %v2442 = vpack.c.bf16 %v2384, %v2383
      %v2443 = vpack.c.bf16 %v2386, %v2385
      %v2444 = vpack.c.bf16 %v2388, %v2387
      %v2445 = vpack.c.bf16 %v2390, %v2389
      %v2446 = vpack.c.bf16 %v2392, %v2391
      %v2447 = vpack.c.bf16 %v2394, %v2393
      %v2448 = vpack.c.bf16 %v2396, %v2395
      %v2449 = vpack.c.bf16 %v2398, %v2397
      %v2450 = vpack.c.bf16 %v2400, %v2399
      %v2451 = vpack.c.bf16 %v2402, %v2401
      %v2452 = vpack.c.bf16 %v2404, %v2403
      %v2453 = vpack.c.bf16 %v2406, %v2405
      %v2454 = vpack.c.bf16 %v2408, %v2407
      %v2455 = vpack.c.bf16 %v2410, %v2409
      %v2456 = vpack.c.bf16 %v2412, %v2411
      %v2457 = vpack.c.bf16 %v2414, %v2413
      %v2458 = vpack.c.bf16 %v2416, %v2415
      %v2459 = vpack.c.bf16 %v2418, %v2417
      %v2460 = vpack.c.bf16 %v2420, %v2419
      %v2461 = vpack.c.bf16 %v2422, %v2421
      %v2462 = vpack.c.bf16 %v2424, %v2423
      %v2463 = vpack.c.bf16 %v2426, %v2425
      %v2465 = vlaneseq
      %v2466 = vshrl.u32 %v2465, 7
      %v2467 = vsub.s32 0, %v2466
      %v2468 = vrot.slane %v2427, %v2467
      %2470 = vmatprep.subr.bf16.mxu0 0
      %2471 = vmatpush1.bf16.msra.mxu0 %v2432
      %2472 = vmatprep.subr.bf16.mxu0 0
      %2473 = vmatpush1.bf16.msra.mxu0 %v2433
      %2474 = vmatprep.subr.bf16.mxu0 0
      %2475 = vmatpush1.bf16.msra.mxu0 %v2434
      %2476 = vmatprep.subr.bf16.mxu0 0
      %2477 = vmatpush1.bf16.msra.mxu0 %v2435
      %2478 = vmatprep.subr.bf16.mxu0 0
      %2479 = vmatpush1.bf16.msra.mxu0 %v2436
      %2480 = vmatprep.subr.bf16.mxu0 0
      %2481 = vmatpush1.bf16.msra.mxu0 %v2437
      %2482 = vmatprep.subr.bf16.mxu0 0
      %2483 = vmatpush1.bf16.msra.mxu0 %v2438
      %2484 = vmatprep.subr.bf16.mxu0 0
      %2485 = vmatpush1.bf16.msra.mxu0 %v2439
      %2486 = vmatprep.subr.bf16.mxu0 0
      %2487 = vmatpush1.bf16.msra.mxu0 %v2440
      %2488 = vmatprep.subr.bf16.mxu0 0
      %2489 = vmatpush1.bf16.msra.mxu0 %v2441
      %2490 = vmatprep.subr.bf16.mxu0 0
      %2491 = vmatpush1.bf16.msra.mxu0 %v2442
      %2492 = vmatprep.subr.bf16.mxu0 0
      %2493 = vmatpush1.bf16.msra.mxu0 %v2443
      %2494 = vmatprep.subr.bf16.mxu0 0
      %2495 = vmatpush1.bf16.msra.mxu0 %v2444
      %2496 = vmatprep.subr.bf16.mxu0 0
      %2497 = vmatpush1.bf16.msra.mxu0 %v2445
      %2498 = vmatprep.subr.bf16.mxu0 0
      %2499 = vmatpush1.bf16.msra.mxu0 %v2446
      %2500 = vmatprep.subr.bf16.mxu0 0
      %2501 = vmatpush1.bf16.msra.mxu0 %v2447
      %2502 = vmatprep.mubr.bf16.mxu0 %v2429
      %2503 = vmatmul.mubr.bf16.gmra.mrb[0].mxu0 %v2428
      %v2504 = vpop.f32.mrb[0].mxu0
      %v2505 = vadd.f32 %v2468, %v2504
      %v2506 = vpop.f32.mrb[0].mxu0
      %v2507 = vpop.f32.mrb[0].mxu0
      %v2508 = vpop.f32.mrb[0].mxu0
      %2509 = vdwg.mxu0
      %2510 = vmatprep.subr.bf16.mxu0 0
      %2511 = vmatpush1.bf16.msra.mxu0 %v2448
      %2512 = vmatprep.subr.bf16.mxu0 0
      %2513 = vmatpush1.bf16.msra.mxu0 %v2449
      %2514 = vmatprep.subr.bf16.mxu0 0
      %2515 = vmatpush1.bf16.msra.mxu0 %v2450
      %2516 = vmatprep.subr.bf16.mxu0 0
      %2517 = vmatpush1.bf16.msra.mxu0 %v2451
      %2518 = vmatprep.subr.bf16.mxu0 0
      %2519 = vmatpush1.bf16.msra.mxu0 %v2452
      %2520 = vmatprep.subr.bf16.mxu0 0
      %2521 = vmatpush1.bf16.msra.mxu0 %v2453
      %2522 = vmatprep.subr.bf16.mxu0 0
      %2523 = vmatpush1.bf16.msra.mxu0 %v2454
      %2524 = vmatprep.subr.bf16.mxu0 0
      %2525 = vmatpush1.bf16.msra.mxu0 %v2455
      %2526 = vmatprep.subr.bf16.mxu0 0
      %2527 = vmatpush1.bf16.msra.mxu0 %v2456
      %2528 = vmatprep.subr.bf16.mxu0 0
      %2529 = vmatpush1.bf16.msra.mxu0 %v2457
      %2530 = vmatprep.subr.bf16.mxu0 0
      %2531 = vmatpush1.bf16.msra.mxu0 %v2458
      %2532 = vmatprep.subr.bf16.mxu0 0
      %2533 = vmatpush1.bf16.msra.mxu0 %v2459
      %2534 = vmatprep.subr.bf16.mxu0 0
      %2535 = vmatpush1.bf16.msra.mxu0 %v2460
      %2536 = vmatprep.subr.bf16.mxu0 0
      %2537 = vmatpush1.bf16.msra.mxu0 %v2461
      %2538 = vmatprep.subr.bf16.mxu0 0
      %2539 = vmatpush1.bf16.msra.mxu0 %v2462
      %2540 = vmatprep.subr.bf16.mxu0 0
      %2541 = vmatpush1.bf16.msra.mxu0 %v2463
      %2542 = vmatprep.mubr.bf16.mxu0 %v2431
      %2543 = vmatmul.mubr.bf16.gmra.mrb[0].mxu0 %v2430
      %v2544 = vpop.f32.mrb[0].mxu0
      %v2545 = vadd.f32 %v2505, %v2544
      %v2546 = vpop.f32.mrb[0].mxu0
      %v2547 = vpop.f32.mrb[0].mxu0
      %v2548 = vpop.f32.mrb[0].mxu0
      %2549 = vdwg.mxu0
      %v2550 = vadd.f32 %v2100, %v2545
      %2551 = vst [vmem:[%s543] sm:$0x1f] %v2550
      %p2552 = scmp.lt.s32.totalorder %s28, 7
      %s2553 = scalar_select %p2552, %s28, 7
      %s2554 = smul.addr %s2553, 8
      %s2555 = scalar_lea.vmem %s17, %s2554
      // Predicated region
      $region89: #{evl_forward.11} parent=87 // pred_check
        %p2556 = pneg %p408
      $region90: #{evl_forward.11} parent=87 // pred_check_branch
        %2558 = sbr.rel (%p2556) target = $region92
      $region91: #{evl_forward.11} parent=87 // pred_region
        _
      $region92: #{evl_forward.11} parent=87 // pred_fallthru
        _
    $region88: #{evl_forward.11} parent=5 // pred_fallthru
      _
    %p2559 = scmp.le.s32.totalorder 2, %s23
    // Predicated region
    $region93: #{evl_forward.11} parent=5 // pred_check
      %p2560 = pneg %p2559
    $region94: #{evl_forward.11} parent=5 // pred_check_branch
      %2562 = sbr.rel (%p2560) target = $region96
    $region95: #{evl_forward.11} parent=5 // pred_region
      %s2563 = ssub.s32 %s23, 2
      // Predicated region
      $region97: #{evl_forward.11} parent=95 // pred_check
        %p2564 = pneg %p414
      $region98: #{evl_forward.11} parent=95 // pred_check_branch
        %2566 = sbr.rel (%p2564) target = $region100
      $region99: #{evl_forward.11} parent=95 // pred_region
        %p2567 = scmp.lt.s32.totalorder %s29, 7
        %s2568 = scalar_select %p2567, %s29, 7
        %s2569 = smul.addr %s2568, 8
        %s2570 = scalar_lea.vmem %s17, %s2569
      $region100: #{evl_forward.11} parent=95 // pred_fallthru
        _
    $region96: #{evl_forward.11} parent=5 // pred_fallthru
      _
  $region6: #{evl_forward.11} parent=0 // loop_footer
    %s27 = sadd.s32 1, %s23
  $region7: #{evl_forward.11} parent=0 // loop_footer_branch
    %22 = sbr.rel target = $region3
  $region8: #{evl_forward.11} parent=0 // loop_exit
    _

// kernel: evl_forward.17
$region0: #{evl_forward.17}
  #allocation0 [shape = 'u32[]', space=smem, size = 0x4, offset = 0x4, fixed_abs, tag = 'smem constant byte address 0x4 - core index']
  #allocation1 [shape = 'u32[144,128]{1,0:T(1,128)}', space=vmem, size = 0x12000, scoped, tag = 'internal scratch']
  %s0 = inlined_call_operand.vmem [shape: f32[2,1,128], index: 0, kind: input, shape index: {}]
  %s1 = inlined_call_operand.vmem [shape: f32[2,20,128], index: 1, kind: input, shape index: {}]
  %s2 = inlined_call_operand.vmem [shape: f32[1,128], index: 2, kind: input, shape index: {}]
  %s3 = inlined_call_operand.vmem [shape: f32[1,128], index: 3, kind: input, shape index: {}]
  %s4 = inlined_call_operand.vmem [shape: f32[1,128], index: 4, kind: input, shape index: {}]
  %s5 = inlined_call_operand.vmem [shape: f32[1,128], index: 5, kind: input, shape index: {}]
  %s6 = inlined_call_operand.vmem [shape: f32[4,128,32], index: 6, kind: input, shape index: {}]
  %s7 = inlined_call_operand.vmem [shape: f32[4,1,32], index: 7, kind: input, shape index: {}]
  %s8 = inlined_call_operand.vmem [shape: f32[4,128,32], index: 8, kind: input, shape index: {}]
  %s9 = inlined_call_operand.vmem [shape: f32[4,1,32], index: 9, kind: input, shape index: {}]
  %s10 = inlined_call_operand.vmem [shape: f32[4,128,32], index: 10, kind: input, shape index: {}]
  %s11 = inlined_call_operand.vmem [shape: f32[4,1,32], index: 11, kind: input, shape index: {}]
  %s12 = inlined_call_operand.vmem [shape: f32[4,32,128], index: 12, kind: input, shape index: {}]
  %s13 = inlined_call_operand.vmem [shape: f32[1,128], index: 13, kind: input, shape index: {}]
  %s14 = inlined_call_operand.vmem [shape: f32[1,128], index: 14, kind: input, shape index: {}]
  %s15 = inlined_call_operand.vmem [shape: f32[1,128], index: 15, kind: input, shape index: {}]
  %s16 = inlined_call_operand.vmem [shape: f32[128,512], index: 16, kind: input, shape index: {}]
  %s17 = inlined_call_operand.vmem [shape: f32[1,512], index: 17, kind: input, shape index: {}]
  %s18 = inlined_call_operand.vmem [shape: f32[512,128], index: 18, kind: input, shape index: {}]
  %s19 = inlined_call_operand.vmem [shape: f32[1,128], index: 19, kind: input, shape index: {}]
  %s20 = inlined_call_operand.vmem [shape: f32[2,1,128], index: 20, kind: output, shape index: {}]
  %s21 = sld [smem:[#allocation0]]
  $region113: #{evl_forward.17} parent=0
    _
  %s23 = ssub.s32 1, %s21
  %s24 = scalar_select 0, %s23, %s21
  loop: start=0, step=1, limit=4
  $region2: #{evl_forward.17} parent=0 // loop_pre_header
    _
  $region3: #{evl_forward.17} parent=0 // loop_header
    %s26 = sphi 0, %s30
    %p27 = scmp.ge.s32.totalorder %s26, 4
    %s36 = sphi 0, %s38
    %s39 = sphi 0, %s36
    %s40 = sphi 0, %s39
    %s56 = sphi 0, %s40
    %s62 = sphi 0, %s64
    %s65 = sphi 0, %s62
    %s66 = sphi 0, %s65
    %s82 = sphi 0, %s66
    %s86 = sphi 0, %s86
    %s88 = sphi 0, %s86
    %s89 = sphi 0, %s88
    %s103 = sphi 0, %s89
    %s107 = sphi 0, %s107
    %s109 = sphi 0, %s107
    %s110 = sphi 0, %s109
    %s124 = sphi 0, %s110
    %s128 = sphi 0, %s128
    %s130 = sphi 0, %s128
    %s131 = sphi 0, %s130
    %s145 = sphi 0, %s131
    %s149 = sphi 0, %s149
    %s151 = sphi 0, %s149
    %s152 = sphi 0, %s151
    %s166 = sphi 0, %s152
    %s170 = sphi 0, %s170
    %s172 = sphi 0, %s170
    %s173 = sphi 0, %s172
    %s187 = sphi 0, %s173
    %s191 = sphi 0, %s191
    %s193 = sphi 0, %s191
    %s194 = sphi 0, %s193
    %s208 = sphi 0, %s194
    %s212 = sphi 0, %s212
    %s214 = sphi 0, %s212
    %s215 = sphi 0, %s214
    %s229 = sphi 0, %s215
    %s233 = sphi 0, %s233
    %s235 = sphi 0, %s233
    %s236 = sphi 0, %s235
    %s250 = sphi 0, %s236
    %s254 = sphi 0, %s254
    %s256 = sphi 0, %s254
    %s257 = sphi 0, %s256
    %s271 = sphi 0, %s257
    %s275 = sphi 0, %s275
    %s277 = sphi 0, %s275
    %s278 = sphi 0, %s277
    %s292 = sphi 0, %s278
    %s296 = sphi 0, %s296
    %s298 = sphi 0, %s296
    %s299 = sphi 0, %s298
    %s313 = sphi 0, %s299
    %s317 = sphi 0, %s317
    %s319 = sphi 0, %s317
    %s320 = sphi 0, %s319
    %s334 = sphi 0, %s320
    %s338 = sphi 0, %s338
    %s340 = sphi 0, %s338
    %s341 = sphi 0, %s340
    %s355 = sphi 0, %s341
    %s359 = sphi 0, %s359
    %s361 = sphi 0, %s359
    %s362 = sphi 0, %s361
    %s376 = sphi 0, %s362
    %s380 = sphi 0, %s380
    %s382 = sphi 0, %s380
    %s383 = sphi 0, %s382
    %s397 = sphi 0, %s383
    %s401 = sphi 0, %s401
    %s403 = sphi 0, %s401
    %s404 = sphi 0, %s403
    %s418 = sphi 0, %s404
    %s422 = sphi 0, %s422
    %s424 = sphi 0, %s422
    %s425 = sphi 0, %s424
    %s439 = sphi 0, %s425
    %s443 = sphi 0, %s443
    %s445 = sphi 0, %s443
    %s446 = sphi 0, %s445
    %s460 = sphi 0, %s446
    %s466 = sphi 0, %s468
    %s469 = sphi 0, %s466
    %s470 = sphi 0, %s469
    %s486 = sphi 0, %s470
  $region4: #{evl_forward.17} parent=0 // loop_header_branch
    %29 = sbr.rel (%p27) target = $region8
  $region5: #{evl_forward.17} parent=0 // loop_body
    %s31 = ssub.s32 %s26, 1
    %s32 = ssub.s32 %s26, 2
    %s33 = sadd.s32 %s26, 1
    %s34 = ssub.s32 %s26, %s33
    %p35 = scmp.eq.s32.totalorder %s34, 0
    %s37 = sadd.s32 %s36, 1
    %s38 = scalar_select %p35, %s36, %s37
    %p41 = pneg %p35
    %p42 = scmp.eq.s32.totalorder %s26, 1
    %p43 = por %p41, %p42
    %p44 = scmp.ne.s32.totalorder %s36, %s39
    %p45 = scmp.eq.s32.totalorder %s26, 0
    %p46 = por %p44, %p45
    %p47 = scmp.ne.s32.totalorder %s36, %s39
    %p48 = scmp.eq.s32.totalorder %s31, 1
    %p49 = por %p47, %p48
    %p50 = scmp.ne.s32.totalorder %s39, %s40
    %p51 = scmp.eq.s32.totalorder %s31, 0
    %p52 = por %p50, %p51
    %p53 = scmp.ne.s32.totalorder %s39, %s40
    %p54 = scmp.eq.s32.totalorder %s32, 1
    %p55 = por %p53, %p54
    %p57 = scmp.ne.s32.totalorder %s40, %s56
    %p58 = scmp.eq.s32.totalorder %s32, 0
    %p59 = por %p57, %p58
    %s60 = ssub.s32 %s26, %s33
    %p61 = scmp.eq.s32.totalorder %s60, 0
    %s63 = sadd.s32 %s62, 1
    %s64 = scalar_select %p61, %s62, %s63
    %p67 = pneg %p61
    %p68 = scmp.eq.s32.totalorder %s26, 1
    %p69 = por %p67, %p68
    %p70 = scmp.ne.s32.totalorder %s62, %s65
    %p71 = scmp.eq.s32.totalorder %s26, 0
    %p72 = por %p70, %p71
    %p73 = scmp.ne.s32.totalorder %s62, %s65
    %p74 = scmp.eq.s32.totalorder %s31, 1
    %p75 = por %p73, %p74
    %p76 = scmp.ne.s32.totalorder %s65, %s66
    %p77 = scmp.eq.s32.totalorder %s31, 0
    %p78 = por %p76, %p77
    %p79 = scmp.ne.s32.totalorder %s65, %s66
    %p80 = scmp.eq.s32.totalorder %s32, 1
    %p81 = por %p79, %p80
    %p83 = scmp.ne.s32.totalorder %s66, %s82
    %p84 = scmp.eq.s32.totalorder %s32, 0
    %p85 = por %p83, %p84
    %s87 = sadd.s32 %s86, 1
    %p90 = scmp.eq.s32.totalorder %s26, 1
    %p91 = scmp.ne.s32.totalorder %s86, %s88
    %p92 = scmp.eq.s32.totalorder %s26, 0
    %p93 = por %p91, %p92
    %p94 = scmp.ne.s32.totalorder %s86, %s88
    %p95 = scmp.eq.s32.totalorder %s31, 1
    %p96 = por %p94, %p95
    %p97 = scmp.ne.s32.totalorder %s88, %s89
    %p98 = scmp.eq.s32.totalorder %s31, 0
    %p99 = por %p97, %p98
    %p100 = scmp.ne.s32.totalorder %s88, %s89
    %p101 = scmp.eq.s32.totalorder %s32, 1
    %p102 = por %p100, %p101
    %p104 = scmp.ne.s32.totalorder %s89, %s103
    %p105 = scmp.eq.s32.totalorder %s32, 0
    %p106 = por %p104, %p105
    %s108 = sadd.s32 %s107, 1
    %p111 = scmp.eq.s32.totalorder %s26, 1
    %p112 = scmp.ne.s32.totalorder %s107, %s109
    %p113 = scmp.eq.s32.totalorder %s26, 0
    %p114 = por %p112, %p113
    %p115 = scmp.ne.s32.totalorder %s107, %s109
    %p116 = scmp.eq.s32.totalorder %s31, 1
    %p117 = por %p115, %p116
    %p118 = scmp.ne.s32.totalorder %s109, %s110
    %p119 = scmp.eq.s32.totalorder %s31, 0
    %p120 = por %p118, %p119
    %p121 = scmp.ne.s32.totalorder %s109, %s110
    %p122 = scmp.eq.s32.totalorder %s32, 1
    %p123 = por %p121, %p122
    %p125 = scmp.ne.s32.totalorder %s110, %s124
    %p126 = scmp.eq.s32.totalorder %s32, 0
    %p127 = por %p125, %p126
    %s129 = sadd.s32 %s128, 1
    %p132 = scmp.eq.s32.totalorder %s26, 1
    %p133 = scmp.ne.s32.totalorder %s128, %s130
    %p134 = scmp.eq.s32.totalorder %s26, 0
    %p135 = por %p133, %p134
    %p136 = scmp.ne.s32.totalorder %s128, %s130
    %p137 = scmp.eq.s32.totalorder %s31, 1
    %p138 = por %p136, %p137
    %p139 = scmp.ne.s32.totalorder %s130, %s131
    %p140 = scmp.eq.s32.totalorder %s31, 0
    %p141 = por %p139, %p140
    %p142 = scmp.ne.s32.totalorder %s130, %s131
    %p143 = scmp.eq.s32.totalorder %s32, 1
    %p144 = por %p142, %p143
    %p146 = scmp.ne.s32.totalorder %s131, %s145
    %p147 = scmp.eq.s32.totalorder %s32, 0
    %p148 = por %p146, %p147
    %s150 = sadd.s32 %s149, 1
    %p153 = scmp.eq.s32.totalorder %s26, 1
    %p154 = scmp.ne.s32.totalorder %s149, %s151
    %p155 = scmp.eq.s32.totalorder %s26, 0
    %p156 = por %p154, %p155
    %p157 = scmp.ne.s32.totalorder %s149, %s151
    %p158 = scmp.eq.s32.totalorder %s31, 1
    %p159 = por %p157, %p158
    %p160 = scmp.ne.s32.totalorder %s151, %s152
    %p161 = scmp.eq.s32.totalorder %s31, 0
    %p162 = por %p160, %p161
    %p163 = scmp.ne.s32.totalorder %s151, %s152
    %p164 = scmp.eq.s32.totalorder %s32, 1
    %p165 = por %p163, %p164
    %p167 = scmp.ne.s32.totalorder %s152, %s166
    %p168 = scmp.eq.s32.totalorder %s32, 0
    %p169 = por %p167, %p168
    %s171 = sadd.s32 %s170, 1
    %p174 = scmp.eq.s32.totalorder %s26, 1
    %p175 = scmp.ne.s32.totalorder %s170, %s172
    %p176 = scmp.eq.s32.totalorder %s26, 0
    %p177 = por %p175, %p176
    %p178 = scmp.ne.s32.totalorder %s170, %s172
    %p179 = scmp.eq.s32.totalorder %s31, 1
    %p180 = por %p178, %p179
    %p181 = scmp.ne.s32.totalorder %s172, %s173
    %p182 = scmp.eq.s32.totalorder %s31, 0
    %p183 = por %p181, %p182
    %p184 = scmp.ne.s32.totalorder %s172, %s173
    %p185 = scmp.eq.s32.totalorder %s32, 1
    %p186 = por %p184, %p185
    %p188 = scmp.ne.s32.totalorder %s173, %s187
    %p189 = scmp.eq.s32.totalorder %s32, 0
    %p190 = por %p188, %p189
    %s192 = sadd.s32 %s191, 1
    %p195 = scmp.eq.s32.totalorder %s26, 1
    %p196 = scmp.ne.s32.totalorder %s191, %s193
    %p197 = scmp.eq.s32.totalorder %s26, 0
    %p198 = por %p196, %p197
    %p199 = scmp.ne.s32.totalorder %s191, %s193
    %p200 = scmp.eq.s32.totalorder %s31, 1
    %p201 = por %p199, %p200
    %p202 = scmp.ne.s32.totalorder %s193, %s194
    %p203 = scmp.eq.s32.totalorder %s31, 0
    %p204 = por %p202, %p203
    %p205 = scmp.ne.s32.totalorder %s193, %s194
    %p206 = scmp.eq.s32.totalorder %s32, 1
    %p207 = por %p205, %p206
    %p209 = scmp.ne.s32.totalorder %s194, %s208
    %p210 = scmp.eq.s32.totalorder %s32, 0
    %p211 = por %p209, %p210
    %s213 = sadd.s32 %s212, 1
    %p216 = scmp.eq.s32.totalorder %s26, 1
    %p217 = scmp.ne.s32.totalorder %s212, %s214
    %p218 = scmp.eq.s32.totalorder %s26, 0
    %p219 = por %p217, %p218
    %p220 = scmp.ne.s32.totalorder %s212, %s214
    %p221 = scmp.eq.s32.totalorder %s31, 1
    %p222 = por %p220, %p221
    %p223 = scmp.ne.s32.totalorder %s214, %s215
    %p224 = scmp.eq.s32.totalorder %s31, 0
    %p225 = por %p223, %p224
    %p226 = scmp.ne.s32.totalorder %s214, %s215
    %p227 = scmp.eq.s32.totalorder %s32, 1
    %p228 = por %p226, %p227
    %p230 = scmp.ne.s32.totalorder %s215, %s229
    %p231 = scmp.eq.s32.totalorder %s32, 0
    %p232 = por %p230, %p231
    %s234 = sadd.s32 %s233, 1
    %p237 = scmp.eq.s32.totalorder %s26, 1
    %p238 = scmp.ne.s32.totalorder %s233, %s235
    %p239 = scmp.eq.s32.totalorder %s26, 0
    %p240 = por %p238, %p239
    %p241 = scmp.ne.s32.totalorder %s233, %s235
    %p242 = scmp.eq.s32.totalorder %s31, 1
    %p243 = por %p241, %p242
    %p244 = scmp.ne.s32.totalorder %s235, %s236
    %p245 = scmp.eq.s32.totalorder %s31, 0
    %p246 = por %p244, %p245
    %p247 = scmp.ne.s32.totalorder %s235, %s236
    %p248 = scmp.eq.s32.totalorder %s32, 1
    %p249 = por %p247, %p248
    %p251 = scmp.ne.s32.totalorder %s236, %s250
    %p252 = scmp.eq.s32.totalorder %s32, 0
    %p253 = por %p251, %p252
    %s255 = sadd.s32 %s254, 1
    %p258 = scmp.eq.s32.totalorder %s26, 1
    %p259 = scmp.ne.s32.totalorder %s254, %s256
    %p260 = scmp.eq.s32.totalorder %s26, 0
    %p261 = por %p259, %p260
    %p262 = scmp.ne.s32.totalorder %s254, %s256
    %p263 = scmp.eq.s32.totalorder %s31, 1
    %p264 = por %p262, %p263
    %p265 = scmp.ne.s32.totalorder %s256, %s257
    %p266 = scmp.eq.s32.totalorder %s31, 0
    %p267 = por %p265, %p266
    %p268 = scmp.ne.s32.totalorder %s256, %s257
    %p269 = scmp.eq.s32.totalorder %s32, 1
    %p270 = por %p268, %p269
    %p272 = scmp.ne.s32.totalorder %s257, %s271
    %p273 = scmp.eq.s32.totalorder %s32, 0
    %p274 = por %p272, %p273
    %s276 = sadd.s32 %s275, 1
    %p279 = scmp.eq.s32.totalorder %s26, 1
    %p280 = scmp.ne.s32.totalorder %s275, %s277
    %p281 = scmp.eq.s32.totalorder %s26, 0
    %p282 = por %p280, %p281
    %p283 = scmp.ne.s32.totalorder %s275, %s277
    %p284 = scmp.eq.s32.totalorder %s31, 1
    %p285 = por %p283, %p284
    %p286 = scmp.ne.s32.totalorder %s277, %s278
    %p287 = scmp.eq.s32.totalorder %s31, 0
    %p288 = por %p286, %p287
    %p289 = scmp.ne.s32.totalorder %s277, %s278
    %p290 = scmp.eq.s32.totalorder %s32, 1
    %p291 = por %p289, %p290
    %p293 = scmp.ne.s32.totalorder %s278, %s292
    %p294 = scmp.eq.s32.totalorder %s32, 0
    %p295 = por %p293, %p294
    %s297 = sadd.s32 %s296, 1
    %p300 = scmp.eq.s32.totalorder %s26, 1
    %p301 = scmp.ne.s32.totalorder %s296, %s298
    %p302 = scmp.eq.s32.totalorder %s26, 0
    %p303 = por %p301, %p302
    %p304 = scmp.ne.s32.totalorder %s296, %s298
    %p305 = scmp.eq.s32.totalorder %s31, 1
    %p306 = por %p304, %p305
    %p307 = scmp.ne.s32.totalorder %s298, %s299
    %p308 = scmp.eq.s32.totalorder %s31, 0
    %p309 = por %p307, %p308
    %p310 = scmp.ne.s32.totalorder %s298, %s299
    %p311 = scmp.eq.s32.totalorder %s32, 1
    %p312 = por %p310, %p311
    %p314 = scmp.ne.s32.totalorder %s299, %s313
    %p315 = scmp.eq.s32.totalorder %s32, 0
    %p316 = por %p314, %p315
    %s318 = sadd.s32 %s317, 1
    %p321 = scmp.eq.s32.totalorder %s26, 1
    %p322 = scmp.ne.s32.totalorder %s317, %s319
    %p323 = scmp.eq.s32.totalorder %s26, 0
    %p324 = por %p322, %p323
    %p325 = scmp.ne.s32.totalorder %s317, %s319
    %p326 = scmp.eq.s32.totalorder %s31, 1
    %p327 = por %p325, %p326
    %p328 = scmp.ne.s32.totalorder %s319, %s320
    %p329 = scmp.eq.s32.totalorder %s31, 0
    %p330 = por %p328, %p329
    %p331 = scmp.ne.s32.totalorder %s319, %s320
    %p332 = scmp.eq.s32.totalorder %s32, 1
    %p333 = por %p331, %p332
    %p335 = scmp.ne.s32.totalorder %s320, %s334
    %p336 = scmp.eq.s32.totalorder %s32, 0
    %p337 = por %p335, %p336
    %s339 = sadd.s32 %s338, 1
    %p342 = scmp.eq.s32.totalorder %s26, 1
    %p343 = scmp.ne.s32.totalorder %s338, %s340
    %p344 = scmp.eq.s32.totalorder %s26, 0
    %p345 = por %p343, %p344
    %p346 = scmp.ne.s32.totalorder %s338, %s340
    %p347 = scmp.eq.s32.totalorder %s31, 1
    %p348 = por %p346, %p347
    %p349 = scmp.ne.s32.totalorder %s340, %s341
    %p350 = scmp.eq.s32.totalorder %s31, 0
    %p351 = por %p349, %p350
    %p352 = scmp.ne.s32.totalorder %s340, %s341
    %p353 = scmp.eq.s32.totalorder %s32, 1
    %p354 = por %p352, %p353
    %p356 = scmp.ne.s32.totalorder %s341, %s355
    %p357 = scmp.eq.s32.totalorder %s32, 0
    %p358 = por %p356, %p357
    %s360 = sadd.s32 %s359, 1
    %p363 = scmp.eq.s32.totalorder %s26, 1
    %p364 = scmp.ne.s32.totalorder %s359, %s361
    %p365 = scmp.eq.s32.totalorder %s26, 0
    %p366 = por %p364, %p365
    %p367 = scmp.ne.s32.totalorder %s359, %s361
    %p368 = scmp.eq.s32.totalorder %s31, 1
    %p369 = por %p367, %p368
    %p370 = scmp.ne.s32.totalorder %s361, %s362
    %p371 = scmp.eq.s32.totalorder %s31, 0
    %p372 = por %p370, %p371
    %p373 = scmp.ne.s32.totalorder %s361, %s362
    %p374 = scmp.eq.s32.totalorder %s32, 1
    %p375 = por %p373, %p374
    %p377 = scmp.ne.s32.totalorder %s362, %s376
    %p378 = scmp.eq.s32.totalorder %s32, 0
    %p379 = por %p377, %p378
    %s381 = sadd.s32 %s380, 1
    %p384 = scmp.eq.s32.totalorder %s26, 1
    %p385 = scmp.ne.s32.totalorder %s380, %s382
    %p386 = scmp.eq.s32.totalorder %s26, 0
    %p387 = por %p385, %p386
    %p388 = scmp.ne.s32.totalorder %s380, %s382
    %p389 = scmp.eq.s32.totalorder %s31, 1
    %p390 = por %p388, %p389
    %p391 = scmp.ne.s32.totalorder %s382, %s383
    %p392 = scmp.eq.s32.totalorder %s31, 0
    %p393 = por %p391, %p392
    %p394 = scmp.ne.s32.totalorder %s382, %s383
    %p395 = scmp.eq.s32.totalorder %s32, 1
    %p396 = por %p394, %p395
    %p398 = scmp.ne.s32.totalorder %s383, %s397
    %p399 = scmp.eq.s32.totalorder %s32, 0
    %p400 = por %p398, %p399
    %s402 = sadd.s32 %s401, 1
    %p405 = scmp.eq.s32.totalorder %s26, 1
    %p406 = scmp.ne.s32.totalorder %s401, %s403
    %p407 = scmp.eq.s32.totalorder %s26, 0
    %p408 = por %p406, %p407
    %p409 = scmp.ne.s32.totalorder %s401, %s403
    %p410 = scmp.eq.s32.totalorder %s31, 1
    %p411 = por %p409, %p410
    %p412 = scmp.ne.s32.totalorder %s403, %s404
    %p413 = scmp.eq.s32.totalorder %s31, 0
    %p414 = por %p412, %p413
    %p415 = scmp.ne.s32.totalorder %s403, %s404
    %p416 = scmp.eq.s32.totalorder %s32, 1
    %p417 = por %p415, %p416
    %p419 = scmp.ne.s32.totalorder %s404, %s418
    %p420 = scmp.eq.s32.totalorder %s32, 0
    %p421 = por %p419, %p420
    %s423 = sadd.s32 %s422, 1
    %p426 = scmp.eq.s32.totalorder %s26, 1
    %p427 = scmp.ne.s32.totalorder %s422, %s424
    %p428 = scmp.eq.s32.totalorder %s26, 0
    %p429 = por %p427, %p428
    %p430 = scmp.ne.s32.totalorder %s422, %s424
    %p431 = scmp.eq.s32.totalorder %s31, 1
    %p432 = por %p430, %p431
    %p433 = scmp.ne.s32.totalorder %s424, %s425
    %p434 = scmp.eq.s32.totalorder %s31, 0
    %p435 = por %p433, %p434
    %p436 = scmp.ne.s32.totalorder %s424, %s425
    %p437 = scmp.eq.s32.totalorder %s32, 1
    %p438 = por %p436, %p437
    %p440 = scmp.ne.s32.totalorder %s425, %s439
    %p441 = scmp.eq.s32.totalorder %s32, 0
    %p442 = por %p440, %p441
    %s444 = sadd.s32 %s443, 1
    %p447 = scmp.eq.s32.totalorder %s26, 1
    %p448 = scmp.ne.s32.totalorder %s443, %s445
    %p449 = scmp.eq.s32.totalorder %s26, 0
    %p450 = por %p448, %p449
    %p451 = scmp.ne.s32.totalorder %s443, %s445
    %p452 = scmp.eq.s32.totalorder %s31, 1
    %p453 = por %p451, %p452
    %p454 = scmp.ne.s32.totalorder %s445, %s446
    %p455 = scmp.eq.s32.totalorder %s31, 0
    %p456 = por %p454, %p455
    %p457 = scmp.ne.s32.totalorder %s445, %s446
    %p458 = scmp.eq.s32.totalorder %s32, 1
    %p459 = por %p457, %p458
    %p461 = scmp.ne.s32.totalorder %s446, %s460
    %p462 = scmp.eq.s32.totalorder %s32, 0
    %p463 = por %p461, %p462
    %s464 = ssub.s32 %s26, %s33
    %p465 = scmp.eq.s32.totalorder %s464, 0
    %s467 = sadd.s32 %s466, 1
    %s468 = scalar_select %p465, %s466, %s467
    %p471 = pneg %p465
    %p472 = scmp.eq.s32.totalorder %s26, 1
    %p473 = por %p471, %p472
    %p474 = scmp.ne.s32.totalorder %s466, %s469
    %p475 = scmp.eq.s32.totalorder %s26, 0
    %p476 = por %p474, %p475
    %p477 = scmp.ne.s32.totalorder %s466, %s469
    %p478 = scmp.eq.s32.totalorder %s31, 1
    %p479 = por %p477, %p478
    %p480 = scmp.ne.s32.totalorder %s469, %s470
    %p481 = scmp.eq.s32.totalorder %s31, 0
    %p482 = por %p480, %p481
    %p483 = scmp.ne.s32.totalorder %s469, %s470
    %p484 = scmp.eq.s32.totalorder %s32, 1
    %p485 = por %p483, %p484
    %p487 = scmp.ne.s32.totalorder %s470, %s486
    %p488 = scmp.eq.s32.totalorder %s32, 0
    %p489 = por %p487, %p488
    %p490 = scmp.le.s32.totalorder 1, %s26
    %p491 = scmp.lt.s32.totalorder %s26, 3
    %p492 = pnand %p490, %p491
    %p493 = pneg %p492
    // Predicated region
    $region9: #{evl_forward.17} parent=5 // pred_check
      _
    $region10: #{evl_forward.17} parent=5 // pred_check_branch
      %495 = sbr.rel (%p492) target = $region12
    $region11: #{evl_forward.17} parent=5 // pred_region
      %s496 = ssub.s32 %s26, 1
      // Predicated region
      $region13: #{evl_forward.17} parent=11 // pred_check
        %p497 = pneg %p99
      $region14: #{evl_forward.17} parent=11 // pred_check_branch
        %499 = sbr.rel (%p497) target = $region16
      $region15: #{evl_forward.17} parent=11 // pred_region
        _
      $region16: #{evl_forward.17} parent=11 // pred_fallthru
        _
      // Predicated region
      $region17: #{evl_forward.17} parent=11 // pred_check
        %p500 = pneg %p120
      $region18: #{evl_forward.17} parent=11 // pred_check_branch
        %502 = sbr.rel (%p500) target = $region20
      $region19: #{evl_forward.17} parent=11 // pred_region
        _
      $region20: #{evl_forward.17} parent=11 // pred_fallthru
        _
      // Predicated region
      $region21: #{evl_forward.17} parent=11 // pred_check
        %p503 = pneg %p141
      $region22: #{evl_forward.17} parent=11 // pred_check_branch
        %505 = sbr.rel (%p503) target = $region24
      $region23: #{evl_forward.17} parent=11 // pred_region
        _
      $region24: #{evl_forward.17} parent=11 // pred_fallthru
        _
      // Predicated region
      $region25: #{evl_forward.17} parent=11 // pred_check
        %p506 = pneg %p162
      $region26: #{evl_forward.17} parent=11 // pred_check_branch
        %508 = sbr.rel (%p506) target = $region28
      $region27: #{evl_forward.17} parent=11 // pred_region
        _
      $region28: #{evl_forward.17} parent=11 // pred_fallthru
        _
      // Predicated region
      $region29: #{evl_forward.17} parent=11 // pred_check
        %p509 = pneg %p183
      $region30: #{evl_forward.17} parent=11 // pred_check_branch
        %511 = sbr.rel (%p509) target = $region32
      $region31: #{evl_forward.17} parent=11 // pred_region
        _
      $region32: #{evl_forward.17} parent=11 // pred_fallthru
        _
      // Predicated region
      $region33: #{evl_forward.17} parent=11 // pred_check
        %p512 = pneg %p204
      $region34: #{evl_forward.17} parent=11 // pred_check_branch
        %514 = sbr.rel (%p512) target = $region36
      $region35: #{evl_forward.17} parent=11 // pred_region
        _
      $region36: #{evl_forward.17} parent=11 // pred_fallthru
        _
      // Predicated region
      $region37: #{evl_forward.17} parent=11 // pred_check
        %p515 = pneg %p225
      $region38: #{evl_forward.17} parent=11 // pred_check_branch
        %517 = sbr.rel (%p515) target = $region40
      $region39: #{evl_forward.17} parent=11 // pred_region
        _
      $region40: #{evl_forward.17} parent=11 // pred_fallthru
        _
      // Predicated region
      $region41: #{evl_forward.17} parent=11 // pred_check
        %p518 = pneg %p246
      $region42: #{evl_forward.17} parent=11 // pred_check_branch
        %520 = sbr.rel (%p518) target = $region44
      $region43: #{evl_forward.17} parent=11 // pred_region
        _
      $region44: #{evl_forward.17} parent=11 // pred_fallthru
        _
      // Predicated region
      $region45: #{evl_forward.17} parent=11 // pred_check
        %p521 = pneg %p267
      $region46: #{evl_forward.17} parent=11 // pred_check_branch
        %523 = sbr.rel (%p521) target = $region48
      $region47: #{evl_forward.17} parent=11 // pred_region
        _
      $region48: #{evl_forward.17} parent=11 // pred_fallthru
        _
      // Predicated region
      $region49: #{evl_forward.17} parent=11 // pred_check
        %p524 = pneg %p288
      $region50: #{evl_forward.17} parent=11 // pred_check_branch
        %526 = sbr.rel (%p524) target = $region52
      $region51: #{evl_forward.17} parent=11 // pred_region
        _
      $region52: #{evl_forward.17} parent=11 // pred_fallthru
        _
      // Predicated region
      $region53: #{evl_forward.17} parent=11 // pred_check
        %p527 = pneg %p309
      $region54: #{evl_forward.17} parent=11 // pred_check_branch
        %529 = sbr.rel (%p527) target = $region56
      $region55: #{evl_forward.17} parent=11 // pred_region
        _
      $region56: #{evl_forward.17} parent=11 // pred_fallthru
        _
      // Predicated region
      $region57: #{evl_forward.17} parent=11 // pred_check
        %p530 = pneg %p330
      $region58: #{evl_forward.17} parent=11 // pred_check_branch
        %532 = sbr.rel (%p530) target = $region60
      $region59: #{evl_forward.17} parent=11 // pred_region
        _
      $region60: #{evl_forward.17} parent=11 // pred_fallthru
        _
      // Predicated region
      $region61: #{evl_forward.17} parent=11 // pred_check
        %p533 = pneg %p351
      $region62: #{evl_forward.17} parent=11 // pred_check_branch
        %535 = sbr.rel (%p533) target = $region64
      $region63: #{evl_forward.17} parent=11 // pred_region
        _
      $region64: #{evl_forward.17} parent=11 // pred_fallthru
        _
      // Predicated region
      $region65: #{evl_forward.17} parent=11 // pred_check
        %p536 = pneg %p372
      $region66: #{evl_forward.17} parent=11 // pred_check_branch
        %538 = sbr.rel (%p536) target = $region68
      $region67: #{evl_forward.17} parent=11 // pred_region
        _
      $region68: #{evl_forward.17} parent=11 // pred_fallthru
        _
      // Predicated region
      $region69: #{evl_forward.17} parent=11 // pred_check
        %p539 = pneg %p393
      $region70: #{evl_forward.17} parent=11 // pred_check_branch
        %541 = sbr.rel (%p539) target = $region72
      $region71: #{evl_forward.17} parent=11 // pred_region
        _
      $region72: #{evl_forward.17} parent=11 // pred_fallthru
        _
      // Predicated region
      $region73: #{evl_forward.17} parent=11 // pred_check
        %p542 = pneg %p414
      $region74: #{evl_forward.17} parent=11 // pred_check_branch
        %544 = sbr.rel (%p542) target = $region76
      $region75: #{evl_forward.17} parent=11 // pred_region
        _
      $region76: #{evl_forward.17} parent=11 // pred_fallthru
        _
      // Predicated region
      $region77: #{evl_forward.17} parent=11 // pred_check
        %p545 = pneg %p435
      $region78: #{evl_forward.17} parent=11 // pred_check_branch
        %547 = sbr.rel (%p545) target = $region80
      $region79: #{evl_forward.17} parent=11 // pred_region
        _
      $region80: #{evl_forward.17} parent=11 // pred_fallthru
        _
      // Predicated region
      $region81: #{evl_forward.17} parent=11 // pred_check
        %p548 = pneg %p456
      $region82: #{evl_forward.17} parent=11 // pred_check_branch
        %550 = sbr.rel (%p548) target = $region84
      $region83: #{evl_forward.17} parent=11 // pred_region
        _
      $region84: #{evl_forward.17} parent=11 // pred_fallthru
        _
    $region12: #{evl_forward.17} parent=5 // pred_fallthru
      _
    %p551 = scmp.lt.s32.totalorder %s26, 2
    // Predicated region
    $region85: #{evl_forward.17} parent=5 // pred_check
      %p552 = pneg %p551
    $region86: #{evl_forward.17} parent=5 // pred_check_branch
      %554 = sbr.rel (%p552) target = $region88
    $region87: #{evl_forward.17} parent=5 // pred_region
      // Predicated region
      $region89: #{evl_forward.17} parent=87 // pred_check
        %p555 = pneg %p46
      $region90: #{evl_forward.17} parent=87 // pred_check_branch
        %557 = sbr.rel (%p555) target = $region92
      $region91: #{evl_forward.17} parent=87 // pred_region
        %p558 = scmp.lt.s32.totalorder %s26, 1
        %s559 = scalar_select %p558, %s26, 1
        %s560 = scalar_lea.vmem %s0, %s559
      $region92: #{evl_forward.17} parent=87 // pred_fallthru
        _
      // Predicated region
      $region93: #{evl_forward.17} parent=87 // pred_check
        %p561 = pneg %p72
      $region94: #{evl_forward.17} parent=87 // pred_check_branch
        %563 = sbr.rel (%p561) target = $region96
      $region95: #{evl_forward.17} parent=87 // pred_region
        %p564 = scmp.lt.s32.totalorder %s26, 1
        %s565 = scalar_select %p564, %s26, 1
        %s566 = smul.addr %s565, 3
        %s567 = smul.addr %s566, 8
        %s568 = scalar_lea.vmem %s1, %s567
      $region96: #{evl_forward.17} parent=87 // pred_fallthru
        _
    $region88: #{evl_forward.17} parent=5 // pred_fallthru
      _
    %p569 = scmp.le.s32.totalorder 1, %s26
    %p570 = scmp.lt.s32.totalorder %s26, 3
    %p571 = pnand %p569, %p570
    %p572 = pneg %p571
    // Predicated region
    $region97: #{evl_forward.17} parent=5 // pred_check
      _
    $region98: #{evl_forward.17} parent=5 // pred_check_branch
      %574 = sbr.rel (%p571) target = $region100
    $region99: #{evl_forward.17} parent=5 // pred_region
      %s575 = ssub.s32 %s26, 1
      %p576 = scmp.lt.s32.totalorder %s31, 1
      %s577 = scalar_select %p576, %s31, 1
      %s578 = scalar_lea.vmem %s0, %s577
      %p579 = pneg %p52
      %p580 = pneg %p49
      %p581 = scmp.lt.s32.totalorder %s31, 1
      %s582 = scalar_select %p581, %s31, 1
      %s583 = smul.addr %s582, 3
      %s584 = smul.addr %s583, 8
      %s585 = scalar_lea.vmem %s1, %s584
      %p586 = pneg %p78
      %p587 = pneg %p75
      %p588 = pneg %p99
      %p589 = pneg %p96
      %p590 = pneg %p120
      %p591 = pneg %p117
      %p592 = pneg %p141
      %p593 = pneg %p138
      %p594 = pneg %p162
      %p595 = pneg %p159
      %p596 = pneg %p183
      %p597 = pneg %p180
      %p598 = pneg %p204
      %p599 = pneg %p201
      %p600 = pneg %p225
      %p601 = pneg %p222
      %p602 = pneg %p246
      %p603 = pneg %p243
      %p604 = pneg %p267
      %p605 = pneg %p264
      %p606 = pneg %p288
      %p607 = pneg %p285
      %p608 = pneg %p309
      %p609 = pneg %p306
      %p610 = pneg %p330
      %p611 = pneg %p327
      %p612 = pneg %p351
      %p613 = pneg %p348
      %p614 = pneg %p372
      %p615 = pneg %p369
      %p616 = pneg %p393
      %p617 = pneg %p390
      %p618 = pneg %p414
      %p619 = pneg %p411
      %p620 = pneg %p435
      %p621 = pneg %p432
      %p622 = pneg %p456
      %p623 = pneg %p453
      %p624 = pneg %p482
      %p625 = pneg %p479
      %p626 = scmp.lt.s32.totalorder %s31, 1
      %s627 = scalar_select %p626, %s31, 1
      %s628 = scalar_lea.vmem %s20, %s627
      %p629 = scmp.lt.s32.totalorder %s31, 1
      %s630 = scalar_select %p629, %s31, 1
      %s631 = scalar_lea.vmem %s0, %s630
      %p632 = scmp.lt.s32.totalorder %s31, 1
      %s633 = scalar_select %p632, %s31, 1
      %s634 = smul.addr %s633, 3
      %s635 = smul.addr %s634, 8
      %s636 = scalar_lea.vmem %s1, %s635
      %p637 = scmp.lt.s32.totalorder %s31, 1
      %s638 = scalar_select %p637, %s31, 1
      %s639 = scalar_lea.vmem %s20, %s638
      %v641 = vld [vmem:[%s631] sm:$0x1]
      %v642 = vld [vmem:[%s636] sm:$0xff]
      %v643 = vld [vmem:[%s636 + $0x8] sm:$0xff]
      %v644 = vld [vmem:[%s636 + $0x10] sm:$0xf]
      %v645 = vld [vmem:[%s2] sm:$0x1]
      %v646 = vld [vmem:[%s3] sm:$0x1]
      %vm647 = vcmask 1040384
      %v648 = vsel %vm647, %v641, 0.0
      %649 = vadd.xlane.f32.xlu0 %v648
      %v650 = vpop.xlane.xlu0 %649
      %v651 = vrcp.pop 128.0
      %v652 = vmul.f32 %v650, %v651
      %v653 = vsub.f32 %v641, %v652
      %v654 = vmul.f32 %v653, %v653
      %v655 = vsel %vm647, %v654, 0.0
      %656 = vadd.xlane.f32.xlu0 %v655
      %v657 = vpop.xlane.xlu0 %656
      %v658 = vmul.f32 %v657, %v651
      %v659 = vadd.f32 %v658, 1e-05
      %v660 = vrsqrt.pop %v659
      %v661 = vmul.f32 %v653, %v660
      %v662 = vmul.f32 %v661, %v645
      %v663 = vadd.f32 %v662, %v646
      %v664 = vld [vmem:[%s4] sm:$0x1]
      %v665 = vld [vmem:[%s5] sm:$0x1]
      %666 = vadd.xlane.f32.xlu0 %v642
      %v667 = vpop.xlane.xlu0 %666
      %668 = vadd.xlane.f32.xlu0 %v643
      %v669 = vpop.xlane.xlu0 %668
      %vm670 = vcmask 1043456
      %v671 = vsel %vm670, %v644, 0.0
      %672 = vadd.xlane.f32.xlu0 %v671
      %v673 = vpop.xlane.xlu0 %672
      %v674 = vmul.f32 %v667, %v651
      %v675 = vmul.f32 %v669, %v651
      %v676 = vmul.f32 %v673, %v651
      %v677 = vsub.f32 %v642, %v674
      %v678 = vsub.f32 %v643, %v675
      %v679 = vsub.f32 %v644, %v676
      %v680 = vmul.f32 %v677, %v677
      %v681 = vmul.f32 %v678, %v678
      %v682 = vmul.f32 %v679, %v679
      %683 = vadd.xlane.f32.xlu0 %v680
      %v684 = vpop.xlane.xlu0 %683
      %685 = vadd.xlane.f32.xlu0 %v681
      %v686 = vpop.xlane.xlu0 %685
      %v687 = vsel %vm670, %v682, 0.0
      %688 = vadd.xlane.f32.xlu0 %v687
      %v689 = vpop.xlane.xlu0 %688
      %v690 = vmul.f32 %v684, %v651
      %v691 = vmul.f32 %v686, %v651
      %v692 = vmul.f32 %v689, %v651
      %v693 = vadd.f32 %v690, 1e-05
      %v694 = vadd.f32 %v691, 1e-05
      %v695 = vadd.f32 %v692, 1e-05
      %v696 = vrsqrt.pop %v693
      %v697 = vrsqrt.pop %v694
      %v698 = vrsqrt.pop %v695
      %v699 = vmul.f32 %v677, %v696
      %v700 = vmul.f32 %v678, %v697
      %v701 = vmul.f32 %v679, %v698
      %v703 = vlaneseq
      %v704 = vshrl.u32 %v703, 7
      %v705 = vsub.s32 0, %v704
      %v706 = vrot.slane %v664, %v705
      %v708 = vmul.f32 %v699, %v706
      %v709 = vmul.f32 %v700, %v706
      %v710 = vmul.f32 %v701, %v706
      %v712 = vlaneseq
      %v713 = vshrl.u32 %v712, 7
      %v714 = vsub.s32 0, %v713
      %v715 = vrot.slane %v665, %v714
      %v717 = vadd.f32 %v708, %v715
      %v718 = vadd.f32 %v709, %v715
      %v719 = vadd.f32 %v710, %v715
      %v720 = vld [vmem:[%s13] sm:$0x1]
      %v721 = vld [vmem:[%s6] sm:$0xff]
      %v722 = vld [vmem:[%s6 + $0x8] sm:$0xff]
      %v723 = vld [vmem:[%s6 + $0x10] sm:$0xff]
      %v724 = vld [vmem:[%s6 + $0x18] sm:$0xff]
      %v725 = vld [vmem:[%s6 + $0x20] sm:$0xff]
      %v726 = vld [vmem:[%s6 + $0x28] sm:$0xff]
      %v727 = vld [vmem:[%s6 + $0x30] sm:$0xff]
      %v728 = vld [vmem:[%s6 + $0x38] sm:$0xff]
      %v729 = vld [vmem:[%s6 + $0x40] sm:$0xff]
      %v730 = vld [vmem:[%s6 + $0x48] sm:$0xff]
      %v731 = vld [vmem:[%s6 + $0x50] sm:$0xff]
      %v732 = vld [vmem:[%s6 + $0x58] sm:$0xff]
      %v733 = vld [vmem:[%s6 + $0x60] sm:$0xff]
      %v734 = vld [vmem:[%s6 + $0x68] sm:$0xff]
      %v735 = vld [vmem:[%s6 + $0x70] sm:$0xff]
      %v736 = vld [vmem:[%s6 + $0x78] sm:$0xff]
      %v737 = vld [vmem:[%s7] sm:$0x1]
      %v738 = vpack.c.bf16 %v663, %v663
      %v739 = vpack.c.bf16 %v722, %v721
      %v740 = vpack.c.bf16 %v724, %v723
      %v741 = vpack.c.bf16 %v726, %v725
      %v742 = vpack.c.bf16 %v728, %v727
      %v743 = vpack.c.bf16 %v730, %v729
      %v744 = vpack.c.bf16 %v732, %v731
      %v745 = vpack.c.bf16 %v734, %v733
      %v746 = vpack.c.bf16 %v736, %v735
      %747 = vmatprep.subr.bf16.mxu0 0
      %748 = vmatpush1.bf16.msra.mxu0 %v739
      %749 = vmatprep.subr.bf16.mxu0 0
      %750 = vmatpush1.bf16.msra.mxu0 %v740
      %751 = vmatprep.subr.bf16.mxu0 0
      %752 = vmatpush1.bf16.msra.mxu0 %v741
      %753 = vmatprep.subr.bf16.mxu0 0
      %754 = vmatpush1.bf16.msra.mxu0 %v742
      %755 = vmatprep.subr.bf16.mxu0 0
      %756 = vmatpush1.bf16.msra.mxu0 %v743
      %757 = vmatprep.subr.bf16.mxu0 0
      %758 = vmatpush1.bf16.msra.mxu0 %v744
      %759 = vmatprep.subr.bf16.mxu0 0
      %760 = vmatpush1.bf16.msra.mxu0 %v745
      %761 = vmatprep.subr.bf16.mxu0 0
      %762 = vmatpush1.bf16.msra.mxu0 %v746
      %763 = vmatprep.subr.bf16.mxu0 0
      %764 = vmatpush1.bf16.msra.mxu0 0
      %765 = vmatprep.subr.bf16.mxu0 0
      %766 = vmatpush1.bf16.msra.mxu0 0
      %767 = vmatprep.subr.bf16.mxu0 0
      %768 = vmatpush1.bf16.msra.mxu0 0
      %769 = vmatprep.subr.bf16.mxu0 0
      %770 = vmatpush1.bf16.msra.mxu0 0
      %771 = vmatprep.subr.bf16.mxu0 0
      %772 = vmatpush1.bf16.msra.mxu0 0
      %773 = vmatprep.subr.bf16.mxu0 0
      %774 = vmatpush1.bf16.msra.mxu0 0
      %775 = vmatprep.subr.bf16.mxu0 0
      %776 = vmatpush1.bf16.msra.mxu0 0
      %777 = vmatprep.subr.bf16.mxu0 0
      %778 = vmatpush1.bf16.msra.mxu0 0
      %779 = vmatprep.mubr.bf16.mxu0 0
      %780 = vmatmul.mubr.bf16.gmra.mrb[0].mxu0 %v738
      %v781 = vpop.f32.mrb[0].mxu0
      %v782 = vadd.f32 %v737, %v781
      %v783 = vpop.f32.mrb[0].mxu0
      %v784 = vpop.f32.mrb[0].mxu0
      %v785 = vpop.f32.mrb[0].mxu0
      %786 = vdwg.mxu0
      %v787 = vmul.f32 %v782, 0.17677669
      %v788 = vld [vmem:[%s8] sm:$0xff]
      %v789 = vld [vmem:[%s8 + $0x8] sm:$0xff]
      %v790 = vld [vmem:[%s8 + $0x10] sm:$0xff]
      %v791 = vld [vmem:[%s8 + $0x18] sm:$0xff]
      %v792 = vld [vmem:[%s8 + $0x20] sm:$0xff]
      %v793 = vld [vmem:[%s8 + $0x28] sm:$0xff]
      %v794 = vld [vmem:[%s8 + $0x30] sm:$0xff]
      %v795 = vld [vmem:[%s8 + $0x38] sm:$0xff]
      %v796 = vld [vmem:[%s8 + $0x40] sm:$0xff]
      %v797 = vld [vmem:[%s8 + $0x48] sm:$0xff]
      %v798 = vld [vmem:[%s8 + $0x50] sm:$0xff]
      %v799 = vld [vmem:[%s8 + $0x58] sm:$0xff]
      %v800 = vld [vmem:[%s8 + $0x60] sm:$0xff]
      %v801 = vld [vmem:[%s8 + $0x68] sm:$0xff]
      %v802 = vld [vmem:[%s8 + $0x70] sm:$0xff]
      %v803 = vld [vmem:[%s8 + $0x78] sm:$0xff]
      %v804 = vld [vmem:[%s9] sm:$0x1]
      %v805 = vpack.c.bf16 %v718, %v717
      %v806 = vpack.c.bf16 %v719, %v719
      %v807 = vpack.c.bf16 %v789, %v788
      %v808 = vpack.c.bf16 %v791, %v790
      %v809 = vpack.c.bf16 %v793, %v792
      %v810 = vpack.c.bf16 %v795, %v794
      %v811 = vpack.c.bf16 %v797, %v796
      %v812 = vpack.c.bf16 %v799, %v798
      %v813 = vpack.c.bf16 %v801, %v800
      %v814 = vpack.c.bf16 %v803, %v802
      %v816 = vlaneseq
      %v817 = vshrl.u32 %v816, 7
      %v818 = vsub.s32 0, %v817
      %v819 = vrot.slane %v804, %v818
      %821 = vmatprep.subr.bf16.mxu0 0
      %822 = vmatpush1.bf16.msra.mxu0 %v807
      %823 = vmatprep.subr.bf16.mxu0 0
      %824 = vmatpush1.bf16.msra.mxu0 %v808
      %825 = vmatprep.subr.bf16.mxu0 0
      %826 = vmatpush1.bf16.msra.mxu0 %v809
      %827 = vmatprep.subr.bf16.mxu0 0
      %828 = vmatpush1.bf16.msra.mxu0 %v810
      %829 = vmatprep.subr.bf16.mxu0 0
      %830 = vmatpush1.bf16.msra.mxu0 %v811
      %831 = vmatprep.subr.bf16.mxu0 0
      %832 = vmatpush1.bf16.msra.mxu0 %v812
      %833 = vmatprep.subr.bf16.mxu0 0
      %834 = vmatpush1.bf16.msra.mxu0 %v813
      %835 = vmatprep.subr.bf16.mxu0 0
      %836 = vmatpush1.bf16.msra.mxu0 %v814
      %837 = vmatprep.subr.bf16.mxu0 0
      %838 = vmatpush1.bf16.msra.mxu0 0
      %839 = vmatprep.subr.bf16.mxu0 0
      %840 = vmatpush1.bf16.msra.mxu0 0
      %841 = vmatprep.subr.bf16.mxu0 0
      %842 = vmatpush1.bf16.msra.mxu0 0
      %843 = vmatprep.subr.bf16.mxu0 0
      %844 = vmatpush1.bf16.msra.mxu0 0
      %845 = vmatprep.subr.bf16.mxu0 0
      %846 = vmatpush1.bf16.msra.mxu0 0
      %847 = vmatprep.subr.bf16.mxu0 0
      %848 = vmatpush1.bf16.msra.mxu0 0
      %849 = vmatprep.subr.bf16.mxu0 0
      %850 = vmatpush1.bf16.msra.mxu0 0
      %851 = vmatprep.subr.bf16.mxu0 0
      %852 = vmatpush1.bf16.msra.mxu0 0
      %853 = vmatprep.mubr.bf16.mxu0 0
      %854 = vmatmul.mubr.bf16.gmra.mrb[0].mxu0 %v805
      %v855 = vpop.f32.mrb[0].mxu0
      %v856 = vadd.f32 %v819, %v855
      %v857 = vpop.f32.mrb[0].mxu0
      %v858 = vpop.f32.mrb[0].mxu0
      %v859 = vadd.f32 %v819, %v858
      %v860 = vpop.f32.mrb[0].mxu0
      %861 = vmatprep.mubr.bf16.mxu0 0
      %862 = vmatmul.mubr.bf16.gmra.mrb[0].mxu0 %v806
      %v863 = vpop.f32.mrb[0].mxu0
      %v864 = vadd.f32 %v819, %v863
      %v865 = vpop.f32.mrb[0].mxu0
      %v866 = vpop.f32.mrb[0].mxu0
      %v867 = vpop.f32.mrb[0].mxu0
      %868 = vdwg.mxu0
      %v869 = vld [vmem:[%s10] sm:$0xff]
      %v870 = vld [vmem:[%s10 + $0x8] sm:$0xff]
      %v871 = vld [vmem:[%s10 + $0x10] sm:$0xff]
      %v872 = vld [vmem:[%s10 + $0x18] sm:$0xff]
      %v873 = vld [vmem:[%s10 + $0x20] sm:$0xff]
      %v874 = vld [vmem:[%s10 + $0x28] sm:$0xff]
      %v875 = vld [vmem:[%s10 + $0x30] sm:$0xff]
      %v876 = vld [vmem:[%s10 + $0x38] sm:$0xff]
      %v877 = vld [vmem:[%s10 + $0x40] sm:$0xff]
      %v878 = vld [vmem:[%s10 + $0x48] sm:$0xff]
      %v879 = vld [vmem:[%s10 + $0x50] sm:$0xff]
      %v880 = vld [vmem:[%s10 + $0x58] sm:$0xff]
      %v881 = vld [vmem:[%s10 + $0x60] sm:$0xff]
      %v882 = vld [vmem:[%s10 + $0x68] sm:$0xff]
      %v883 = vld [vmem:[%s10 + $0x70] sm:$0xff]
      %v884 = vld [vmem:[%s10 + $0x78] sm:$0xff]
      %v885 = vld [vmem:[%s11] sm:$0x1]
      %v886 = vpack.c.bf16 %v870, %v869
      %v887 = vpack.c.bf16 %v872, %v871
      %v888 = vpack.c.bf16 %v874, %v873
      %v889 = vpack.c.bf16 %v876, %v875
      %v890 = vpack.c.bf16 %v878, %v877
      %v891 = vpack.c.bf16 %v880, %v879
      %v892 = vpack.c.bf16 %v882, %v881
      %v893 = vpack.c.bf16 %v884, %v883
      %v895 = vlaneseq
      %v896 = vshrl.u32 %v895, 7
      %v897 = vsub.s32 0, %v896
      %v898 = vrot.slane %v885, %v897
      %900 = vmatprep.subr.bf16.mxu0 0
      %901 = vmatpush1.bf16.msra.mxu0 %v886
      %902 = vmatprep.subr.bf16.mxu0 0
      %903 = vmatpush1.bf16.msra.mxu0 %v887
      %904 = vmatprep.subr.bf16.mxu0 0
      %905 = vmatpush1.bf16.msra.mxu0 %v888
      %906 = vmatprep.subr.bf16.mxu0 0
      %907 = vmatpush1.bf16.msra.mxu0 %v889
      %908 = vmatprep.subr.bf16.mxu0 0
      %909 = vmatpush1.bf16.msra.mxu0 %v890
      %910 = vmatprep.subr.bf16.mxu0 0
      %911 = vmatpush1.bf16.msra.mxu0 %v891
      %912 = vmatprep.subr.bf16.mxu0 0
      %913 = vmatpush1.bf16.msra.mxu0 %v892
      %914 = vmatprep.subr.bf16.mxu0 0
      %915 = vmatpush1.bf16.msra.mxu0 %v893
      %916 = vmatprep.subr.bf16.mxu0 0
      %917 = vmatpush1.bf16.msra.mxu0 0
      %918 = vmatprep.subr.bf16.mxu0 0
      %919 = vmatpush1.bf16.msra.mxu0 0
      %920 = vmatprep.subr.bf16.mxu0 0
      %921 = vmatpush1.bf16.msra.mxu0 0
      %922 = vmatprep.subr.bf16.mxu0 0
      %923 = vmatpush1.bf16.msra.mxu0 0
      %924 = vmatprep.subr.bf16.mxu0 0
      %925 = vmatpush1.bf16.msra.mxu0 0
      %926 = vmatprep.subr.bf16.mxu0 0
      %927 = vmatpush1.bf16.msra.mxu0 0
      %928 = vmatprep.subr.bf16.mxu0 0
      %929 = vmatpush1.bf16.msra.mxu0 0
      %930 = vmatprep.subr.bf16.mxu0 0
      %931 = vmatpush1.bf16.msra.mxu0 0
      %932 = vmatprep.mubr.bf16.mxu0 0
      %933 = vmatmul.mubr.bf16.gmra.mrb[0].mxu0 %v805
      %v934 = vpop.f32.mrb[0].mxu0
      %v935 = vadd.f32 %v898, %v934
      %v936 = vpop.f32.mrb[0].mxu0
      %v937 = vpop.f32.mrb[0].mxu0
      %v938 = vadd.f32 %v898, %v937
      %v939 = vpop.f32.mrb[0].mxu0
      %940 = vmatprep.mubr.bf16.mxu0 0
      %941 = vmatmul.mubr.bf16.gmra.mrb[0].mxu0 %v806
      %v942 = vpop.f32.mrb[0].mxu0
      %v943 = vadd.f32 %v898, %v942
      %v944 = vpop.f32.mrb[0].mxu0
      %v945 = vpop.f32.mrb[0].mxu0
      %v946 = vpop.f32.mrb[0].mxu0
      %947 = vdwg.mxu0
      %v948 = vpack.c.bf16 %v787, %v787
      %v949 = vpack.c.bf16 %v859, %v856
      %v950 = vpack.c.bf16 %v864, %v864
      %vm951 = vcmask 261120
      %v953 = vsel %vm951, %v948, 0
      %v956 = vsel %vm951, %v949, 0
      %v959 = vsel %vm951, %v950, 0
      %961 = vmatprep.subr.bf16.mxu0 0
      %962 = vmatpush1.bf16.xpose.msra.mxu0 %v956
      %963 = vmatprep.subr.bf16.mxu0 0
      %964 = vmatpush1.bf16.xpose.msra.mxu0 %v959
      %965 = vmatprep.subr.bf16.mxu0 0
      %966 = vmatpush1.bf16.xpose.msra.mxu0 0
      %967 = vmatprep.subr.bf16.mxu0 0
      %968 = vmatpush1.bf16.xpose.msra.mxu0 0
      %969 = vmatprep.subr.bf16.mxu0 0
      %970 = vmatpush1.bf16.xpose.msra.mxu0 0
      %971 = vmatprep.subr.bf16.mxu0 0
      %972 = vmatpush1.bf16.xpose.msra.mxu0 0
      %973 = vmatprep.subr.bf16.mxu0 0
      %974 = vmatpush1.bf16.xpose.msra.mxu0 0
      %975 = vmatprep.subr.bf16.mxu0 0
      %976 = vmatpush1.bf16.xpose.msra.mxu0 0
      %977 = vmatprep.subr.bf16.mxu0 0
      %978 = vmatpush1.bf16.xpose.msra.mxu0 0
      %979 = vmatprep.subr.bf16.mxu0 0
      %980 = vmatpush1.bf16.xpose.msra.mxu0 0
      %981 = vmatprep.subr.bf16.mxu0 0
      %982 = vmatpush1.bf16.xpose.msra.mxu0 0
      %983 = vmatprep.subr.bf16.mxu0 0
      %984 = vmatpush1.bf16.xpose.msra.mxu0 0
      %985 = vmatprep.subr.bf16.mxu0 0
      %986 = vmatpush1.bf16.xpose.msra.mxu0 0
      %987 = vmatprep.subr.bf16.mxu0 0
      %988 = vmatpush1.bf16.xpose.msra.mxu0 0
      %989 = vmatprep.subr.bf16.mxu0 0
      %990 = vmatpush1.bf16.xpose.msra.mxu0 0
      %991 = vmatprep.subr.bf16.mxu0 0
      %992 = vmatpush1.bf16.xpose.msra.mxu0 0
      %993 = vmatprep.mubr.bf16.mxu0 0
      %994 = vmatmul.mubr.bf16.gmra.mrb[0].mxu0 %v953
      %v995 = vpop.f32.mrb[0].mxu0
      %v996 = vadd.f32 0.0, %v995
      %v997 = vpop.f32.mrb[0].mxu0
      %v998 = vpop.f32.mrb[0].mxu0
      %v999 = vpop.f32.mrb[0].mxu0
      %1000 = vdwg.mxu0
      %vm1001 = vcmask 155648
      %v1002 = vsel %vm1001, %v996, -inf
      %1003 = vmax.xlane.f32.xlu0 %v1002
      %v1004 = vpop.xlane.xlu0 %1003
      %v1005 = vsub.f32 %v996, %v1004
      %v1006 = vmul.f32 %v1005, 1.442695
      %v1007 = vpow.pop %v1006
      %v1008 = vsel %vm1001, %v1007, 0.0
      %1009 = vadd.xlane.f32.xlu0 %v1008
      %v1010 = vpop.xlane.xlu0 %1009
      %v1011 = vrcp.pop %v1010
      %v1012 = vmul.f32 %v1007, %v1011
      %v1013 = vpack.c.bf16 %v1012, %v1012
      %v1014 = vpack.c.bf16 %v938, %v935
      %v1015 = vpack.c.bf16 %v943, %v943
      %vm1016 = vcmask 162816
      %v1018 = vsel %vm1016, %v1013, 0
      %vm1020 = vcmask 1041408
      %v1022 = vsel %vm1020, %v1015, 0
      %1024 = vmatprep.subr.bf16.mxu0 0
      %1025 = vmatpush1.bf16.msra.mxu0 %v1014
      %1026 = vmatprep.subr.bf16.mxu0 0
      %1027 = vmatpush1.bf16.msra.mxu0 %v1022
      %1028 = vmatprep.subr.bf16.mxu0 0
      %1029 = vmatpush1.bf16.msra.mxu0 0
      %1030 = vmatprep.subr.bf16.mxu0 0
      %1031 = vmatpush1.bf16.msra.mxu0 0
      %1032 = vmatprep.subr.bf16.mxu0 0
      %1033 = vmatpush1.bf16.msra.mxu0 0
      %1034 = vmatprep.subr.bf16.mxu0 0
      %1035 = vmatpush1.bf16.msra.mxu0 0
      %1036 = vmatprep.subr.bf16.mxu0 0
      %1037 = vmatpush1.bf16.msra.mxu0 0
      %1038 = vmatprep.subr.bf16.mxu0 0
      %1039 = vmatpush1.bf16.msra.mxu0 0
      %1040 = vmatprep.subr.bf16.mxu0 0
      %1041 = vmatpush1.bf16.msra.mxu0 0
      %1042 = vmatprep.subr.bf16.mxu0 0
      %1043 = vmatpush1.bf16.msra.mxu0 0
      %1044 = vmatprep.subr.bf16.mxu0 0
      %1045 = vmatpush1.bf16.msra.mxu0 0
      %1046 = vmatprep.subr.bf16.mxu0 0
      %1047 = vmatpush1.bf16.msra.mxu0 0
      %1048 = vmatprep.subr.bf16.mxu0 0
      %1049 = vmatpush1.bf16.msra.mxu0 0
      %1050 = vmatprep.subr.bf16.mxu0 0
      %1051 = vmatpush1.bf16.msra.mxu0 0
      %1052 = vmatprep.subr.bf16.mxu0 0
      %1053 = vmatpush1.bf16.msra.mxu0 0
      %1054 = vmatprep.subr.bf16.mxu0 0
      %1055 = vmatpush1.bf16.msra.mxu0 0
      %1056 = vmatprep.mubr.bf16.mxu0 0
      %1057 = vmatmul.mubr.bf16.gmra.mrb[0].mxu0 %v1018
      %v1058 = vpop.f32.mrb[0].mxu0
      %v1059 = vadd.f32 0.0, %v1058
      %v1060 = vpop.f32.mrb[0].mxu0
      %v1061 = vpop.f32.mrb[0].mxu0
      %v1062 = vpop.f32.mrb[0].mxu0
      %1063 = vdwg.mxu0
      %v1064 = vld [vmem:[%s12] sm:$0xff]
      %v1065 = vld [vmem:[%s12 + $0x8] sm:$0xff]
      %v1066 = vld [vmem:[%s12 + $0x10] sm:$0xff]
      %v1067 = vld [vmem:[%s12 + $0x18] sm:$0xff]
      %v1068 = vpack.c.bf16 %v1059, %v1059
      %v1069 = vpack.c.bf16 %v1065, %v1064
      %v1070 = vpack.c.bf16 %v1067, %v1066
      %s1071 = scalar_lea.vmem %s6, 128
      %v1072 = vld [vmem:[%s1071] sm:$0xff]
      %v1073 = vld [vmem:[%s1071 + $0x8] sm:$0xff]
      %v1074 = vld [vmem:[%s1071 + $0x10] sm:$0xff]
      %v1075 = vld [vmem:[%s1071 + $0x18] sm:$0xff]
      %v1076 = vld [vmem:[%s1071 + $0x20] sm:$0xff]
      %v1077 = vld [vmem:[%s1071 + $0x28] sm:$0xff]
      %v1078 = vld [vmem:[%s1071 + $0x30] sm:$0xff]
      %v1079 = vld [vmem:[%s1071 + $0x38] sm:$0xff]
      %v1080 = vld [vmem:[%s1071 + $0x40] sm:$0xff]
      %v1081 = vld [vmem:[%s1071 + $0x48] sm:$0xff]
      %v1082 = vld [vmem:[%s1071 + $0x50] sm:$0xff]
      %v1083 = vld [vmem:[%s1071 + $0x58] sm:$0xff]
      %v1084 = vld [vmem:[%s1071 + $0x60] sm:$0xff]
      %v1085 = vld [vmem:[%s1071 + $0x68] sm:$0xff]
      %v1086 = vld [vmem:[%s1071 + $0x70] sm:$0xff]
      %v1087 = vld [vmem:[%s1071 + $0x78] sm:$0xff]
      %s1088 = scalar_lea.vmem %s7, 1
      %v1089 = vld [vmem:[%s1088] sm:$0x1]
      %v1090 = vpack.c.bf16 %v1073, %v1072
      %v1091 = vpack.c.bf16 %v1075, %v1074
      %v1092 = vpack.c.bf16 %v1077, %v1076
      %v1093 = vpack.c.bf16 %v1079, %v1078
      %v1094 = vpack.c.bf16 %v1081, %v1080
      %v1095 = vpack.c.bf16 %v1083, %v1082
      %v1096 = vpack.c.bf16 %v1085, %v1084
      %v1097 = vpack.c.bf16 %v1087, %v1086
      %1098 = vmatprep.subr.bf16.mxu0 0
      %1099 = vmatpush1.bf16.msra.mxu0 %v1090
      %1100 = vmatprep.subr.bf16.mxu0 0
      %1101 = vmatpush1.bf16.msra.mxu0 %v1091
      %1102 = vmatprep.subr.bf16.mxu0 0
      %1103 = vmatpush1.bf16.msra.mxu0 %v1092
      %1104 = vmatprep.subr.bf16.mxu0 0
      %1105 = vmatpush1.bf16.msra.mxu0 %v1093
      %1106 = vmatprep.subr.bf16.mxu0 0
      %1107 = vmatpush1.bf16.msra.mxu0 %v1094
      %1108 = vmatprep.subr.bf16.mxu0 0
      %1109 = vmatpush1.bf16.msra.mxu0 %v1095
      %1110 = vmatprep.subr.bf16.mxu0 0
      %1111 = vmatpush1.bf16.msra.mxu0 %v1096
      %1112 = vmatprep.subr.bf16.mxu0 0
      %1113 = vmatpush1.bf16.msra.mxu0 %v1097
      %1114 = vmatprep.subr.bf16.mxu0 0
      %1115 = vmatpush1.bf16.msra.mxu0 0
      %1116 = vmatprep.subr.bf16.mxu0 0
      %1117 = vmatpush1.bf16.msra.mxu0 0
      %1118 = vmatprep.subr.bf16.mxu0 0
      %1119 = vmatpush1.bf16.msra.mxu0 0
      %1120 = vmatprep.subr.bf16.mxu0 0
      %1121 = vmatpush1.bf16.msra.mxu0 0
      %1122 = vmatprep.subr.bf16.mxu0 0
      %1123 = vmatpush1.bf16.msra.mxu0 0
      %1124 = vmatprep.subr.bf16.mxu0 0
      %1125 = vmatpush1.bf16.msra.mxu0 0
      %1126 = vmatprep.subr.bf16.mxu0 0
      %1127 = vmatpush1.bf16.msra.mxu0 0
      %1128 = vmatprep.subr.bf16.mxu0 0
      %1129 = vmatpush1.bf16.msra.mxu0 0
      %1130 = vmatprep.mubr.bf16.mxu0 0
      %1131 = vmatmul.mubr.bf16.gmra.mrb[0].mxu0 %v738
      %v1132 = vpop.f32.mrb[0].mxu0
      %v1133 = vadd.f32 %v1089, %v1132
      %v1134 = vpop.f32.mrb[0].mxu0
      %v1135 = vpop.f32.mrb[0].mxu0
      %v1136 = vpop.f32.mrb[0].mxu0
      %1137 = vdwg.mxu0
      %v1138 = vmul.f32 %v1133, 0.17677669
      %s1139 = scalar_lea.vmem %s8, 128
      %v1140 = vld [vmem:[%s1139] sm:$0xff]
      %v1141 = vld [vmem:[%s1139 + $0x8] sm:$0xff]
      %v1142 = vld [vmem:[%s1139 + $0x10] sm:$0xff]
      %v1143 = vld [vmem:[%s1139 + $0x18] sm:$0xff]
      %v1144 = vld [vmem:[%s1139 + $0x20] sm:$0xff]
      %v1145 = vld [vmem:[%s1139 + $0x28] sm:$0xff]
      %v1146 = vld [vmem:[%s1139 + $0x30] sm:$0xff]
      %v1147 = vld [vmem:[%s1139 + $0x38] sm:$0xff]
      %v1148 = vld [vmem:[%s1139 + $0x40] sm:$0xff]
      %v1149 = vld [vmem:[%s1139 + $0x48] sm:$0xff]
      %v1150 = vld [vmem:[%s1139 + $0x50] sm:$0xff]
      %v1151 = vld [vmem:[%s1139 + $0x58] sm:$0xff]
      %v1152 = vld [vmem:[%s1139 + $0x60] sm:$0xff]
      %v1153 = vld [vmem:[%s1139 + $0x68] sm:$0xff]
      %v1154 = vld [vmem:[%s1139 + $0x70] sm:$0xff]
      %v1155 = vld [vmem:[%s1139 + $0x78] sm:$0xff]
      %s1156 = scalar_lea.vmem %s9, 1
      %v1157 = vld [vmem:[%s1156] sm:$0x1]
      %v1158 = vpack.c.bf16 %v1141, %v1140
      %v1159 = vpack.c.bf16 %v1143, %v1142
      %v1160 = vpack.c.bf16 %v1145, %v1144
      %v1161 = vpack.c.bf16 %v1147, %v1146
      %v1162 = vpack.c.bf16 %v1149, %v1148
      %v1163 = vpack.c.bf16 %v1151, %v1150
      %v1164 = vpack.c.bf16 %v1153, %v1152
      %v1165 = vpack.c.bf16 %v1155, %v1154
      %v1167 = vlaneseq
      %v1168 = vshrl.u32 %v1167, 7
      %v1169 = vsub.s32 0, %v1168
      %v1170 = vrot.slane %v1157, %v1169
      %1172 = vmatprep.subr.bf16.mxu0 0
      %1173 = vmatpush1.bf16.msra.mxu0 %v1158
      %1174 = vmatprep.subr.bf16.mxu0 0
      %1175 = vmatpush1.bf16.msra.mxu0 %v1159
      %1176 = vmatprep.subr.bf16.mxu0 0
      %1177 = vmatpush1.bf16.msra.mxu0 %v1160
      %1178 = vmatprep.subr.bf16.mxu0 0
      %1179 = vmatpush1.bf16.msra.mxu0 %v1161
      %1180 = vmatprep.subr.bf16.mxu0 0
      %1181 = vmatpush1.bf16.msra.mxu0 %v1162
      %1182 = vmatprep.subr.bf16.mxu0 0
      %1183 = vmatpush1.bf16.msra.mxu0 %v1163
      %1184 = vmatprep.subr.bf16.mxu0 0
      %1185 = vmatpush1.bf16.msra.mxu0 %v1164
      %1186 = vmatprep.subr.bf16.mxu0 0
      %1187 = vmatpush1.bf16.msra.mxu0 %v1165
      %1188 = vmatprep.subr.bf16.mxu0 0
      %1189 = vmatpush1.bf16.msra.mxu0 0
      %1190 = vmatprep.subr.bf16.mxu0 0
      %1191 = vmatpush1.bf16.msra.mxu0 0
      %1192 = vmatprep.subr.bf16.mxu0 0
      %1193 = vmatpush1.bf16.msra.mxu0 0
      %1194 = vmatprep.subr.bf16.mxu0 0
      %1195 = vmatpush1.bf16.msra.mxu0 0
      %1196 = vmatprep.subr.bf16.mxu0 0
      %1197 = vmatpush1.bf16.msra.mxu0 0
      %1198 = vmatprep.subr.bf16.mxu0 0
      %1199 = vmatpush1.bf16.msra.mxu0 0
      %1200 = vmatprep.subr.bf16.mxu0 0
      %1201 = vmatpush1.bf16.msra.mxu0 0
      %1202 = vmatprep.subr.bf16.mxu0 0
      %1203 = vmatpush1.bf16.msra.mxu0 0
      %1204 = vmatprep.mubr.bf16.mxu0 0
      %1205 = vmatmul.mubr.bf16.gmra.mrb[0].mxu0 %v805
      %v1206 = vpop.f32.mrb[0].mxu0
      %v1207 = vadd.f32 %v1170, %v1206
      %v1208 = vpop.f32.mrb[0].mxu0
      %v1209 = vpop.f32.mrb[0].mxu0
      %v1210 = vadd.f32 %v1170, %v1209
      %v1211 = vpop.f32.mrb[0].mxu0
      %1212 = vmatprep.mubr.bf16.mxu0 0
      %1213 = vmatmul.mubr.bf16.gmra.mrb[0].mxu0 %v806
      %v1214 = vpop.f32.mrb[0].mxu0
      %v1215 = vadd.f32 %v1170, %v1214
      %v1216 = vpop.f32.mrb[0].mxu0
      %v1217 = vpop.f32.mrb[0].mxu0
      %v1218 = vpop.f32.mrb[0].mxu0
      %1219 = vdwg.mxu0
      %s1220 = scalar_lea.vmem %s10, 128
      %v1221 = vld [vmem:[%s1220] sm:$0xff]
      %v1222 = vld [vmem:[%s1220 + $0x8] sm:$0xff]
      %v1223 = vld [vmem:[%s1220 + $0x10] sm:$0xff]
      %v1224 = vld [vmem:[%s1220 + $0x18] sm:$0xff]
      %v1225 = vld [vmem:[%s1220 + $0x20] sm:$0xff]
      %v1226 = vld [vmem:[%s1220 + $0x28] sm:$0xff]
      %v1227 = vld [vmem:[%s1220 + $0x30] sm:$0xff]
      %v1228 = vld [vmem:[%s1220 + $0x38] sm:$0xff]
      %v1229 = vld [vmem:[%s1220 + $0x40] sm:$0xff]
      %v1230 = vld [vmem:[%s1220 + $0x48] sm:$0xff]
      %v1231 = vld [vmem:[%s1220 + $0x50] sm:$0xff]
      %v1232 = vld [vmem:[%s1220 + $0x58] sm:$0xff]
      %v1233 = vld [vmem:[%s1220 + $0x60] sm:$0xff]
      %v1234 = vld [vmem:[%s1220 + $0x68] sm:$0xff]
      %v1235 = vld [vmem:[%s1220 + $0x70] sm:$0xff]
      %v1236 = vld [vmem:[%s1220 + $0x78] sm:$0xff]
      %s1237 = scalar_lea.vmem %s11, 1
      %v1238 = vld [vmem:[%s1237] sm:$0x1]
      %v1239 = vpack.c.bf16 %v1222, %v1221
      %v1240 = vpack.c.bf16 %v1224, %v1223
      %v1241 = vpack.c.bf16 %v1226, %v1225
      %v1242 = vpack.c.bf16 %v1228, %v1227
      %v1243 = vpack.c.bf16 %v1230, %v1229
      %v1244 = vpack.c.bf16 %v1232, %v1231
      %v1245 = vpack.c.bf16 %v1234, %v1233
      %v1246 = vpack.c.bf16 %v1236, %v1235
      %v1248 = vlaneseq
      %v1249 = vshrl.u32 %v1248, 7
      %v1250 = vsub.s32 0, %v1249
      %v1251 = vrot.slane %v1238, %v1250
      %1253 = vmatprep.subr.bf16.mxu0 0
      %1254 = vmatpush1.bf16.msra.mxu0 %v1239
      %1255 = vmatprep.subr.bf16.mxu0 0
      %1256 = vmatpush1.bf16.msra.mxu0 %v1240
      %1257 = vmatprep.subr.bf16.mxu0 0
      %1258 = vmatpush1.bf16.msra.mxu0 %v1241
      %1259 = vmatprep.subr.bf16.mxu0 0
      %1260 = vmatpush1.bf16.msra.mxu0 %v1242
      %1261 = vmatprep.subr.bf16.mxu0 0
      %1262 = vmatpush1.bf16.msra.mxu0 %v1243
      %1263 = vmatprep.subr.bf16.mxu0 0
      %1264 = vmatpush1.bf16.msra.mxu0 %v1244
      %1265 = vmatprep.subr.bf16.mxu0 0
      %1266 = vmatpush1.bf16.msra.mxu0 %v1245
      %1267 = vmatprep.subr.bf16.mxu0 0
      %1268 = vmatpush1.bf16.msra.mxu0 %v1246
      %1269 = vmatprep.subr.bf16.mxu0 0
      %1270 = vmatpush1.bf16.msra.mxu0 0
      %1271 = vmatprep.subr.bf16.mxu0 0
      %1272 = vmatpush1.bf16.msra.mxu0 0
      %1273 = vmatprep.subr.bf16.mxu0 0
      %1274 = vmatpush1.bf16.msra.mxu0 0
      %1275 = vmatprep.subr.bf16.mxu0 0
      %1276 = vmatpush1.bf16.msra.mxu0 0
      %1277 = vmatprep.subr.bf16.mxu0 0
      %1278 = vmatpush1.bf16.msra.mxu0 0
      %1279 = vmatprep.subr.bf16.mxu0 0
      %1280 = vmatpush1.bf16.msra.mxu0 0
      %1281 = vmatprep.subr.bf16.mxu0 0
      %1282 = vmatpush1.bf16.msra.mxu0 0
      %1283 = vmatprep.subr.bf16.mxu0 0
      %1284 = vmatpush1.bf16.msra.mxu0 0
      %1285 = vmatprep.mubr.bf16.mxu0 0
      %1286 = vmatmul.mubr.bf16.gmra.mrb[0].mxu0 %v805
      %v1287 = vpop.f32.mrb[0].mxu0
      %v1288 = vadd.f32 %v1251, %v1287
      %v1289 = vpop.f32.mrb[0].mxu0
      %v1290 = vpop.f32.mrb[0].mxu0
      %v1291 = vadd.f32 %v1251, %v1290
      %v1292 = vpop.f32.mrb[0].mxu0
      %1293 = vmatprep.mubr.bf16.mxu0 0
      %1294 = vmatmul.mubr.bf16.gmra.mrb[0].mxu0 %v806
      %v1295 = vpop.f32.mrb[0].mxu0
      %v1296 = vadd.f32 %v1251, %v1295
      %v1297 = vpop.f32.mrb[0].mxu0
      %v1298 = vpop.f32.mrb[0].mxu0
      %v1299 = vpop.f32.mrb[0].mxu0
      %1300 = vdwg.mxu0
      %v1301 = vpack.c.bf16 %v1138, %v1138
      %v1302 = vpack.c.bf16 %v1210, %v1207
      %v1303 = vpack.c.bf16 %v1215, %v1215
      %v1305 = vsel %vm951, %v1301, 0
      %v1308 = vsel %vm951, %v1302, 0
      %v1311 = vsel %vm951, %v1303, 0
      %1313 = vmatprep.subr.bf16.mxu0 0
      %1314 = vmatpush1.bf16.xpose.msra.mxu0 %v1308
      %1315 = vmatprep.subr.bf16.mxu0 0
      %1316 = vmatpush1.bf16.xpose.msra.mxu0 %v1311
      %1317 = vmatprep.subr.bf16.mxu0 0
      %1318 = vmatpush1.bf16.xpose.msra.mxu0 0
      %1319 = vmatprep.subr.bf16.mxu0 0
      %1320 = vmatpush1.bf16.xpose.msra.mxu0 0
      %1321 = vmatprep.subr.bf16.mxu0 0
      %1322 = vmatpush1.bf16.xpose.msra.mxu0 0
      %1323 = vmatprep.subr.bf16.mxu0 0
      %1324 = vmatpush1.bf16.xpose.msra.mxu0 0
      %1325 = vmatprep.subr.bf16.mxu0 0
      %1326 = vmatpush1.bf16.xpose.msra.mxu0 0
      %1327 = vmatprep.subr.bf16.mxu0 0
      %1328 = vmatpush1.bf16.xpose.msra.mxu0 0
      %1329 = vmatprep.subr.bf16.mxu0 0
      %1330 = vmatpush1.bf16.xpose.msra.mxu0 0
      %1331 = vmatprep.subr.bf16.mxu0 0
      %1332 = vmatpush1.bf16.xpose.msra.mxu0 0
      %1333 = vmatprep.subr.bf16.mxu0 0
      %1334 = vmatpush1.bf16.xpose.msra.mxu0 0
      %1335 = vmatprep.subr.bf16.mxu0 0
      %1336 = vmatpush1.bf16.xpose.msra.mxu0 0
      %1337 = vmatprep.subr.bf16.mxu0 0
      %1338 = vmatpush1.bf16.xpose.msra.mxu0 0
      %1339 = vmatprep.subr.bf16.mxu0 0
      %1340 = vmatpush1.bf16.xpose.msra.mxu0 0
      %1341 = vmatprep.subr.bf16.mxu0 0
      %1342 = vmatpush1.bf16.xpose.msra.mxu0 0
      %1343 = vmatprep.subr.bf16.mxu0 0
      %1344 = vmatpush1.bf16.xpose.msra.mxu0 0
      %1345 = vmatprep.mubr.bf16.mxu0 0
      %1346 = vmatmul.mubr.bf16.gmra.mrb[0].mxu0 %v1305
      %v1347 = vpop.f32.mrb[0].mxu0
      %v1348 = vadd.f32 0.0, %v1347
      %v1349 = vpop.f32.mrb[0].mxu0
      %v1350 = vpop.f32.mrb[0].mxu0
      %v1351 = vpop.f32.mrb[0].mxu0
      %1352 = vdwg.mxu0
      %v1353 = vsel %vm1001, %v1348, -inf
      %1354 = vmax.xlane.f32.xlu0 %v1353
      %v1355 = vpop.xlane.xlu0 %1354
      %v1356 = vsub.f32 %v1348, %v1355
      %v1357 = vmul.f32 %v1356, 1.442695
      %v1358 = vpow.pop %v1357
      %v1359 = vsel %vm1001, %v1358, 0.0
      %1360 = vadd.xlane.f32.xlu0 %v1359
      %v1361 = vpop.xlane.xlu0 %1360
      %v1362 = vrcp.pop %v1361
      %v1363 = vmul.f32 %v1358, %v1362
      %v1364 = vpack.c.bf16 %v1363, %v1363
      %v1365 = vpack.c.bf16 %v1291, %v1288
      %v1366 = vpack.c.bf16 %v1296, %v1296
      %v1368 = vsel %vm1016, %v1364, 0
      %v1371 = vsel %vm1020, %v1366, 0
      %1373 = vmatprep.subr.bf16.mxu0 0
      %1374 = vmatpush1.bf16.msra.mxu0 %v1365
      %1375 = vmatprep.subr.bf16.mxu0 0
      %1376 = vmatpush1.bf16.msra.mxu0 %v1371
      %1377 = vmatprep.subr.bf16.mxu0 0
      %1378 = vmatpush1.bf16.msra.mxu0 0
      %1379 = vmatprep.subr.bf16.mxu0 0
      %1380 = vmatpush1.bf16.msra.mxu0 0
      %1381 = vmatprep.subr.bf16.mxu0 0
      %1382 = vmatpush1.bf16.msra.mxu0 0
      %1383 = vmatprep.subr.bf16.mxu0 0
      %1384 = vmatpush1.bf16.msra.mxu0 0
      %1385 = vmatprep.subr.bf16.mxu0 0
      %1386 = vmatpush1.bf16.msra.mxu0 0
      %1387 = vmatprep.subr.bf16.mxu0 0
      %1388 = vmatpush1.bf16.msra.mxu0 0
      %1389 = vmatprep.subr.bf16.mxu0 0
      %1390 = vmatpush1.bf16.msra.mxu0 0
      %1391 = vmatprep.subr.bf16.mxu0 0
      %1392 = vmatpush1.bf16.msra.mxu0 0
      %1393 = vmatprep.subr.bf16.mxu0 0
      %1394 = vmatpush1.bf16.msra.mxu0 0
      %1395 = vmatprep.subr.bf16.mxu0 0
      %1396 = vmatpush1.bf16.msra.mxu0 0
      %1397 = vmatprep.subr.bf16.mxu0 0
      %1398 = vmatpush1.bf16.msra.mxu0 0
      %1399 = vmatprep.subr.bf16.mxu0 0
      %1400 = vmatpush1.bf16.msra.mxu0 0
      %1401 = vmatprep.subr.bf16.mxu0 0
      %1402 = vmatpush1.bf16.msra.mxu0 0
      %1403 = vmatprep.subr.bf16.mxu0 0
      %1404 = vmatpush1.bf16.msra.mxu0 0
      %1405 = vmatprep.mubr.bf16.mxu0 0
      %1406 = vmatmul.mubr.bf16.gmra.mrb[0].mxu0 %v1368
      %v1407 = vpop.f32.mrb[0].mxu0
      %v1408 = vadd.f32 0.0, %v1407
      %v1409 = vpop.f32.mrb[0].mxu0
      %v1410 = vpop.f32.mrb[0].mxu0
      %v1411 = vpop.f32.mrb[0].mxu0
      %1412 = vdwg.mxu0
      %s1413 = scalar_lea.vmem %s12, 32
      %v1414 = vld [vmem:[%s1413] sm:$0xff]
      %v1415 = vld [vmem:[%s1413 + $0x8] sm:$0xff]
      %v1416 = vld [vmem:[%s1413 + $0x10] sm:$0xff]
      %v1417 = vld [vmem:[%s1413 + $0x18] sm:$0xff]
      %v1418 = vpack.c.bf16 %v1408, %v1408
      %v1419 = vpack.c.bf16 %v1415, %v1414
      %v1420 = vpack.c.bf16 %v1417, %v1416
      %v1422 = vsel %vm951, %v1418, 0
      %1424 = vmatprep.subr.bf16.mxu0 0
      %1425 = vmatpush1.bf16.msra.mxu0 %v1419
      %1426 = vmatprep.subr.bf16.mxu0 0
      %1427 = vmatpush1.bf16.msra.mxu0 %v1420
      %1428 = vmatprep.subr.bf16.mxu0 0
      %1429 = vmatpush1.bf16.msra.mxu0 0
      %1430 = vmatprep.subr.bf16.mxu0 0
      %1431 = vmatpush1.bf16.msra.mxu0 0
      %1432 = vmatprep.subr.bf16.mxu0 0
      %1433 = vmatpush1.bf16.msra.mxu0 0
      %1434 = vmatprep.subr.bf16.mxu0 0
      %1435 = vmatpush1.bf16.msra.mxu0 0
      %1436 = vmatprep.subr.bf16.mxu0 0
      %1437 = vmatpush1.bf16.msra.mxu0 0
      %1438 = vmatprep.subr.bf16.mxu0 0
      %1439 = vmatpush1.bf16.msra.mxu0 0
      %1440 = vmatprep.subr.bf16.mxu0 0
      %1441 = vmatpush1.bf16.msra.mxu0 0
      %1442 = vmatprep.subr.bf16.mxu0 0
      %1443 = vmatpush1.bf16.msra.mxu0 0
      %1444 = vmatprep.subr.bf16.mxu0 0
      %1445 = vmatpush1.bf16.msra.mxu0 0
      %1446 = vmatprep.subr.bf16.mxu0 0
      %1447 = vmatpush1.bf16.msra.mxu0 0
      %1448 = vmatprep.subr.bf16.mxu0 0
      %1449 = vmatpush1.bf16.msra.mxu0 0
      %1450 = vmatprep.subr.bf16.mxu0 0
      %1451 = vmatpush1.bf16.msra.mxu0 0
      %1452 = vmatprep.subr.bf16.mxu0 0
      %1453 = vmatpush1.bf16.msra.mxu0 0
      %1454 = vmatprep.subr.bf16.mxu0 0
      %1455 = vmatpush1.bf16.msra.mxu0 0
      %1456 = vmatprep.mubr.bf16.mxu0 0
      %1457 = vmatmul.mubr.bf16.gmra.mrb[0].mxu0 %v1422
      %v1458 = vpop.f32.mrb[0].mxu0
      %v1459 = vadd.f32 0.0, %v1458
      %v1460 = vpop.f32.mrb[0].mxu0
      %v1461 = vpop.f32.mrb[0].mxu0
      %v1462 = vpop.f32.mrb[0].mxu0
      %1463 = vdwg.mxu0
      %v1465 = vsel %vm951, %v1068, 0
      %1467 = vmatprep.subr.bf16.mxu0 0
      %1468 = vmatpush1.bf16.msra.mxu0 %v1069
      %1469 = vmatprep.subr.bf16.mxu0 0
      %1470 = vmatpush1.bf16.msra.mxu0 %v1070
      %1471 = vmatprep.subr.bf16.mxu0 0
      %1472 = vmatpush1.bf16.msra.mxu0 0
      %1473 = vmatprep.subr.bf16.mxu0 0
      %1474 = vmatpush1.bf16.msra.mxu0 0
      %1475 = vmatprep.subr.bf16.mxu0 0
      %1476 = vmatpush1.bf16.msra.mxu0 0
      %1477 = vmatprep.subr.bf16.mxu0 0
      %1478 = vmatpush1.bf16.msra.mxu0 0
      %1479 = vmatprep.subr.bf16.mxu0 0
      %1480 = vmatpush1.bf16.msra.mxu0 0
      %1481 = vmatprep.subr.bf16.mxu0 0
      %1482 = vmatpush1.bf16.msra.mxu0 0
      %1483 = vmatprep.subr.bf16.mxu0 0
      %1484 = vmatpush1.bf16.msra.mxu0 0
      %1485 = vmatprep.subr.bf16.mxu0 0
      %1486 = vmatpush1.bf16.msra.mxu0 0
      %1487 = vmatprep.subr.bf16.mxu0 0
      %1488 = vmatpush1.bf16.msra.mxu0 0
      %1489 = vmatprep.subr.bf16.mxu0 0
      %1490 = vmatpush1.bf16.msra.mxu0 0
      %1491 = vmatprep.subr.bf16.mxu0 0
      %1492 = vmatpush1.bf16.msra.mxu0 0
      %1493 = vmatprep.subr.bf16.mxu0 0
      %1494 = vmatpush1.bf16.msra.mxu0 0
      %1495 = vmatprep.subr.bf16.mxu0 0
      %1496 = vmatpush1.bf16.msra.mxu0 0
      %1497 = vmatprep.subr.bf16.mxu0 0
      %1498 = vmatpush1.bf16.msra.mxu0 0
      %1499 = vmatprep.mubr.bf16.mxu0 0
      %1500 = vmatmul.mubr.bf16.gmra.mrb[0].mxu0 %v1465
      %v1501 = vpop.f32.mrb[0].mxu0
      %v1502 = vadd.f32 %v1459, %v1501
      %v1503 = vpop.f32.mrb[0].mxu0
      %v1504 = vpop.f32.mrb[0].mxu0
      %v1505 = vpop.f32.mrb[0].mxu0
      %1506 = vdwg.mxu0
      %s1507 = scalar_lea.vmem %s6, 256
      %v1508 = vld [vmem:[%s1507] sm:$0xff]
      %v1509 = vld [vmem:[%s1507 + $0x8] sm:$0xff]
      %v1510 = vld [vmem:[%s1507 + $0x10] sm:$0xff]
      %v1511 = vld [vmem:[%s1507 + $0x18] sm:$0xff]
      %v1512 = vld [vmem:[%s1507 + $0x20] sm:$0xff]
      %v1513 = vld [vmem:[%s1507 + $0x28] sm:$0xff]
      %v1514 = vld [vmem:[%s1507 + $0x30] sm:$0xff]
      %v1515 = vld [vmem:[%s1507 + $0x38] sm:$0xff]
      %v1516 = vld [vmem:[%s1507 + $0x40] sm:$0xff]
      %v1517 = vld [vmem:[%s1507 + $0x48] sm:$0xff]
      %v1518 = vld [vmem:[%s1507 + $0x50] sm:$0xff]
      %v1519 = vld [vmem:[%s1507 + $0x58] sm:$0xff]
      %v1520 = vld [vmem:[%s1507 + $0x60] sm:$0xff]
      %v1521 = vld [vmem:[%s1507 + $0x68] sm:$0xff]
      %v1522 = vld [vmem:[%s1507 + $0x70] sm:$0xff]
      %v1523 = vld [vmem:[%s1507 + $0x78] sm:$0xff]
      %s1524 = scalar_lea.vmem %s7, 2
      %v1525 = vld [vmem:[%s1524] sm:$0x1]
      %v1526 = vpack.c.bf16 %v1509, %v1508
      %v1527 = vpack.c.bf16 %v1511, %v1510
      %v1528 = vpack.c.bf16 %v1513, %v1512
      %v1529 = vpack.c.bf16 %v1515, %v1514
      %v1530 = vpack.c.bf16 %v1517, %v1516
      %v1531 = vpack.c.bf16 %v1519, %v1518
      %v1532 = vpack.c.bf16 %v1521, %v1520
      %v1533 = vpack.c.bf16 %v1523, %v1522
      %1534 = vmatprep.subr.bf16.mxu0 0
      %1535 = vmatpush1.bf16.msra.mxu0 %v1526
      %1536 = vmatprep.subr.bf16.mxu0 0
      %1537 = vmatpush1.bf16.msra.mxu0 %v1527
      %1538 = vmatprep.subr.bf16.mxu0 0
      %1539 = vmatpush1.bf16.msra.mxu0 %v1528
      %1540 = vmatprep.subr.bf16.mxu0 0
      %1541 = vmatpush1.bf16.msra.mxu0 %v1529
      %1542 = vmatprep.subr.bf16.mxu0 0
      %1543 = vmatpush1.bf16.msra.mxu0 %v1530
      %1544 = vmatprep.subr.bf16.mxu0 0
      %1545 = vmatpush1.bf16.msra.mxu0 %v1531
      %1546 = vmatprep.subr.bf16.mxu0 0
      %1547 = vmatpush1.bf16.msra.mxu0 %v1532
      %1548 = vmatprep.subr.bf16.mxu0 0
      %1549 = vmatpush1.bf16.msra.mxu0 %v1533
      %1550 = vmatprep.subr.bf16.mxu0 0
      %1551 = vmatpush1.bf16.msra.mxu0 0
      %1552 = vmatprep.subr.bf16.mxu0 0
      %1553 = vmatpush1.bf16.msra.mxu0 0
      %1554 = vmatprep.subr.bf16.mxu0 0
      %1555 = vmatpush1.bf16.msra.mxu0 0
      %1556 = vmatprep.subr.bf16.mxu0 0
      %1557 = vmatpush1.bf16.msra.mxu0 0
      %1558 = vmatprep.subr.bf16.mxu0 0
      %1559 = vmatpush1.bf16.msra.mxu0 0
      %1560 = vmatprep.subr.bf16.mxu0 0
      %1561 = vmatpush1.bf16.msra.mxu0 0
      %1562 = vmatprep.subr.bf16.mxu0 0
      %1563 = vmatpush1.bf16.msra.mxu0 0
      %1564 = vmatprep.subr.bf16.mxu0 0
      %1565 = vmatpush1.bf16.msra.mxu0 0
      %1566 = vmatprep.mubr.bf16.mxu0 0
      %1567 = vmatmul.mubr.bf16.gmra.mrb[0].mxu0 %v738
      %v1568 = vpop.f32.mrb[0].mxu0
      %v1569 = vadd.f32 %v1525, %v1568
      %v1570 = vpop.f32.mrb[0].mxu0
      %v1571 = vpop.f32.mrb[0].mxu0
      %v1572 = vpop.f32.mrb[0].mxu0
      %1573 = vdwg.mxu0
      %v1574 = vmul.f32 %v1569, 0.17677669
      %s1575 = scalar_lea.vmem %s8, 256
      %v1576 = vld [vmem:[%s1575] sm:$0xff]
      %v1577 = vld [vmem:[%s1575 + $0x8] sm:$0xff]
      %v1578 = vld [vmem:[%s1575 + $0x10] sm:$0xff]
      %v1579 = vld [vmem:[%s1575 + $0x18] sm:$0xff]
      %v1580 = vld [vmem:[%s1575 + $0x20] sm:$0xff]
      %v1581 = vld [vmem:[%s1575 + $0x28] sm:$0xff]
      %v1582 = vld [vmem:[%s1575 + $0x30] sm:$0xff]
      %v1583 = vld [vmem:[%s1575 + $0x38] sm:$0xff]
      %v1584 = vld [vmem:[%s1575 + $0x40] sm:$0xff]
      %v1585 = vld [vmem:[%s1575 + $0x48] sm:$0xff]
      %v1586 = vld [vmem:[%s1575 + $0x50] sm:$0xff]
      %v1587 = vld [vmem:[%s1575 + $0x58] sm:$0xff]
      %v1588 = vld [vmem:[%s1575 + $0x60] sm:$0xff]
      %v1589 = vld [vmem:[%s1575 + $0x68] sm:$0xff]
      %v1590 = vld [vmem:[%s1575 + $0x70] sm:$0xff]
      %v1591 = vld [vmem:[%s1575 + $0x78] sm:$0xff]
      %s1592 = scalar_lea.vmem %s9, 2
      %v1593 = vld [vmem:[%s1592] sm:$0x1]
      %v1594 = vpack.c.bf16 %v1577, %v1576
      %v1595 = vpack.c.bf16 %v1579, %v1578
      %v1596 = vpack.c.bf16 %v1581, %v1580
      %v1597 = vpack.c.bf16 %v1583, %v1582
      %v1598 = vpack.c.bf16 %v1585, %v1584
      %v1599 = vpack.c.bf16 %v1587, %v1586
      %v1600 = vpack.c.bf16 %v1589, %v1588
      %v1601 = vpack.c.bf16 %v1591, %v1590
      %v1603 = vlaneseq
      %v1604 = vshrl.u32 %v1603, 7
      %v1605 = vsub.s32 0, %v1604
      %v1606 = vrot.slane %v1593, %v1605
      %1608 = vmatprep.subr.bf16.mxu0 0
      %1609 = vmatpush1.bf16.msra.mxu0 %v1594
      %1610 = vmatprep.subr.bf16.mxu0 0
      %1611 = vmatpush1.bf16.msra.mxu0 %v1595
      %1612 = vmatprep.subr.bf16.mxu0 0
      %1613 = vmatpush1.bf16.msra.mxu0 %v1596
      %1614 = vmatprep.subr.bf16.mxu0 0
      %1615 = vmatpush1.bf16.msra.mxu0 %v1597
      %1616 = vmatprep.subr.bf16.mxu0 0
      %1617 = vmatpush1.bf16.msra.mxu0 %v1598
      %1618 = vmatprep.subr.bf16.mxu0 0
      %1619 = vmatpush1.bf16.msra.mxu0 %v1599
      %1620 = vmatprep.subr.bf16.mxu0 0
      %1621 = vmatpush1.bf16.msra.mxu0 %v1600
      %1622 = vmatprep.subr.bf16.mxu0 0
      %1623 = vmatpush1.bf16.msra.mxu0 %v1601
      %1624 = vmatprep.subr.bf16.mxu0 0
      %1625 = vmatpush1.bf16.msra.mxu0 0
      %1626 = vmatprep.subr.bf16.mxu0 0
      %1627 = vmatpush1.bf16.msra.mxu0 0
      %1628 = vmatprep.subr.bf16.mxu0 0
      %1629 = vmatpush1.bf16.msra.mxu0 0
      %1630 = vmatprep.subr.bf16.mxu0 0
      %1631 = vmatpush1.bf16.msra.mxu0 0
      %1632 = vmatprep.subr.bf16.mxu0 0
      %1633 = vmatpush1.bf16.msra.mxu0 0
      %1634 = vmatprep.subr.bf16.mxu0 0
      %1635 = vmatpush1.bf16.msra.mxu0 0
      %1636 = vmatprep.subr.bf16.mxu0 0
      %1637 = vmatpush1.bf16.msra.mxu0 0
      %1638 = vmatprep.subr.bf16.mxu0 0
      %1639 = vmatpush1.bf16.msra.mxu0 0
      %1640 = vmatprep.mubr.bf16.mxu0 0
      %1641 = vmatmul.mubr.bf16.gmra.mrb[0].mxu0 %v805
      %v1642 = vpop.f32.mrb[0].mxu0
      %v1643 = vadd.f32 %v1606, %v1642
      %v1644 = vpop.f32.mrb[0].mxu0
      %v1645 = vpop.f32.mrb[0].mxu0
      %v1646 = vadd.f32 %v1606, %v1645
      %v1647 = vpop.f32.mrb[0].mxu0
      %1648 = vmatprep.mubr.bf16.mxu0 0
      %1649 = vmatmul.mubr.bf16.gmra.mrb[0].mxu0 %v806
      %v1650 = vpop.f32.mrb[0].mxu0
      %v1651 = vadd.f32 %v1606, %v1650
      %v1652 = vpop.f32.mrb[0].mxu0
      %v1653 = vpop.f32.mrb[0].mxu0
      %v1654 = vpop.f32.mrb[0].mxu0
      %1655 = vdwg.mxu0
      %s1656 = scalar_lea.vmem %s10, 256
      %v1657 = vld [vmem:[%s1656] sm:$0xff]
      %v1658 = vld [vmem:[%s1656 + $0x8] sm:$0xff]
      %v1659 = vld [vmem:[%s1656 + $0x10] sm:$0xff]
      %v1660 = vld [vmem:[%s1656 + $0x18] sm:$0xff]
      %v1661 = vld [vmem:[%s1656 + $0x20] sm:$0xff]
      %v1662 = vld [vmem:[%s1656 + $0x28] sm:$0xff]
      %v1663 = vld [vmem:[%s1656 + $0x30] sm:$0xff]
      %v1664 = vld [vmem:[%s1656 + $0x38] sm:$0xff]
      %v1665 = vld [vmem:[%s1656 + $0x40] sm:$0xff]
      %v1666 = vld [vmem:[%s1656 + $0x48] sm:$0xff]
      %v1667 = vld [vmem:[%s1656 + $0x50] sm:$0xff]
      %v1668 = vld [vmem:[%s1656 + $0x58] sm:$0xff]
      %v1669 = vld [vmem:[%s1656 + $0x60] sm:$0xff]
      %v1670 = vld [vmem:[%s1656 + $0x68] sm:$0xff]
      %v1671 = vld [vmem:[%s1656 + $0x70] sm:$0xff]
      %v1672 = vld [vmem:[%s1656 + $0x78] sm:$0xff]
      %s1673 = scalar_lea.vmem %s11, 2
      %v1674 = vld [vmem:[%s1673] sm:$0x1]
      %v1675 = vpack.c.bf16 %v1658, %v1657
      %v1676 = vpack.c.bf16 %v1660, %v1659
      %v1677 = vpack.c.bf16 %v1662, %v1661
      %v1678 = vpack.c.bf16 %v1664, %v1663
      %v1679 = vpack.c.bf16 %v1666, %v1665
      %v1680 = vpack.c.bf16 %v1668, %v1667
      %v1681 = vpack.c.bf16 %v1670, %v1669
      %v1682 = vpack.c.bf16 %v1672, %v1671
      %v1684 = vlaneseq
      %v1685 = vshrl.u32 %v1684, 7
      %v1686 = vsub.s32 0, %v1685
      %v1687 = vrot.slane %v1674, %v1686
      %1689 = vmatprep.subr.bf16.mxu0 0
      %1690 = vmatpush1.bf16.msra.mxu0 %v1675
      %1691 = vmatprep.subr.bf16.mxu0 0
      %1692 = vmatpush1.bf16.msra.mxu0 %v1676
      %1693 = vmatprep.subr.bf16.mxu0 0
      %1694 = vmatpush1.bf16.msra.mxu0 %v1677
      %1695 = vmatprep.subr.bf16.mxu0 0
      %1696 = vmatpush1.bf16.msra.mxu0 %v1678
      %1697 = vmatprep.subr.bf16.mxu0 0
      %1698 = vmatpush1.bf16.msra.mxu0 %v1679
      %1699 = vmatprep.subr.bf16.mxu0 0
      %1700 = vmatpush1.bf16.msra.mxu0 %v1680
      %1701 = vmatprep.subr.bf16.mxu0 0
      %1702 = vmatpush1.bf16.msra.mxu0 %v1681
      %1703 = vmatprep.subr.bf16.mxu0 0
      %1704 = vmatpush1.bf16.msra.mxu0 %v1682
      %1705 = vmatprep.subr.bf16.mxu0 0
      %1706 = vmatpush1.bf16.msra.mxu0 0
      %1707 = vmatprep.subr.bf16.mxu0 0
      %1708 = vmatpush1.bf16.msra.mxu0 0
      %1709 = vmatprep.subr.bf16.mxu0 0
      %1710 = vmatpush1.bf16.msra.mxu0 0
      %1711 = vmatprep.subr.bf16.mxu0 0
      %1712 = vmatpush1.bf16.msra.mxu0 0
      %1713 = vmatprep.subr.bf16.mxu0 0
      %1714 = vmatpush1.bf16.msra.mxu0 0
      %1715 = vmatprep.subr.bf16.mxu0 0
      %1716 = vmatpush1.bf16.msra.mxu0 0
      %1717 = vmatprep.subr.bf16.mxu0 0
      %1718 = vmatpush1.bf16.msra.mxu0 0
      %1719 = vmatprep.subr.bf16.mxu0 0
      %1720 = vmatpush1.bf16.msra.mxu0 0
      %1721 = vmatprep.mubr.bf16.mxu0 0
      %1722 = vmatmul.mubr.bf16.gmra.mrb[0].mxu0 %v805
      %v1723 = vpop.f32.mrb[0].mxu0
      %v1724 = vadd.f32 %v1687, %v1723
      %v1725 = vpop.f32.mrb[0].mxu0
      %v1726 = vpop.f32.mrb[0].mxu0
      %v1727 = vadd.f32 %v1687, %v1726
      %v1728 = vpop.f32.mrb[0].mxu0
      %1729 = vmatprep.mubr.bf16.mxu0 0
      %1730 = vmatmul.mubr.bf16.gmra.mrb[0].mxu0 %v806
      %v1731 = vpop.f32.mrb[0].mxu0
      %v1732 = vadd.f32 %v1687, %v1731
      %v1733 = vpop.f32.mrb[0].mxu0
      %v1734 = vpop.f32.mrb[0].mxu0
      %v1735 = vpop.f32.mrb[0].mxu0
      %1736 = vdwg.mxu0
      %v1737 = vpack.c.bf16 %v1574, %v1574
      %v1738 = vpack.c.bf16 %v1646, %v1643
      %v1739 = vpack.c.bf16 %v1651, %v1651
      %v1741 = vsel %vm951, %v1737, 0
      %v1744 = vsel %vm951, %v1738, 0
      %v1747 = vsel %vm951, %v1739, 0
      %1749 = vmatprep.subr.bf16.mxu0 0
      %1750 = vmatpush1.bf16.xpose.msra.mxu0 %v1744
      %1751 = vmatprep.subr.bf16.mxu0 0
      %1752 = vmatpush1.bf16.xpose.msra.mxu0 %v1747
      %1753 = vmatprep.subr.bf16.mxu0 0
      %1754 = vmatpush1.bf16.xpose.msra.mxu0 0
      %1755 = vmatprep.subr.bf16.mxu0 0
      %1756 = vmatpush1.bf16.xpose.msra.mxu0 0
      %1757 = vmatprep.subr.bf16.mxu0 0
      %1758 = vmatpush1.bf16.xpose.msra.mxu0 0
      %1759 = vmatprep.subr.bf16.mxu0 0
      %1760 = vmatpush1.bf16.xpose.msra.mxu0 0
      %1761 = vmatprep.subr.bf16.mxu0 0
      %1762 = vmatpush1.bf16.xpose.msra.mxu0 0
      %1763 = vmatprep.subr.bf16.mxu0 0
      %1764 = vmatpush1.bf16.xpose.msra.mxu0 0
      %1765 = vmatprep.subr.bf16.mxu0 0
      %1766 = vmatpush1.bf16.xpose.msra.mxu0 0
      %1767 = vmatprep.subr.bf16.mxu0 0
      %1768 = vmatpush1.bf16.xpose.msra.mxu0 0
      %1769 = vmatprep.subr.bf16.mxu0 0
      %1770 = vmatpush1.bf16.xpose.msra.mxu0 0
      %1771 = vmatprep.subr.bf16.mxu0 0
      %1772 = vmatpush1.bf16.xpose.msra.mxu0 0
      %1773 = vmatprep.subr.bf16.mxu0 0
      %1774 = vmatpush1.bf16.xpose.msra.mxu0 0
      %1775 = vmatprep.subr.bf16.mxu0 0
      %1776 = vmatpush1.bf16.xpose.msra.mxu0 0
      %1777 = vmatprep.subr.bf16.mxu0 0
      %1778 = vmatpush1.bf16.xpose.msra.mxu0 0
      %1779 = vmatprep.subr.bf16.mxu0 0
      %1780 = vmatpush1.bf16.xpose.msra.mxu0 0
      %1781 = vmatprep.mubr.bf16.mxu0 0
      %1782 = vmatmul.mubr.bf16.gmra.mrb[0].mxu0 %v1741
      %v1783 = vpop.f32.mrb[0].mxu0
      %v1784 = vadd.f32 0.0, %v1783
      %v1785 = vpop.f32.mrb[0].mxu0
      %v1786 = vpop.f32.mrb[0].mxu0
      %v1787 = vpop.f32.mrb[0].mxu0
      %1788 = vdwg.mxu0
      %v1789 = vsel %vm1001, %v1784, -inf
      %1790 = vmax.xlane.f32.xlu0 %v1789
      %v1791 = vpop.xlane.xlu0 %1790
      %v1792 = vsub.f32 %v1784, %v1791
      %v1793 = vmul.f32 %v1792, 1.442695
      %v1794 = vpow.pop %v1793
      %v1795 = vsel %vm1001, %v1794, 0.0
      %1796 = vadd.xlane.f32.xlu0 %v1795
      %v1797 = vpop.xlane.xlu0 %1796
      %v1798 = vrcp.pop %v1797
      %v1799 = vmul.f32 %v1794, %v1798
      %v1800 = vpack.c.bf16 %v1799, %v1799
      %v1801 = vpack.c.bf16 %v1727, %v1724
      %v1802 = vpack.c.bf16 %v1732, %v1732
      %v1804 = vsel %vm1016, %v1800, 0
      %v1807 = vsel %vm1020, %v1802, 0
      %1809 = vmatprep.subr.bf16.mxu0 0
      %1810 = vmatpush1.bf16.msra.mxu0 %v1801
      %1811 = vmatprep.subr.bf16.mxu0 0
      %1812 = vmatpush1.bf16.msra.mxu0 %v1807
      %1813 = vmatprep.subr.bf16.mxu0 0
      %1814 = vmatpush1.bf16.msra.mxu0 0
      %1815 = vmatprep.subr.bf16.mxu0 0
      %1816 = vmatpush1.bf16.msra.mxu0 0
      %1817 = vmatprep.subr.bf16.mxu0 0
      %1818 = vmatpush1.bf16.msra.mxu0 0
      %1819 = vmatprep.subr.bf16.mxu0 0
      %1820 = vmatpush1.bf16.msra.mxu0 0
      %1821 = vmatprep.subr.bf16.mxu0 0
      %1822 = vmatpush1.bf16.msra.mxu0 0
      %1823 = vmatprep.subr.bf16.mxu0 0
      %1824 = vmatpush1.bf16.msra.mxu0 0
      %1825 = vmatprep.subr.bf16.mxu0 0
      %1826 = vmatpush1.bf16.msra.mxu0 0
      %1827 = vmatprep.subr.bf16.mxu0 0
      %1828 = vmatpush1.bf16.msra.mxu0 0
      %1829 = vmatprep.subr.bf16.mxu0 0
      %1830 = vmatpush1.bf16.msra.mxu0 0
      %1831 = vmatprep.subr.bf16.mxu0 0
      %1832 = vmatpush1.bf16.msra.mxu0 0
      %1833 = vmatprep.subr.bf16.mxu0 0
      %1834 = vmatpush1.bf16.msra.mxu0 0
      %1835 = vmatprep.subr.bf16.mxu0 0
      %1836 = vmatpush1.bf16.msra.mxu0 0
      %1837 = vmatprep.subr.bf16.mxu0 0
      %1838 = vmatpush1.bf16.msra.mxu0 0
      %1839 = vmatprep.subr.bf16.mxu0 0
      %1840 = vmatpush1.bf16.msra.mxu0 0
      %1841 = vmatprep.mubr.bf16.mxu0 0
      %1842 = vmatmul.mubr.bf16.gmra.mrb[0].mxu0 %v1804
      %v1843 = vpop.f32.mrb[0].mxu0
      %v1844 = vadd.f32 0.0, %v1843
      %v1845 = vpop.f32.mrb[0].mxu0
      %v1846 = vpop.f32.mrb[0].mxu0
      %v1847 = vpop.f32.mrb[0].mxu0
      %1848 = vdwg.mxu0
      %s1849 = scalar_lea.vmem %s12, 64
      %v1850 = vld [vmem:[%s1849] sm:$0xff]
      %v1851 = vld [vmem:[%s1849 + $0x8] sm:$0xff]
      %v1852 = vld [vmem:[%s1849 + $0x10] sm:$0xff]
      %v1853 = vld [vmem:[%s1849 + $0x18] sm:$0xff]
      %v1854 = vpack.c.bf16 %v1844, %v1844
      %v1855 = vpack.c.bf16 %v1851, %v1850
      %v1856 = vpack.c.bf16 %v1853, %v1852
      %v1858 = vsel %vm951, %v1854, 0
      %1860 = vmatprep.subr.bf16.mxu0 0
      %1861 = vmatpush1.bf16.msra.mxu0 %v1855
      %1862 = vmatprep.subr.bf16.mxu0 0
      %1863 = vmatpush1.bf16.msra.mxu0 %v1856
      %1864 = vmatprep.subr.bf16.mxu0 0
      %1865 = vmatpush1.bf16.msra.mxu0 0
      %1866 = vmatprep.subr.bf16.mxu0 0
      %1867 = vmatpush1.bf16.msra.mxu0 0
      %1868 = vmatprep.subr.bf16.mxu0 0
      %1869 = vmatpush1.bf16.msra.mxu0 0
      %1870 = vmatprep.subr.bf16.mxu0 0
      %1871 = vmatpush1.bf16.msra.mxu0 0
      %1872 = vmatprep.subr.bf16.mxu0 0
      %1873 = vmatpush1.bf16.msra.mxu0 0
      %1874 = vmatprep.subr.bf16.mxu0 0
      %1875 = vmatpush1.bf16.msra.mxu0 0
      %1876 = vmatprep.subr.bf16.mxu0 0
      %1877 = vmatpush1.bf16.msra.mxu0 0
      %1878 = vmatprep.subr.bf16.mxu0 0
      %1879 = vmatpush1.bf16.msra.mxu0 0
      %1880 = vmatprep.subr.bf16.mxu0 0
      %1881 = vmatpush1.bf16.msra.mxu0 0
      %1882 = vmatprep.subr.bf16.mxu0 0
      %1883 = vmatpush1.bf16.msra.mxu0 0
      %1884 = vmatprep.subr.bf16.mxu0 0
      %1885 = vmatpush1.bf16.msra.mxu0 0
      %1886 = vmatprep.subr.bf16.mxu0 0
      %1887 = vmatpush1.bf16.msra.mxu0 0
      %1888 = vmatprep.subr.bf16.mxu0 0
      %1889 = vmatpush1.bf16.msra.mxu0 0
      %1890 = vmatprep.subr.bf16.mxu0 0
      %1891 = vmatpush1.bf16.msra.mxu0 0
      %1892 = vmatprep.mubr.bf16.mxu0 0
      %1893 = vmatmul.mubr.bf16.gmra.mrb[0].mxu0 %v1858
      %v1894 = vpop.f32.mrb[0].mxu0
      %v1895 = vadd.f32 0.0, %v1894
      %v1896 = vpop.f32.mrb[0].mxu0
      %v1897 = vpop.f32.mrb[0].mxu0
      %v1898 = vpop.f32.mrb[0].mxu0
      %1899 = vdwg.mxu0
      %v1900 = vadd.f32 %v1502, %v1895
      %s1901 = scalar_lea.vmem %s6, 384
      %v1902 = vld [vmem:[%s1901] sm:$0xff]
      %v1903 = vld [vmem:[%s1901 + $0x8] sm:$0xff]
      %v1904 = vld [vmem:[%s1901 + $0x10] sm:$0xff]
      %v1905 = vld [vmem:[%s1901 + $0x18] sm:$0xff]
      %v1906 = vld [vmem:[%s1901 + $0x20] sm:$0xff]
      %v1907 = vld [vmem:[%s1901 + $0x28] sm:$0xff]
      %v1908 = vld [vmem:[%s1901 + $0x30] sm:$0xff]
      %v1909 = vld [vmem:[%s1901 + $0x38] sm:$0xff]
      %v1910 = vld [vmem:[%s1901 + $0x40] sm:$0xff]
      %v1911 = vld [vmem:[%s1901 + $0x48] sm:$0xff]
      %v1912 = vld [vmem:[%s1901 + $0x50] sm:$0xff]
      %v1913 = vld [vmem:[%s1901 + $0x58] sm:$0xff]
      %v1914 = vld [vmem:[%s1901 + $0x60] sm:$0xff]
      %v1915 = vld [vmem:[%s1901 + $0x68] sm:$0xff]
      %v1916 = vld [vmem:[%s1901 + $0x70] sm:$0xff]
      %v1917 = vld [vmem:[%s1901 + $0x78] sm:$0xff]
      %s1918 = scalar_lea.vmem %s7, 3
      %v1919 = vld [vmem:[%s1918] sm:$0x1]
      %v1920 = vpack.c.bf16 %v1903, %v1902
      %v1921 = vpack.c.bf16 %v1905, %v1904
      %v1922 = vpack.c.bf16 %v1907, %v1906
      %v1923 = vpack.c.bf16 %v1909, %v1908
      %v1924 = vpack.c.bf16 %v1911, %v1910
      %v1925 = vpack.c.bf16 %v1913, %v1912
      %v1926 = vpack.c.bf16 %v1915, %v1914
      %v1927 = vpack.c.bf16 %v1917, %v1916
      %1928 = vmatprep.subr.bf16.mxu0 0
      %1929 = vmatpush1.bf16.msra.mxu0 %v1920
      %1930 = vmatprep.subr.bf16.mxu0 0
      %1931 = vmatpush1.bf16.msra.mxu0 %v1921
      %1932 = vmatprep.subr.bf16.mxu0 0
      %1933 = vmatpush1.bf16.msra.mxu0 %v1922
      %1934 = vmatprep.subr.bf16.mxu0 0
      %1935 = vmatpush1.bf16.msra.mxu0 %v1923
      %1936 = vmatprep.subr.bf16.mxu0 0
      %1937 = vmatpush1.bf16.msra.mxu0 %v1924
      %1938 = vmatprep.subr.bf16.mxu0 0
      %1939 = vmatpush1.bf16.msra.mxu0 %v1925
      %1940 = vmatprep.subr.bf16.mxu0 0
      %1941 = vmatpush1.bf16.msra.mxu0 %v1926
      %1942 = vmatprep.subr.bf16.mxu0 0
      %1943 = vmatpush1.bf16.msra.mxu0 %v1927
      %1944 = vmatprep.subr.bf16.mxu0 0
      %1945 = vmatpush1.bf16.msra.mxu0 0
      %1946 = vmatprep.subr.bf16.mxu0 0
      %1947 = vmatpush1.bf16.msra.mxu0 0
      %1948 = vmatprep.subr.bf16.mxu0 0
      %1949 = vmatpush1.bf16.msra.mxu0 0
      %1950 = vmatprep.subr.bf16.mxu0 0
      %1951 = vmatpush1.bf16.msra.mxu0 0
      %1952 = vmatprep.subr.bf16.mxu0 0
      %1953 = vmatpush1.bf16.msra.mxu0 0
      %1954 = vmatprep.subr.bf16.mxu0 0
      %1955 = vmatpush1.bf16.msra.mxu0 0
      %1956 = vmatprep.subr.bf16.mxu0 0
      %1957 = vmatpush1.bf16.msra.mxu0 0
      %1958 = vmatprep.subr.bf16.mxu0 0
      %1959 = vmatpush1.bf16.msra.mxu0 0
      %1960 = vmatprep.mubr.bf16.mxu0 0
      %1961 = vmatmul.mubr.bf16.gmra.mrb[0].mxu0 %v738
      %v1962 = vpop.f32.mrb[0].mxu0
      %v1963 = vadd.f32 %v1919, %v1962
      %v1964 = vpop.f32.mrb[0].mxu0
      %v1965 = vpop.f32.mrb[0].mxu0
      %v1966 = vpop.f32.mrb[0].mxu0
      %1967 = vdwg.mxu0
      %v1968 = vmul.f32 %v1963, 0.17677669
      %s1969 = scalar_lea.vmem %s8, 384
      %v1970 = vld [vmem:[%s1969] sm:$0xff]
      %v1971 = vld [vmem:[%s1969 + $0x8] sm:$0xff]
      %v1972 = vld [vmem:[%s1969 + $0x10] sm:$0xff]
      %v1973 = vld [vmem:[%s1969 + $0x18] sm:$0xff]
      %v1974 = vld [vmem:[%s1969 + $0x20] sm:$0xff]
      %v1975 = vld [vmem:[%s1969 + $0x28] sm:$0xff]
      %v1976 = vld [vmem:[%s1969 + $0x30] sm:$0xff]
      %v1977 = vld [vmem:[%s1969 + $0x38] sm:$0xff]
      %v1978 = vld [vmem:[%s1969 + $0x40] sm:$0xff]
      %v1979 = vld [vmem:[%s1969 + $0x48] sm:$0xff]
      %v1980 = vld [vmem:[%s1969 + $0x50] sm:$0xff]
      %v1981 = vld [vmem:[%s1969 + $0x58] sm:$0xff]
      %v1982 = vld [vmem:[%s1969 + $0x60] sm:$0xff]
      %v1983 = vld [vmem:[%s1969 + $0x68] sm:$0xff]
      %v1984 = vld [vmem:[%s1969 + $0x70] sm:$0xff]
      %v1985 = vld [vmem:[%s1969 + $0x78] sm:$0xff]
      %s1986 = scalar_lea.vmem %s9, 3
      %v1987 = vld [vmem:[%s1986] sm:$0x1]
      %v1988 = vpack.c.bf16 %v1971, %v1970
      %v1989 = vpack.c.bf16 %v1973, %v1972
      %v1990 = vpack.c.bf16 %v1975, %v1974
      %v1991 = vpack.c.bf16 %v1977, %v1976
      %v1992 = vpack.c.bf16 %v1979, %v1978
      %v1993 = vpack.c.bf16 %v1981, %v1980
      %v1994 = vpack.c.bf16 %v1983, %v1982
      %v1995 = vpack.c.bf16 %v1985, %v1984
      %v1997 = vlaneseq
      %v1998 = vshrl.u32 %v1997, 7
      %v1999 = vsub.s32 0, %v1998
      %v2000 = vrot.slane %v1987, %v1999
      %2002 = vmatprep.subr.bf16.mxu0 0
      %2003 = vmatpush1.bf16.msra.mxu0 %v1988
      %2004 = vmatprep.subr.bf16.mxu0 0
      %2005 = vmatpush1.bf16.msra.mxu0 %v1989
      %2006 = vmatprep.subr.bf16.mxu0 0
      %2007 = vmatpush1.bf16.msra.mxu0 %v1990
      %2008 = vmatprep.subr.bf16.mxu0 0
      %2009 = vmatpush1.bf16.msra.mxu0 %v1991
      %2010 = vmatprep.subr.bf16.mxu0 0
      %2011 = vmatpush1.bf16.msra.mxu0 %v1992
      %2012 = vmatprep.subr.bf16.mxu0 0
      %2013 = vmatpush1.bf16.msra.mxu0 %v1993
      %2014 = vmatprep.subr.bf16.mxu0 0
      %2015 = vmatpush1.bf16.msra.mxu0 %v1994
      %2016 = vmatprep.subr.bf16.mxu0 0
      %2017 = vmatpush1.bf16.msra.mxu0 %v1995
      %2018 = vmatprep.subr.bf16.mxu0 0
      %2019 = vmatpush1.bf16.msra.mxu0 0
      %2020 = vmatprep.subr.bf16.mxu0 0
      %2021 = vmatpush1.bf16.msra.mxu0 0
      %2022 = vmatprep.subr.bf16.mxu0 0
      %2023 = vmatpush1.bf16.msra.mxu0 0
      %2024 = vmatprep.subr.bf16.mxu0 0
      %2025 = vmatpush1.bf16.msra.mxu0 0
      %2026 = vmatprep.subr.bf16.mxu0 0
      %2027 = vmatpush1.bf16.msra.mxu0 0
      %2028 = vmatprep.subr.bf16.mxu0 0
      %2029 = vmatpush1.bf16.msra.mxu0 0
      %2030 = vmatprep.subr.bf16.mxu0 0
      %2031 = vmatpush1.bf16.msra.mxu0 0
      %2032 = vmatprep.subr.bf16.mxu0 0
      %2033 = vmatpush1.bf16.msra.mxu0 0
      %2034 = vmatprep.mubr.bf16.mxu0 0
      %2035 = vmatmul.mubr.bf16.gmra.mrb[0].mxu0 %v805
      %v2036 = vpop.f32.mrb[0].mxu0
      %v2037 = vadd.f32 %v2000, %v2036
      %v2038 = vpop.f32.mrb[0].mxu0
      %v2039 = vpop.f32.mrb[0].mxu0
      %v2040 = vadd.f32 %v2000, %v2039
      %v2041 = vpop.f32.mrb[0].mxu0
      %2042 = vmatprep.mubr.bf16.mxu0 0
      %2043 = vmatmul.mubr.bf16.gmra.mrb[0].mxu0 %v806
      %v2044 = vpop.f32.mrb[0].mxu0
      %v2045 = vadd.f32 %v2000, %v2044
      %v2046 = vpop.f32.mrb[0].mxu0
      %v2047 = vpop.f32.mrb[0].mxu0
      %v2048 = vpop.f32.mrb[0].mxu0
      %2049 = vdwg.mxu0
      %s2050 = scalar_lea.vmem %s10, 384
      %v2051 = vld [vmem:[%s2050] sm:$0xff]
      %v2052 = vld [vmem:[%s2050 + $0x8] sm:$0xff]
      %v2053 = vld [vmem:[%s2050 + $0x10] sm:$0xff]
      %v2054 = vld [vmem:[%s2050 + $0x18] sm:$0xff]
      %v2055 = vld [vmem:[%s2050 + $0x20] sm:$0xff]
      %v2056 = vld [vmem:[%s2050 + $0x28] sm:$0xff]
      %v2057 = vld [vmem:[%s2050 + $0x30] sm:$0xff]
      %v2058 = vld [vmem:[%s2050 + $0x38] sm:$0xff]
      %v2059 = vld [vmem:[%s2050 + $0x40] sm:$0xff]
      %v2060 = vld [vmem:[%s2050 + $0x48] sm:$0xff]
      %v2061 = vld [vmem:[%s2050 + $0x50] sm:$0xff]
      %v2062 = vld [vmem:[%s2050 + $0x58] sm:$0xff]
      %v2063 = vld [vmem:[%s2050 + $0x60] sm:$0xff]
      %v2064 = vld [vmem:[%s2050 + $0x68] sm:$0xff]
      %v2065 = vld [vmem:[%s2050 + $0x70] sm:$0xff]
      %v2066 = vld [vmem:[%s2050 + $0x78] sm:$0xff]
      %s2067 = scalar_lea.vmem %s11, 3
      %v2068 = vld [vmem:[%s2067] sm:$0x1]
      %v2069 = vpack.c.bf16 %v2052, %v2051
      %v2070 = vpack.c.bf16 %v2054, %v2053
      %v2071 = vpack.c.bf16 %v2056, %v2055
      %v2072 = vpack.c.bf16 %v2058, %v2057
      %v2073 = vpack.c.bf16 %v2060, %v2059
      %v2074 = vpack.c.bf16 %v2062, %v2061
      %v2075 = vpack.c.bf16 %v2064, %v2063
      %v2076 = vpack.c.bf16 %v2066, %v2065
      %v2078 = vlaneseq
      %v2079 = vshrl.u32 %v2078, 7
      %v2080 = vsub.s32 0, %v2079
      %v2081 = vrot.slane %v2068, %v2080
      %2083 = vmatprep.subr.bf16.mxu0 0
      %2084 = vmatpush1.bf16.msra.mxu0 %v2069
      %2085 = vmatprep.subr.bf16.mxu0 0
      %2086 = vmatpush1.bf16.msra.mxu0 %v2070
      %2087 = vmatprep.subr.bf16.mxu0 0
      %2088 = vmatpush1.bf16.msra.mxu0 %v2071
      %2089 = vmatprep.subr.bf16.mxu0 0
      %2090 = vmatpush1.bf16.msra.mxu0 %v2072
      %2091 = vmatprep.subr.bf16.mxu0 0
      %2092 = vmatpush1.bf16.msra.mxu0 %v2073
      %2093 = vmatprep.subr.bf16.mxu0 0
      %2094 = vmatpush1.bf16.msra.mxu0 %v2074
      %2095 = vmatprep.subr.bf16.mxu0 0
      %2096 = vmatpush1.bf16.msra.mxu0 %v2075
      %2097 = vmatprep.subr.bf16.mxu0 0
      %2098 = vmatpush1.bf16.msra.mxu0 %v2076
      %2099 = vmatprep.subr.bf16.mxu0 0
      %2100 = vmatpush1.bf16.msra.mxu0 0
      %2101 = vmatprep.subr.bf16.mxu0 0
      %2102 = vmatpush1.bf16.msra.mxu0 0
      %2103 = vmatprep.subr.bf16.mxu0 0
      %2104 = vmatpush1.bf16.msra.mxu0 0
      %2105 = vmatprep.subr.bf16.mxu0 0
      %2106 = vmatpush1.bf16.msra.mxu0 0
      %2107 = vmatprep.subr.bf16.mxu0 0
      %2108 = vmatpush1.bf16.msra.mxu0 0
      %2109 = vmatprep.subr.bf16.mxu0 0
      %2110 = vmatpush1.bf16.msra.mxu0 0
      %2111 = vmatprep.subr.bf16.mxu0 0
      %2112 = vmatpush1.bf16.msra.mxu0 0
      %2113 = vmatprep.subr.bf16.mxu0 0
      %2114 = vmatpush1.bf16.msra.mxu0 0
      %2115 = vmatprep.mubr.bf16.mxu0 0
      %2116 = vmatmul.mubr.bf16.gmra.mrb[0].mxu0 %v805
      %v2117 = vpop.f32.mrb[0].mxu0
      %v2118 = vadd.f32 %v2081, %v2117
      %v2119 = vpop.f32.mrb[0].mxu0
      %v2120 = vpop.f32.mrb[0].mxu0
      %v2121 = vadd.f32 %v2081, %v2120
      %v2122 = vpop.f32.mrb[0].mxu0
      %2123 = vmatprep.mubr.bf16.mxu0 0
      %2124 = vmatmul.mubr.bf16.gmra.mrb[0].mxu0 %v806
      %v2125 = vpop.f32.mrb[0].mxu0
      %v2126 = vadd.f32 %v2081, %v2125
      %v2127 = vpop.f32.mrb[0].mxu0
      %v2128 = vpop.f32.mrb[0].mxu0
      %v2129 = vpop.f32.mrb[0].mxu0
      %2130 = vdwg.mxu0
      %v2131 = vpack.c.bf16 %v1968, %v1968
      %v2132 = vpack.c.bf16 %v2040, %v2037
      %v2133 = vpack.c.bf16 %v2045, %v2045
      %v2135 = vsel %vm951, %v2131, 0
      %v2138 = vsel %vm951, %v2132, 0
      %v2141 = vsel %vm951, %v2133, 0
      %2143 = vmatprep.subr.bf16.mxu0 0
      %2144 = vmatpush1.bf16.xpose.msra.mxu0 %v2138
      %2145 = vmatprep.subr.bf16.mxu0 0
      %2146 = vmatpush1.bf16.xpose.msra.mxu0 %v2141
      %2147 = vmatprep.subr.bf16.mxu0 0
      %2148 = vmatpush1.bf16.xpose.msra.mxu0 0
      %2149 = vmatprep.subr.bf16.mxu0 0
      %2150 = vmatpush1.bf16.xpose.msra.mxu0 0
      %2151 = vmatprep.subr.bf16.mxu0 0
      %2152 = vmatpush1.bf16.xpose.msra.mxu0 0
      %2153 = vmatprep.subr.bf16.mxu0 0
      %2154 = vmatpush1.bf16.xpose.msra.mxu0 0
      %2155 = vmatprep.subr.bf16.mxu0 0
      %2156 = vmatpush1.bf16.xpose.msra.mxu0 0
      %2157 = vmatprep.subr.bf16.mxu0 0
      %2158 = vmatpush1.bf16.xpose.msra.mxu0 0
      %2159 = vmatprep.subr.bf16.mxu0 0
      %2160 = vmatpush1.bf16.xpose.msra.mxu0 0
      %2161 = vmatprep.subr.bf16.mxu0 0
      %2162 = vmatpush1.bf16.xpose.msra.mxu0 0
      %2163 = vmatprep.subr.bf16.mxu0 0
      %2164 = vmatpush1.bf16.xpose.msra.mxu0 0
      %2165 = vmatprep.subr.bf16.mxu0 0
      %2166 = vmatpush1.bf16.xpose.msra.mxu0 0
      %2167 = vmatprep.subr.bf16.mxu0 0
      %2168 = vmatpush1.bf16.xpose.msra.mxu0 0
      %2169 = vmatprep.subr.bf16.mxu0 0
      %2170 = vmatpush1.bf16.xpose.msra.mxu0 0
      %2171 = vmatprep.subr.bf16.mxu0 0
      %2172 = vmatpush1.bf16.xpose.msra.mxu0 0
      %2173 = vmatprep.subr.bf16.mxu0 0
      %2174 = vmatpush1.bf16.xpose.msra.mxu0 0
      %2175 = vmatprep.mubr.bf16.mxu0 0
      %2176 = vmatmul.mubr.bf16.gmra.mrb[0].mxu0 %v2135
      %v2177 = vpop.f32.mrb[0].mxu0
      %v2178 = vadd.f32 0.0, %v2177
      %v2179 = vpop.f32.mrb[0].mxu0
      %v2180 = vpop.f32.mrb[0].mxu0
      %v2181 = vpop.f32.mrb[0].mxu0
      %2182 = vdwg.mxu0
      %v2183 = vsel %vm1001, %v2178, -inf
      %2184 = vmax.xlane.f32.xlu0 %v2183
      %v2185 = vpop.xlane.xlu0 %2184
      %v2186 = vsub.f32 %v2178, %v2185
      %v2187 = vmul.f32 %v2186, 1.442695
      %v2188 = vpow.pop %v2187
      %v2189 = vsel %vm1001, %v2188, 0.0
      %2190 = vadd.xlane.f32.xlu0 %v2189
      %v2191 = vpop.xlane.xlu0 %2190
      %v2192 = vrcp.pop %v2191
      %v2193 = vmul.f32 %v2188, %v2192
      %v2194 = vpack.c.bf16 %v2193, %v2193
      %v2195 = vpack.c.bf16 %v2121, %v2118
      %v2196 = vpack.c.bf16 %v2126, %v2126
      %v2198 = vsel %vm1016, %v2194, 0
      %v2201 = vsel %vm1020, %v2196, 0
      %2203 = vmatprep.subr.bf16.mxu0 0
      %2204 = vmatpush1.bf16.msra.mxu0 %v2195
      %2205 = vmatprep.subr.bf16.mxu0 0
      %2206 = vmatpush1.bf16.msra.mxu0 %v2201
      %2207 = vmatprep.subr.bf16.mxu0 0
      %2208 = vmatpush1.bf16.msra.mxu0 0
      %2209 = vmatprep.subr.bf16.mxu0 0
      %2210 = vmatpush1.bf16.msra.mxu0 0
      %2211 = vmatprep.subr.bf16.mxu0 0
      %2212 = vmatpush1.bf16.msra.mxu0 0
      %2213 = vmatprep.subr.bf16.mxu0 0
      %2214 = vmatpush1.bf16.msra.mxu0 0
      %2215 = vmatprep.subr.bf16.mxu0 0
      %2216 = vmatpush1.bf16.msra.mxu0 0
      %2217 = vmatprep.subr.bf16.mxu0 0
      %2218 = vmatpush1.bf16.msra.mxu0 0
      %2219 = vmatprep.subr.bf16.mxu0 0
      %2220 = vmatpush1.bf16.msra.mxu0 0
      %2221 = vmatprep.subr.bf16.mxu0 0
      %2222 = vmatpush1.bf16.msra.mxu0 0
      %2223 = vmatprep.subr.bf16.mxu0 0
      %2224 = vmatpush1.bf16.msra.mxu0 0
      %2225 = vmatprep.subr.bf16.mxu0 0
      %2226 = vmatpush1.bf16.msra.mxu0 0
      %2227 = vmatprep.subr.bf16.mxu0 0
      %2228 = vmatpush1.bf16.msra.mxu0 0
      %2229 = vmatprep.subr.bf16.mxu0 0
      %2230 = vmatpush1.bf16.msra.mxu0 0
      %2231 = vmatprep.subr.bf16.mxu0 0
      %2232 = vmatpush1.bf16.msra.mxu0 0
      %2233 = vmatprep.subr.bf16.mxu0 0
      %2234 = vmatpush1.bf16.msra.mxu0 0
      %2235 = vmatprep.mubr.bf16.mxu0 0
      %2236 = vmatmul.mubr.bf16.gmra.mrb[0].mxu0 %v2198
      %v2237 = vpop.f32.mrb[0].mxu0
      %v2238 = vadd.f32 0.0, %v2237
      %v2239 = vpop.f32.mrb[0].mxu0
      %v2240 = vpop.f32.mrb[0].mxu0
      %v2241 = vpop.f32.mrb[0].mxu0
      %2242 = vdwg.mxu0
      %s2243 = scalar_lea.vmem %s12, 96
      %v2244 = vld [vmem:[%s2243] sm:$0xff]
      %v2245 = vld [vmem:[%s2243 + $0x8] sm:$0xff]
      %v2246 = vld [vmem:[%s2243 + $0x10] sm:$0xff]
      %v2247 = vld [vmem:[%s2243 + $0x18] sm:$0xff]
      %v2248 = vpack.c.bf16 %v2238, %v2238
      %v2249 = vpack.c.bf16 %v2245, %v2244
      %v2250 = vpack.c.bf16 %v2247, %v2246
      %v2252 = vsel %vm951, %v2248, 0
      %2254 = vmatprep.subr.bf16.mxu0 0
      %2255 = vmatpush1.bf16.msra.mxu0 %v2249
      %2256 = vmatprep.subr.bf16.mxu0 0
      %2257 = vmatpush1.bf16.msra.mxu0 %v2250
      %2258 = vmatprep.subr.bf16.mxu0 0
      %2259 = vmatpush1.bf16.msra.mxu0 0
      %2260 = vmatprep.subr.bf16.mxu0 0
      %2261 = vmatpush1.bf16.msra.mxu0 0
      %2262 = vmatprep.subr.bf16.mxu0 0
      %2263 = vmatpush1.bf16.msra.mxu0 0
      %2264 = vmatprep.subr.bf16.mxu0 0
      %2265 = vmatpush1.bf16.msra.mxu0 0
      %2266 = vmatprep.subr.bf16.mxu0 0
      %2267 = vmatpush1.bf16.msra.mxu0 0
      %2268 = vmatprep.subr.bf16.mxu0 0
      %2269 = vmatpush1.bf16.msra.mxu0 0
      %2270 = vmatprep.subr.bf16.mxu0 0
      %2271 = vmatpush1.bf16.msra.mxu0 0
      %2272 = vmatprep.subr.bf16.mxu0 0
      %2273 = vmatpush1.bf16.msra.mxu0 0
      %2274 = vmatprep.subr.bf16.mxu0 0
      %2275 = vmatpush1.bf16.msra.mxu0 0
      %2276 = vmatprep.subr.bf16.mxu0 0
      %2277 = vmatpush1.bf16.msra.mxu0 0
      %2278 = vmatprep.subr.bf16.mxu0 0
      %2279 = vmatpush1.bf16.msra.mxu0 0
      %2280 = vmatprep.subr.bf16.mxu0 0
      %2281 = vmatpush1.bf16.msra.mxu0 0
      %2282 = vmatprep.subr.bf16.mxu0 0
      %2283 = vmatpush1.bf16.msra.mxu0 0
      %2284 = vmatprep.subr.bf16.mxu0 0
      %2285 = vmatpush1.bf16.msra.mxu0 0
      %2286 = vmatprep.mubr.bf16.mxu0 0
      %2287 = vmatmul.mubr.bf16.gmra.mrb[0].mxu0 %v2252
      %v2288 = vpop.f32.mrb[0].mxu0
      %v2289 = vadd.f32 0.0, %v2288
      %v2290 = vpop.f32.mrb[0].mxu0
      %v2291 = vpop.f32.mrb[0].mxu0
      %v2292 = vpop.f32.mrb[0].mxu0
      %2293 = vdwg.mxu0
      %v2294 = vadd.f32 %v1900, %v2289
      %v2295 = vadd.f32 %v2294, %v720
      %v2296 = vadd.f32 %v641, %v2295
      %v2297 = vld [vmem:[%s14] sm:$0x1]
      %v2298 = vld [vmem:[%s15] sm:$0x1]
      %v2299 = vsel %vm647, %v2296, 0.0
      %2300 = vadd.xlane.f32.xlu0 %v2299
      %v2301 = vpop.xlane.xlu0 %2300
      %v2302 = vmul.f32 %v2301, %v651
      %v2303 = vsub.f32 %v2296, %v2302
      %v2304 = vmul.f32 %v2303, %v2303
      %v2305 = vsel %vm647, %v2304, 0.0
      %2306 = vadd.xlane.f32.xlu0 %v2305
      %v2307 = vpop.xlane.xlu0 %2306
      %v2308 = vmul.f32 %v2307, %v651
      %v2309 = vadd.f32 %v2308, 1e-05
      %v2310 = vrsqrt.pop %v2309
      %v2311 = vmul.f32 %v2303, %v2310
      %v2312 = vmul.f32 %v2311, %v2297
      %v2313 = vadd.f32 %v2312, %v2298
      %v2314 = vld [vmem:[%s16] sm:$0xff]
      %v2315 = vld [vmem:[%s16 + $0x8] sm:$0xff]
      %v2316 = vld [vmem:[%s16 + $0x10] sm:$0xff]
      %v2317 = vld [vmem:[%s16 + $0x18] sm:$0xff]
      %v2318 = vld [vmem:[%s16 + $0x20] sm:$0xff]
      %v2319 = vld [vmem:[%s16 + $0x28] sm:$0xff]
      %v2320 = vld [vmem:[%s16 + $0x30] sm:$0xff]
      %v2321 = vld [vmem:[%s16 + $0x38] sm:$0xff]
      %v2322 = vld [vmem:[%s16 + $0x40] sm:$0xff]
      %v2323 = vld [vmem:[%s16 + $0x48] sm:$0xff]
      %v2324 = vld [vmem:[%s16 + $0x50] sm:$0xff]
      %v2325 = vld [vmem:[%s16 + $0x58] sm:$0xff]
      %v2326 = vld [vmem:[%s16 + $0x60] sm:$0xff]
      %v2327 = vld [vmem:[%s16 + $0x68] sm:$0xff]
      %v2328 = vld [vmem:[%s16 + $0x70] sm:$0xff]
      %v2329 = vld [vmem:[%s16 + $0x78] sm:$0xff]
      %v2330 = vld [vmem:[%s16 + $0x80] sm:$0xff]
      %v2331 = vld [vmem:[%s16 + $0x88] sm:$0xff]
      %v2332 = vld [vmem:[%s16 + $0x90] sm:$0xff]
      %v2333 = vld [vmem:[%s16 + $0x98] sm:$0xff]
      %v2334 = vld [vmem:[%s16 + $0xa0] sm:$0xff]
      %v2335 = vld [vmem:[%s16 + $0xa8] sm:$0xff]
      %v2336 = vld [vmem:[%s16 + $0xb0] sm:$0xff]
      %v2337 = vld [vmem:[%s16 + $0xb8] sm:$0xff]
      %v2338 = vld [vmem:[%s16 + $0xc0] sm:$0xff]
      %v2339 = vld [vmem:[%s16 + $0xc8] sm:$0xff]
      %v2340 = vld [vmem:[%s16 + $0xd0] sm:$0xff]
      %v2341 = vld [vmem:[%s16 + $0xd8] sm:$0xff]
      %v2342 = vld [vmem:[%s16 + $0xe0] sm:$0xff]
      %v2343 = vld [vmem:[%s16 + $0xe8] sm:$0xff]
      %v2344 = vld [vmem:[%s16 + $0xf0] sm:$0xff]
      %v2345 = vld [vmem:[%s16 + $0xf8] sm:$0xff]
      %v2346 = vld [vmem:[%s16 + $0x100] sm:$0xff]
      %v2347 = vld [vmem:[%s16 + $0x108] sm:$0xff]
      %v2348 = vld [vmem:[%s16 + $0x110] sm:$0xff]
      %v2349 = vld [vmem:[%s16 + $0x118] sm:$0xff]
      %v2350 = vld [vmem:[%s16 + $0x120] sm:$0xff]
      %v2351 = vld [vmem:[%s16 + $0x128] sm:$0xff]
      %v2352 = vld [vmem:[%s16 + $0x130] sm:$0xff]
      %v2353 = vld [vmem:[%s16 + $0x138] sm:$0xff]
      %v2354 = vld [vmem:[%s16 + $0x140] sm:$0xff]
      %v2355 = vld [vmem:[%s16 + $0x148] sm:$0xff]
      %v2356 = vld [vmem:[%s16 + $0x150] sm:$0xff]
      %v2357 = vld [vmem:[%s16 + $0x158] sm:$0xff]
      %v2358 = vld [vmem:[%s16 + $0x160] sm:$0xff]
      %v2359 = vld [vmem:[%s16 + $0x168] sm:$0xff]
      %v2360 = vld [vmem:[%s16 + $0x170] sm:$0xff]
      %v2361 = vld [vmem:[%s16 + $0x178] sm:$0xff]
      %v2362 = vld [vmem:[%s16 + $0x180] sm:$0xff]
      %v2363 = vld [vmem:[%s16 + $0x188] sm:$0xff]
      %v2364 = vld [vmem:[%s16 + $0x190] sm:$0xff]
      %v2365 = vld [vmem:[%s16 + $0x198] sm:$0xff]
      %v2366 = vld [vmem:[%s16 + $0x1a0] sm:$0xff]
      %v2367 = vld [vmem:[%s16 + $0x1a8] sm:$0xff]
      %v2368 = vld [vmem:[%s16 + $0x1b0] sm:$0xff]
      %v2369 = vld [vmem:[%s16 + $0x1b8] sm:$0xff]
      %v2370 = vld [vmem:[%s16 + $0x1c0] sm:$0xff]
      %v2371 = vld [vmem:[%s16 + $0x1c8] sm:$0xff]
      %v2372 = vld [vmem:[%s16 + $0x1d0] sm:$0xff]
      %v2373 = vld [vmem:[%s16 + $0x1d8] sm:$0xff]
      %v2374 = vld [vmem:[%s16 + $0x1e0] sm:$0xff]
      %v2375 = vld [vmem:[%s16 + $0x1e8] sm:$0xff]
      %v2376 = vld [vmem:[%s16 + $0x1f0] sm:$0xff]
      %v2377 = vld [vmem:[%s16 + $0x1f8] sm:$0xff]
      %v2378 = vld [vmem:[%s17] sm:$0xf]
      %v2379 = vpack.c.bf16 %v2313, %v2313
      %v2380 = vpack.c.bf16 %v2318, %v2314
      %v2381 = vpack.c.bf16 %v2319, %v2315
      %v2382 = vpack.c.bf16 %v2320, %v2316
      %v2383 = vpack.c.bf16 %v2321, %v2317
      %v2384 = vpack.c.bf16 %v2326, %v2322
      %v2385 = vpack.c.bf16 %v2327, %v2323
      %v2386 = vpack.c.bf16 %v2328, %v2324
      %v2387 = vpack.c.bf16 %v2329, %v2325
      %v2388 = vpack.c.bf16 %v2334, %v2330
      %v2389 = vpack.c.bf16 %v2335, %v2331
      %v2390 = vpack.c.bf16 %v2336, %v2332
      %v2391 = vpack.c.bf16 %v2337, %v2333
      %v2392 = vpack.c.bf16 %v2342, %v2338
      %v2393 = vpack.c.bf16 %v2343, %v2339
      %v2394 = vpack.c.bf16 %v2344, %v2340
      %v2395 = vpack.c.bf16 %v2345, %v2341
      %v2396 = vpack.c.bf16 %v2350, %v2346
      %v2397 = vpack.c.bf16 %v2351, %v2347
      %v2398 = vpack.c.bf16 %v2352, %v2348
      %v2399 = vpack.c.bf16 %v2353, %v2349
      %v2400 = vpack.c.bf16 %v2358, %v2354
      %v2401 = vpack.c.bf16 %v2359, %v2355
      %v2402 = vpack.c.bf16 %v2360, %v2356
      %v2403 = vpack.c.bf16 %v2361, %v2357
      %v2404 = vpack.c.bf16 %v2366, %v2362
      %v2405 = vpack.c.bf16 %v2367, %v2363
      %v2406 = vpack.c.bf16 %v2368, %v2364
      %v2407 = vpack.c.bf16 %v2369, %v2365
      %v2408 = vpack.c.bf16 %v2374, %v2370
      %v2409 = vpack.c.bf16 %v2375, %v2371
      %v2410 = vpack.c.bf16 %v2376, %v2372
      %v2411 = vpack.c.bf16 %v2377, %v2373
      %v2413 = vlaneseq
      %v2414 = vshrl.u32 %v2413, 7
      %v2415 = vsub.s32 0, %v2414
      %v2416 = vrot.slane %v2378, %v2415
      %v2417 = vlaneseq
      %v2418 = vshrl.u32 %v2417, 7
      %v2419 = vsub.s32 1, %v2418
      %v2420 = vrot.slane %v2378, %v2419
      %v2421 = vlaneseq
      %v2422 = vshrl.u32 %v2421, 7
      %v2423 = vsub.s32 2, %v2422
      %v2424 = vrot.slane %v2378, %v2423
      %v2425 = vlaneseq
      %v2426 = vshrl.u32 %v2425, 7
      %v2427 = vsub.s32 3, %v2426
      %v2428 = vrot.slane %v2378, %v2427
      %2433 = vmatprep.subr.bf16.mxu0 %v2381
      %2434 = vmatpush1.bf16.msra.mxu0 %v2380
      %2435 = vmatprep.subr.bf16.mxu0 %v2385
      %2436 = vmatpush1.bf16.msra.mxu0 %v2384
      %2437 = vmatprep.subr.bf16.mxu0 %v2389
      %2438 = vmatpush1.bf16.msra.mxu0 %v2388
      %2439 = vmatprep.subr.bf16.mxu0 %v2393
      %2440 = vmatpush1.bf16.msra.mxu0 %v2392
      %2441 = vmatprep.subr.bf16.mxu0 %v2397
      %2442 = vmatpush1.bf16.msra.mxu0 %v2396
      %2443 = vmatprep.subr.bf16.mxu0 %v2401
      %2444 = vmatpush1.bf16.msra.mxu0 %v2400
      %2445 = vmatprep.subr.bf16.mxu0 %v2405
      %2446 = vmatpush1.bf16.msra.mxu0 %v2404
      %2447 = vmatprep.subr.bf16.mxu0 %v2409
      %2448 = vmatpush1.bf16.msra.mxu0 %v2408
      %2449 = vmatprep.subr.bf16.mxu0 0
      %2450 = vmatpush1.bf16.msra.mxu0 0
      %2451 = vmatprep.subr.bf16.mxu0 0
      %2452 = vmatpush1.bf16.msra.mxu0 0
      %2453 = vmatprep.subr.bf16.mxu0 0
      %2454 = vmatpush1.bf16.msra.mxu0 0
      %2455 = vmatprep.subr.bf16.mxu0 0
      %2456 = vmatpush1.bf16.msra.mxu0 0
      %2457 = vmatprep.subr.bf16.mxu0 0
      %2458 = vmatpush1.bf16.msra.mxu0 0
      %2459 = vmatprep.subr.bf16.mxu0 0
      %2460 = vmatpush1.bf16.msra.mxu0 0
      %2461 = vmatprep.subr.bf16.mxu0 0
      %2462 = vmatpush1.bf16.msra.mxu0 0
      %2463 = vmatprep.subr.bf16.mxu0 0
      %2464 = vmatpush1.bf16.msra.mxu0 0
      %2465 = vmatprep.mubr.bf16.mxu0 0
      %2466 = vmatmul.mubr.bf16.gmra.mrb[0].mxu0 %v2379
      %v2467 = vpop.f32.mrb[0].mxu0
      %v2468 = vadd.f32 %v2416, %v2467
      %v2469 = vpop.f32.mrb[0].mxu0
      %v2470 = vadd.f32 %v2420, %v2469
      %v2471 = vpop.f32.mrb[0].mxu0
      %v2472 = vpop.f32.mrb[0].mxu0
      %2473 = vdwg.mxu0
      %2474 = vmatprep.subr.bf16.mxu0 %v2383
      %2475 = vmatpush1.bf16.msra.mxu0 %v2382
      %2476 = vmatprep.subr.bf16.mxu0 %v2387
      %2477 = vmatpush1.bf16.msra.mxu0 %v2386
      %2478 = vmatprep.subr.bf16.mxu0 %v2391
      %2479 = vmatpush1.bf16.msra.mxu0 %v2390
      %2480 = vmatprep.subr.bf16.mxu0 %v2395
      %2481 = vmatpush1.bf16.msra.mxu0 %v2394
      %2482 = vmatprep.subr.bf16.mxu0 %v2399
      %2483 = vmatpush1.bf16.msra.mxu0 %v2398
      %2484 = vmatprep.subr.bf16.mxu0 %v2403
      %2485 = vmatpush1.bf16.msra.mxu0 %v2402
      %2486 = vmatprep.subr.bf16.mxu0 %v2407
      %2487 = vmatpush1.bf16.msra.mxu0 %v2406
      %2488 = vmatprep.subr.bf16.mxu0 %v2411
      %2489 = vmatpush1.bf16.msra.mxu0 %v2410
      %2490 = vmatprep.subr.bf16.mxu0 0
      %2491 = vmatpush1.bf16.msra.mxu0 0
      %2492 = vmatprep.subr.bf16.mxu0 0
      %2493 = vmatpush1.bf16.msra.mxu0 0
      %2494 = vmatprep.subr.bf16.mxu0 0
      %2495 = vmatpush1.bf16.msra.mxu0 0
      %2496 = vmatprep.subr.bf16.mxu0 0
      %2497 = vmatpush1.bf16.msra.mxu0 0
      %2498 = vmatprep.subr.bf16.mxu0 0
      %2499 = vmatpush1.bf16.msra.mxu0 0
      %2500 = vmatprep.subr.bf16.mxu0 0
      %2501 = vmatpush1.bf16.msra.mxu0 0
      %2502 = vmatprep.subr.bf16.mxu0 0
      %2503 = vmatpush1.bf16.msra.mxu0 0
      %2504 = vmatprep.subr.bf16.mxu0 0
      %2505 = vmatpush1.bf16.msra.mxu0 0
      %2506 = vmatprep.mubr.bf16.mxu0 0
      %2507 = vmatmul.mubr.bf16.gmra.mrb[0].mxu0 %v2379
      %v2508 = vpop.f32.mrb[0].mxu0
      %v2509 = vadd.f32 %v2424, %v2508
      %v2510 = vpop.f32.mrb[0].mxu0
      %v2511 = vadd.f32 %v2428, %v2510
      %v2512 = vpop.f32.mrb[0].mxu0
      %v2513 = vpop.f32.mrb[0].mxu0
      %2514 = vdwg.mxu0
      %v2515 = vmul.f32 %v2468, 1.702
      %v2516 = vmul.f32 %v2470, 1.702
      %v2517 = vmul.f32 %v2509, 1.702
      %v2518 = vmul.f32 %v2511, 1.702
      %v2519 = vxor.u32 %v2515, 2147483648
      %v2520 = vxor.u32 %v2516, 2147483648
      %v2521 = vxor.u32 %v2517, 2147483648
      %v2522 = vxor.u32 %v2518, 2147483648
      %v2523 = vmul.f32 %v2519, 1.442695
      %v2524 = vpow.pop %v2523
      %v2525 = vmul.f32 %v2520, 1.442695
      %v2526 = vpow.pop %v2525
      %v2527 = vmul.f32 %v2521, 1.442695
      %v2528 = vpow.pop %v2527
      %v2529 = vmul.f32 %v2522, 1.442695
      %v2530 = vpow.pop %v2529
      %v2531 = vadd.f32 %v2524, 1.0
      %v2532 = vadd.f32 %v2526, 1.0
      %v2533 = vadd.f32 %v2528, 1.0
      %v2534 = vadd.f32 %v2530, 1.0
      %v2535 = vrcp.pop %v2531
      %v2536 = vmul.f32 1.0, %v2535
      %v2537 = vrcp.pop %v2532
      %v2538 = vmul.f32 1.0, %v2537
      %v2539 = vrcp.pop %v2533
      %v2540 = vmul.f32 1.0, %v2539
      %v2541 = vrcp.pop %v2534
      %v2542 = vmul.f32 1.0, %v2541
      %v2543 = vmul.f32 %v2468, %v2536
      %v2544 = vmul.f32 %v2470, %v2538
      %v2545 = vmul.f32 %v2509, %v2540
      %v2546 = vmul.f32 %v2511, %v2542
      %v2547 = vld [vmem:[%s18] sm:$0xff]
      %v2548 = vld [vmem:[%s18 + $0x8] sm:$0xff]
      %v2549 = vld [vmem:[%s18 + $0x10] sm:$0xff]
      %v2550 = vld [vmem:[%s18 + $0x18] sm:$0xff]
      %v2551 = vld [vmem:[%s18 + $0x20] sm:$0xff]
      %v2552 = vld [vmem:[%s18 + $0x28] sm:$0xff]
      %v2553 = vld [vmem:[%s18 + $0x30] sm:$0xff]
      %v2554 = vld [vmem:[%s18 + $0x38] sm:$0xff]
      %v2555 = vld [vmem:[%s18 + $0x40] sm:$0xff]
      %v2556 = vld [vmem:[%s18 + $0x48] sm:$0xff]
      %v2557 = vld [vmem:[%s18 + $0x50] sm:$0xff]
      %v2558 = vld [vmem:[%s18 + $0x58] sm:$0xff]
      %v2559 = vld [vmem:[%s18 + $0x60] sm:$0xff]
      %v2560 = vld [vmem:[%s18 + $0x68] sm:$0xff]
      %v2561 = vld [vmem:[%s18 + $0x70] sm:$0xff]
      %v2562 = vld [vmem:[%s18 + $0x78] sm:$0xff]
      %v2563 = vld [vmem:[%s18 + $0x80] sm:$0xff]
      %v2564 = vld [vmem:[%s18 + $0x88] sm:$0xff]
      %v2565 = vld [vmem:[%s18 + $0x90] sm:$0xff]
      %v2566 = vld [vmem:[%s18 + $0x98] sm:$0xff]
      %v2567 = vld [vmem:[%s18 + $0xa0] sm:$0xff]
      %v2568 = vld [vmem:[%s18 + $0xa8] sm:$0xff]
      %v2569 = vld [vmem:[%s18 + $0xb0] sm:$0xff]
      %v2570 = vld [vmem:[%s18 + $0xb8] sm:$0xff]
      %v2571 = vld [vmem:[%s18 + $0xc0] sm:$0xff]
      %v2572 = vld [vmem:[%s18 + $0xc8] sm:$0xff]
      %v2573 = vld [vmem:[%s18 + $0xd0] sm:$0xff]
      %v2574 = vld [vmem:[%s18 + $0xd8] sm:$0xff]
      %v2575 = vld [vmem:[%s18 + $0xe0] sm:$0xff]
      %v2576 = vld [vmem:[%s18 + $0xe8] sm:$0xff]
      %v2577 = vld [vmem:[%s18 + $0xf0] sm:$0xff]
      %v2578 = vld [vmem:[%s18 + $0xf8] sm:$0xff]
      %v2579 = vld [vmem:[%s18 + $0x100] sm:$0xff]
      %v2580 = vld [vmem:[%s18 + $0x108] sm:$0xff]
      %v2581 = vld [vmem:[%s18 + $0x110] sm:$0xff]
      %v2582 = vld [vmem:[%s18 + $0x118] sm:$0xff]
      %v2583 = vld [vmem:[%s18 + $0x120] sm:$0xff]
      %v2584 = vld [vmem:[%s18 + $0x128] sm:$0xff]
      %v2585 = vld [vmem:[%s18 + $0x130] sm:$0xff]
      %v2586 = vld [vmem:[%s18 + $0x138] sm:$0xff]
      %v2587 = vld [vmem:[%s18 + $0x140] sm:$0xff]
      %v2588 = vld [vmem:[%s18 + $0x148] sm:$0xff]
      %v2589 = vld [vmem:[%s18 + $0x150] sm:$0xff]
      %v2590 = vld [vmem:[%s18 + $0x158] sm:$0xff]
      %v2591 = vld [vmem:[%s18 + $0x160] sm:$0xff]
      %v2592 = vld [vmem:[%s18 + $0x168] sm:$0xff]
      %v2593 = vld [vmem:[%s18 + $0x170] sm:$0xff]
      %v2594 = vld [vmem:[%s18 + $0x178] sm:$0xff]
      %v2595 = vld [vmem:[%s18 + $0x180] sm:$0xff]
      %v2596 = vld [vmem:[%s18 + $0x188] sm:$0xff]
      %v2597 = vld [vmem:[%s18 + $0x190] sm:$0xff]
      %v2598 = vld [vmem:[%s18 + $0x198] sm:$0xff]
      %v2599 = vld [vmem:[%s18 + $0x1a0] sm:$0xff]
      %v2600 = vld [vmem:[%s18 + $0x1a8] sm:$0xff]
      %v2601 = vld [vmem:[%s18 + $0x1b0] sm:$0xff]
      %v2602 = vld [vmem:[%s18 + $0x1b8] sm:$0xff]
      %v2603 = vld [vmem:[%s18 + $0x1c0] sm:$0xff]
      %v2604 = vld [vmem:[%s18 + $0x1c8] sm:$0xff]
      %v2605 = vld [vmem:[%s18 + $0x1d0] sm:$0xff]
      %v2606 = vld [vmem:[%s18 + $0x1d8] sm:$0xff]
      %v2607 = vld [vmem:[%s18 + $0x1e0] sm:$0xff]
      %v2608 = vld [vmem:[%s18 + $0x1e8] sm:$0xff]
      %v2609 = vld [vmem:[%s18 + $0x1f0] sm:$0xff]
      %v2610 = vld [vmem:[%s18 + $0x1f8] sm:$0xff]
      %v2611 = vld [vmem:[%s19] sm:$0x1]
      %v2612 = vpack.c.bf16 %v2543, %v2543
      %v2613 = vpack.c.bf16 %v2544, %v2544
      %v2614 = vpack.c.bf16 %v2545, %v2545
      %v2615 = vpack.c.bf16 %v2546, %v2546
      %v2616 = vpack.c.bf16 %v2548, %v2547
      %v2617 = vpack.c.bf16 %v2550, %v2549
      %v2618 = vpack.c.bf16 %v2552, %v2551
      %v2619 = vpack.c.bf16 %v2554, %v2553
      %v2620 = vpack.c.bf16 %v2556, %v2555
      %v2621 = vpack.c.bf16 %v2558, %v2557
      %v2622 = vpack.c.bf16 %v2560, %v2559
      %v2623 = vpack.c.bf16 %v2562, %v2561
      %v2624 = vpack.c.bf16 %v2564, %v2563
      %v2625 = vpack.c.bf16 %v2566, %v2565
      %v2626 = vpack.c.bf16 %v2568, %v2567
      %v2627 = vpack.c.bf16 %v2570, %v2569
      %v2628 = vpack.c.bf16 %v2572, %v2571
      %v2629 = vpack.c.bf16 %v2574, %v2573
      %v2630 = vpack.c.bf16 %v2576, %v2575
      %v2631 = vpack.c.bf16 %v2578, %v2577
      %v2632 = vpack.c.bf16 %v2580, %v2579
      %v2633 = vpack.c.bf16 %v2582, %v2581
      %v2634 = vpack.c.bf16 %v2584, %v2583
      %v2635 = vpack.c.bf16 %v2586, %v2585
      %v2636 = vpack.c.bf16 %v2588, %v2587
      %v2637 = vpack.c.bf16 %v2590, %v2589
      %v2638 = vpack.c.bf16 %v2592, %v2591
      %v2639 = vpack.c.bf16 %v2594, %v2593
      %v2640 = vpack.c.bf16 %v2596, %v2595
      %v2641 = vpack.c.bf16 %v2598, %v2597
      %v2642 = vpack.c.bf16 %v2600, %v2599
      %v2643 = vpack.c.bf16 %v2602, %v2601
      %v2644 = vpack.c.bf16 %v2604, %v2603
      %v2645 = vpack.c.bf16 %v2606, %v2605
      %v2646 = vpack.c.bf16 %v2608, %v2607
      %v2647 = vpack.c.bf16 %v2610, %v2609
      %2648 = vmatprep.subr.bf16.mxu0 0
      %2649 = vmatpush1.bf16.msra.mxu0 %v2616
      %2650 = vmatprep.subr.bf16.mxu0 0
      %2651 = vmatpush1.bf16.msra.mxu0 %v2617
      %2652 = vmatprep.subr.bf16.mxu0 0
      %2653 = vmatpush1.bf16.msra.mxu0 %v2618
      %2654 = vmatprep.subr.bf16.mxu0 0
      %2655 = vmatpush1.bf16.msra.mxu0 %v2619
      %2656 = vmatprep.subr.bf16.mxu0 0
      %2657 = vmatpush1.bf16.msra.mxu0 %v2620
      %2658 = vmatprep.subr.bf16.mxu0 0
      %2659 = vmatpush1.bf16.msra.mxu0 %v2621
      %2660 = vmatprep.subr.bf16.mxu0 0
      %2661 = vmatpush1.bf16.msra.mxu0 %v2622
      %2662 = vmatprep.subr.bf16.mxu0 0
      %2663 = vmatpush1.bf16.msra.mxu0 %v2623
      %2664 = vmatprep.subr.bf16.mxu0 0
      %2665 = vmatpush1.bf16.msra.mxu0 %v2624
      %2666 = vmatprep.subr.bf16.mxu0 0
      %2667 = vmatpush1.bf16.msra.mxu0 %v2625
      %2668 = vmatprep.subr.bf16.mxu0 0
      %2669 = vmatpush1.bf16.msra.mxu0 %v2626
      %2670 = vmatprep.subr.bf16.mxu0 0
      %2671 = vmatpush1.bf16.msra.mxu0 %v2627
      %2672 = vmatprep.subr.bf16.mxu0 0
      %2673 = vmatpush1.bf16.msra.mxu0 %v2628
      %2674 = vmatprep.subr.bf16.mxu0 0
      %2675 = vmatpush1.bf16.msra.mxu0 %v2629
      %2676 = vmatprep.subr.bf16.mxu0 0
      %2677 = vmatpush1.bf16.msra.mxu0 %v2630
      %2678 = vmatprep.subr.bf16.mxu0 0
      %2679 = vmatpush1.bf16.msra.mxu0 %v2631
      %2680 = vmatprep.mubr.bf16.mxu0 %v2613
      %2681 = vmatmul.mubr.bf16.gmra.mrb[0].mxu0 %v2612
      %v2682 = vpop.f32.mrb[0].mxu0
      %v2683 = vadd.f32 %v2611, %v2682
      %v2684 = vpop.f32.mrb[0].mxu0
      %v2685 = vpop.f32.mrb[0].mxu0
      %v2686 = vpop.f32.mrb[0].mxu0
      %2687 = vdwg.mxu0
      %2688 = vmatprep.subr.bf16.mxu0 0
      %2689 = vmatpush1.bf16.msra.mxu0 %v2632
      %2690 = vmatprep.subr.bf16.mxu0 0
      %2691 = vmatpush1.bf16.msra.mxu0 %v2633
      %2692 = vmatprep.subr.bf16.mxu0 0
      %2693 = vmatpush1.bf16.msra.mxu0 %v2634
      %2694 = vmatprep.subr.bf16.mxu0 0
      %2695 = vmatpush1.bf16.msra.mxu0 %v2635
      %2696 = vmatprep.subr.bf16.mxu0 0
      %2697 = vmatpush1.bf16.msra.mxu0 %v2636
      %2698 = vmatprep.subr.bf16.mxu0 0
      %2699 = vmatpush1.bf16.msra.mxu0 %v2637
      %2700 = vmatprep.subr.bf16.mxu0 0
      %2701 = vmatpush1.bf16.msra.mxu0 %v2638
      %2702 = vmatprep.subr.bf16.mxu0 0
      %2703 = vmatpush1.bf16.msra.mxu0 %v2639
      %2704 = vmatprep.subr.bf16.mxu0 0
      %2705 = vmatpush1.bf16.msra.mxu0 %v2640
      %2706 = vmatprep.subr.bf16.mxu0 0
      %2707 = vmatpush1.bf16.msra.mxu0 %v2641
      %2708 = vmatprep.subr.bf16.mxu0 0
      %2709 = vmatpush1.bf16.msra.mxu0 %v2642
      %2710 = vmatprep.subr.bf16.mxu0 0
      %2711 = vmatpush1.bf16.msra.mxu0 %v2643
      %2712 = vmatprep.subr.bf16.mxu0 0
      %2713 = vmatpush1.bf16.msra.mxu0 %v2644
      %2714 = vmatprep.subr.bf16.mxu0 0
      %2715 = vmatpush1.bf16.msra.mxu0 %v2645
      %2716 = vmatprep.subr.bf16.mxu0 0
      %2717 = vmatpush1.bf16.msra.mxu0 %v2646
      %2718 = vmatprep.subr.bf16.mxu0 0
      %2719 = vmatpush1.bf16.msra.mxu0 %v2647
      %2720 = vmatprep.mubr.bf16.mxu0 %v2615
      %2721 = vmatmul.mubr.bf16.gmra.mrb[0].mxu0 %v2614
      %v2722 = vpop.f32.mrb[0].mxu0
      %v2723 = vadd.f32 %v2683, %v2722
      %v2724 = vpop.f32.mrb[0].mxu0
      %v2725 = vpop.f32.mrb[0].mxu0
      %v2726 = vpop.f32.mrb[0].mxu0
      %2727 = vdwg.mxu0
      %v2728 = vadd.f32 %v2296, %v2723
      %2729 = vst [vmem:[%s639] sm:$0x1] %v2728
      %p2730 = scmp.lt.s32.totalorder %s31, 1
      %s2731 = scalar_select %p2730, %s31, 1
      %s2732 = scalar_lea.vmem %s20, %s2731
      // Predicated region
      $region101: #{evl_forward.17} parent=99 // pred_check
        %p2733 = pneg %p479
      $region102: #{evl_forward.17} parent=99 // pred_check_branch
        %2735 = sbr.rel (%p2733) target = $region104
      $region103: #{evl_forward.17} parent=99 // pred_region
        _
      $region104: #{evl_forward.17} parent=99 // pred_fallthru
        _
    $region100: #{evl_forward.17} parent=5 // pred_fallthru
      _
    %p2736 = scmp.le.s32.totalorder 2, %s26
    // Predicated region
    $region105: #{evl_forward.17} parent=5 // pred_check
      %p2737 = pneg %p2736
    $region106: #{evl_forward.17} parent=5 // pred_check_branch
      %2739 = sbr.rel (%p2737) target = $region108
    $region107: #{evl_forward.17} parent=5 // pred_region
      %s2740 = ssub.s32 %s26, 2
      // Predicated region
      $region109: #{evl_forward.17} parent=107 // pred_check
        %p2741 = pneg %p485
      $region110: #{evl_forward.17} parent=107 // pred_check_branch
        %2743 = sbr.rel (%p2741) target = $region112
      $region111: #{evl_forward.17} parent=107 // pred_region
        %p2744 = scmp.lt.s32.totalorder %s32, 1
        %s2745 = scalar_select %p2744, %s32, 1
        %s2746 = scalar_lea.vmem %s20, %s2745
      $region112: #{evl_forward.17} parent=107 // pred_fallthru
        _
    $region108: #{evl_forward.17} parent=5 // pred_fallthru
      _
  $region6: #{evl_forward.17} parent=0 // loop_footer
    %s30 = sadd.s32 1, %s26
  $region7: #{evl_forward.17} parent=0 // loop_footer_branch
    %25 = sbr.rel target = $region3
  $region8: #{evl_forward.17} parent=0 // loop_exit
    _

</llo_original>
